<compile_context>
chip_gen: v5e
topology: v5e:2x2
jax: 0.10.0
libtpu: 0.0.40
codegen_flags: <defaults>
</compile_context>

<pallas_src>
import functools
import math

import jax
import jax.numpy as jnp
from jax.experimental import pallas as pl
from jax.experimental.pallas import tpu as pltpu

LN_EPS = 1e-5     # PyTorch nn.LayerNorm default
NEG_INF = -1e9


# ----------------------------------------------------------------------------
# Fused decoder-layer kernel (Bt batch elements per grid step)
# ----------------------------------------------------------------------------
def decoder_layer_kernel(x_ref, enc_ref, smask_ref,
                         lng_ref, lnb_ref,
                         wqkv_s_ref, bqkv_s_ref, wo_s_ref, bo_s_ref,
                         wq_c_ref, bq_c_ref, wkv_c_ref, bkv_c_ref,
                         wo_c_ref, bo_c_ref,
                         wff1_ref, bff1_ref, wff2_ref, bff2_ref,
                         flng_ref, flnb_ref,
                         out_ref, *, num_heads, apply_final_ln):
    f32, bf16 = jnp.float32, jnp.bfloat16

    x = x_ref[...].astype(f32)          # (Bt, S, D) residual stream, f32 math
    enc16 = enc_ref[...]                # (Bt, T, D) bf16
    smask = smask_ref[...]              # (Bt, 1, T) f32 (1.0 = attend)

    Bt, S, D = x.shape
    T = enc16.shape[1]
    H = num_heads
    hd = D // H

    def layer_norm(v, g, b):
        mu = jnp.mean(v, axis=-1, keepdims=True)
        var = jnp.mean(jnp.square(v - mu), axis=-1, keepdims=True)
        return g * (v - mu) * jax.lax.rsqrt(var + LN_EPS) + b

    def attention(q16, k16, v16, keep):
        # q16: (Bt, S, D) bf16, k16/v16: (Bt, Tk, D) bf16, heads packed
        # head-major along the lane dim; keep broadcastable to (Bt, S, Tk).
        # NOTE: 1/sqrt(hd) is already folded into W_q / b_q.
        ctx_heads = []
        for h in range(H):                      # static, small H
            sl = slice(h * hd, (h + 1) * hd)
            s = jnp.einsum('bqk,btk->bqt', q16[:, :, sl], k16[:, :, sl],
                           preferred_element_type=f32)
            s = jnp.where(keep, s, NEG_INF)
            s = s - jnp.max(s, axis=-1, keepdims=True)
            p = jnp.exp(s)
            inv_l = pl.reciprocal(jnp.sum(p, axis=-1, keepdims=True),
                                  approx=True)
            # Denominator folded into the (smaller) PV output.
            ctx = jnp.einsum('bqt,btk->bqk', p.astype(bf16), v16[:, :, sl],
                             preferred_element_type=f32) * inv_l
            ctx_heads.append(ctx.astype(bf16))
        return jnp.concatenate(ctx_heads, axis=-1)        # (Bt, S, D) bf16

    def out_proj(ctx16, wo_ref, bo_ref):
        # Head-sum folded into one lane-dense (Bt*S, D) @ (D, D) matmul.
        o = jnp.dot(ctx16.reshape(Bt * S, D), wo_ref[...],
                    preferred_element_type=f32) + bo_ref[...]
        return o.reshape(Bt, S, D)

    # Masks built in-kernel (a few VPU ops, no O(B*S^2) HBM traffic).
    rows = jax.lax.broadcasted_iota(jnp.int32, (S, S), 0)
    cols = jax.lax.broadcasted_iota(jnp.int32, (S, S), 1)
    causal = (rows >= cols)[None]               # (1, S, S)
    src_keep = smask > 0.0                      # (Bt, 1, T)

    # 1) masked self-attention (pre-LN) + residual ----------------------------
    xn = layer_norm(x, lng_ref[0], lnb_ref[0])
    qkv = (jnp.dot(xn.astype(bf16).reshape(Bt * S, D), wqkv_s_ref[...],
                   preferred_element_type=f32) + bqkv_s_ref[...]).astype(bf16)
    qkv = qkv.reshape(Bt, S, 3 * D)
    ctx = attention(qkv[:, :, 0:D], qkv[:, :, D:2 * D], qkv[:, :, 2 * D:3 * D],
                    causal)
    x = x + out_proj(ctx, wo_s_ref, bo_s_ref)

    # 2) encoder-decoder attention (pre-LN) + residual ------------------------
    xn = layer_norm(x, lng_ref[1], lnb_ref[1])
    q_c = (jnp.dot(xn.astype(bf16).reshape(Bt * S, D), wq_c_ref[...],
                   preferred_element_type=f32) + bq_c_ref[...]).astype(bf16)
    kv = (jnp.dot(enc16.reshape(Bt * T, D), wkv_c_ref[...],
                  preferred_element_type=f32) + bkv_c_ref[...]).astype(bf16)
    q_c = q_c.reshape(Bt, S, D)
    kv = kv.reshape(Bt, T, 2 * D)
    ctx = attention(q_c, kv[:, :, 0:D], kv[:, :, D:2 * D], src_keep)
    x = x + out_proj(ctx, wo_c_ref, bo_c_ref)

    # 3) position-wise FFN (pre-LN) + residual --------------------------------
    xn = layer_norm(x, lng_ref[2], lnb_ref[2])
    h = jnp.dot(xn.astype(bf16).reshape(Bt * S, D), wff1_ref[...],
                preferred_element_type=f32) + bff1_ref[...]
    h = jnp.maximum(h, 0.0).astype(bf16)               # ReLU (relu_dropout = 0)
    y = jnp.dot(h, wff2_ref[...], preferred_element_type=f32) + bff2_ref[...]
    x = x + y.reshape(Bt, S, D)

    # Final output LayerNorm fused into the last layer's epilogue.
    if apply_final_ln:
        x = layer_norm(x, flng_ref[...], flnb_ref[...])

    out_ref[...] = x.astype(out_ref.dtype)


# ----------------------------------------------------------------------------
# Wrapper: BlockSpecs, VMEM budget, pallas_call
# ----------------------------------------------------------------------------
def _choose_batch_block(B, S, *, target_rows=256):
    """Pack batch elements per grid step so matmul M = Bt*S approaches
    `target_rows` (fills MXU rows), but keep >= 2 grid steps when B allows
    (v7x has 2 TensorCores per chip)."""
    divisors = [d for d in range(1, B + 1) if B % d == 0]
    fit = [d for d in divisors if d * S <= target_rows] or [1]
    multi = [d for d in fit if B // d >= 2]
    return max(multi) if multi else max(fit)


def _vmem_limit_bytes(act_block_bytes, weight_bytes, scratch_bytes):
    """Generation-aware scoped-VMEM budget: physical capacity minus headroom,
    never above 100 MiB (v5e/v6e) and ~52 MiB on 64 MiB v7x parts."""
    try:
        phys = int(pltpu.get_tpu_info().vmem_capacity_bytes)
    except Exception:                       # info unavailable: assume v7x worst case
        phys = 64 * 1024 * 1024
    cap = max(32 << 20, min(phys - (12 << 20), 100 << 20))
    need = 2 * act_block_bytes + weight_bytes + scratch_bytes + (4 << 20)
    return int(min(cap, max(need, 32 << 20)))


def decoder_layer(x, enc, src_mask, p, out_ln_g, out_ln_b, *,
                  num_heads, apply_final_ln, out_dtype, batch_block):
    B, S, D = x.shape
    T = enc.shape[1]
    F = p["w_ff1"].shape[1]
    Bt = batch_block
    assert B % Bt == 0

    kernel = functools.partial(decoder_layer_kernel, num_heads=num_heads,
                               apply_final_ln=apply_final_ln)

    operands = (x, enc, src_mask,
                p["ln_g"], p["ln_b"],
                p["w_qkv_self"], p["b_qkv_self"], p["w_o_self"], p["b_o_self"],
                p["w_q_cross"], p["b_q_cross"], p["w_kv_cross"], p["b_kv_cross"],
                p["w_o_cross"], p["b_o_cross"],
                p["w_ff1"], p["b_ff1"], p["w_ff2"], p["b_ff2"],
                out_ln_g, out_ln_b)

    bpe = lambda dt: jnp.dtype(dt).itemsize
    act_block = (Bt * S * D * bpe(x.dtype) + Bt * T * D * bpe(enc.dtype)
                 + Bt * T * bpe(src_mask.dtype) + Bt * S * D * bpe(out_dtype))
    weight_bytes = sum(int(o.nbytes) for o in operands[3:])
    scratch = 4 * Bt * S * (3 * D + max(S, T) + 2 * D) * 4   # rough f32 temps

    def build_call(single_buffer_weights):
        c2 = lambda b: (0, 0)
        c3 = lambda b: (0, 0, 0)
        if single_buffer_weights:
            # Constant-index weight blocks need no double buffer.
            w2 = lambda r, c: pl.BlockSpec((r, c), c2,
                                           pipeline_mode=pl.Buffered(1))
            w3 = lambda a, r, c: pl.BlockSpec((a, r, c), c3,
                                              pipeline_mode=pl.Buffered(1))
            w_mult = 1
        else:
            w2 = lambda r, c: pl.BlockSpec((r, c), c2)
            w3 = lambda a, r, c: pl.BlockSpec((a, r, c), c3)
            w_mult = 2

        in_specs = [
            pl.BlockSpec((Bt, S, D), lambda b: (b, 0, 0)),   # x (bf16)
            pl.BlockSpec((Bt, T, D), lambda b: (b, 0, 0)),   # encoder outputs
            pl.BlockSpec((Bt, 1, T), lambda b: (b, 0, 0)),   # src_mask (tiny)
            w3(3, 1, D), w3(3, 1, D),                        # pre-LN gamma/beta
            w2(D, 3 * D), w2(1, 3 * D),                      # self-attn fused Wqkv/b
            w2(D, D), w2(1, D),                              # self-attn Wo/bo
            w2(D, D), w2(1, D),                              # cross-attn Wq/bq
            w2(D, 2 * D), w2(1, 2 * D),                      # cross-attn fused Wkv/b
            w2(D, D), w2(1, D),                              # cross-attn Wo/bo
            w2(D, F), w2(1, F),                              # FFN W1/b1
            w2(F, D), w2(1, D),                              # FFN W2/b2
            w2(1, D), w2(1, D),                              # final LN gamma/beta
        ]
        vmem_limit = _vmem_limit_bytes(act_block, w_mult * weight_bytes, scratch)
        return pl.pallas_call(
            kernel,
            out_shape=jax.ShapeDtypeStruct((B, S, D), out_dtype),
            grid=(B // Bt,),
            in_specs=in_specs,
            out_specs=pl.BlockSpec((Bt, S, D), lambda b: (b, 0, 0)),
            compiler_params=pltpu.CompilerParams(
                dimension_semantics=("parallel",),
                vmem_limit_bytes=vmem_limit),
        )

    try:
        return build_call(True)(*operands)
    except Exception:
        # Fallback for JAX builds without pl.Buffered(1) single-buffering.
        return build_call(False)(*operands)


# ----------------------------------------------------------------------------
# Parameter construction (deterministic, synthetic) + full forward
# ----------------------------------------------------------------------------
def sinusoidal_pe(max_len, d_model):
    assert d_model % 2 == 0, "sinusoidal PE assumes even d_model"
    pos = jnp.arange(max_len, dtype=jnp.float32)[:, None]
    i = jnp.arange(d_model // 2, dtype=jnp.float32)[None, :]
    angle = pos / jnp.power(10000.0, (2.0 * i) / d_model)
    pe = jnp.zeros((max_len, d_model), jnp.float32)
    pe = pe.at[:, 0::2].set(jnp.sin(angle))
    pe = pe.at[:, 1::2].set(jnp.cos(angle))
    return pe


def init_params(key, *, vocab, d_model, d_ff, num_heads, num_layers):
    assert d_model % num_heads == 0
    hd = d_model // num_heads
    scale = 1.0 / math.sqrt(hd)          # folded into W_q (b_q is zero)

    def normal(k, shape):
        return 0.02 * jax.random.normal(k, shape, dtype=jnp.float32)

    params = {
        "embedding": normal(jax.random.fold_in(key, 0), (vocab, d_model)),
        "out_ln_g": jnp.ones((1, d_model), jnp.float32),
        "out_ln_b": jnp.zeros((1, d_model), jnp.float32),
        "layers": [],
    }
    for l in range(num_layers):
        k = jax.random.fold_in(key, 100 + l)
        ks = jax.random.split(k, 10)
        wq_s = normal(ks[0], (d_model, d_model)) * scale
        wk_s = normal(ks[1], (d_model, d_model))
        wv_s = normal(ks[2], (d_model, d_model))
        wq_c = normal(ks[3], (d_model, d_model)) * scale
        wk_c = normal(ks[4], (d_model, d_model))
        wv_c = normal(ks[5], (d_model, d_model))
        params["layers"].append({
            "ln_g": jnp.ones((3, 1, d_model), jnp.float32),
            "ln_b": jnp.zeros((3, 1, d_model), jnp.float32),
            # Fused, head-major-column Q|K|V weights, bf16 for MXU + HBM BW.
            "w_qkv_self": jnp.concatenate([wq_s, wk_s, wv_s], axis=1)
                              .astype(jnp.bfloat16),
            "b_qkv_self": jnp.zeros((1, 3 * d_model), jnp.float32),
            "w_o_self": normal(ks[6], (d_model, d_model)).astype(jnp.bfloat16),
            "b_o_self": jnp.zeros((1, d_model), jnp.float32),
            "w_q_cross": wq_c.astype(jnp.bfloat16),
            "b_q_cross": jnp.zeros((1, d_model), jnp.float32),
            "w_kv_cross": jnp.concatenate([wk_c, wv_c], axis=1)
                              .astype(jnp.bfloat16),
            "b_kv_cross": jnp.zeros((1, 2 * d_model), jnp.float32),
            "w_o_cross": normal(ks[7], (d_model, d_model)).astype(jnp.bfloat16),
            "b_o_cross": jnp.zeros((1, d_model), jnp.float32),
            "w_ff1": normal(ks[8], (d_model, d_ff)).astype(jnp.bfloat16),
            "b_ff1": jnp.zeros((1, d_ff), jnp.float32),
            "w_ff2": normal(ks[9], (d_ff, d_model)).astype(jnp.bfloat16),
            "b_ff2": jnp.zeros((1, d_model), jnp.float32),
        })
    return params


def transformer_decoder_forward(trg, encoder_outputs, src_mask, trg_mask,
                                params, *, num_heads):
    B, S = trg.shape
    d_model = params["embedding"].shape[1]

    # The fused kernel regenerates the standard causal target mask in-kernel;
    # guard against silently ignoring a non-causal custom trg_mask.
    # TODO(synk): consume arbitrary / padded trg_mask patterns in-kernel.
    if trg_mask is not None:
        causal_ref = jnp.tril(jnp.ones((S, S), trg_mask.dtype))
        assert bool(jnp.all(trg_mask == causal_ref)), \
            "only the standard causal trg_mask is supported by the fused kernel"

    x = params["embedding"][trg]                      # token gather (plain JAX glue)
    x = x * math.sqrt(d_model) + sinusoidal_pe(S, d_model)[None, :, :]

    # bf16 inter-layer activation I/O (f32 residual math stays in-kernel).
    x = x.astype(jnp.bfloat16)
    enc16 = encoder_outputs.astype(jnp.bfloat16)

    Bt = _choose_batch_block(B, S)
    n = len(params["layers"])
    assert n >= 1
    for i, lp in enumerate(params["layers"]):
        last = (i == n - 1)
        x = decoder_layer(x, enc16, src_mask, lp,
                          params["out_ln_g"], params["out_ln_b"],
                          num_heads=num_heads,
                          apply_final_ln=last,             # final LN fused in last layer
                          out_dtype=(jnp.float32 if last else jnp.bfloat16),
                          batch_block=Bt)
    return x, None


# ----------------------------------------------------------------------------
if __name__ == "__main__":
    # Small, lane-dense demo config: batch=2, seq=8, d_model=128, num_heads=4,
    # d_ff=256, num_layers=2, tgt_vocab_size=50.
    B, S, T = 2, 8, 8
    D, H, FF = 128, 4, 256
    NUM_LAYERS = 2
    VOCAB = 50

    key = jax.random.PRNGKey(0)
    k_trg, k_enc, k_par = jax.random.split(key, 3)

    trg = jax.random.randint(k_trg, (B, S), 0, VOCAB, dtype=jnp.int32)
    encoder_outputs = jax.random.normal(k_enc, (B, T, D), dtype=jnp.float32)

    # Masks: 1.0 = attend, 0.0 = masked (causal for target, full for source).
    trg_mask = jnp.tril(jnp.ones((S, S), jnp.float32))[None].repeat(B, axis=0)  # (B,S,S)
    src_mask = jnp.ones((B, 1, T), jnp.float32)                                 # (B,1,T)

    params = init_params(k_par, vocab=VOCAB, d_model=D, d_ff=FF,
                         num_heads=H, num_layers=NUM_LAYERS)

    out, _ = transformer_decoder_forward(trg, encoder_outputs, src_mask, trg_mask,
                                         params, num_heads=H)
    out = jax.block_until_ready(out)
    assert out.shape == (B, S, D)
    assert out.dtype == jnp.float32
    assert bool(jnp.all(jnp.isfinite(out)))
    print("KERNEL_OK")
</pallas_src>

<mosaic_0001>
module attributes {stable_mosaic.version = 11 : i64} {
  func.func @decoder_layer_kernel(%arg0: i32, %arg1: memref<1x8x128xbf16, #tpu.memory_space<vmem>>, %arg2: memref<1x8x128xbf16, #tpu.memory_space<vmem>>, %arg3: memref<1x1x8xf32, #tpu.memory_space<vmem>>, %arg4: memref<3x1x128xf32, #tpu.memory_space<vmem>>, %arg5: memref<3x1x128xf32, #tpu.memory_space<vmem>>, %arg6: memref<128x384xbf16, #tpu.memory_space<vmem>>, %arg7: memref<1x384xf32, #tpu.memory_space<vmem>>, %arg8: memref<128x128xbf16, #tpu.memory_space<vmem>>, %arg9: memref<1x128xf32, #tpu.memory_space<vmem>>, %arg10: memref<128x128xbf16, #tpu.memory_space<vmem>>, %arg11: memref<1x128xf32, #tpu.memory_space<vmem>>, %arg12: memref<128x256xbf16, #tpu.memory_space<vmem>>, %arg13: memref<1x256xf32, #tpu.memory_space<vmem>>, %arg14: memref<128x128xbf16, #tpu.memory_space<vmem>>, %arg15: memref<1x128xf32, #tpu.memory_space<vmem>>, %arg16: memref<128x256xbf16, #tpu.memory_space<vmem>>, %arg17: memref<1x256xf32, #tpu.memory_space<vmem>>, %arg18: memref<256x128xbf16, #tpu.memory_space<vmem>>, %arg19: memref<1x128xf32, #tpu.memory_space<vmem>>, %arg20: memref<1x128xf32, #tpu.memory_space<vmem>>, %arg21: memref<1x128xf32, #tpu.memory_space<vmem>>, %arg22: memref<1x8x128xbf16, #tpu.memory_space<vmem>>) attributes {dimension_semantics = [#tpu.dimension_semantics<parallel>], iteration_bounds = array<i64: 2>, scalar_prefetch = 0 : i64, scratch_operands = 0 : i64, tpu.core_type = #tpu.core_type<tc>, window_params = [{transform_indices = @transform_0, window_bounds = array<i64: 1, 8, 128>}, {transform_indices = @transform_1, window_bounds = array<i64: 1, 8, 128>}, {transform_indices = @transform_2, window_bounds = array<i64: 1, 1, 8>}, {pipeline_mode = #tpu.pipeline_mode<synchronous>, transform_indices = @transform_3, window_bounds = array<i64: 3, 1, 128>}, {pipeline_mode = #tpu.pipeline_mode<synchronous>, transform_indices = @transform_4, window_bounds = array<i64: 3, 1, 128>}, {pipeline_mode = #tpu.pipeline_mode<synchronous>, transform_indices = @transform_5, window_bounds = array<i64: 128, 384>}, {pipeline_mode = #tpu.pipeline_mode<synchronous>, transform_indices = @transform_6, window_bounds = array<i64: 1, 384>}, {pipeline_mode = #tpu.pipeline_mode<synchronous>, transform_indices = @transform_7, window_bounds = array<i64: 128, 128>}, {pipeline_mode = #tpu.pipeline_mode<synchronous>, transform_indices = @transform_8, window_bounds = array<i64: 1, 128>}, {pipeline_mode = #tpu.pipeline_mode<synchronous>, transform_indices = @transform_9, window_bounds = array<i64: 128, 128>}, {pipeline_mode = #tpu.pipeline_mode<synchronous>, transform_indices = @transform_10, window_bounds = array<i64: 1, 128>}, {pipeline_mode = #tpu.pipeline_mode<synchronous>, transform_indices = @transform_11, window_bounds = array<i64: 128, 256>}, {pipeline_mode = #tpu.pipeline_mode<synchronous>, transform_indices = @transform_12, window_bounds = array<i64: 1, 256>}, {pipeline_mode = #tpu.pipeline_mode<synchronous>, transform_indices = @transform_13, window_bounds = array<i64: 128, 128>}, {pipeline_mode = #tpu.pipeline_mode<synchronous>, transform_indices = @transform_14, window_bounds = array<i64: 1, 128>}, {pipeline_mode = #tpu.pipeline_mode<synchronous>, transform_indices = @transform_15, window_bounds = array<i64: 128, 256>}, {pipeline_mode = #tpu.pipeline_mode<synchronous>, transform_indices = @transform_16, window_bounds = array<i64: 1, 256>}, {pipeline_mode = #tpu.pipeline_mode<synchronous>, transform_indices = @transform_17, window_bounds = array<i64: 256, 128>}, {pipeline_mode = #tpu.pipeline_mode<synchronous>, transform_indices = @transform_18, window_bounds = array<i64: 1, 128>}, {pipeline_mode = #tpu.pipeline_mode<synchronous>, transform_indices = @transform_19, window_bounds = array<i64: 1, 128>}, {pipeline_mode = #tpu.pipeline_mode<synchronous>, transform_indices = @transform_20, window_bounds = array<i64: 1, 128>}, {transform_indices = @transform_21, window_bounds = array<i64: 1, 8, 128>}]} {
    %c0 = arith.constant 0 : index
    %c0_0 = arith.constant 0 : index
    %c0_1 = arith.constant 0 : index
    %0 = vector.load %arg1[%c0, %c0_0, %c0_1] : memref<1x8x128xbf16, #tpu.memory_space<vmem>>, vector<1x8x128xbf16>
    %1 = arith.extf %0 : vector<1x8x128xbf16> to vector<1x8x128xf32>
    %c0_2 = arith.constant 0 : index
    %c0_3 = arith.constant 0 : index
    %c0_4 = arith.constant 0 : index
    %2 = vector.load %arg2[%c0_2, %c0_3, %c0_4] : memref<1x8x128xbf16, #tpu.memory_space<vmem>>, vector<1x8x128xbf16>
    %c0_5 = arith.constant 0 : index
    %c0_6 = arith.constant 0 : index
    %c0_7 = arith.constant 0 : index
    %3 = vector.load %arg3[%c0_5, %c0_6, %c0_7] : memref<1x1x8xf32, #tpu.memory_space<vmem>>, vector<1x1x8xf32>
    %4 = tpu.iota {dimensions = array<i32: 0>} : vector<8x8xi32>
    %5 = tpu.iota {dimensions = array<i32: 1>} : vector<8x8xi32>
    %6 = arith.cmpi sge, %4, %5 : vector<8x8xi32>
    %7 = vector.shape_cast %6 : vector<8x8xi1> to vector<1x8x8xi1>
    %cst = arith.constant 0.000000e+00 : f32
    %8 = vector.broadcast %cst : f32 to vector<1x1x8xf32>
    %9 = arith.cmpf ogt, %3, %8 : vector<1x1x8xf32>
    %c0_8 = arith.constant 0 : index
    %c0_9 = arith.constant 0 : index
    %c0_10 = arith.constant 0 : index
    %10 = vector.load %arg4[%c0_8, %c0_9, %c0_10] : memref<3x1x128xf32, #tpu.memory_space<vmem>>, vector<1x1x128xf32>
    %11 = vector.shape_cast %10 : vector<1x1x128xf32> to vector<1x128xf32>
    %c0_11 = arith.constant 0 : index
    %c0_12 = arith.constant 0 : index
    %c0_13 = arith.constant 0 : index
    %12 = vector.load %arg5[%c0_11, %c0_12, %c0_13] : memref<3x1x128xf32, #tpu.memory_space<vmem>>, vector<1x1x128xf32>
    %13 = vector.shape_cast %12 : vector<1x1x128xf32> to vector<1x128xf32>
    %cst_14 = arith.constant dense<0.000000e+00> : vector<1x8xf32>
    %14 = vector.multi_reduction <add>, %1, %cst_14 [2] : vector<1x8x128xf32> to vector<1x8xf32>
    %15 = vector.shape_cast %14 : vector<1x8xf32> to vector<1x8x1xf32>
    %cst_15 = arith.constant 1.280000e+02 : f32
    %16 = vector.broadcast %cst_15 : f32 to vector<1x8x1xf32>
    %17 = arith.divf %15, %16 : vector<1x8x1xf32>
    %18 = vector.broadcast %17 : vector<1x8x1xf32> to vector<1x8x128xf32>
    %19 = arith.subf %1, %18 : vector<1x8x128xf32>
    %20 = arith.mulf %19, %19 : vector<1x8x128xf32>
    %cst_16 = arith.constant dense<0.000000e+00> : vector<1x8xf32>
    %21 = vector.multi_reduction <add>, %20, %cst_16 [2] : vector<1x8x128xf32> to vector<1x8xf32>
    %22 = vector.shape_cast %21 : vector<1x8xf32> to vector<1x8x1xf32>
    %cst_17 = arith.constant 1.280000e+02 : f32
    %23 = vector.broadcast %cst_17 : f32 to vector<1x8x1xf32>
    %24 = arith.divf %22, %23 : vector<1x8x1xf32>
    %25 = vector.broadcast %17 : vector<1x8x1xf32> to vector<1x8x128xf32>
    %26 = arith.subf %1, %25 : vector<1x8x128xf32>
    %27 = vector.shape_cast %11 : vector<1x128xf32> to vector<1x1x128xf32>
    %28 = vector.broadcast %27 : vector<1x1x128xf32> to vector<1x8x128xf32>
    %29 = arith.mulf %28, %26 : vector<1x8x128xf32>
    %cst_18 = arith.constant 9.99999974E-6 : f32
    %30 = vector.broadcast %cst_18 : f32 to vector<1x8x1xf32>
    %31 = arith.addf %24, %30 : vector<1x8x1xf32>
    %32 = math.rsqrt %31 : vector<1x8x1xf32>
    %33 = vector.broadcast %32 : vector<1x8x1xf32> to vector<1x8x128xf32>
    %34 = arith.mulf %29, %33 : vector<1x8x128xf32>
    %35 = vector.shape_cast %13 : vector<1x128xf32> to vector<1x1x128xf32>
    %36 = vector.broadcast %35 : vector<1x1x128xf32> to vector<1x8x128xf32>
    %37 = arith.addf %34, %36 : vector<1x8x128xf32>
    %38 = arith.truncf %37 : vector<1x8x128xf32> to vector<1x8x128xbf16>
    %39 = vector.shape_cast %38 : vector<1x8x128xbf16> to vector<8x128xbf16>
    %c0_19 = arith.constant 0 : index
    %c0_20 = arith.constant 0 : index
    %40 = vector.load %arg6[%c0_19, %c0_20] : memref<128x384xbf16, #tpu.memory_space<vmem>>, vector<128x384xbf16>
    %cst_21 = arith.constant dense<0.000000e+00> : vector<8x384xf32>
    %41 = tpu.matmul %39, %40, %cst_21 {dimension_numbers = #tpu.dot_dimension_numbers<[1], [0], [0], [1], [0, 0, 1, 1], [], []>} : vector<8x128xbf16>, vector<128x384xbf16>, vector<8x384xf32> -> vector<8x384xf32>
    %c0_22 = arith.constant 0 : index
    %c0_23 = arith.constant 0 : index
    %42 = vector.load %arg7[%c0_22, %c0_23] : memref<1x384xf32, #tpu.memory_space<vmem>>, vector<1x384xf32>
    %43 = vector.broadcast %42 : vector<1x384xf32> to vector<8x384xf32>
    %44 = arith.addf %41, %43 : vector<8x384xf32>
    %45 = arith.truncf %44 : vector<8x384xf32> to vector<8x384xbf16>
    %46 = vector.shape_cast %45 : vector<8x384xbf16> to vector<1x8x384xbf16>
    %47 = vector.extract_strided_slice %46 {offsets = [0, 0, 0], sizes = [1, 8, 128], strides = [1, 1, 1]} : vector<1x8x384xbf16> to vector<1x8x128xbf16>
    %48 = vector.extract_strided_slice %46 {offsets = [0, 0, 128], sizes = [1, 8, 128], strides = [1, 1, 1]} : vector<1x8x384xbf16> to vector<1x8x128xbf16>
    %49 = vector.extract_strided_slice %46 {offsets = [0, 0, 256], sizes = [1, 8, 128], strides = [1, 1, 1]} : vector<1x8x384xbf16> to vector<1x8x128xbf16>
    %50 = vector.extract_strided_slice %47 {offsets = [0, 0, 0], sizes = [1, 8, 32], strides = [1, 1, 1]} : vector<1x8x128xbf16> to vector<1x8x32xbf16>
    %51 = vector.extract_strided_slice %48 {offsets = [0, 0, 0], sizes = [1, 8, 32], strides = [1, 1, 1]} : vector<1x8x128xbf16> to vector<1x8x32xbf16>
    "tpu.trace_start"() <{level = 10 : i32, message = "bqk,btk->bqt"}> : () -> ()
    %cst_24 = arith.constant dense<0.000000e+00> : vector<1x8x8xf32>
    %52 = tpu.matmul %50, %51, %cst_24 {dimension_numbers = #tpu.dot_dimension_numbers<[2], [2], [1], [1], [0, 0, 0, 1, 1, 1], [0], [0]>} : vector<1x8x32xbf16>, vector<1x8x32xbf16>, vector<1x8x8xf32> -> vector<1x8x8xf32>
    %cst_25 = arith.constant -1.000000e+09 : f32
    "tpu.trace_stop"() : () -> ()
    %53 = vector.broadcast %cst_25 : f32 to vector<1x8x8xf32>
    %54 = arith.select %7, %52, %53 : vector<1x8x8xi1>, vector<1x8x8xf32>
    %cst_26 = arith.constant dense<0xFF800000> : vector<1x8xf32>
    %55 = vector.multi_reduction <maximumf>, %54, %cst_26 [2] : vector<1x8x8xf32> to vector<1x8xf32>
    %56 = vector.shape_cast %55 : vector<1x8xf32> to vector<1x8x1xf32>
    %57 = vector.broadcast %56 : vector<1x8x1xf32> to vector<1x8x8xf32>
    %58 = arith.subf %54, %57 : vector<1x8x8xf32>
    %59 = math.exp %58 : vector<1x8x8xf32>
    %cst_27 = arith.constant dense<0.000000e+00> : vector<1x8xf32>
    %60 = vector.multi_reduction <add>, %59, %cst_27 [2] : vector<1x8x8xf32> to vector<1x8xf32>
    %61 = vector.shape_cast %60 : vector<1x8xf32> to vector<1x8x1xf32>
    %62 = tpu.reciprocal %61 {approx = true} : vector<1x8x1xf32> -> vector<1x8x1xf32>
    %63 = arith.truncf %59 : vector<1x8x8xf32> to vector<1x8x8xbf16>
    %64 = vector.extract_strided_slice %49 {offsets = [0, 0, 0], sizes = [1, 8, 32], strides = [1, 1, 1]} : vector<1x8x128xbf16> to vector<1x8x32xbf16>
    "tpu.trace_start"() <{level = 10 : i32, message = "bqt,btk->bqk"}> : () -> ()
    %cst_28 = arith.constant dense<0.000000e+00> : vector<1x8x32xf32>
    %65 = tpu.matmul %63, %64, %cst_28 {dimension_numbers = #tpu.dot_dimension_numbers<[2], [1], [1], [2], [0, 0, 0, 1, 1, 2], [0], [0]>} : vector<1x8x8xbf16>, vector<1x8x32xbf16>, vector<1x8x32xf32> -> vector<1x8x32xf32>
    "tpu.trace_stop"() : () -> ()
    %66 = vector.broadcast %62 : vector<1x8x1xf32> to vector<1x8x32xf32>
    %67 = arith.mulf %65, %66 : vector<1x8x32xf32>
    %68 = arith.truncf %67 : vector<1x8x32xf32> to vector<1x8x32xbf16>
    %69 = vector.extract_strided_slice %47 {offsets = [0, 0, 32], sizes = [1, 8, 32], strides = [1, 1, 1]} : vector<1x8x128xbf16> to vector<1x8x32xbf16>
    %70 = vector.extract_strided_slice %48 {offsets = [0, 0, 32], sizes = [1, 8, 32], strides = [1, 1, 1]} : vector<1x8x128xbf16> to vector<1x8x32xbf16>
    "tpu.trace_start"() <{level = 10 : i32, message = "bqk,btk->bqt"}> : () -> ()
    %cst_29 = arith.constant dense<0.000000e+00> : vector<1x8x8xf32>
    %71 = tpu.matmul %69, %70, %cst_29 {dimension_numbers = #tpu.dot_dimension_numbers<[2], [2], [1], [1], [0, 0, 0, 1, 1, 1], [0], [0]>} : vector<1x8x32xbf16>, vector<1x8x32xbf16>, vector<1x8x8xf32> -> vector<1x8x8xf32>
    %cst_30 = arith.constant -1.000000e+09 : f32
    "tpu.trace_stop"() : () -> ()
    %72 = vector.broadcast %cst_30 : f32 to vector<1x8x8xf32>
    %73 = arith.select %7, %71, %72 : vector<1x8x8xi1>, vector<1x8x8xf32>
    %cst_31 = arith.constant dense<0xFF800000> : vector<1x8xf32>
    %74 = vector.multi_reduction <maximumf>, %73, %cst_31 [2] : vector<1x8x8xf32> to vector<1x8xf32>
    %75 = vector.shape_cast %74 : vector<1x8xf32> to vector<1x8x1xf32>
    %76 = vector.broadcast %75 : vector<1x8x1xf32> to vector<1x8x8xf32>
    %77 = arith.subf %73, %76 : vector<1x8x8xf32>
    %78 = math.exp %77 : vector<1x8x8xf32>
    %cst_32 = arith.constant dense<0.000000e+00> : vector<1x8xf32>
    %79 = vector.multi_reduction <add>, %78, %cst_32 [2] : vector<1x8x8xf32> to vector<1x8xf32>
    %80 = vector.shape_cast %79 : vector<1x8xf32> to vector<1x8x1xf32>
    %81 = tpu.reciprocal %80 {approx = true} : vector<1x8x1xf32> -> vector<1x8x1xf32>
    %82 = arith.truncf %78 : vector<1x8x8xf32> to vector<1x8x8xbf16>
    %83 = vector.extract_strided_slice %49 {offsets = [0, 0, 32], sizes = [1, 8, 32], strides = [1, 1, 1]} : vector<1x8x128xbf16> to vector<1x8x32xbf16>
    "tpu.trace_start"() <{level = 10 : i32, message = "bqt,btk->bqk"}> : () -> ()
    %cst_33 = arith.constant dense<0.000000e+00> : vector<1x8x32xf32>
    %84 = tpu.matmul %82, %83, %cst_33 {dimension_numbers = #tpu.dot_dimension_numbers<[2], [1], [1], [2], [0, 0, 0, 1, 1, 2], [0], [0]>} : vector<1x8x8xbf16>, vector<1x8x32xbf16>, vector<1x8x32xf32> -> vector<1x8x32xf32>
    "tpu.trace_stop"() : () -> ()
    %85 = vector.broadcast %81 : vector<1x8x1xf32> to vector<1x8x32xf32>
    %86 = arith.mulf %84, %85 : vector<1x8x32xf32>
    %87 = arith.truncf %86 : vector<1x8x32xf32> to vector<1x8x32xbf16>
    %88 = vector.extract_strided_slice %47 {offsets = [0, 0, 64], sizes = [1, 8, 32], strides = [1, 1, 1]} : vector<1x8x128xbf16> to vector<1x8x32xbf16>
    %89 = vector.extract_strided_slice %48 {offsets = [0, 0, 64], sizes = [1, 8, 32], strides = [1, 1, 1]} : vector<1x8x128xbf16> to vector<1x8x32xbf16>
    "tpu.trace_start"() <{level = 10 : i32, message = "bqk,btk->bqt"}> : () -> ()
    %cst_34 = arith.constant dense<0.000000e+00> : vector<1x8x8xf32>
    %90 = tpu.matmul %88, %89, %cst_34 {dimension_numbers = #tpu.dot_dimension_numbers<[2], [2], [1], [1], [0, 0, 0, 1, 1, 1], [0], [0]>} : vector<1x8x32xbf16>, vector<1x8x32xbf16>, vector<1x8x8xf32> -> vector<1x8x8xf32>
    %cst_35 = arith.constant -1.000000e+09 : f32
    "tpu.trace_stop"() : () -> ()
    %91 = vector.broadcast %cst_35 : f32 to vector<1x8x8xf32>
    %92 = arith.select %7, %90, %91 : vector<1x8x8xi1>, vector<1x8x8xf32>
    %cst_36 = arith.constant dense<0xFF800000> : vector<1x8xf32>
    %93 = vector.multi_reduction <maximumf>, %92, %cst_36 [2] : vector<1x8x8xf32> to vector<1x8xf32>
    %94 = vector.shape_cast %93 : vector<1x8xf32> to vector<1x8x1xf32>
    %95 = vector.broadcast %94 : vector<1x8x1xf32> to vector<1x8x8xf32>
    %96 = arith.subf %92, %95 : vector<1x8x8xf32>
    %97 = math.exp %96 : vector<1x8x8xf32>
    %cst_37 = arith.constant dense<0.000000e+00> : vector<1x8xf32>
    %98 = vector.multi_reduction <add>, %97, %cst_37 [2] : vector<1x8x8xf32> to vector<1x8xf32>
    %99 = vector.shape_cast %98 : vector<1x8xf32> to vector<1x8x1xf32>
    %100 = tpu.reciprocal %99 {approx = true} : vector<1x8x1xf32> -> vector<1x8x1xf32>
    %101 = arith.truncf %97 : vector<1x8x8xf32> to vector<1x8x8xbf16>
    %102 = vector.extract_strided_slice %49 {offsets = [0, 0, 64], sizes = [1, 8, 32], strides = [1, 1, 1]} : vector<1x8x128xbf16> to vector<1x8x32xbf16>
    "tpu.trace_start"() <{level = 10 : i32, message = "bqt,btk->bqk"}> : () -> ()
    %cst_38 = arith.constant dense<0.000000e+00> : vector<1x8x32xf32>
    %103 = tpu.matmul %101, %102, %cst_38 {dimension_numbers = #tpu.dot_dimension_numbers<[2], [1], [1], [2], [0, 0, 0, 1, 1, 2], [0], [0]>} : vector<1x8x8xbf16>, vector<1x8x32xbf16>, vector<1x8x32xf32> -> vector<1x8x32xf32>
    "tpu.trace_stop"() : () -> ()
    %104 = vector.broadcast %100 : vector<1x8x1xf32> to vector<1x8x32xf32>
    %105 = arith.mulf %103, %104 : vector<1x8x32xf32>
    %106 = arith.truncf %105 : vector<1x8x32xf32> to vector<1x8x32xbf16>
    %107 = vector.extract_strided_slice %47 {offsets = [0, 0, 96], sizes = [1, 8, 32], strides = [1, 1, 1]} : vector<1x8x128xbf16> to vector<1x8x32xbf16>
    %108 = vector.extract_strided_slice %48 {offsets = [0, 0, 96], sizes = [1, 8, 32], strides = [1, 1, 1]} : vector<1x8x128xbf16> to vector<1x8x32xbf16>
    "tpu.trace_start"() <{level = 10 : i32, message = "bqk,btk->bqt"}> : () -> ()
    %cst_39 = arith.constant dense<0.000000e+00> : vector<1x8x8xf32>
    %109 = tpu.matmul %107, %108, %cst_39 {dimension_numbers = #tpu.dot_dimension_numbers<[2], [2], [1], [1], [0, 0, 0, 1, 1, 1], [0], [0]>} : vector<1x8x32xbf16>, vector<1x8x32xbf16>, vector<1x8x8xf32> -> vector<1x8x8xf32>
    %cst_40 = arith.constant -1.000000e+09 : f32
    "tpu.trace_stop"() : () -> ()
    %110 = vector.broadcast %cst_40 : f32 to vector<1x8x8xf32>
    %111 = arith.select %7, %109, %110 : vector<1x8x8xi1>, vector<1x8x8xf32>
    %cst_41 = arith.constant dense<0xFF800000> : vector<1x8xf32>
    %112 = vector.multi_reduction <maximumf>, %111, %cst_41 [2] : vector<1x8x8xf32> to vector<1x8xf32>
    %113 = vector.shape_cast %112 : vector<1x8xf32> to vector<1x8x1xf32>
    %114 = vector.broadcast %113 : vector<1x8x1xf32> to vector<1x8x8xf32>
    %115 = arith.subf %111, %114 : vector<1x8x8xf32>
    %116 = math.exp %115 : vector<1x8x8xf32>
    %cst_42 = arith.constant dense<0.000000e+00> : vector<1x8xf32>
    %117 = vector.multi_reduction <add>, %116, %cst_42 [2] : vector<1x8x8xf32> to vector<1x8xf32>
    %118 = vector.shape_cast %117 : vector<1x8xf32> to vector<1x8x1xf32>
    %119 = tpu.reciprocal %118 {approx = true} : vector<1x8x1xf32> -> vector<1x8x1xf32>
    %120 = arith.truncf %116 : vector<1x8x8xf32> to vector<1x8x8xbf16>
    %121 = vector.extract_strided_slice %49 {offsets = [0, 0, 96], sizes = [1, 8, 32], strides = [1, 1, 1]} : vector<1x8x128xbf16> to vector<1x8x32xbf16>
    "tpu.trace_start"() <{level = 10 : i32, message = "bqt,btk->bqk"}> : () -> ()
    %cst_43 = arith.constant dense<0.000000e+00> : vector<1x8x32xf32>
    %122 = tpu.matmul %120, %121, %cst_43 {dimension_numbers = #tpu.dot_dimension_numbers<[2], [1], [1], [2], [0, 0, 0, 1, 1, 2], [0], [0]>} : vector<1x8x8xbf16>, vector<1x8x32xbf16>, vector<1x8x32xf32> -> vector<1x8x32xf32>
    "tpu.trace_stop"() : () -> ()
    %123 = vector.broadcast %119 : vector<1x8x1xf32> to vector<1x8x32xf32>
    %124 = arith.mulf %122, %123 : vector<1x8x32xf32>
    %125 = arith.truncf %124 : vector<1x8x32xf32> to vector<1x8x32xbf16>
    %126 = tpu.concatenate %68, %87, %106, %125 in 2 : vector<1x8x32xbf16>, vector<1x8x32xbf16>, vector<1x8x32xbf16>, vector<1x8x32xbf16> -> vector<1x8x128xbf16>
    %127 = vector.shape_cast %126 : vector<1x8x128xbf16> to vector<8x128xbf16>
    %c0_44 = arith.constant 0 : index
    %c0_45 = arith.constant 0 : index
    %128 = vector.load %arg8[%c0_44, %c0_45] : memref<128x128xbf16, #tpu.memory_space<vmem>>, vector<128x128xbf16>
    %cst_46 = arith.constant dense<0.000000e+00> : vector<8x128xf32>
    %129 = tpu.matmul %127, %128, %cst_46 {dimension_numbers = #tpu.dot_dimension_numbers<[1], [0], [0], [1], [0, 0, 1, 1], [], []>} : vector<8x128xbf16>, vector<128x128xbf16>, vector<8x128xf32> -> vector<8x128xf32>
    %c0_47 = arith.constant 0 : index
    %c0_48 = arith.constant 0 : index
    %130 = vector.load %arg9[%c0_47, %c0_48] : memref<1x128xf32, #tpu.memory_space<vmem>>, vector<1x128xf32>
    %131 = vector.broadcast %130 : vector<1x128xf32> to vector<8x128xf32>
    %132 = arith.addf %129, %131 : vector<8x128xf32>
    %133 = vector.shape_cast %132 : vector<8x128xf32> to vector<1x8x128xf32>
    %134 = arith.addf %1, %133 : vector<1x8x128xf32>
    %c1 = arith.constant 1 : index
    %c0_49 = arith.constant 0 : index
    %c0_50 = arith.constant 0 : index
    %135 = vector.load %arg4[%c1, %c0_49, %c0_50] : memref<3x1x128xf32, #tpu.memory_space<vmem>>, vector<1x1x128xf32>
    %136 = vector.shape_cast %135 : vector<1x1x128xf32> to vector<1x128xf32>
    %c1_51 = arith.constant 1 : index
    %c0_52 = arith.constant 0 : index
    %c0_53 = arith.constant 0 : index
    %137 = vector.load %arg5[%c1_51, %c0_52, %c0_53] : memref<3x1x128xf32, #tpu.memory_space<vmem>>, vector<1x1x128xf32>
    %138 = vector.shape_cast %137 : vector<1x1x128xf32> to vector<1x128xf32>
    %cst_54 = arith.constant dense<0.000000e+00> : vector<1x8xf32>
    %139 = vector.multi_reduction <add>, %134, %cst_54 [2] : vector<1x8x128xf32> to vector<1x8xf32>
    %140 = vector.shape_cast %139 : vector<1x8xf32> to vector<1x8x1xf32>
    %cst_55 = arith.constant 1.280000e+02 : f32
    %141 = vector.broadcast %cst_55 : f32 to vector<1x8x1xf32>
    %142 = arith.divf %140, %141 : vector<1x8x1xf32>
    %143 = vector.broadcast %142 : vector<1x8x1xf32> to vector<1x8x128xf32>
    %144 = arith.subf %134, %143 : vector<1x8x128xf32>
    %145 = arith.mulf %144, %144 : vector<1x8x128xf32>
    %cst_56 = arith.constant dense<0.000000e+00> : vector<1x8xf32>
    %146 = vector.multi_reduction <add>, %145, %cst_56 [2] : vector<1x8x128xf32> to vector<1x8xf32>
    %147 = vector.shape_cast %146 : vector<1x8xf32> to vector<1x8x1xf32>
    %cst_57 = arith.constant 1.280000e+02 : f32
    %148 = vector.broadcast %cst_57 : f32 to vector<1x8x1xf32>
    %149 = arith.divf %147, %148 : vector<1x8x1xf32>
    %150 = vector.broadcast %142 : vector<1x8x1xf32> to vector<1x8x128xf32>
    %151 = arith.subf %134, %150 : vector<1x8x128xf32>
    %152 = vector.shape_cast %136 : vector<1x128xf32> to vector<1x1x128xf32>
    %153 = vector.broadcast %152 : vector<1x1x128xf32> to vector<1x8x128xf32>
    %154 = arith.mulf %153, %151 : vector<1x8x128xf32>
    %cst_58 = arith.constant 9.99999974E-6 : f32
    %155 = vector.broadcast %cst_58 : f32 to vector<1x8x1xf32>
    %156 = arith.addf %149, %155 : vector<1x8x1xf32>
    %157 = math.rsqrt %156 : vector<1x8x1xf32>
    %158 = vector.broadcast %157 : vector<1x8x1xf32> to vector<1x8x128xf32>
    %159 = arith.mulf %154, %158 : vector<1x8x128xf32>
    %160 = vector.shape_cast %138 : vector<1x128xf32> to vector<1x1x128xf32>
    %161 = vector.broadcast %160 : vector<1x1x128xf32> to vector<1x8x128xf32>
    %162 = arith.addf %159, %161 : vector<1x8x128xf32>
    %163 = arith.truncf %162 : vector<1x8x128xf32> to vector<1x8x128xbf16>
    %164 = vector.shape_cast %163 : vector<1x8x128xbf16> to vector<8x128xbf16>
    %c0_59 = arith.constant 0 : index
    %c0_60 = arith.constant 0 : index
    %165 = vector.load %arg10[%c0_59, %c0_60] : memref<128x128xbf16, #tpu.memory_space<vmem>>, vector<128x128xbf16>
    %cst_61 = arith.constant dense<0.000000e+00> : vector<8x128xf32>
    %166 = tpu.matmul %164, %165, %cst_61 {dimension_numbers = #tpu.dot_dimension_numbers<[1], [0], [0], [1], [0, 0, 1, 1], [], []>} : vector<8x128xbf16>, vector<128x128xbf16>, vector<8x128xf32> -> vector<8x128xf32>
    %c0_62 = arith.constant 0 : index
    %c0_63 = arith.constant 0 : index
    %167 = vector.load %arg11[%c0_62, %c0_63] : memref<1x128xf32, #tpu.memory_space<vmem>>, vector<1x128xf32>
    %168 = vector.broadcast %167 : vector<1x128xf32> to vector<8x128xf32>
    %169 = arith.addf %166, %168 : vector<8x128xf32>
    %170 = arith.truncf %169 : vector<8x128xf32> to vector<8x128xbf16>
    %171 = vector.shape_cast %2 : vector<1x8x128xbf16> to vector<8x128xbf16>
    %c0_64 = arith.constant 0 : index
    %c0_65 = arith.constant 0 : index
    %172 = vector.load %arg12[%c0_64, %c0_65] : memref<128x256xbf16, #tpu.memory_space<vmem>>, vector<128x256xbf16>
    %cst_66 = arith.constant dense<0.000000e+00> : vector<8x256xf32>
    %173 = tpu.matmul %171, %172, %cst_66 {dimension_numbers = #tpu.dot_dimension_numbers<[1], [0], [0], [1], [0, 0, 1, 1], [], []>} : vector<8x128xbf16>, vector<128x256xbf16>, vector<8x256xf32> -> vector<8x256xf32>
    %c0_67 = arith.constant 0 : index
    %c0_68 = arith.constant 0 : index
    %174 = vector.load %arg13[%c0_67, %c0_68] : memref<1x256xf32, #tpu.memory_space<vmem>>, vector<1x256xf32>
    %175 = vector.broadcast %174 : vector<1x256xf32> to vector<8x256xf32>
    %176 = arith.addf %173, %175 : vector<8x256xf32>
    %177 = arith.truncf %176 : vector<8x256xf32> to vector<8x256xbf16>
    %178 = vector.shape_cast %170 : vector<8x128xbf16> to vector<1x8x128xbf16>
    %179 = vector.shape_cast %177 : vector<8x256xbf16> to vector<1x8x256xbf16>
    %180 = vector.extract_strided_slice %179 {offsets = [0, 0, 0], sizes = [1, 8, 128], strides = [1, 1, 1]} : vector<1x8x256xbf16> to vector<1x8x128xbf16>
    %181 = vector.extract_strided_slice %179 {offsets = [0, 0, 128], sizes = [1, 8, 128], strides = [1, 1, 1]} : vector<1x8x256xbf16> to vector<1x8x128xbf16>
    %182 = vector.extract_strided_slice %178 {offsets = [0, 0, 0], sizes = [1, 8, 32], strides = [1, 1, 1]} : vector<1x8x128xbf16> to vector<1x8x32xbf16>
    %183 = vector.extract_strided_slice %180 {offsets = [0, 0, 0], sizes = [1, 8, 32], strides = [1, 1, 1]} : vector<1x8x128xbf16> to vector<1x8x32xbf16>
    "tpu.trace_start"() <{level = 10 : i32, message = "bqk,btk->bqt"}> : () -> ()
    %cst_69 = arith.constant dense<0.000000e+00> : vector<1x8x8xf32>
    %184 = tpu.matmul %182, %183, %cst_69 {dimension_numbers = #tpu.dot_dimension_numbers<[2], [2], [1], [1], [0, 0, 0, 1, 1, 1], [0], [0]>} : vector<1x8x32xbf16>, vector<1x8x32xbf16>, vector<1x8x8xf32> -> vector<1x8x8xf32>
    %cst_70 = arith.constant -1.000000e+09 : f32
    "tpu.trace_stop"() : () -> ()
    %185 = vector.shape_cast %9 : vector<1x1x8xi1> to vector<1x1x8xi1>
    %186 = vector.broadcast %185 : vector<1x1x8xi1> to vector<1x8x8xi1>
    %187 = vector.broadcast %cst_70 : f32 to vector<1x8x8xf32>
    %188 = arith.select %186, %184, %187 : vector<1x8x8xi1>, vector<1x8x8xf32>
    %cst_71 = arith.constant dense<0xFF800000> : vector<1x8xf32>
    %189 = vector.multi_reduction <maximumf>, %188, %cst_71 [2] : vector<1x8x8xf32> to vector<1x8xf32>
    %190 = vector.shape_cast %189 : vector<1x8xf32> to vector<1x8x1xf32>
    %191 = vector.broadcast %190 : vector<1x8x1xf32> to vector<1x8x8xf32>
    %192 = arith.subf %188, %191 : vector<1x8x8xf32>
    %193 = math.exp %192 : vector<1x8x8xf32>
    %cst_72 = arith.constant dense<0.000000e+00> : vector<1x8xf32>
    %194 = vector.multi_reduction <add>, %193, %cst_72 [2] : vector<1x8x8xf32> to vector<1x8xf32>
    %195 = vector.shape_cast %194 : vector<1x8xf32> to vector<1x8x1xf32>
    %196 = tpu.reciprocal %195 {approx = true} : vector<1x8x1xf32> -> vector<1x8x1xf32>
    %197 = arith.truncf %193 : vector<1x8x8xf32> to vector<1x8x8xbf16>
    %198 = vector.extract_strided_slice %181 {offsets = [0, 0, 0], sizes = [1, 8, 32], strides = [1, 1, 1]} : vector<1x8x128xbf16> to vector<1x8x32xbf16>
    "tpu.trace_start"() <{level = 10 : i32, message = "bqt,btk->bqk"}> : () -> ()
    %cst_73 = arith.constant dense<0.000000e+00> : vector<1x8x32xf32>
    %199 = tpu.matmul %197, %198, %cst_73 {dimension_numbers = #tpu.dot_dimension_numbers<[2], [1], [1], [2], [0, 0, 0, 1, 1, 2], [0], [0]>} : vector<1x8x8xbf16>, vector<1x8x32xbf16>, vector<1x8x32xf32> -> vector<1x8x32xf32>
    "tpu.trace_stop"() : () -> ()
    %200 = vector.broadcast %196 : vector<1x8x1xf32> to vector<1x8x32xf32>
    %201 = arith.mulf %199, %200 : vector<1x8x32xf32>
    %202 = arith.truncf %201 : vector<1x8x32xf32> to vector<1x8x32xbf16>
    %203 = vector.extract_strided_slice %178 {offsets = [0, 0, 32], sizes = [1, 8, 32], strides = [1, 1, 1]} : vector<1x8x128xbf16> to vector<1x8x32xbf16>
    %204 = vector.extract_strided_slice %180 {offsets = [0, 0, 32], sizes = [1, 8, 32], strides = [1, 1, 1]} : vector<1x8x128xbf16> to vector<1x8x32xbf16>
    "tpu.trace_start"() <{level = 10 : i32, message = "bqk,btk->bqt"}> : () -> ()
    %cst_74 = arith.constant dense<0.000000e+00> : vector<1x8x8xf32>
    %205 = tpu.matmul %203, %204, %cst_74 {dimension_numbers = #tpu.dot_dimension_numbers<[2], [2], [1], [1], [0, 0, 0, 1, 1, 1], [0], [0]>} : vector<1x8x32xbf16>, vector<1x8x32xbf16>, vector<1x8x8xf32> -> vector<1x8x8xf32>
    %cst_75 = arith.constant -1.000000e+09 : f32
    "tpu.trace_stop"() : () -> ()
    %206 = vector.shape_cast %9 : vector<1x1x8xi1> to vector<1x1x8xi1>
    %207 = vector.broadcast %206 : vector<1x1x8xi1> to vector<1x8x8xi1>
    %208 = vector.broadcast %cst_75 : f32 to vector<1x8x8xf32>
    %209 = arith.select %207, %205, %208 : vector<1x8x8xi1>, vector<1x8x8xf32>
    %cst_76 = arith.constant dense<0xFF800000> : vector<1x8xf32>
    %210 = vector.multi_reduction <maximumf>, %209, %cst_76 [2] : vector<1x8x8xf32> to vector<1x8xf32>
    %211 = vector.shape_cast %210 : vector<1x8xf32> to vector<1x8x1xf32>
    %212 = vector.broadcast %211 : vector<1x8x1xf32> to vector<1x8x8xf32>
    %213 = arith.subf %209, %212 : vector<1x8x8xf32>
    %214 = math.exp %213 : vector<1x8x8xf32>
    %cst_77 = arith.constant dense<0.000000e+00> : vector<1x8xf32>
    %215 = vector.multi_reduction <add>, %214, %cst_77 [2] : vector<1x8x8xf32> to vector<1x8xf32>
    %216 = vector.shape_cast %215 : vector<1x8xf32> to vector<1x8x1xf32>
    %217 = tpu.reciprocal %216 {approx = true} : vector<1x8x1xf32> -> vector<1x8x1xf32>
    %218 = arith.truncf %214 : vector<1x8x8xf32> to vector<1x8x8xbf16>
    %219 = vector.extract_strided_slice %181 {offsets = [0, 0, 32], sizes = [1, 8, 32], strides = [1, 1, 1]} : vector<1x8x128xbf16> to vector<1x8x32xbf16>
    "tpu.trace_start"() <{level = 10 : i32, message = "bqt,btk->bqk"}> : () -> ()
    %cst_78 = arith.constant dense<0.000000e+00> : vector<1x8x32xf32>
    %220 = tpu.matmul %218, %219, %cst_78 {dimension_numbers = #tpu.dot_dimension_numbers<[2], [1], [1], [2], [0, 0, 0, 1, 1, 2], [0], [0]>} : vector<1x8x8xbf16>, vector<1x8x32xbf16>, vector<1x8x32xf32> -> vector<1x8x32xf32>
    "tpu.trace_stop"() : () -> ()
    %221 = vector.broadcast %217 : vector<1x8x1xf32> to vector<1x8x32xf32>
    %222 = arith.mulf %220, %221 : vector<1x8x32xf32>
    %223 = arith.truncf %222 : vector<1x8x32xf32> to vector<1x8x32xbf16>
    %224 = vector.extract_strided_slice %178 {offsets = [0, 0, 64], sizes = [1, 8, 32], strides = [1, 1, 1]} : vector<1x8x128xbf16> to vector<1x8x32xbf16>
    %225 = vector.extract_strided_slice %180 {offsets = [0, 0, 64], sizes = [1, 8, 32], strides = [1, 1, 1]} : vector<1x8x128xbf16> to vector<1x8x32xbf16>
    "tpu.trace_start"() <{level = 10 : i32, message = "bqk,btk->bqt"}> : () -> ()
    %cst_79 = arith.constant dense<0.000000e+00> : vector<1x8x8xf32>
    %226 = tpu.matmul %224, %225, %cst_79 {dimension_numbers = #tpu.dot_dimension_numbers<[2], [2], [1], [1], [0, 0, 0, 1, 1, 1], [0], [0]>} : vector<1x8x32xbf16>, vector<1x8x32xbf16>, vector<1x8x8xf32> -> vector<1x8x8xf32>
    %cst_80 = arith.constant -1.000000e+09 : f32
    "tpu.trace_stop"() : () -> ()
    %227 = vector.shape_cast %9 : vector<1x1x8xi1> to vector<1x1x8xi1>
    %228 = vector.broadcast %227 : vector<1x1x8xi1> to vector<1x8x8xi1>
    %229 = vector.broadcast %cst_80 : f32 to vector<1x8x8xf32>
    %230 = arith.select %228, %226, %229 : vector<1x8x8xi1>, vector<1x8x8xf32>
    %cst_81 = arith.constant dense<0xFF800000> : vector<1x8xf32>
    %231 = vector.multi_reduction <maximumf>, %230, %cst_81 [2] : vector<1x8x8xf32> to vector<1x8xf32>
    %232 = vector.shape_cast %231 : vector<1x8xf32> to vector<1x8x1xf32>
    %233 = vector.broadcast %232 : vector<1x8x1xf32> to vector<1x8x8xf32>
    %234 = arith.subf %230, %233 : vector<1x8x8xf32>
    %235 = math.exp %234 : vector<1x8x8xf32>
    %cst_82 = arith.constant dense<0.000000e+00> : vector<1x8xf32>
    %236 = vector.multi_reduction <add>, %235, %cst_82 [2] : vector<1x8x8xf32> to vector<1x8xf32>
    %237 = vector.shape_cast %236 : vector<1x8xf32> to vector<1x8x1xf32>
    %238 = tpu.reciprocal %237 {approx = true} : vector<1x8x1xf32> -> vector<1x8x1xf32>
    %239 = arith.truncf %235 : vector<1x8x8xf32> to vector<1x8x8xbf16>
    %240 = vector.extract_strided_slice %181 {offsets = [0, 0, 64], sizes = [1, 8, 32], strides = [1, 1, 1]} : vector<1x8x128xbf16> to vector<1x8x32xbf16>
    "tpu.trace_start"() <{level = 10 : i32, message = "bqt,btk->bqk"}> : () -> ()
    %cst_83 = arith.constant dense<0.000000e+00> : vector<1x8x32xf32>
    %241 = tpu.matmul %239, %240, %cst_83 {dimension_numbers = #tpu.dot_dimension_numbers<[2], [1], [1], [2], [0, 0, 0, 1, 1, 2], [0], [0]>} : vector<1x8x8xbf16>, vector<1x8x32xbf16>, vector<1x8x32xf32> -> vector<1x8x32xf32>
    "tpu.trace_stop"() : () -> ()
    %242 = vector.broadcast %238 : vector<1x8x1xf32> to vector<1x8x32xf32>
    %243 = arith.mulf %241, %242 : vector<1x8x32xf32>
    %244 = arith.truncf %243 : vector<1x8x32xf32> to vector<1x8x32xbf16>
    %245 = vector.extract_strided_slice %178 {offsets = [0, 0, 96], sizes = [1, 8, 32], strides = [1, 1, 1]} : vector<1x8x128xbf16> to vector<1x8x32xbf16>
    %246 = vector.extract_strided_slice %180 {offsets = [0, 0, 96], sizes = [1, 8, 32], strides = [1, 1, 1]} : vector<1x8x128xbf16> to vector<1x8x32xbf16>
    "tpu.trace_start"() <{level = 10 : i32, message = "bqk,btk->bqt"}> : () -> ()
    %cst_84 = arith.constant dense<0.000000e+00> : vector<1x8x8xf32>
    %247 = tpu.matmul %245, %246, %cst_84 {dimension_numbers = #tpu.dot_dimension_numbers<[2], [2], [1], [1], [0, 0, 0, 1, 1, 1], [0], [0]>} : vector<1x8x32xbf16>, vector<1x8x32xbf16>, vector<1x8x8xf32> -> vector<1x8x8xf32>
    %cst_85 = arith.constant -1.000000e+09 : f32
    "tpu.trace_stop"() : () -> ()
    %248 = vector.shape_cast %9 : vector<1x1x8xi1> to vector<1x1x8xi1>
    %249 = vector.broadcast %248 : vector<1x1x8xi1> to vector<1x8x8xi1>
    %250 = vector.broadcast %cst_85 : f32 to vector<1x8x8xf32>
    %251 = arith.select %249, %247, %250 : vector<1x8x8xi1>, vector<1x8x8xf32>
    %cst_86 = arith.constant dense<0xFF800000> : vector<1x8xf32>
    %252 = vector.multi_reduction <maximumf>, %251, %cst_86 [2] : vector<1x8x8xf32> to vector<1x8xf32>
    %253 = vector.shape_cast %252 : vector<1x8xf32> to vector<1x8x1xf32>
    %254 = vector.broadcast %253 : vector<1x8x1xf32> to vector<1x8x8xf32>
    %255 = arith.subf %251, %254 : vector<1x8x8xf32>
    %256 = math.exp %255 : vector<1x8x8xf32>
    %cst_87 = arith.constant dense<0.000000e+00> : vector<1x8xf32>
    %257 = vector.multi_reduction <add>, %256, %cst_87 [2] : vector<1x8x8xf32> to vector<1x8xf32>
    %258 = vector.shape_cast %257 : vector<1x8xf32> to vector<1x8x1xf32>
    %259 = tpu.reciprocal %258 {approx = true} : vector<1x8x1xf32> -> vector<1x8x1xf32>
    %260 = arith.truncf %256 : vector<1x8x8xf32> to vector<1x8x8xbf16>
    %261 = vector.extract_strided_slice %181 {offsets = [0, 0, 96], sizes = [1, 8, 32], strides = [1, 1, 1]} : vector<1x8x128xbf16> to vector<1x8x32xbf16>
    "tpu.trace_start"() <{level = 10 : i32, message = "bqt,btk->bqk"}> : () -> ()
    %cst_88 = arith.constant dense<0.000000e+00> : vector<1x8x32xf32>
    %262 = tpu.matmul %260, %261, %cst_88 {dimension_numbers = #tpu.dot_dimension_numbers<[2], [1], [1], [2], [0, 0, 0, 1, 1, 2], [0], [0]>} : vector<1x8x8xbf16>, vector<1x8x32xbf16>, vector<1x8x32xf32> -> vector<1x8x32xf32>
    "tpu.trace_stop"() : () -> ()
    %263 = vector.broadcast %259 : vector<1x8x1xf32> to vector<1x8x32xf32>
    %264 = arith.mulf %262, %263 : vector<1x8x32xf32>
    %265 = arith.truncf %264 : vector<1x8x32xf32> to vector<1x8x32xbf16>
    %266 = tpu.concatenate %202, %223, %244, %265 in 2 : vector<1x8x32xbf16>, vector<1x8x32xbf16>, vector<1x8x32xbf16>, vector<1x8x32xbf16> -> vector<1x8x128xbf16>
    %267 = vector.shape_cast %266 : vector<1x8x128xbf16> to vector<8x128xbf16>
    %c0_89 = arith.constant 0 : index
    %c0_90 = arith.constant 0 : index
    %268 = vector.load %arg14[%c0_89, %c0_90] : memref<128x128xbf16, #tpu.memory_space<vmem>>, vector<128x128xbf16>
    %cst_91 = arith.constant dense<0.000000e+00> : vector<8x128xf32>
    %269 = tpu.matmul %267, %268, %cst_91 {dimension_numbers = #tpu.dot_dimension_numbers<[1], [0], [0], [1], [0, 0, 1, 1], [], []>} : vector<8x128xbf16>, vector<128x128xbf16>, vector<8x128xf32> -> vector<8x128xf32>
    %c0_92 = arith.constant 0 : index
    %c0_93 = arith.constant 0 : index
    %270 = vector.load %arg15[%c0_92, %c0_93] : memref<1x128xf32, #tpu.memory_space<vmem>>, vector<1x128xf32>
    %271 = vector.broadcast %270 : vector<1x128xf32> to vector<8x128xf32>
    %272 = arith.addf %269, %271 : vector<8x128xf32>
    %273 = vector.shape_cast %272 : vector<8x128xf32> to vector<1x8x128xf32>
    %274 = arith.addf %134, %273 : vector<1x8x128xf32>
    %c2 = arith.constant 2 : index
    %c0_94 = arith.constant 0 : index
    %c0_95 = arith.constant 0 : index
    %275 = vector.load %arg4[%c2, %c0_94, %c0_95] : memref<3x1x128xf32, #tpu.memory_space<vmem>>, vector<1x1x128xf32>
    %276 = vector.shape_cast %275 : vector<1x1x128xf32> to vector<1x128xf32>
    %c2_96 = arith.constant 2 : index
    %c0_97 = arith.constant 0 : index
    %c0_98 = arith.constant 0 : index
    %277 = vector.load %arg5[%c2_96, %c0_97, %c0_98] : memref<3x1x128xf32, #tpu.memory_space<vmem>>, vector<1x1x128xf32>
    %278 = vector.shape_cast %277 : vector<1x1x128xf32> to vector<1x128xf32>
    %cst_99 = arith.constant dense<0.000000e+00> : vector<1x8xf32>
    %279 = vector.multi_reduction <add>, %274, %cst_99 [2] : vector<1x8x128xf32> to vector<1x8xf32>
    %280 = vector.shape_cast %279 : vector<1x8xf32> to vector<1x8x1xf32>
    %cst_100 = arith.constant 1.280000e+02 : f32
    %281 = vector.broadcast %cst_100 : f32 to vector<1x8x1xf32>
    %282 = arith.divf %280, %281 : vector<1x8x1xf32>
    %283 = vector.broadcast %282 : vector<1x8x1xf32> to vector<1x8x128xf32>
    %284 = arith.subf %274, %283 : vector<1x8x128xf32>
    %285 = arith.mulf %284, %284 : vector<1x8x128xf32>
    %cst_101 = arith.constant dense<0.000000e+00> : vector<1x8xf32>
    %286 = vector.multi_reduction <add>, %285, %cst_101 [2] : vector<1x8x128xf32> to vector<1x8xf32>
    %287 = vector.shape_cast %286 : vector<1x8xf32> to vector<1x8x1xf32>
    %cst_102 = arith.constant 1.280000e+02 : f32
    %288 = vector.broadcast %cst_102 : f32 to vector<1x8x1xf32>
    %289 = arith.divf %287, %288 : vector<1x8x1xf32>
    %290 = vector.broadcast %282 : vector<1x8x1xf32> to vector<1x8x128xf32>
    %291 = arith.subf %274, %290 : vector<1x8x128xf32>
    %292 = vector.shape_cast %276 : vector<1x128xf32> to vector<1x1x128xf32>
    %293 = vector.broadcast %292 : vector<1x1x128xf32> to vector<1x8x128xf32>
    %294 = arith.mulf %293, %291 : vector<1x8x128xf32>
    %cst_103 = arith.constant 9.99999974E-6 : f32
    %295 = vector.broadcast %cst_103 : f32 to vector<1x8x1xf32>
    %296 = arith.addf %289, %295 : vector<1x8x1xf32>
    %297 = math.rsqrt %296 : vector<1x8x1xf32>
    %298 = vector.broadcast %297 : vector<1x8x1xf32> to vector<1x8x128xf32>
    %299 = arith.mulf %294, %298 : vector<1x8x128xf32>
    %300 = vector.shape_cast %278 : vector<1x128xf32> to vector<1x1x128xf32>
    %301 = vector.broadcast %300 : vector<1x1x128xf32> to vector<1x8x128xf32>
    %302 = arith.addf %299, %301 : vector<1x8x128xf32>
    %303 = arith.truncf %302 : vector<1x8x128xf32> to vector<1x8x128xbf16>
    %304 = vector.shape_cast %303 : vector<1x8x128xbf16> to vector<8x128xbf16>
    %c0_104 = arith.constant 0 : index
    %c0_105 = arith.constant 0 : index
    %305 = vector.load %arg16[%c0_104, %c0_105] : memref<128x256xbf16, #tpu.memory_space<vmem>>, vector<128x256xbf16>
    %cst_106 = arith.constant dense<0.000000e+00> : vector<8x256xf32>
    %306 = tpu.matmul %304, %305, %cst_106 {dimension_numbers = #tpu.dot_dimension_numbers<[1], [0], [0], [1], [0, 0, 1, 1], [], []>} : vector<8x128xbf16>, vector<128x256xbf16>, vector<8x256xf32> -> vector<8x256xf32>
    %c0_107 = arith.constant 0 : index
    %c0_108 = arith.constant 0 : index
    %307 = vector.load %arg17[%c0_107, %c0_108] : memref<1x256xf32, #tpu.memory_space<vmem>>, vector<1x256xf32>
    %308 = vector.broadcast %307 : vector<1x256xf32> to vector<8x256xf32>
    %309 = arith.addf %306, %308 : vector<8x256xf32>
    %cst_109 = arith.constant 0.000000e+00 : f32
    %310 = vector.broadcast %cst_109 : f32 to vector<8x256xf32>
    %311 = arith.maximumf %309, %310 : vector<8x256xf32>
    %312 = arith.truncf %311 : vector<8x256xf32> to vector<8x256xbf16>
    %c0_110 = arith.constant 0 : index
    %c0_111 = arith.constant 0 : index
    %313 = vector.load %arg18[%c0_110, %c0_111] : memref<256x128xbf16, #tpu.memory_space<vmem>>, vector<256x128xbf16>
    %cst_112 = arith.constant dense<0.000000e+00> : vector<8x128xf32>
    %314 = tpu.matmul %312, %313, %cst_112 {dimension_numbers = #tpu.dot_dimension_numbers<[1], [0], [0], [1], [0, 0, 1, 1], [], []>} : vector<8x256xbf16>, vector<256x128xbf16>, vector<8x128xf32> -> vector<8x128xf32>
    %c0_113 = arith.constant 0 : index
    %c0_114 = arith.constant 0 : index
    %315 = vector.load %arg19[%c0_113, %c0_114] : memref<1x128xf32, #tpu.memory_space<vmem>>, vector<1x128xf32>
    %316 = vector.broadcast %315 : vector<1x128xf32> to vector<8x128xf32>
    %317 = arith.addf %314, %316 : vector<8x128xf32>
    %318 = vector.shape_cast %317 : vector<8x128xf32> to vector<1x8x128xf32>
    %319 = arith.addf %274, %318 : vector<1x8x128xf32>
    %320 = arith.truncf %319 : vector<1x8x128xf32> to vector<1x8x128xbf16>
    %c0_115 = arith.constant 0 : index
    %c0_116 = arith.constant 0 : index
    %c0_117 = arith.constant 0 : index
    %321 = vector.load %arg22[%c0_115, %c0_116, %c0_117] : memref<1x8x128xbf16, #tpu.memory_space<vmem>>, vector<1x8x128xbf16>
    tpu.vector_store %arg22[%c0_115, %c0_116, %c0_117], %320 {strides = array<i32>} : memref<1x8x128xbf16, #tpu.memory_space<vmem>>, vector<1x8x128xbf16>,
    return
  }
  func.func @transform_0(%arg0: i32) -> (i32, i32, i32) {
    %c0_i32 = arith.constant 0 : i32
    %c0_i32_0 = arith.constant 0 : i32
    %c0_i32_1 = arith.constant 0 : i32
    return %arg0, %c0_i32, %c0_i32_0 : i32, i32, i32
  }
  func.func @transform_1(%arg0: i32) -> (i32, i32, i32) {
    %c0_i32 = arith.constant 0 : i32
    %c0_i32_0 = arith.constant 0 : i32
    %c0_i32_1 = arith.constant 0 : i32
    return %arg0, %c0_i32, %c0_i32_0 : i32, i32, i32
  }
  func.func @transform_2(%arg0: i32) -> (i32, i32, i32) {
    %c0_i32 = arith.constant 0 : i32
    %c0_i32_0 = arith.constant 0 : i32
    %c0_i32_1 = arith.constant 0 : i32
    return %arg0, %c0_i32, %c0_i32_0 : i32, i32, i32
  }
  func.func @transform_3(%arg0: i32) -> (i32, i32, i32) {
    %c0_i32 = arith.constant 0 : i32
    %c0_i32_0 = arith.constant 0 : i32
    %c0_i32_1 = arith.constant 0 : i32
    %c0_i32_2 = arith.constant 0 : i32
    return %c0_i32, %c0_i32_0, %c0_i32_1 : i32, i32, i32
  }
  func.func @transform_4(%arg0: i32) -> (i32, i32, i32) {
    %c0_i32 = arith.constant 0 : i32
    %c0_i32_0 = arith.constant 0 : i32
    %c0_i32_1 = arith.constant 0 : i32
    %c0_i32_2 = arith.constant 0 : i32
    return %c0_i32, %c0_i32_0, %c0_i32_1 : i32, i32, i32
  }
  func.func @transform_5(%arg0: i32) -> (i32, i32) {
    %c0_i32 = arith.constant 0 : i32
    %c0_i32_0 = arith.constant 0 : i32
    %c0_i32_1 = arith.constant 0 : i32
    return %c0_i32, %c0_i32_0 : i32, i32
  }
  func.func @transform_6(%arg0: i32) -> (i32, i32) {
    %c0_i32 = arith.constant 0 : i32
    %c0_i32_0 = arith.constant 0 : i32
    %c0_i32_1 = arith.constant 0 : i32
    return %c0_i32, %c0_i32_0 : i32, i32
  }
  func.func @transform_7(%arg0: i32) -> (i32, i32) {
    %c0_i32 = arith.constant 0 : i32
    %c0_i32_0 = arith.constant 0 : i32
    %c0_i32_1 = arith.constant 0 : i32
    return %c0_i32, %c0_i32_0 : i32, i32
  }
  func.func @transform_8(%arg0: i32) -> (i32, i32) {
    %c0_i32 = arith.constant 0 : i32
    %c0_i32_0 = arith.constant 0 : i32
    %c0_i32_1 = arith.constant 0 : i32
    return %c0_i32, %c0_i32_0 : i32, i32
  }
  func.func @transform_9(%arg0: i32) -> (i32, i32) {
    %c0_i32 = arith.constant 0 : i32
    %c0_i32_0 = arith.constant 0 : i32
    %c0_i32_1 = arith.constant 0 : i32
    return %c0_i32, %c0_i32_0 : i32, i32
  }
  func.func @transform_10(%arg0: i32) -> (i32, i32) {
    %c0_i32 = arith.constant 0 : i32
    %c0_i32_0 = arith.constant 0 : i32
    %c0_i32_1 = arith.constant 0 : i32
    return %c0_i32, %c0_i32_0 : i32, i32
  }
  func.func @transform_11(%arg0: i32) -> (i32, i32) {
    %c0_i32 = arith.constant 0 : i32
    %c0_i32_0 = arith.constant 0 : i32
    %c0_i32_1 = arith.constant 0 : i32
    return %c0_i32, %c0_i32_0 : i32, i32
  }
  func.func @transform_12(%arg0: i32) -> (i32, i32) {
    %c0_i32 = arith.constant 0 : i32
    %c0_i32_0 = arith.constant 0 : i32
    %c0_i32_1 = arith.constant 0 : i32
    return %c0_i32, %c0_i32_0 : i32, i32
  }
  func.func @transform_13(%arg0: i32) -> (i32, i32) {
    %c0_i32 = arith.constant 0 : i32
    %c0_i32_0 = arith.constant 0 : i32
    %c0_i32_1 = arith.constant 0 : i32
    return %c0_i32, %c0_i32_0 : i32, i32
  }
  func.func @transform_14(%arg0: i32) -> (i32, i32) {
    %c0_i32 = arith.constant 0 : i32
    %c0_i32_0 = arith.constant 0 : i32
    %c0_i32_1 = arith.constant 0 : i32
    return %c0_i32, %c0_i32_0 : i32, i32
  }
  func.func @transform_15(%arg0: i32) -> (i32, i32) {
    %c0_i32 = arith.constant 0 : i32
    %c0_i32_0 = arith.constant 0 : i32
    %c0_i32_1 = arith.constant 0 : i32
    return %c0_i32, %c0_i32_0 : i32, i32
  }
  func.func @transform_16(%arg0: i32) -> (i32, i32) {
    %c0_i32 = arith.constant 0 : i32
    %c0_i32_0 = arith.constant 0 : i32
    %c0_i32_1 = arith.constant 0 : i32
    return %c0_i32, %c0_i32_0 : i32, i32
  }
  func.func @transform_17(%arg0: i32) -> (i32, i32) {
    %c0_i32 = arith.constant 0 : i32
    %c0_i32_0 = arith.constant 0 : i32
    %c0_i32_1 = arith.constant 0 : i32
    return %c0_i32, %c0_i32_0 : i32, i32
  }
  func.func @transform_18(%arg0: i32) -> (i32, i32) {
    %c0_i32 = arith.constant 0 : i32
    %c0_i32_0 = arith.constant 0 : i32
    %c0_i32_1 = arith.constant 0 : i32
    return %c0_i32, %c0_i32_0 : i32, i32
  }
  func.func @transform_19(%arg0: i32) -> (i32, i32) {
    %c0_i32 = arith.constant 0 : i32
    %c0_i32_0 = arith.constant 0 : i32
    %c0_i32_1 = arith.constant 0 : i32
    return %c0_i32, %c0_i32_0 : i32, i32
  }
  func.func @transform_20(%arg0: i32) -> (i32, i32) {
    %c0_i32 = arith.constant 0 : i32
    %c0_i32_0 = arith.constant 0 : i32
    %c0_i32_1 = arith.constant 0 : i32
    return %c0_i32, %c0_i32_0 : i32, i32
  }
  func.func @transform_21(%arg0: i32) -> (i32, i32, i32) {
    %c0_i32 = arith.constant 0 : i32
    %c0_i32_0 = arith.constant 0 : i32
    %c0_i32_1 = arith.constant 0 : i32
    return %arg0, %c0_i32, %c0_i32_0 : i32, i32, i32
  }
}

module attributes {stable_mosaic.version = 11 : i64} {
  func.func @decoder_layer_kernel(%arg0: i32, %arg1: memref<1x8x128xbf16, #tpu.memory_space<vmem>>, %arg2: memref<1x8x128xbf16, #tpu.memory_space<vmem>>, %arg3: memref<1x1x8xf32, #tpu.memory_space<vmem>>, %arg4: memref<3x1x128xf32, #tpu.memory_space<vmem>>, %arg5: memref<3x1x128xf32, #tpu.memory_space<vmem>>, %arg6: memref<128x384xbf16, #tpu.memory_space<vmem>>, %arg7: memref<1x384xf32, #tpu.memory_space<vmem>>, %arg8: memref<128x128xbf16, #tpu.memory_space<vmem>>, %arg9: memref<1x128xf32, #tpu.memory_space<vmem>>, %arg10: memref<128x128xbf16, #tpu.memory_space<vmem>>, %arg11: memref<1x128xf32, #tpu.memory_space<vmem>>, %arg12: memref<128x256xbf16, #tpu.memory_space<vmem>>, %arg13: memref<1x256xf32, #tpu.memory_space<vmem>>, %arg14: memref<128x128xbf16, #tpu.memory_space<vmem>>, %arg15: memref<1x128xf32, #tpu.memory_space<vmem>>, %arg16: memref<128x256xbf16, #tpu.memory_space<vmem>>, %arg17: memref<1x256xf32, #tpu.memory_space<vmem>>, %arg18: memref<256x128xbf16, #tpu.memory_space<vmem>>, %arg19: memref<1x128xf32, #tpu.memory_space<vmem>>, %arg20: memref<1x128xf32, #tpu.memory_space<vmem>>, %arg21: memref<1x128xf32, #tpu.memory_space<vmem>>, %arg22: memref<1x8x128xbf16, #tpu.memory_space<vmem>>) attributes {dimension_semantics = [#tpu.dimension_semantics<parallel>], iteration_bounds = array<i64: 2>, scalar_prefetch = 0 : i64, scratch_operands = 0 : i64, tpu.core_type = #tpu.core_type<tc>, window_params = [{transform_indices = @transform_0, window_bounds = array<i64: 1, 8, 128>}, {transform_indices = @transform_1, window_bounds = array<i64: 1, 8, 128>}, {transform_indices = @transform_2, window_bounds = array<i64: 1, 1, 8>}, {pipeline_mode = #tpu.pipeline_mode<synchronous>, transform_indices = @transform_3, window_bounds = array<i64: 3, 1, 128>}, {pipeline_mode = #tpu.pipeline_mode<synchronous>, transform_indices = @transform_4, window_bounds = array<i64: 3, 1, 128>}, {pipeline_mode = #tpu.pipeline_mode<synchronous>, transform_indices = @transform_5, window_bounds = array<i64: 128, 384>}, {pipeline_mode = #tpu.pipeline_mode<synchronous>, transform_indices = @transform_6, window_bounds = array<i64: 1, 384>}, {pipeline_mode = #tpu.pipeline_mode<synchronous>, transform_indices = @transform_7, window_bounds = array<i64: 128, 128>}, {pipeline_mode = #tpu.pipeline_mode<synchronous>, transform_indices = @transform_8, window_bounds = array<i64: 1, 128>}, {pipeline_mode = #tpu.pipeline_mode<synchronous>, transform_indices = @transform_9, window_bounds = array<i64: 128, 128>}, {pipeline_mode = #tpu.pipeline_mode<synchronous>, transform_indices = @transform_10, window_bounds = array<i64: 1, 128>}, {pipeline_mode = #tpu.pipeline_mode<synchronous>, transform_indices = @transform_11, window_bounds = array<i64: 128, 256>}, {pipeline_mode = #tpu.pipeline_mode<synchronous>, transform_indices = @transform_12, window_bounds = array<i64: 1, 256>}, {pipeline_mode = #tpu.pipeline_mode<synchronous>, transform_indices = @transform_13, window_bounds = array<i64: 128, 128>}, {pipeline_mode = #tpu.pipeline_mode<synchronous>, transform_indices = @transform_14, window_bounds = array<i64: 1, 128>}, {pipeline_mode = #tpu.pipeline_mode<synchronous>, transform_indices = @transform_15, window_bounds = array<i64: 128, 256>}, {pipeline_mode = #tpu.pipeline_mode<synchronous>, transform_indices = @transform_16, window_bounds = array<i64: 1, 256>}, {pipeline_mode = #tpu.pipeline_mode<synchronous>, transform_indices = @transform_17, window_bounds = array<i64: 256, 128>}, {pipeline_mode = #tpu.pipeline_mode<synchronous>, transform_indices = @transform_18, window_bounds = array<i64: 1, 128>}, {pipeline_mode = #tpu.pipeline_mode<synchronous>, transform_indices = @transform_19, window_bounds = array<i64: 1, 128>}, {pipeline_mode = #tpu.pipeline_mode<synchronous>, transform_indices = @transform_20, window_bounds = array<i64: 1, 128>}, {transform_indices = @transform_21, window_bounds = array<i64: 1, 8, 128>}]} {
    %c0 = arith.constant 0 : index
    %c0_0 = arith.constant 0 : index
    %c0_1 = arith.constant 0 : index
    %0 = vector.load %arg1[%c0, %c0_0, %c0_1] : memref<1x8x128xbf16, #tpu.memory_space<vmem>>, vector<1x8x128xbf16>
    %1 = arith.extf %0 : vector<1x8x128xbf16> to vector<1x8x128xf32>
    %c0_2 = arith.constant 0 : index
    %c0_3 = arith.constant 0 : index
    %c0_4 = arith.constant 0 : index
    %2 = vector.load %arg2[%c0_2, %c0_3, %c0_4] : memref<1x8x128xbf16, #tpu.memory_space<vmem>>, vector<1x8x128xbf16>
    %c0_5 = arith.constant 0 : index
    %c0_6 = arith.constant 0 : index
    %c0_7 = arith.constant 0 : index
    %3 = vector.load %arg3[%c0_5, %c0_6, %c0_7] : memref<1x1x8xf32, #tpu.memory_space<vmem>>, vector<1x1x8xf32>
    %4 = tpu.iota {dimensions = array<i32: 0>} : vector<8x8xi32>
    %5 = tpu.iota {dimensions = array<i32: 1>} : vector<8x8xi32>
    %6 = arith.cmpi sge, %4, %5 : vector<8x8xi32>
    %7 = vector.shape_cast %6 : vector<8x8xi1> to vector<1x8x8xi1>
    %cst = arith.constant 0.000000e+00 : f32
    %8 = vector.broadcast %cst : f32 to vector<1x1x8xf32>
    %9 = arith.cmpf ogt, %3, %8 : vector<1x1x8xf32>
    %c0_8 = arith.constant 0 : index
    %c0_9 = arith.constant 0 : index
    %c0_10 = arith.constant 0 : index
    %10 = vector.load %arg4[%c0_8, %c0_9, %c0_10] : memref<3x1x128xf32, #tpu.memory_space<vmem>>, vector<1x1x128xf32>
    %11 = vector.shape_cast %10 : vector<1x1x128xf32> to vector<1x128xf32>
    %c0_11 = arith.constant 0 : index
    %c0_12 = arith.constant 0 : index
    %c0_13 = arith.constant 0 : index
    %12 = vector.load %arg5[%c0_11, %c0_12, %c0_13] : memref<3x1x128xf32, #tpu.memory_space<vmem>>, vector<1x1x128xf32>
    %13 = vector.shape_cast %12 : vector<1x1x128xf32> to vector<1x128xf32>
    %cst_14 = arith.constant dense<0.000000e+00> : vector<1x8xf32>
    %14 = vector.multi_reduction <add>, %1, %cst_14 [2] : vector<1x8x128xf32> to vector<1x8xf32>
    %15 = vector.shape_cast %14 : vector<1x8xf32> to vector<1x8x1xf32>
    %cst_15 = arith.constant 1.280000e+02 : f32
    %16 = vector.broadcast %cst_15 : f32 to vector<1x8x1xf32>
    %17 = arith.divf %15, %16 : vector<1x8x1xf32>
    %18 = vector.broadcast %17 : vector<1x8x1xf32> to vector<1x8x128xf32>
    %19 = arith.subf %1, %18 : vector<1x8x128xf32>
    %20 = arith.mulf %19, %19 : vector<1x8x128xf32>
    %cst_16 = arith.constant dense<0.000000e+00> : vector<1x8xf32>
    %21 = vector.multi_reduction <add>, %20, %cst_16 [2] : vector<1x8x128xf32> to vector<1x8xf32>
    %22 = vector.shape_cast %21 : vector<1x8xf32> to vector<1x8x1xf32>
    %cst_17 = arith.constant 1.280000e+02 : f32
    %23 = vector.broadcast %cst_17 : f32 to vector<1x8x1xf32>
    %24 = arith.divf %22, %23 : vector<1x8x1xf32>
    %25 = vector.broadcast %17 : vector<1x8x1xf32> to vector<1x8x128xf32>
    %26 = arith.subf %1, %25 : vector<1x8x128xf32>
    %27 = vector.shape_cast %11 : vector<1x128xf32> to vector<1x1x128xf32>
    %28 = vector.broadcast %27 : vector<1x1x128xf32> to vector<1x8x128xf32>
    %29 = arith.mulf %28, %26 : vector<1x8x128xf32>
    %cst_18 = arith.constant 9.99999974E-6 : f32
    %30 = vector.broadcast %cst_18 : f32 to vector<1x8x1xf32>
    %31 = arith.addf %24, %30 : vector<1x8x1xf32>
    %32 = math.rsqrt %31 : vector<1x8x1xf32>
    %33 = vector.broadcast %32 : vector<1x8x1xf32> to vector<1x8x128xf32>
    %34 = arith.mulf %29, %33 : vector<1x8x128xf32>
    %35 = vector.shape_cast %13 : vector<1x128xf32> to vector<1x1x128xf32>
    %36 = vector.broadcast %35 : vector<1x1x128xf32> to vector<1x8x128xf32>
    %37 = arith.addf %34, %36 : vector<1x8x128xf32>
    %38 = arith.truncf %37 : vector<1x8x128xf32> to vector<1x8x128xbf16>
    %39 = vector.shape_cast %38 : vector<1x8x128xbf16> to vector<8x128xbf16>
    %c0_19 = arith.constant 0 : index
    %c0_20 = arith.constant 0 : index
    %40 = vector.load %arg6[%c0_19, %c0_20] : memref<128x384xbf16, #tpu.memory_space<vmem>>, vector<128x384xbf16>
    %cst_21 = arith.constant dense<0.000000e+00> : vector<8x384xf32>
    %41 = tpu.matmul %39, %40, %cst_21 {dimension_numbers = #tpu.dot_dimension_numbers<[1], [0], [0], [1], [0, 0, 1, 1], [], []>} : vector<8x128xbf16>, vector<128x384xbf16>, vector<8x384xf32> -> vector<8x384xf32>
    %c0_22 = arith.constant 0 : index
    %c0_23 = arith.constant 0 : index
    %42 = vector.load %arg7[%c0_22, %c0_23] : memref<1x384xf32, #tpu.memory_space<vmem>>, vector<1x384xf32>
    %43 = vector.broadcast %42 : vector<1x384xf32> to vector<8x384xf32>
    %44 = arith.addf %41, %43 : vector<8x384xf32>
    %45 = arith.truncf %44 : vector<8x384xf32> to vector<8x384xbf16>
    %46 = vector.shape_cast %45 : vector<8x384xbf16> to vector<1x8x384xbf16>
    %47 = vector.extract_strided_slice %46 {offsets = [0, 0, 0], sizes = [1, 8, 128], strides = [1, 1, 1]} : vector<1x8x384xbf16> to vector<1x8x128xbf16>
    %48 = vector.extract_strided_slice %46 {offsets = [0, 0, 128], sizes = [1, 8, 128], strides = [1, 1, 1]} : vector<1x8x384xbf16> to vector<1x8x128xbf16>
    %49 = vector.extract_strided_slice %46 {offsets = [0, 0, 256], sizes = [1, 8, 128], strides = [1, 1, 1]} : vector<1x8x384xbf16> to vector<1x8x128xbf16>
    %50 = vector.extract_strided_slice %47 {offsets = [0, 0, 0], sizes = [1, 8, 32], strides = [1, 1, 1]} : vector<1x8x128xbf16> to vector<1x8x32xbf16>
    %51 = vector.extract_strided_slice %48 {offsets = [0, 0, 0], sizes = [1, 8, 32], strides = [1, 1, 1]} : vector<1x8x128xbf16> to vector<1x8x32xbf16>
    "tpu.trace_start"() <{level = 10 : i32, message = "bqk,btk->bqt"}> : () -> ()
    %cst_24 = arith.constant dense<0.000000e+00> : vector<1x8x8xf32>
    %52 = tpu.matmul %50, %51, %cst_24 {dimension_numbers = #tpu.dot_dimension_numbers<[2], [2], [1], [1], [0, 0, 0, 1, 1, 1], [0], [0]>} : vector<1x8x32xbf16>, vector<1x8x32xbf16>, vector<1x8x8xf32> -> vector<1x8x8xf32>
    %cst_25 = arith.constant -1.000000e+09 : f32
    "tpu.trace_stop"() : () -> ()
    %53 = vector.broadcast %cst_25 : f32 to vector<1x8x8xf32>
    %54 = arith.select %7, %52, %53 : vector<1x8x8xi1>, vector<1x8x8xf32>
    %cst_26 = arith.constant dense<0xFF800000> : vector<1x8xf32>
    %55 = vector.multi_reduction <maximumf>, %54, %cst_26 [2] : vector<1x8x8xf32> to vector<1x8xf32>
    %56 = vector.shape_cast %55 : vector<1x8xf32> to vector<1x8x1xf32>
    %57 = vector.broadcast %56 : vector<1x8x1xf32> to vector<1x8x8xf32>
    %58 = arith.subf %54, %57 : vector<1x8x8xf32>
    %59 = math.exp %58 : vector<1x8x8xf32>
    %cst_27 = arith.constant dense<0.000000e+00> : vector<1x8xf32>
    %60 = vector.multi_reduction <add>, %59, %cst_27 [2] : vector<1x8x8xf32> to vector<1x8xf32>
    %61 = vector.shape_cast %60 : vector<1x8xf32> to vector<1x8x1xf32>
    %62 = tpu.reciprocal %61 {approx = true} : vector<1x8x1xf32> -> vector<1x8x1xf32>
    %63 = arith.truncf %59 : vector<1x8x8xf32> to vector<1x8x8xbf16>
    %64 = vector.extract_strided_slice %49 {offsets = [0, 0, 0], sizes = [1, 8, 32], strides = [1, 1, 1]} : vector<1x8x128xbf16> to vector<1x8x32xbf16>
    "tpu.trace_start"() <{level = 10 : i32, message = "bqt,btk->bqk"}> : () -> ()
    %cst_28 = arith.constant dense<0.000000e+00> : vector<1x8x32xf32>
    %65 = tpu.matmul %63, %64, %cst_28 {dimension_numbers = #tpu.dot_dimension_numbers<[2], [1], [1], [2], [0, 0, 0, 1, 1, 2], [0], [0]>} : vector<1x8x8xbf16>, vector<1x8x32xbf16>, vector<1x8x32xf32> -> vector<1x8x32xf32>
    "tpu.trace_stop"() : () -> ()
    %66 = vector.broadcast %62 : vector<1x8x1xf32> to vector<1x8x32xf32>
    %67 = arith.mulf %65, %66 : vector<1x8x32xf32>
    %68 = arith.truncf %67 : vector<1x8x32xf32> to vector<1x8x32xbf16>
    %69 = vector.extract_strided_slice %47 {offsets = [0, 0, 32], sizes = [1, 8, 32], strides = [1, 1, 1]} : vector<1x8x128xbf16> to vector<1x8x32xbf16>
    %70 = vector.extract_strided_slice %48 {offsets = [0, 0, 32], sizes = [1, 8, 32], strides = [1, 1, 1]} : vector<1x8x128xbf16> to vector<1x8x32xbf16>
    "tpu.trace_start"() <{level = 10 : i32, message = "bqk,btk->bqt"}> : () -> ()
    %cst_29 = arith.constant dense<0.000000e+00> : vector<1x8x8xf32>
    %71 = tpu.matmul %69, %70, %cst_29 {dimension_numbers = #tpu.dot_dimension_numbers<[2], [2], [1], [1], [0, 0, 0, 1, 1, 1], [0], [0]>} : vector<1x8x32xbf16>, vector<1x8x32xbf16>, vector<1x8x8xf32> -> vector<1x8x8xf32>
    %cst_30 = arith.constant -1.000000e+09 : f32
    "tpu.trace_stop"() : () -> ()
    %72 = vector.broadcast %cst_30 : f32 to vector<1x8x8xf32>
    %73 = arith.select %7, %71, %72 : vector<1x8x8xi1>, vector<1x8x8xf32>
    %cst_31 = arith.constant dense<0xFF800000> : vector<1x8xf32>
    %74 = vector.multi_reduction <maximumf>, %73, %cst_31 [2] : vector<1x8x8xf32> to vector<1x8xf32>
    %75 = vector.shape_cast %74 : vector<1x8xf32> to vector<1x8x1xf32>
    %76 = vector.broadcast %75 : vector<1x8x1xf32> to vector<1x8x8xf32>
    %77 = arith.subf %73, %76 : vector<1x8x8xf32>
    %78 = math.exp %77 : vector<1x8x8xf32>
    %cst_32 = arith.constant dense<0.000000e+00> : vector<1x8xf32>
    %79 = vector.multi_reduction <add>, %78, %cst_32 [2] : vector<1x8x8xf32> to vector<1x8xf32>
    %80 = vector.shape_cast %79 : vector<1x8xf32> to vector<1x8x1xf32>
    %81 = tpu.reciprocal %80 {approx = true} : vector<1x8x1xf32> -> vector<1x8x1xf32>
    %82 = arith.truncf %78 : vector<1x8x8xf32> to vector<1x8x8xbf16>
    %83 = vector.extract_strided_slice %49 {offsets = [0, 0, 32], sizes = [1, 8, 32], strides = [1, 1, 1]} : vector<1x8x128xbf16> to vector<1x8x32xbf16>
    "tpu.trace_start"() <{level = 10 : i32, message = "bqt,btk->bqk"}> : () -> ()
    %cst_33 = arith.constant dense<0.000000e+00> : vector<1x8x32xf32>
    %84 = tpu.matmul %82, %83, %cst_33 {dimension_numbers = #tpu.dot_dimension_numbers<[2], [1], [1], [2], [0, 0, 0, 1, 1, 2], [0], [0]>} : vector<1x8x8xbf16>, vector<1x8x32xbf16>, vector<1x8x32xf32> -> vector<1x8x32xf32>
    "tpu.trace_stop"() : () -> ()
    %85 = vector.broadcast %81 : vector<1x8x1xf32> to vector<1x8x32xf32>
    %86 = arith.mulf %84, %85 : vector<1x8x32xf32>
    %87 = arith.truncf %86 : vector<1x8x32xf32> to vector<1x8x32xbf16>
    %88 = vector.extract_strided_slice %47 {offsets = [0, 0, 64], sizes = [1, 8, 32], strides = [1, 1, 1]} : vector<1x8x128xbf16> to vector<1x8x32xbf16>
    %89 = vector.extract_strided_slice %48 {offsets = [0, 0, 64], sizes = [1, 8, 32], strides = [1, 1, 1]} : vector<1x8x128xbf16> to vector<1x8x32xbf16>
    "tpu.trace_start"() <{level = 10 : i32, message = "bqk,btk->bqt"}> : () -> ()
    %cst_34 = arith.constant dense<0.000000e+00> : vector<1x8x8xf32>
    %90 = tpu.matmul %88, %89, %cst_34 {dimension_numbers = #tpu.dot_dimension_numbers<[2], [2], [1], [1], [0, 0, 0, 1, 1, 1], [0], [0]>} : vector<1x8x32xbf16>, vector<1x8x32xbf16>, vector<1x8x8xf32> -> vector<1x8x8xf32>
    %cst_35 = arith.constant -1.000000e+09 : f32
    "tpu.trace_stop"() : () -> ()
    %91 = vector.broadcast %cst_35 : f32 to vector<1x8x8xf32>
    %92 = arith.select %7, %90, %91 : vector<1x8x8xi1>, vector<1x8x8xf32>
    %cst_36 = arith.constant dense<0xFF800000> : vector<1x8xf32>
    %93 = vector.multi_reduction <maximumf>, %92, %cst_36 [2] : vector<1x8x8xf32> to vector<1x8xf32>
    %94 = vector.shape_cast %93 : vector<1x8xf32> to vector<1x8x1xf32>
    %95 = vector.broadcast %94 : vector<1x8x1xf32> to vector<1x8x8xf32>
    %96 = arith.subf %92, %95 : vector<1x8x8xf32>
    %97 = math.exp %96 : vector<1x8x8xf32>
    %cst_37 = arith.constant dense<0.000000e+00> : vector<1x8xf32>
    %98 = vector.multi_reduction <add>, %97, %cst_37 [2] : vector<1x8x8xf32> to vector<1x8xf32>
    %99 = vector.shape_cast %98 : vector<1x8xf32> to vector<1x8x1xf32>
    %100 = tpu.reciprocal %99 {approx = true} : vector<1x8x1xf32> -> vector<1x8x1xf32>
    %101 = arith.truncf %97 : vector<1x8x8xf32> to vector<1x8x8xbf16>
    %102 = vector.extract_strided_slice %49 {offsets = [0, 0, 64], sizes = [1, 8, 32], strides = [1, 1, 1]} : vector<1x8x128xbf16> to vector<1x8x32xbf16>
    "tpu.trace_start"() <{level = 10 : i32, message = "bqt,btk->bqk"}> : () -> ()
    %cst_38 = arith.constant dense<0.000000e+00> : vector<1x8x32xf32>
    %103 = tpu.matmul %101, %102, %cst_38 {dimension_numbers = #tpu.dot_dimension_numbers<[2], [1], [1], [2], [0, 0, 0, 1, 1, 2], [0], [0]>} : vector<1x8x8xbf16>, vector<1x8x32xbf16>, vector<1x8x32xf32> -> vector<1x8x32xf32>
    "tpu.trace_stop"() : () -> ()
    %104 = vector.broadcast %100 : vector<1x8x1xf32> to vector<1x8x32xf32>
    %105 = arith.mulf %103, %104 : vector<1x8x32xf32>
    %106 = arith.truncf %105 : vector<1x8x32xf32> to vector<1x8x32xbf16>
    %107 = vector.extract_strided_slice %47 {offsets = [0, 0, 96], sizes = [1, 8, 32], strides = [1, 1, 1]} : vector<1x8x128xbf16> to vector<1x8x32xbf16>
    %108 = vector.extract_strided_slice %48 {offsets = [0, 0, 96], sizes = [1, 8, 32], strides = [1, 1, 1]} : vector<1x8x128xbf16> to vector<1x8x32xbf16>
    "tpu.trace_start"() <{level = 10 : i32, message = "bqk,btk->bqt"}> : () -> ()
    %cst_39 = arith.constant dense<0.000000e+00> : vector<1x8x8xf32>
    %109 = tpu.matmul %107, %108, %cst_39 {dimension_numbers = #tpu.dot_dimension_numbers<[2], [2], [1], [1], [0, 0, 0, 1, 1, 1], [0], [0]>} : vector<1x8x32xbf16>, vector<1x8x32xbf16>, vector<1x8x8xf32> -> vector<1x8x8xf32>
    %cst_40 = arith.constant -1.000000e+09 : f32
    "tpu.trace_stop"() : () -> ()
    %110 = vector.broadcast %cst_40 : f32 to vector<1x8x8xf32>
    %111 = arith.select %7, %109, %110 : vector<1x8x8xi1>, vector<1x8x8xf32>
    %cst_41 = arith.constant dense<0xFF800000> : vector<1x8xf32>
    %112 = vector.multi_reduction <maximumf>, %111, %cst_41 [2] : vector<1x8x8xf32> to vector<1x8xf32>
    %113 = vector.shape_cast %112 : vector<1x8xf32> to vector<1x8x1xf32>
    %114 = vector.broadcast %113 : vector<1x8x1xf32> to vector<1x8x8xf32>
    %115 = arith.subf %111, %114 : vector<1x8x8xf32>
    %116 = math.exp %115 : vector<1x8x8xf32>
    %cst_42 = arith.constant dense<0.000000e+00> : vector<1x8xf32>
    %117 = vector.multi_reduction <add>, %116, %cst_42 [2] : vector<1x8x8xf32> to vector<1x8xf32>
    %118 = vector.shape_cast %117 : vector<1x8xf32> to vector<1x8x1xf32>
    %119 = tpu.reciprocal %118 {approx = true} : vector<1x8x1xf32> -> vector<1x8x1xf32>
    %120 = arith.truncf %116 : vector<1x8x8xf32> to vector<1x8x8xbf16>
    %121 = vector.extract_strided_slice %49 {offsets = [0, 0, 96], sizes = [1, 8, 32], strides = [1, 1, 1]} : vector<1x8x128xbf16> to vector<1x8x32xbf16>
    "tpu.trace_start"() <{level = 10 : i32, message = "bqt,btk->bqk"}> : () -> ()
    %cst_43 = arith.constant dense<0.000000e+00> : vector<1x8x32xf32>
    %122 = tpu.matmul %120, %121, %cst_43 {dimension_numbers = #tpu.dot_dimension_numbers<[2], [1], [1], [2], [0, 0, 0, 1, 1, 2], [0], [0]>} : vector<1x8x8xbf16>, vector<1x8x32xbf16>, vector<1x8x32xf32> -> vector<1x8x32xf32>
    "tpu.trace_stop"() : () -> ()
    %123 = vector.broadcast %119 : vector<1x8x1xf32> to vector<1x8x32xf32>
    %124 = arith.mulf %122, %123 : vector<1x8x32xf32>
    %125 = arith.truncf %124 : vector<1x8x32xf32> to vector<1x8x32xbf16>
    %126 = tpu.concatenate %68, %87, %106, %125 in 2 : vector<1x8x32xbf16>, vector<1x8x32xbf16>, vector<1x8x32xbf16>, vector<1x8x32xbf16> -> vector<1x8x128xbf16>
    %127 = vector.shape_cast %126 : vector<1x8x128xbf16> to vector<8x128xbf16>
    %c0_44 = arith.constant 0 : index
    %c0_45 = arith.constant 0 : index
    %128 = vector.load %arg8[%c0_44, %c0_45] : memref<128x128xbf16, #tpu.memory_space<vmem>>, vector<128x128xbf16>
    %cst_46 = arith.constant dense<0.000000e+00> : vector<8x128xf32>
    %129 = tpu.matmul %127, %128, %cst_46 {dimension_numbers = #tpu.dot_dimension_numbers<[1], [0], [0], [1], [0, 0, 1, 1], [], []>} : vector<8x128xbf16>, vector<128x128xbf16>, vector<8x128xf32> -> vector<8x128xf32>
    %c0_47 = arith.constant 0 : index
    %c0_48 = arith.constant 0 : index
    %130 = vector.load %arg9[%c0_47, %c0_48] : memref<1x128xf32, #tpu.memory_space<vmem>>, vector<1x128xf32>
    %131 = vector.broadcast %130 : vector<1x128xf32> to vector<8x128xf32>
    %132 = arith.addf %129, %131 : vector<8x128xf32>
    %133 = vector.shape_cast %132 : vector<8x128xf32> to vector<1x8x128xf32>
    %134 = arith.addf %1, %133 : vector<1x8x128xf32>
    %c1 = arith.constant 1 : index
    %c0_49 = arith.constant 0 : index
    %c0_50 = arith.constant 0 : index
    %135 = vector.load %arg4[%c1, %c0_49, %c0_50] : memref<3x1x128xf32, #tpu.memory_space<vmem>>, vector<1x1x128xf32>
    %136 = vector.shape_cast %135 : vector<1x1x128xf32> to vector<1x128xf32>
    %c1_51 = arith.constant 1 : index
    %c0_52 = arith.constant 0 : index
    %c0_53 = arith.constant 0 : index
    %137 = vector.load %arg5[%c1_51, %c0_52, %c0_53] : memref<3x1x128xf32, #tpu.memory_space<vmem>>, vector<1x1x128xf32>
    %138 = vector.shape_cast %137 : vector<1x1x128xf32> to vector<1x128xf32>
    %cst_54 = arith.constant dense<0.000000e+00> : vector<1x8xf32>
    %139 = vector.multi_reduction <add>, %134, %cst_54 [2] : vector<1x8x128xf32> to vector<1x8xf32>
    %140 = vector.shape_cast %139 : vector<1x8xf32> to vector<1x8x1xf32>
    %cst_55 = arith.constant 1.280000e+02 : f32
    %141 = vector.broadcast %cst_55 : f32 to vector<1x8x1xf32>
    %142 = arith.divf %140, %141 : vector<1x8x1xf32>
    %143 = vector.broadcast %142 : vector<1x8x1xf32> to vector<1x8x128xf32>
    %144 = arith.subf %134, %143 : vector<1x8x128xf32>
    %145 = arith.mulf %144, %144 : vector<1x8x128xf32>
    %cst_56 = arith.constant dense<0.000000e+00> : vector<1x8xf32>
    %146 = vector.multi_reduction <add>, %145, %cst_56 [2] : vector<1x8x128xf32> to vector<1x8xf32>
    %147 = vector.shape_cast %146 : vector<1x8xf32> to vector<1x8x1xf32>
    %cst_57 = arith.constant 1.280000e+02 : f32
    %148 = vector.broadcast %cst_57 : f32 to vector<1x8x1xf32>
    %149 = arith.divf %147, %148 : vector<1x8x1xf32>
    %150 = vector.broadcast %142 : vector<1x8x1xf32> to vector<1x8x128xf32>
    %151 = arith.subf %134, %150 : vector<1x8x128xf32>
    %152 = vector.shape_cast %136 : vector<1x128xf32> to vector<1x1x128xf32>
    %153 = vector.broadcast %152 : vector<1x1x128xf32> to vector<1x8x128xf32>
    %154 = arith.mulf %153, %151 : vector<1x8x128xf32>
    %cst_58 = arith.constant 9.99999974E-6 : f32
    %155 = vector.broadcast %cst_58 : f32 to vector<1x8x1xf32>
    %156 = arith.addf %149, %155 : vector<1x8x1xf32>
    %157 = math.rsqrt %156 : vector<1x8x1xf32>
    %158 = vector.broadcast %157 : vector<1x8x1xf32> to vector<1x8x128xf32>
    %159 = arith.mulf %154, %158 : vector<1x8x128xf32>
    %160 = vector.shape_cast %138 : vector<1x128xf32> to vector<1x1x128xf32>
    %161 = vector.broadcast %160 : vector<1x1x128xf32> to vector<1x8x128xf32>
    %162 = arith.addf %159, %161 : vector<1x8x128xf32>
    %163 = arith.truncf %162 : vector<1x8x128xf32> to vector<1x8x128xbf16>
    %164 = vector.shape_cast %163 : vector<1x8x128xbf16> to vector<8x128xbf16>
    %c0_59 = arith.constant 0 : index
    %c0_60 = arith.constant 0 : index
    %165 = vector.load %arg10[%c0_59, %c0_60] : memref<128x128xbf16, #tpu.memory_space<vmem>>, vector<128x128xbf16>
    %cst_61 = arith.constant dense<0.000000e+00> : vector<8x128xf32>
    %166 = tpu.matmul %164, %165, %cst_61 {dimension_numbers = #tpu.dot_dimension_numbers<[1], [0], [0], [1], [0, 0, 1, 1], [], []>} : vector<8x128xbf16>, vector<128x128xbf16>, vector<8x128xf32> -> vector<8x128xf32>
    %c0_62 = arith.constant 0 : index
    %c0_63 = arith.constant 0 : index
    %167 = vector.load %arg11[%c0_62, %c0_63] : memref<1x128xf32, #tpu.memory_space<vmem>>, vector<1x128xf32>
    %168 = vector.broadcast %167 : vector<1x128xf32> to vector<8x128xf32>
    %169 = arith.addf %166, %168 : vector<8x128xf32>
    %170 = arith.truncf %169 : vector<8x128xf32> to vector<8x128xbf16>
    %171 = vector.shape_cast %2 : vector<1x8x128xbf16> to vector<8x128xbf16>
    %c0_64 = arith.constant 0 : index
    %c0_65 = arith.constant 0 : index
    %172 = vector.load %arg12[%c0_64, %c0_65] : memref<128x256xbf16, #tpu.memory_space<vmem>>, vector<128x256xbf16>
    %cst_66 = arith.constant dense<0.000000e+00> : vector<8x256xf32>
    %173 = tpu.matmul %171, %172, %cst_66 {dimension_numbers = #tpu.dot_dimension_numbers<[1], [0], [0], [1], [0, 0, 1, 1], [], []>} : vector<8x128xbf16>, vector<128x256xbf16>, vector<8x256xf32> -> vector<8x256xf32>
    %c0_67 = arith.constant 0 : index
    %c0_68 = arith.constant 0 : index
    %174 = vector.load %arg13[%c0_67, %c0_68] : memref<1x256xf32, #tpu.memory_space<vmem>>, vector<1x256xf32>
    %175 = vector.broadcast %174 : vector<1x256xf32> to vector<8x256xf32>
    %176 = arith.addf %173, %175 : vector<8x256xf32>
    %177 = arith.truncf %176 : vector<8x256xf32> to vector<8x256xbf16>
    %178 = vector.shape_cast %170 : vector<8x128xbf16> to vector<1x8x128xbf16>
    %179 = vector.shape_cast %177 : vector<8x256xbf16> to vector<1x8x256xbf16>
    %180 = vector.extract_strided_slice %179 {offsets = [0, 0, 0], sizes = [1, 8, 128], strides = [1, 1, 1]} : vector<1x8x256xbf16> to vector<1x8x128xbf16>
    %181 = vector.extract_strided_slice %179 {offsets = [0, 0, 128], sizes = [1, 8, 128], strides = [1, 1, 1]} : vector<1x8x256xbf16> to vector<1x8x128xbf16>
    %182 = vector.extract_strided_slice %178 {offsets = [0, 0, 0], sizes = [1, 8, 32], strides = [1, 1, 1]} : vector<1x8x128xbf16> to vector<1x8x32xbf16>
    %183 = vector.extract_strided_slice %180 {offsets = [0, 0, 0], sizes = [1, 8, 32], strides = [1, 1, 1]} : vector<1x8x128xbf16> to vector<1x8x32xbf16>
    "tpu.trace_start"() <{level = 10 : i32, message = "bqk,btk->bqt"}> : () -> ()
    %cst_69 = arith.constant dense<0.000000e+00> : vector<1x8x8xf32>
    %184 = tpu.matmul %182, %183, %cst_69 {dimension_numbers = #tpu.dot_dimension_numbers<[2], [2], [1], [1], [0, 0, 0, 1, 1, 1], [0], [0]>} : vector<1x8x32xbf16>, vector<1x8x32xbf16>, vector<1x8x8xf32> -> vector<1x8x8xf32>
    %cst_70 = arith.constant -1.000000e+09 : f32
    "tpu.trace_stop"() : () -> ()
    %185 = vector.shape_cast %9 : vector<1x1x8xi1> to vector<1x1x8xi1>
    %186 = vector.broadcast %185 : vector<1x1x8xi1> to vector<1x8x8xi1>
    %187 = vector.broadcast %cst_70 : f32 to vector<1x8x8xf32>
    %188 = arith.select %186, %184, %187 : vector<1x8x8xi1>, vector<1x8x8xf32>
    %cst_71 = arith.constant dense<0xFF800000> : vector<1x8xf32>
    %189 = vector.multi_reduction <maximumf>, %188, %cst_71 [2] : vector<1x8x8xf32> to vector<1x8xf32>
    %190 = vector.shape_cast %189 : vector<1x8xf32> to vector<1x8x1xf32>
    %191 = vector.broadcast %190 : vector<1x8x1xf32> to vector<1x8x8xf32>
    %192 = arith.subf %188, %191 : vector<1x8x8xf32>
    %193 = math.exp %192 : vector<1x8x8xf32>
    %cst_72 = arith.constant dense<0.000000e+00> : vector<1x8xf32>
    %194 = vector.multi_reduction <add>, %193, %cst_72 [2] : vector<1x8x8xf32> to vector<1x8xf32>
    %195 = vector.shape_cast %194 : vector<1x8xf32> to vector<1x8x1xf32>
    %196 = tpu.reciprocal %195 {approx = true} : vector<1x8x1xf32> -> vector<1x8x1xf32>
    %197 = arith.truncf %193 : vector<1x8x8xf32> to vector<1x8x8xbf16>
    %198 = vector.extract_strided_slice %181 {offsets = [0, 0, 0], sizes = [1, 8, 32], strides = [1, 1, 1]} : vector<1x8x128xbf16> to vector<1x8x32xbf16>
    "tpu.trace_start"() <{level = 10 : i32, message = "bqt,btk->bqk"}> : () -> ()
    %cst_73 = arith.constant dense<0.000000e+00> : vector<1x8x32xf32>
    %199 = tpu.matmul %197, %198, %cst_73 {dimension_numbers = #tpu.dot_dimension_numbers<[2], [1], [1], [2], [0, 0, 0, 1, 1, 2], [0], [0]>} : vector<1x8x8xbf16>, vector<1x8x32xbf16>, vector<1x8x32xf32> -> vector<1x8x32xf32>
    "tpu.trace_stop"() : () -> ()
    %200 = vector.broadcast %196 : vector<1x8x1xf32> to vector<1x8x32xf32>
    %201 = arith.mulf %199, %200 : vector<1x8x32xf32>
    %202 = arith.truncf %201 : vector<1x8x32xf32> to vector<1x8x32xbf16>
    %203 = vector.extract_strided_slice %178 {offsets = [0, 0, 32], sizes = [1, 8, 32], strides = [1, 1, 1]} : vector<1x8x128xbf16> to vector<1x8x32xbf16>
    %204 = vector.extract_strided_slice %180 {offsets = [0, 0, 32], sizes = [1, 8, 32], strides = [1, 1, 1]} : vector<1x8x128xbf16> to vector<1x8x32xbf16>
    "tpu.trace_start"() <{level = 10 : i32, message = "bqk,btk->bqt"}> : () -> ()
    %cst_74 = arith.constant dense<0.000000e+00> : vector<1x8x8xf32>
    %205 = tpu.matmul %203, %204, %cst_74 {dimension_numbers = #tpu.dot_dimension_numbers<[2], [2], [1], [1], [0, 0, 0, 1, 1, 1], [0], [0]>} : vector<1x8x32xbf16>, vector<1x8x32xbf16>, vector<1x8x8xf32> -> vector<1x8x8xf32>
    %cst_75 = arith.constant -1.000000e+09 : f32
    "tpu.trace_stop"() : () -> ()
    %206 = vector.shape_cast %9 : vector<1x1x8xi1> to vector<1x1x8xi1>
    %207 = vector.broadcast %206 : vector<1x1x8xi1> to vector<1x8x8xi1>
    %208 = vector.broadcast %cst_75 : f32 to vector<1x8x8xf32>
    %209 = arith.select %207, %205, %208 : vector<1x8x8xi1>, vector<1x8x8xf32>
    %cst_76 = arith.constant dense<0xFF800000> : vector<1x8xf32>
    %210 = vector.multi_reduction <maximumf>, %209, %cst_76 [2] : vector<1x8x8xf32> to vector<1x8xf32>
    %211 = vector.shape_cast %210 : vector<1x8xf32> to vector<1x8x1xf32>
    %212 = vector.broadcast %211 : vector<1x8x1xf32> to vector<1x8x8xf32>
    %213 = arith.subf %209, %212 : vector<1x8x8xf32>
    %214 = math.exp %213 : vector<1x8x8xf32>
    %cst_77 = arith.constant dense<0.000000e+00> : vector<1x8xf32>
    %215 = vector.multi_reduction <add>, %214, %cst_77 [2] : vector<1x8x8xf32> to vector<1x8xf32>
    %216 = vector.shape_cast %215 : vector<1x8xf32> to vector<1x8x1xf32>
    %217 = tpu.reciprocal %216 {approx = true} : vector<1x8x1xf32> -> vector<1x8x1xf32>
    %218 = arith.truncf %214 : vector<1x8x8xf32> to vector<1x8x8xbf16>
    %219 = vector.extract_strided_slice %181 {offsets = [0, 0, 32], sizes = [1, 8, 32], strides = [1, 1, 1]} : vector<1x8x128xbf16> to vector<1x8x32xbf16>
    "tpu.trace_start"() <{level = 10 : i32, message = "bqt,btk->bqk"}> : () -> ()
    %cst_78 = arith.constant dense<0.000000e+00> : vector<1x8x32xf32>
    %220 = tpu.matmul %218, %219, %cst_78 {dimension_numbers = #tpu.dot_dimension_numbers<[2], [1], [1], [2], [0, 0, 0, 1, 1, 2], [0], [0]>} : vector<1x8x8xbf16>, vector<1x8x32xbf16>, vector<1x8x32xf32> -> vector<1x8x32xf32>
    "tpu.trace_stop"() : () -> ()
    %221 = vector.broadcast %217 : vector<1x8x1xf32> to vector<1x8x32xf32>
    %222 = arith.mulf %220, %221 : vector<1x8x32xf32>
    %223 = arith.truncf %222 : vector<1x8x32xf32> to vector<1x8x32xbf16>
    %224 = vector.extract_strided_slice %178 {offsets = [0, 0, 64], sizes = [1, 8, 32], strides = [1, 1, 1]} : vector<1x8x128xbf16> to vector<1x8x32xbf16>
    %225 = vector.extract_strided_slice %180 {offsets = [0, 0, 64], sizes = [1, 8, 32], strides = [1, 1, 1]} : vector<1x8x128xbf16> to vector<1x8x32xbf16>
    "tpu.trace_start"() <{level = 10 : i32, message = "bqk,btk->bqt"}> : () -> ()
    %cst_79 = arith.constant dense<0.000000e+00> : vector<1x8x8xf32>
    %226 = tpu.matmul %224, %225, %cst_79 {dimension_numbers = #tpu.dot_dimension_numbers<[2], [2], [1], [1], [0, 0, 0, 1, 1, 1], [0], [0]>} : vector<1x8x32xbf16>, vector<1x8x32xbf16>, vector<1x8x8xf32> -> vector<1x8x8xf32>
    %cst_80 = arith.constant -1.000000e+09 : f32
    "tpu.trace_stop"() : () -> ()
    %227 = vector.shape_cast %9 : vector<1x1x8xi1> to vector<1x1x8xi1>
    %228 = vector.broadcast %227 : vector<1x1x8xi1> to vector<1x8x8xi1>
    %229 = vector.broadcast %cst_80 : f32 to vector<1x8x8xf32>
    %230 = arith.select %228, %226, %229 : vector<1x8x8xi1>, vector<1x8x8xf32>
    %cst_81 = arith.constant dense<0xFF800000> : vector<1x8xf32>
    %231 = vector.multi_reduction <maximumf>, %230, %cst_81 [2] : vector<1x8x8xf32> to vector<1x8xf32>
    %232 = vector.shape_cast %231 : vector<1x8xf32> to vector<1x8x1xf32>
    %233 = vector.broadcast %232 : vector<1x8x1xf32> to vector<1x8x8xf32>
    %234 = arith.subf %230, %233 : vector<1x8x8xf32>
    %235 = math.exp %234 : vector<1x8x8xf32>
    %cst_82 = arith.constant dense<0.000000e+00> : vector<1x8xf32>
    %236 = vector.multi_reduction <add>, %235, %cst_82 [2] : vector<1x8x8xf32> to vector<1x8xf32>
    %237 = vector.shape_cast %236 : vector<1x8xf32> to vector<1x8x1xf32>
    %238 = tpu.reciprocal %237 {approx = true} : vector<1x8x1xf32> -> vector<1x8x1xf32>
    %239 = arith.truncf %235 : vector<1x8x8xf32> to vector<1x8x8xbf16>
    %240 = vector.extract_strided_slice %181 {offsets = [0, 0, 64], sizes = [1, 8, 32], strides = [1, 1, 1]} : vector<1x8x128xbf16> to vector<1x8x32xbf16>
    "tpu.trace_start"() <{level = 10 : i32, message = "bqt,btk->bqk"}> : () -> ()
    %cst_83 = arith.constant dense<0.000000e+00> : vector<1x8x32xf32>
    %241 = tpu.matmul %239, %240, %cst_83 {dimension_numbers = #tpu.dot_dimension_numbers<[2], [1], [1], [2], [0, 0, 0, 1, 1, 2], [0], [0]>} : vector<1x8x8xbf16>, vector<1x8x32xbf16>, vector<1x8x32xf32> -> vector<1x8x32xf32>
    "tpu.trace_stop"() : () -> ()
    %242 = vector.broadcast %238 : vector<1x8x1xf32> to vector<1x8x32xf32>
    %243 = arith.mulf %241, %242 : vector<1x8x32xf32>
    %244 = arith.truncf %243 : vector<1x8x32xf32> to vector<1x8x32xbf16>
    %245 = vector.extract_strided_slice %178 {offsets = [0, 0, 96], sizes = [1, 8, 32], strides = [1, 1, 1]} : vector<1x8x128xbf16> to vector<1x8x32xbf16>
    %246 = vector.extract_strided_slice %180 {offsets = [0, 0, 96], sizes = [1, 8, 32], strides = [1, 1, 1]} : vector<1x8x128xbf16> to vector<1x8x32xbf16>
    "tpu.trace_start"() <{level = 10 : i32, message = "bqk,btk->bqt"}> : () -> ()
    %cst_84 = arith.constant dense<0.000000e+00> : vector<1x8x8xf32>
    %247 = tpu.matmul %245, %246, %cst_84 {dimension_numbers = #tpu.dot_dimension_numbers<[2], [2], [1], [1], [0, 0, 0, 1, 1, 1], [0], [0]>} : vector<1x8x32xbf16>, vector<1x8x32xbf16>, vector<1x8x8xf32> -> vector<1x8x8xf32>
    %cst_85 = arith.constant -1.000000e+09 : f32
    "tpu.trace_stop"() : () -> ()
    %248 = vector.shape_cast %9 : vector<1x1x8xi1> to vector<1x1x8xi1>
    %249 = vector.broadcast %248 : vector<1x1x8xi1> to vector<1x8x8xi1>
    %250 = vector.broadcast %cst_85 : f32 to vector<1x8x8xf32>
    %251 = arith.select %249, %247, %250 : vector<1x8x8xi1>, vector<1x8x8xf32>
    %cst_86 = arith.constant dense<0xFF800000> : vector<1x8xf32>
    %252 = vector.multi_reduction <maximumf>, %251, %cst_86 [2] : vector<1x8x8xf32> to vector<1x8xf32>
    %253 = vector.shape_cast %252 : vector<1x8xf32> to vector<1x8x1xf32>
    %254 = vector.broadcast %253 : vector<1x8x1xf32> to vector<1x8x8xf32>
    %255 = arith.subf %251, %254 : vector<1x8x8xf32>
    %256 = math.exp %255 : vector<1x8x8xf32>
    %cst_87 = arith.constant dense<0.000000e+00> : vector<1x8xf32>
    %257 = vector.multi_reduction <add>, %256, %cst_87 [2] : vector<1x8x8xf32> to vector<1x8xf32>
    %258 = vector.shape_cast %257 : vector<1x8xf32> to vector<1x8x1xf32>
    %259 = tpu.reciprocal %258 {approx = true} : vector<1x8x1xf32> -> vector<1x8x1xf32>
    %260 = arith.truncf %256 : vector<1x8x8xf32> to vector<1x8x8xbf16>
    %261 = vector.extract_strided_slice %181 {offsets = [0, 0, 96], sizes = [1, 8, 32], strides = [1, 1, 1]} : vector<1x8x128xbf16> to vector<1x8x32xbf16>
    "tpu.trace_start"() <{level = 10 : i32, message = "bqt,btk->bqk"}> : () -> ()
    %cst_88 = arith.constant dense<0.000000e+00> : vector<1x8x32xf32>
    %262 = tpu.matmul %260, %261, %cst_88 {dimension_numbers = #tpu.dot_dimension_numbers<[2], [1], [1], [2], [0, 0, 0, 1, 1, 2], [0], [0]>} : vector<1x8x8xbf16>, vector<1x8x32xbf16>, vector<1x8x32xf32> -> vector<1x8x32xf32>
    "tpu.trace_stop"() : () -> ()
    %263 = vector.broadcast %259 : vector<1x8x1xf32> to vector<1x8x32xf32>
    %264 = arith.mulf %262, %263 : vector<1x8x32xf32>
    %265 = arith.truncf %264 : vector<1x8x32xf32> to vector<1x8x32xbf16>
    %266 = tpu.concatenate %202, %223, %244, %265 in 2 : vector<1x8x32xbf16>, vector<1x8x32xbf16>, vector<1x8x32xbf16>, vector<1x8x32xbf16> -> vector<1x8x128xbf16>
    %267 = vector.shape_cast %266 : vector<1x8x128xbf16> to vector<8x128xbf16>
    %c0_89 = arith.constant 0 : index
    %c0_90 = arith.constant 0 : index
    %268 = vector.load %arg14[%c0_89, %c0_90] : memref<128x128xbf16, #tpu.memory_space<vmem>>, vector<128x128xbf16>
    %cst_91 = arith.constant dense<0.000000e+00> : vector<8x128xf32>
    %269 = tpu.matmul %267, %268, %cst_91 {dimension_numbers = #tpu.dot_dimension_numbers<[1], [0], [0], [1], [0, 0, 1, 1], [], []>} : vector<8x128xbf16>, vector<128x128xbf16>, vector<8x128xf32> -> vector<8x128xf32>
    %c0_92 = arith.constant 0 : index
    %c0_93 = arith.constant 0 : index
    %270 = vector.load %arg15[%c0_92, %c0_93] : memref<1x128xf32, #tpu.memory_space<vmem>>, vector<1x128xf32>
    %271 = vector.broadcast %270 : vector<1x128xf32> to vector<8x128xf32>
    %272 = arith.addf %269, %271 : vector<8x128xf32>
    %273 = vector.shape_cast %272 : vector<8x128xf32> to vector<1x8x128xf32>
    %274 = arith.addf %134, %273 : vector<1x8x128xf32>
    %c2 = arith.constant 2 : index
    %c0_94 = arith.constant 0 : index
    %c0_95 = arith.constant 0 : index
    %275 = vector.load %arg4[%c2, %c0_94, %c0_95] : memref<3x1x128xf32, #tpu.memory_space<vmem>>, vector<1x1x128xf32>
    %276 = vector.shape_cast %275 : vector<1x1x128xf32> to vector<1x128xf32>
    %c2_96 = arith.constant 2 : index
    %c0_97 = arith.constant 0 : index
    %c0_98 = arith.constant 0 : index
    %277 = vector.load %arg5[%c2_96, %c0_97, %c0_98] : memref<3x1x128xf32, #tpu.memory_space<vmem>>, vector<1x1x128xf32>
    %278 = vector.shape_cast %277 : vector<1x1x128xf32> to vector<1x128xf32>
    %cst_99 = arith.constant dense<0.000000e+00> : vector<1x8xf32>
    %279 = vector.multi_reduction <add>, %274, %cst_99 [2] : vector<1x8x128xf32> to vector<1x8xf32>
    %280 = vector.shape_cast %279 : vector<1x8xf32> to vector<1x8x1xf32>
    %cst_100 = arith.constant 1.280000e+02 : f32
    %281 = vector.broadcast %cst_100 : f32 to vector<1x8x1xf32>
    %282 = arith.divf %280, %281 : vector<1x8x1xf32>
    %283 = vector.broadcast %282 : vector<1x8x1xf32> to vector<1x8x128xf32>
    %284 = arith.subf %274, %283 : vector<1x8x128xf32>
    %285 = arith.mulf %284, %284 : vector<1x8x128xf32>
    %cst_101 = arith.constant dense<0.000000e+00> : vector<1x8xf32>
    %286 = vector.multi_reduction <add>, %285, %cst_101 [2] : vector<1x8x128xf32> to vector<1x8xf32>
    %287 = vector.shape_cast %286 : vector<1x8xf32> to vector<1x8x1xf32>
    %cst_102 = arith.constant 1.280000e+02 : f32
    %288 = vector.broadcast %cst_102 : f32 to vector<1x8x1xf32>
    %289 = arith.divf %287, %288 : vector<1x8x1xf32>
    %290 = vector.broadcast %282 : vector<1x8x1xf32> to vector<1x8x128xf32>
    %291 = arith.subf %274, %290 : vector<1x8x128xf32>
    %292 = vector.shape_cast %276 : vector<1x128xf32> to vector<1x1x128xf32>
    %293 = vector.broadcast %292 : vector<1x1x128xf32> to vector<1x8x128xf32>
    %294 = arith.mulf %293, %291 : vector<1x8x128xf32>
    %cst_103 = arith.constant 9.99999974E-6 : f32
    %295 = vector.broadcast %cst_103 : f32 to vector<1x8x1xf32>
    %296 = arith.addf %289, %295 : vector<1x8x1xf32>
    %297 = math.rsqrt %296 : vector<1x8x1xf32>
    %298 = vector.broadcast %297 : vector<1x8x1xf32> to vector<1x8x128xf32>
    %299 = arith.mulf %294, %298 : vector<1x8x128xf32>
    %300 = vector.shape_cast %278 : vector<1x128xf32> to vector<1x1x128xf32>
    %301 = vector.broadcast %300 : vector<1x1x128xf32> to vector<1x8x128xf32>
    %302 = arith.addf %299, %301 : vector<1x8x128xf32>
    %303 = arith.truncf %302 : vector<1x8x128xf32> to vector<1x8x128xbf16>
    %304 = vector.shape_cast %303 : vector<1x8x128xbf16> to vector<8x128xbf16>
    %c0_104 = arith.constant 0 : index
    %c0_105 = arith.constant 0 : index
    %305 = vector.load %arg16[%c0_104, %c0_105] : memref<128x256xbf16, #tpu.memory_space<vmem>>, vector<128x256xbf16>
    %cst_106 = arith.constant dense<0.000000e+00> : vector<8x256xf32>
    %306 = tpu.matmul %304, %305, %cst_106 {dimension_numbers = #tpu.dot_dimension_numbers<[1], [0], [0], [1], [0, 0, 1, 1], [], []>} : vector<8x128xbf16>, vector<128x256xbf16>, vector<8x256xf32> -> vector<8x256xf32>
    %c0_107 = arith.constant 0 : index
    %c0_108 = arith.constant 0 : index
    %307 = vector.load %arg17[%c0_107, %c0_108] : memref<1x256xf32, #tpu.memory_space<vmem>>, vector<1x256xf32>
    %308 = vector.broadcast %307 : vector<1x256xf32> to vector<8x256xf32>
    %309 = arith.addf %306, %308 : vector<8x256xf32>
    %cst_109 = arith.constant 0.000000e+00 : f32
    %310 = vector.broadcast %cst_109 : f32 to vector<8x256xf32>
    %311 = arith.maximumf %309, %310 : vector<8x256xf32>
    %312 = arith.truncf %311 : vector<8x256xf32> to vector<8x256xbf16>
    %c0_110 = arith.constant 0 : index
    %c0_111 = arith.constant 0 : index
    %313 = vector.load %arg18[%c0_110, %c0_111] : memref<256x128xbf16, #tpu.memory_space<vmem>>, vector<256x128xbf16>
    %cst_112 = arith.constant dense<0.000000e+00> : vector<8x128xf32>
    %314 = tpu.matmul %312, %313, %cst_112 {dimension_numbers = #tpu.dot_dimension_numbers<[1], [0], [0], [1], [0, 0, 1, 1], [], []>} : vector<8x256xbf16>, vector<256x128xbf16>, vector<8x128xf32> -> vector<8x128xf32>
    %c0_113 = arith.constant 0 : index
    %c0_114 = arith.constant 0 : index
    %315 = vector.load %arg19[%c0_113, %c0_114] : memref<1x128xf32, #tpu.memory_space<vmem>>, vector<1x128xf32>
    %316 = vector.broadcast %315 : vector<1x128xf32> to vector<8x128xf32>
    %317 = arith.addf %314, %316 : vector<8x128xf32>
    %318 = vector.shape_cast %317 : vector<8x128xf32> to vector<1x8x128xf32>
    %319 = arith.addf %274, %318 : vector<1x8x128xf32>
    %320 = arith.truncf %319 : vector<1x8x128xf32> to vector<1x8x128xbf16>
    %c0_115 = arith.constant 0 : index
    %c0_116 = arith.constant 0 : index
    %c0_117 = arith.constant 0 : index
    %321 = vector.load %arg22[%c0_115, %c0_116, %c0_117] : memref<1x8x128xbf16, #tpu.memory_space<vmem>>, vector<1x8x128xbf16>
    tpu.vector_store %arg22[%c0_115, %c0_116, %c0_117], %320 {strides = array<i32>} : memref<1x8x128xbf16, #tpu.memory_space<vmem>>, vector<1x8x128xbf16>,
    return
  }
  func.func @transform_0(%arg0: i32) -> (i32, i32, i32) {
    %c0_i32 = arith.constant 0 : i32
    %c0_i32_0 = arith.constant 0 : i32
    %c0_i32_1 = arith.constant 0 : i32
    return %arg0, %c0_i32, %c0_i32_0 : i32, i32, i32
  }
  func.func @transform_1(%arg0: i32) -> (i32, i32, i32) {
    %c0_i32 = arith.constant 0 : i32
    %c0_i32_0 = arith.constant 0 : i32
    %c0_i32_1 = arith.constant 0 : i32
    return %arg0, %c0_i32, %c0_i32_0 : i32, i32, i32
  }
  func.func @transform_2(%arg0: i32) -> (i32, i32, i32) {
    %c0_i32 = arith.constant 0 : i32
    %c0_i32_0 = arith.constant 0 : i32
    %c0_i32_1 = arith.constant 0 : i32
    return %arg0, %c0_i32, %c0_i32_0 : i32, i32, i32
  }
  func.func @transform_3(%arg0: i32) -> (i32, i32, i32) {
    %c0_i32 = arith.constant 0 : i32
    %c0_i32_0 = arith.constant 0 : i32
    %c0_i32_1 = arith.constant 0 : i32
    %c0_i32_2 = arith.constant 0 : i32
    return %c0_i32, %c0_i32_0, %c0_i32_1 : i32, i32, i32
  }
  func.func @transform_4(%arg0: i32) -> (i32, i32, i32) {
    %c0_i32 = arith.constant 0 : i32
    %c0_i32_0 = arith.constant 0 : i32
    %c0_i32_1 = arith.constant 0 : i32
    %c0_i32_2 = arith.constant 0 : i32
    return %c0_i32, %c0_i32_0, %c0_i32_1 : i32, i32, i32
  }
  func.func @transform_5(%arg0: i32) -> (i32, i32) {
    %c0_i32 = arith.constant 0 : i32
    %c0_i32_0 = arith.constant 0 : i32
    %c0_i32_1 = arith.constant 0 : i32
    return %c0_i32, %c0_i32_0 : i32, i32
  }
  func.func @transform_6(%arg0: i32) -> (i32, i32) {
    %c0_i32 = arith.constant 0 : i32
    %c0_i32_0 = arith.constant 0 : i32
    %c0_i32_1 = arith.constant 0 : i32
    return %c0_i32, %c0_i32_0 : i32, i32
  }
  func.func @transform_7(%arg0: i32) -> (i32, i32) {
    %c0_i32 = arith.constant 0 : i32
    %c0_i32_0 = arith.constant 0 : i32
    %c0_i32_1 = arith.constant 0 : i32
    return %c0_i32, %c0_i32_0 : i32, i32
  }
  func.func @transform_8(%arg0: i32) -> (i32, i32) {
    %c0_i32 = arith.constant 0 : i32
    %c0_i32_0 = arith.constant 0 : i32
    %c0_i32_1 = arith.constant 0 : i32
    return %c0_i32, %c0_i32_0 : i32, i32
  }
  func.func @transform_9(%arg0: i32) -> (i32, i32) {
    %c0_i32 = arith.constant 0 : i32
    %c0_i32_0 = arith.constant 0 : i32
    %c0_i32_1 = arith.constant 0 : i32
    return %c0_i32, %c0_i32_0 : i32, i32
  }
  func.func @transform_10(%arg0: i32) -> (i32, i32) {
    %c0_i32 = arith.constant 0 : i32
    %c0_i32_0 = arith.constant 0 : i32
    %c0_i32_1 = arith.constant 0 : i32
    return %c0_i32, %c0_i32_0 : i32, i32
  }
  func.func @transform_11(%arg0: i32) -> (i32, i32) {
    %c0_i32 = arith.constant 0 : i32
    %c0_i32_0 = arith.constant 0 : i32
    %c0_i32_1 = arith.constant 0 : i32
    return %c0_i32, %c0_i32_0 : i32, i32
  }
  func.func @transform_12(%arg0: i32) -> (i32, i32) {
    %c0_i32 = arith.constant 0 : i32
    %c0_i32_0 = arith.constant 0 : i32
    %c0_i32_1 = arith.constant 0 : i32
    return %c0_i32, %c0_i32_0 : i32, i32
  }
  func.func @transform_13(%arg0: i32) -> (i32, i32) {
    %c0_i32 = arith.constant 0 : i32
    %c0_i32_0 = arith.constant 0 : i32
    %c0_i32_1 = arith.constant 0 : i32
    return %c0_i32, %c0_i32_0 : i32, i32
  }
  func.func @transform_14(%arg0: i32) -> (i32, i32) {
    %c0_i32 = arith.constant 0 : i32
    %c0_i32_0 = arith.constant 0 : i32
    %c0_i32_1 = arith.constant 0 : i32
    return %c0_i32, %c0_i32_0 : i32, i32
  }
  func.func @transform_15(%arg0: i32) -> (i32, i32) {
    %c0_i32 = arith.constant 0 : i32
    %c0_i32_0 = arith.constant 0 : i32
    %c0_i32_1 = arith.constant 0 : i32
    return %c0_i32, %c0_i32_0 : i32, i32
  }
  func.func @transform_16(%arg0: i32) -> (i32, i32) {
    %c0_i32 = arith.constant 0 : i32
    %c0_i32_0 = arith.constant 0 : i32
    %c0_i32_1 = arith.constant 0 : i32
    return %c0_i32, %c0_i32_0 : i32, i32
  }
  func.func @transform_17(%arg0: i32) -> (i32, i32) {
    %c0_i32 = arith.constant 0 : i32
    %c0_i32_0 = arith.constant 0 : i32
    %c0_i32_1 = arith.constant 0 : i32
    return %c0_i32, %c0_i32_0 : i32, i32
  }
  func.func @transform_18(%arg0: i32) -> (i32, i32) {
    %c0_i32 = arith.constant 0 : i32
    %c0_i32_0 = arith.constant 0 : i32
    %c0_i32_1 = arith.constant 0 : i32
    return %c0_i32, %c0_i32_0 : i32, i32
  }
  func.func @transform_19(%arg0: i32) -> (i32, i32) {
    %c0_i32 = arith.constant 0 : i32
    %c0_i32_0 = arith.constant 0 : i32
    %c0_i32_1 = arith.constant 0 : i32
    return %c0_i32, %c0_i32_0 : i32, i32
  }
  func.func @transform_20(%arg0: i32) -> (i32, i32) {
    %c0_i32 = arith.constant 0 : i32
    %c0_i32_0 = arith.constant 0 : i32
    %c0_i32_1 = arith.constant 0 : i32
    return %c0_i32, %c0_i32_0 : i32, i32
  }
  func.func @transform_21(%arg0: i32) -> (i32, i32, i32) {
    %c0_i32 = arith.constant 0 : i32
    %c0_i32_0 = arith.constant 0 : i32
    %c0_i32_1 = arith.constant 0 : i32
    return %arg0, %c0_i32, %c0_i32_0 : i32, i32, i32
  }
}

</mosaic_0001>

<llo_original>
// kernel: tpu_custom_call.1
$region0: #{tpu_custom_call.1}
  #allocation0 [shape = 'u32[]', space=smem, size = 0x4, offset = 0x4, fixed_abs, tag = 'smem constant byte address 0x4 - core index']
  #allocation1 [shape = 'u32[72,128]{1,0:T(1,128)}', space=vmem, size = 0x9000, scoped, tag = 'internal scratch']
  %s0 = inlined_call_operand.hbm [shape: bf16[2,8,128], index: 0, kind: input, shape index: {}]
  %s1 = inlined_call_operand.hbm [shape: bf16[2,8,128], index: 1, kind: input, shape index: {}]
  %s2 = inlined_call_operand.hbm [shape: f32[2,1,8], index: 2, kind: input, shape index: {}]
  %s3 = inlined_call_operand.hbm [shape: f32[3,1,128], index: 3, kind: input, shape index: {}]
  %s4 = inlined_call_operand.vmem [shape: f32[3,1,128], index: 4, kind: input, shape index: {}]
  %s5 = inlined_call_operand.hbm [shape: bf16[128,384], index: 5, kind: input, shape index: {}]
  %s6 = inlined_call_operand.hbm [shape: f32[1,384], index: 6, kind: input, shape index: {}]
  %s7 = inlined_call_operand.hbm [shape: bf16[128,128], index: 7, kind: input, shape index: {}]
  %s8 = inlined_call_operand.hbm [shape: f32[1,128], index: 8, kind: input, shape index: {}]
  %s9 = inlined_call_operand.hbm [shape: bf16[128,128], index: 9, kind: input, shape index: {}]
  %s10 = inlined_call_operand.vmem [shape: f32[1,128], index: 10, kind: input, shape index: {}]
  %s11 = inlined_call_operand.hbm [shape: bf16[128,256], index: 11, kind: input, shape index: {}]
  %s12 = inlined_call_operand.vmem [shape: f32[1,256], index: 12, kind: input, shape index: {}]
  %s13 = inlined_call_operand.hbm [shape: bf16[128,128], index: 13, kind: input, shape index: {}]
  %s14 = inlined_call_operand.vmem [shape: f32[1,128], index: 14, kind: input, shape index: {}]
  %s15 = inlined_call_operand.hbm [shape: bf16[128,256], index: 15, kind: input, shape index: {}]
  %s16 = inlined_call_operand.vmem [shape: f32[1,256], index: 16, kind: input, shape index: {}]
  %s17 = inlined_call_operand.hbm [shape: bf16[256,128], index: 17, kind: input, shape index: {}]
  %s18 = inlined_call_operand.vmem [shape: f32[1,128], index: 18, kind: input, shape index: {}]
  %s19 = inlined_call_operand.vmem [shape: f32[1,128], index: 19, kind: input, shape index: {}]
  %s20 = inlined_call_operand.vmem [shape: f32[1,128], index: 20, kind: input, shape index: {}]
  %s21 = inlined_call_operand.hbm [shape: bf16[2,8,128], index: 21, kind: output, shape index: {}]
  %s22 = sld [smem:[#allocation0]]
  $region169: #{tpu_custom_call.1} parent=0
    _
  %s24 = ssub.s32 1, %s22
  %s25 = scalar_select 0, %s24, %s22
  $region1: #{tpu_custom_call.1} parent=0
    #allocation2 [shape = 'u8[4096]{0}', space=vmem, size = 0x1000, scoped, tag = 'input window, operand 0']
    #allocation3 [shape = 's32[2]{0}', space=sflag, size = 0x8, scoped, tag = 'scoped memory for tpu_custom_call.1']
    #allocation4 [shape = 's32[2]{0}', space=sflag, size = 0x8, scoped, tag = 'scoped memory for tpu_custom_call.1']
    #allocation5 [shape = 'u8[4096]{0}', space=vmem, size = 0x1000, scoped, tag = 'input window, operand 1']
    #allocation6 [shape = 's32[2]{0}', space=sflag, size = 0x8, scoped, tag = 'scoped memory for tpu_custom_call.1']
    #allocation7 [shape = 'u8[1024]{0}', space=vmem, size = 0x400, scoped, tag = 'input window, operand 2']
    #allocation8 [shape = 'u8[1536]{0}', space=vmem, size = 0x800, scoped, tag = 'input window, operand 3, single buffered']
    #allocation9 [shape = 's32[1]{0}', space=sflag, size = 0x4, scoped, tag = 'scoped memory for tpu_custom_call.1']
    #allocation10 [shape = 'u8[98304]{0}', space=vmem, size = 0x18000, scoped, tag = 'input window, operand 5, single buffered']
    #allocation11 [shape = 'u8[1536]{0}', space=vmem, size = 0x800, scoped, tag = 'input window, operand 6, single buffered']
    #allocation12 [shape = 's32[1]{0}', space=sflag, size = 0x4, scoped, tag = 'scoped memory for tpu_custom_call.1']
    #allocation13 [shape = 'u8[32768]{0}', space=vmem, size = 0x8000, scoped, tag = 'input window, operand 7, single buffered']
    #allocation14 [shape = 'u8[512]{0}', space=vmem, size = 0x400, scoped, tag = 'input window, operand 8, single buffered']
    #allocation15 [shape = 's32[1]{0}', space=sflag, size = 0x4, scoped, tag = 'scoped memory for tpu_custom_call.1']
    #allocation16 [shape = 'u8[32768]{0}', space=vmem, size = 0x8000, scoped, tag = 'input window, operand 9, single buffered']
    #allocation17 [shape = 'u8[65536]{0}', space=vmem, size = 0x10000, scoped, tag = 'input window, operand 11, single buffered']
    #allocation18 [shape = 's32[1]{0}', space=sflag, size = 0x4, scoped, tag = 'scoped memory for tpu_custom_call.1']
    #allocation19 [shape = 'u8[32768]{0}', space=vmem, size = 0x8000, scoped, tag = 'input window, operand 13, single buffered']
    #allocation20 [shape = 'u8[65536]{0}', space=vmem, size = 0x10000, scoped, tag = 'input window, operand 15, single buffered']
    #allocation21 [shape = 's32[1]{0}', space=sflag, size = 0x4, scoped, tag = 'scoped memory for tpu_custom_call.1']
    #allocation22 [shape = 'u8[65536]{0}', space=vmem, size = 0x10000, scoped, tag = 'input window, operand 17, single buffered']
    #allocation23 [shape = 'u8[4096]{0}', space=vmem, size = 0x1000, scoped, tag = 'output window, operand 0']
    %26 = vsyncpa [#allocation3], 0
    %s27 = scalar_lea.sflag [#allocation3], 1
    %28 = vsyncpa %s27, 0
    %29 = vsyncpa [#allocation6], 0
    %s30 = scalar_lea.sflag [#allocation6], 1
    %31 = vsyncpa %s30, 0
    %32 = vsyncpa [#allocation9], 0
    %33 = vsyncpa [#allocation12], 0
    %34 = vsyncpa [#allocation15], 0
    %35 = vsyncpa [#allocation18], 0
    %36 = vsyncpa [#allocation21], 0
    %37 = vsyncpa [#allocation4], 0
    %s38 = scalar_lea.sflag [#allocation4], 1
    %39 = vsyncpa %s38, 0
    loop: start=0, step=1, limit=4
    $region2: #{tpu_custom_call.1} parent=1 // loop_pre_header
      _
    $region3: #{tpu_custom_call.1} parent=1 // loop_header
      %s41 = sphi 0, %s45
      %p42 = scmp.ge.s32.totalorder %s41, 4
      %s51 = sphi 0, %s53
      %s54 = sphi 0, %s51
      %s55 = sphi 0, %s54
      %s71 = sphi 0, %s55
      %s77 = sphi 0, %s79
      %s80 = sphi 0, %s77
      %s81 = sphi 0, %s80
      %s97 = sphi 0, %s81
      %s103 = sphi 0, %s105
      %s106 = sphi 0, %s103
      %s107 = sphi 0, %s106
      %s123 = sphi 0, %s107
      %s127 = sphi 0, %s127
      %s129 = sphi 0, %s127
      %s130 = sphi 0, %s129
      %s144 = sphi 0, %s130
      %s148 = sphi 0, %s148
      %s150 = sphi 0, %s148
      %s151 = sphi 0, %s150
      %s165 = sphi 0, %s151
      %s169 = sphi 0, %s169
      %s171 = sphi 0, %s169
      %s172 = sphi 0, %s171
      %s186 = sphi 0, %s172
      %s190 = sphi 0, %s190
      %s192 = sphi 0, %s190
      %s193 = sphi 0, %s192
      %s207 = sphi 0, %s193
      %s211 = sphi 0, %s211
      %s213 = sphi 0, %s211
      %s214 = sphi 0, %s213
      %s228 = sphi 0, %s214
      %s232 = sphi 0, %s232
      %s234 = sphi 0, %s232
      %s235 = sphi 0, %s234
      %s249 = sphi 0, %s235
      %s253 = sphi 0, %s253
      %s255 = sphi 0, %s253
      %s256 = sphi 0, %s255
      %s270 = sphi 0, %s256
      %s274 = sphi 0, %s274
      %s276 = sphi 0, %s274
      %s277 = sphi 0, %s276
      %s291 = sphi 0, %s277
      %s295 = sphi 0, %s295
      %s297 = sphi 0, %s295
      %s298 = sphi 0, %s297
      %s312 = sphi 0, %s298
      %s316 = sphi 0, %s316
      %s318 = sphi 0, %s316
      %s319 = sphi 0, %s318
      %s333 = sphi 0, %s319
      %s337 = sphi 0, %s337
      %s339 = sphi 0, %s337
      %s340 = sphi 0, %s339
      %s354 = sphi 0, %s340
      %s358 = sphi 0, %s358
      %s360 = sphi 0, %s358
      %s361 = sphi 0, %s360
      %s375 = sphi 0, %s361
      %s379 = sphi 0, %s379
      %s381 = sphi 0, %s379
      %s382 = sphi 0, %s381
      %s396 = sphi 0, %s382
      %s400 = sphi 0, %s400
      %s402 = sphi 0, %s400
      %s403 = sphi 0, %s402
      %s417 = sphi 0, %s403
      %s421 = sphi 0, %s421
      %s423 = sphi 0, %s421
      %s424 = sphi 0, %s423
      %s438 = sphi 0, %s424
      %s442 = sphi 0, %s442
      %s444 = sphi 0, %s442
      %s445 = sphi 0, %s444
      %s459 = sphi 0, %s445
      %s463 = sphi 0, %s463
      %s465 = sphi 0, %s463
      %s466 = sphi 0, %s465
      %s480 = sphi 0, %s466
      %s484 = sphi 0, %s484
      %s486 = sphi 0, %s484
      %s487 = sphi 0, %s486
      %s501 = sphi 0, %s487
      %s507 = sphi 0, %s509
      %s510 = sphi 0, %s507
      %s511 = sphi 0, %s510
      %s527 = sphi 0, %s511
    $region4: #{tpu_custom_call.1} parent=1 // loop_header_branch
      %44 = sbr.rel (%p42) target = $region8
    $region5: #{tpu_custom_call.1} parent=1 // loop_body
      %s46 = ssub.s32 %s41, 1
      %s47 = ssub.s32 %s41, 2
      %s48 = sadd.s32 %s41, 1
      %s49 = ssub.s32 %s41, %s48
      %p50 = scmp.eq.s32.totalorder %s49, 0
      %s52 = sadd.s32 %s51, 1
      %s53 = scalar_select %p50, %s51, %s52
      %p56 = pneg %p50
      %p57 = scmp.eq.s32.totalorder %s41, 1
      %p58 = por %p56, %p57
      %p59 = scmp.ne.s32.totalorder %s51, %s54
      %p60 = scmp.eq.s32.totalorder %s41, 0
      %p61 = por %p59, %p60
      %p62 = scmp.ne.s32.totalorder %s51, %s54
      %p63 = scmp.eq.s32.totalorder %s46, 1
      %p64 = por %p62, %p63
      %p65 = scmp.ne.s32.totalorder %s54, %s55
      %p66 = scmp.eq.s32.totalorder %s46, 0
      %p67 = por %p65, %p66
      %p68 = scmp.ne.s32.totalorder %s54, %s55
      %p69 = scmp.eq.s32.totalorder %s47, 1
      %p70 = por %p68, %p69
      %p72 = scmp.ne.s32.totalorder %s55, %s71
      %p73 = scmp.eq.s32.totalorder %s47, 0
      %p74 = por %p72, %p73
      %s75 = ssub.s32 %s41, %s48
      %p76 = scmp.eq.s32.totalorder %s75, 0
      %s78 = sadd.s32 %s77, 1
      %s79 = scalar_select %p76, %s77, %s78
      %p82 = pneg %p76
      %p83 = scmp.eq.s32.totalorder %s41, 1
      %p84 = por %p82, %p83
      %p85 = scmp.ne.s32.totalorder %s77, %s80
      %p86 = scmp.eq.s32.totalorder %s41, 0
      %p87 = por %p85, %p86
      %p88 = scmp.ne.s32.totalorder %s77, %s80
      %p89 = scmp.eq.s32.totalorder %s46, 1
      %p90 = por %p88, %p89
      %p91 = scmp.ne.s32.totalorder %s80, %s81
      %p92 = scmp.eq.s32.totalorder %s46, 0
      %p93 = por %p91, %p92
      %p94 = scmp.ne.s32.totalorder %s80, %s81
      %p95 = scmp.eq.s32.totalorder %s47, 1
      %p96 = por %p94, %p95
      %p98 = scmp.ne.s32.totalorder %s81, %s97
      %p99 = scmp.eq.s32.totalorder %s47, 0
      %p100 = por %p98, %p99
      %s101 = ssub.s32 %s41, %s48
      %p102 = scmp.eq.s32.totalorder %s101, 0
      %s104 = sadd.s32 %s103, 1
      %s105 = scalar_select %p102, %s103, %s104
      %p108 = pneg %p102
      %p109 = scmp.eq.s32.totalorder %s41, 1
      %p110 = por %p108, %p109
      %p111 = scmp.ne.s32.totalorder %s103, %s106
      %p112 = scmp.eq.s32.totalorder %s41, 0
      %p113 = por %p111, %p112
      %p114 = scmp.ne.s32.totalorder %s103, %s106
      %p115 = scmp.eq.s32.totalorder %s46, 1
      %p116 = por %p114, %p115
      %p117 = scmp.ne.s32.totalorder %s106, %s107
      %p118 = scmp.eq.s32.totalorder %s46, 0
      %p119 = por %p117, %p118
      %p120 = scmp.ne.s32.totalorder %s106, %s107
      %p121 = scmp.eq.s32.totalorder %s47, 1
      %p122 = por %p120, %p121
      %p124 = scmp.ne.s32.totalorder %s107, %s123
      %p125 = scmp.eq.s32.totalorder %s47, 0
      %p126 = por %p124, %p125
      %s128 = sadd.s32 %s127, 1
      %p131 = scmp.eq.s32.totalorder %s41, 1
      %p132 = scmp.ne.s32.totalorder %s127, %s129
      %p133 = scmp.eq.s32.totalorder %s41, 0
      %p134 = por %p132, %p133
      %p135 = scmp.ne.s32.totalorder %s127, %s129
      %p136 = scmp.eq.s32.totalorder %s46, 1
      %p137 = por %p135, %p136
      %p138 = scmp.ne.s32.totalorder %s129, %s130
      %p139 = scmp.eq.s32.totalorder %s46, 0
      %p140 = por %p138, %p139
      %p141 = scmp.ne.s32.totalorder %s129, %s130
      %p142 = scmp.eq.s32.totalorder %s47, 1
      %p143 = por %p141, %p142
      %p145 = scmp.ne.s32.totalorder %s130, %s144
      %p146 = scmp.eq.s32.totalorder %s47, 0
      %p147 = por %p145, %p146
      %s149 = sadd.s32 %s148, 1
      %p152 = scmp.eq.s32.totalorder %s41, 1
      %p153 = scmp.ne.s32.totalorder %s148, %s150
      %p154 = scmp.eq.s32.totalorder %s41, 0
      %p155 = por %p153, %p154
      %p156 = scmp.ne.s32.totalorder %s148, %s150
      %p157 = scmp.eq.s32.totalorder %s46, 1
      %p158 = por %p156, %p157
      %p159 = scmp.ne.s32.totalorder %s150, %s151
      %p160 = scmp.eq.s32.totalorder %s46, 0
      %p161 = por %p159, %p160
      %p162 = scmp.ne.s32.totalorder %s150, %s151
      %p163 = scmp.eq.s32.totalorder %s47, 1
      %p164 = por %p162, %p163
      %p166 = scmp.ne.s32.totalorder %s151, %s165
      %p167 = scmp.eq.s32.totalorder %s47, 0
      %p168 = por %p166, %p167
      %s170 = sadd.s32 %s169, 1
      %p173 = scmp.eq.s32.totalorder %s41, 1
      %p174 = scmp.ne.s32.totalorder %s169, %s171
      %p175 = scmp.eq.s32.totalorder %s41, 0
      %p176 = por %p174, %p175
      %p177 = scmp.ne.s32.totalorder %s169, %s171
      %p178 = scmp.eq.s32.totalorder %s46, 1
      %p179 = por %p177, %p178
      %p180 = scmp.ne.s32.totalorder %s171, %s172
      %p181 = scmp.eq.s32.totalorder %s46, 0
      %p182 = por %p180, %p181
      %p183 = scmp.ne.s32.totalorder %s171, %s172
      %p184 = scmp.eq.s32.totalorder %s47, 1
      %p185 = por %p183, %p184
      %p187 = scmp.ne.s32.totalorder %s172, %s186
      %p188 = scmp.eq.s32.totalorder %s47, 0
      %p189 = por %p187, %p188
      %s191 = sadd.s32 %s190, 1
      %p194 = scmp.eq.s32.totalorder %s41, 1
      %p195 = scmp.ne.s32.totalorder %s190, %s192
      %p196 = scmp.eq.s32.totalorder %s41, 0
      %p197 = por %p195, %p196
      %p198 = scmp.ne.s32.totalorder %s190, %s192
      %p199 = scmp.eq.s32.totalorder %s46, 1
      %p200 = por %p198, %p199
      %p201 = scmp.ne.s32.totalorder %s192, %s193
      %p202 = scmp.eq.s32.totalorder %s46, 0
      %p203 = por %p201, %p202
      %p204 = scmp.ne.s32.totalorder %s192, %s193
      %p205 = scmp.eq.s32.totalorder %s47, 1
      %p206 = por %p204, %p205
      %p208 = scmp.ne.s32.totalorder %s193, %s207
      %p209 = scmp.eq.s32.totalorder %s47, 0
      %p210 = por %p208, %p209
      %s212 = sadd.s32 %s211, 1
      %p215 = scmp.eq.s32.totalorder %s41, 1
      %p216 = scmp.ne.s32.totalorder %s211, %s213
      %p217 = scmp.eq.s32.totalorder %s41, 0
      %p218 = por %p216, %p217
      %p219 = scmp.ne.s32.totalorder %s211, %s213
      %p220 = scmp.eq.s32.totalorder %s46, 1
      %p221 = por %p219, %p220
      %p222 = scmp.ne.s32.totalorder %s213, %s214
      %p223 = scmp.eq.s32.totalorder %s46, 0
      %p224 = por %p222, %p223
      %p225 = scmp.ne.s32.totalorder %s213, %s214
      %p226 = scmp.eq.s32.totalorder %s47, 1
      %p227 = por %p225, %p226
      %p229 = scmp.ne.s32.totalorder %s214, %s228
      %p230 = scmp.eq.s32.totalorder %s47, 0
      %p231 = por %p229, %p230
      %s233 = sadd.s32 %s232, 1
      %p236 = scmp.eq.s32.totalorder %s41, 1
      %p237 = scmp.ne.s32.totalorder %s232, %s234
      %p238 = scmp.eq.s32.totalorder %s41, 0
      %p239 = por %p237, %p238
      %p240 = scmp.ne.s32.totalorder %s232, %s234
      %p241 = scmp.eq.s32.totalorder %s46, 1
      %p242 = por %p240, %p241
      %p243 = scmp.ne.s32.totalorder %s234, %s235
      %p244 = scmp.eq.s32.totalorder %s46, 0
      %p245 = por %p243, %p244
      %p246 = scmp.ne.s32.totalorder %s234, %s235
      %p247 = scmp.eq.s32.totalorder %s47, 1
      %p248 = por %p246, %p247
      %p250 = scmp.ne.s32.totalorder %s235, %s249
      %p251 = scmp.eq.s32.totalorder %s47, 0
      %p252 = por %p250, %p251
      %s254 = sadd.s32 %s253, 1
      %p257 = scmp.eq.s32.totalorder %s41, 1
      %p258 = scmp.ne.s32.totalorder %s253, %s255
      %p259 = scmp.eq.s32.totalorder %s41, 0
      %p260 = por %p258, %p259
      %p261 = scmp.ne.s32.totalorder %s253, %s255
      %p262 = scmp.eq.s32.totalorder %s46, 1
      %p263 = por %p261, %p262
      %p264 = scmp.ne.s32.totalorder %s255, %s256
      %p265 = scmp.eq.s32.totalorder %s46, 0
      %p266 = por %p264, %p265
      %p267 = scmp.ne.s32.totalorder %s255, %s256
      %p268 = scmp.eq.s32.totalorder %s47, 1
      %p269 = por %p267, %p268
      %p271 = scmp.ne.s32.totalorder %s256, %s270
      %p272 = scmp.eq.s32.totalorder %s47, 0
      %p273 = por %p271, %p272
      %s275 = sadd.s32 %s274, 1
      %p278 = scmp.eq.s32.totalorder %s41, 1
      %p279 = scmp.ne.s32.totalorder %s274, %s276
      %p280 = scmp.eq.s32.totalorder %s41, 0
      %p281 = por %p279, %p280
      %p282 = scmp.ne.s32.totalorder %s274, %s276
      %p283 = scmp.eq.s32.totalorder %s46, 1
      %p284 = por %p282, %p283
      %p285 = scmp.ne.s32.totalorder %s276, %s277
      %p286 = scmp.eq.s32.totalorder %s46, 0
      %p287 = por %p285, %p286
      %p288 = scmp.ne.s32.totalorder %s276, %s277
      %p289 = scmp.eq.s32.totalorder %s47, 1
      %p290 = por %p288, %p289
      %p292 = scmp.ne.s32.totalorder %s277, %s291
      %p293 = scmp.eq.s32.totalorder %s47, 0
      %p294 = por %p292, %p293
      %s296 = sadd.s32 %s295, 1
      %p299 = scmp.eq.s32.totalorder %s41, 1
      %p300 = scmp.ne.s32.totalorder %s295, %s297
      %p301 = scmp.eq.s32.totalorder %s41, 0
      %p302 = por %p300, %p301
      %p303 = scmp.ne.s32.totalorder %s295, %s297
      %p304 = scmp.eq.s32.totalorder %s46, 1
      %p305 = por %p303, %p304
      %p306 = scmp.ne.s32.totalorder %s297, %s298
      %p307 = scmp.eq.s32.totalorder %s46, 0
      %p308 = por %p306, %p307
      %p309 = scmp.ne.s32.totalorder %s297, %s298
      %p310 = scmp.eq.s32.totalorder %s47, 1
      %p311 = por %p309, %p310
      %p313 = scmp.ne.s32.totalorder %s298, %s312
      %p314 = scmp.eq.s32.totalorder %s47, 0
      %p315 = por %p313, %p314
      %s317 = sadd.s32 %s316, 1
      %p320 = scmp.eq.s32.totalorder %s41, 1
      %p321 = scmp.ne.s32.totalorder %s316, %s318
      %p322 = scmp.eq.s32.totalorder %s41, 0
      %p323 = por %p321, %p322
      %p324 = scmp.ne.s32.totalorder %s316, %s318
      %p325 = scmp.eq.s32.totalorder %s46, 1
      %p326 = por %p324, %p325
      %p327 = scmp.ne.s32.totalorder %s318, %s319
      %p328 = scmp.eq.s32.totalorder %s46, 0
      %p329 = por %p327, %p328
      %p330 = scmp.ne.s32.totalorder %s318, %s319
      %p331 = scmp.eq.s32.totalorder %s47, 1
      %p332 = por %p330, %p331
      %p334 = scmp.ne.s32.totalorder %s319, %s333
      %p335 = scmp.eq.s32.totalorder %s47, 0
      %p336 = por %p334, %p335
      %s338 = sadd.s32 %s337, 1
      %p341 = scmp.eq.s32.totalorder %s41, 1
      %p342 = scmp.ne.s32.totalorder %s337, %s339
      %p343 = scmp.eq.s32.totalorder %s41, 0
      %p344 = por %p342, %p343
      %p345 = scmp.ne.s32.totalorder %s337, %s339
      %p346 = scmp.eq.s32.totalorder %s46, 1
      %p347 = por %p345, %p346
      %p348 = scmp.ne.s32.totalorder %s339, %s340
      %p349 = scmp.eq.s32.totalorder %s46, 0
      %p350 = por %p348, %p349
      %p351 = scmp.ne.s32.totalorder %s339, %s340
      %p352 = scmp.eq.s32.totalorder %s47, 1
      %p353 = por %p351, %p352
      %p355 = scmp.ne.s32.totalorder %s340, %s354
      %p356 = scmp.eq.s32.totalorder %s47, 0
      %p357 = por %p355, %p356
      %s359 = sadd.s32 %s358, 1
      %p362 = scmp.eq.s32.totalorder %s41, 1
      %p363 = scmp.ne.s32.totalorder %s358, %s360
      %p364 = scmp.eq.s32.totalorder %s41, 0
      %p365 = por %p363, %p364
      %p366 = scmp.ne.s32.totalorder %s358, %s360
      %p367 = scmp.eq.s32.totalorder %s46, 1
      %p368 = por %p366, %p367
      %p369 = scmp.ne.s32.totalorder %s360, %s361
      %p370 = scmp.eq.s32.totalorder %s46, 0
      %p371 = por %p369, %p370
      %p372 = scmp.ne.s32.totalorder %s360, %s361
      %p373 = scmp.eq.s32.totalorder %s47, 1
      %p374 = por %p372, %p373
      %p376 = scmp.ne.s32.totalorder %s361, %s375
      %p377 = scmp.eq.s32.totalorder %s47, 0
      %p378 = por %p376, %p377
      %s380 = sadd.s32 %s379, 1
      %p383 = scmp.eq.s32.totalorder %s41, 1
      %p384 = scmp.ne.s32.totalorder %s379, %s381
      %p385 = scmp.eq.s32.totalorder %s41, 0
      %p386 = por %p384, %p385
      %p387 = scmp.ne.s32.totalorder %s379, %s381
      %p388 = scmp.eq.s32.totalorder %s46, 1
      %p389 = por %p387, %p388
      %p390 = scmp.ne.s32.totalorder %s381, %s382
      %p391 = scmp.eq.s32.totalorder %s46, 0
      %p392 = por %p390, %p391
      %p393 = scmp.ne.s32.totalorder %s381, %s382
      %p394 = scmp.eq.s32.totalorder %s47, 1
      %p395 = por %p393, %p394
      %p397 = scmp.ne.s32.totalorder %s382, %s396
      %p398 = scmp.eq.s32.totalorder %s47, 0
      %p399 = por %p397, %p398
      %s401 = sadd.s32 %s400, 1
      %p404 = scmp.eq.s32.totalorder %s41, 1
      %p405 = scmp.ne.s32.totalorder %s400, %s402
      %p406 = scmp.eq.s32.totalorder %s41, 0
      %p407 = por %p405, %p406
      %p408 = scmp.ne.s32.totalorder %s400, %s402
      %p409 = scmp.eq.s32.totalorder %s46, 1
      %p410 = por %p408, %p409
      %p411 = scmp.ne.s32.totalorder %s402, %s403
      %p412 = scmp.eq.s32.totalorder %s46, 0
      %p413 = por %p411, %p412
      %p414 = scmp.ne.s32.totalorder %s402, %s403
      %p415 = scmp.eq.s32.totalorder %s47, 1
      %p416 = por %p414, %p415
      %p418 = scmp.ne.s32.totalorder %s403, %s417
      %p419 = scmp.eq.s32.totalorder %s47, 0
      %p420 = por %p418, %p419
      %s422 = sadd.s32 %s421, 1
      %p425 = scmp.eq.s32.totalorder %s41, 1
      %p426 = scmp.ne.s32.totalorder %s421, %s423
      %p427 = scmp.eq.s32.totalorder %s41, 0
      %p428 = por %p426, %p427
      %p429 = scmp.ne.s32.totalorder %s421, %s423
      %p430 = scmp.eq.s32.totalorder %s46, 1
      %p431 = por %p429, %p430
      %p432 = scmp.ne.s32.totalorder %s423, %s424
      %p433 = scmp.eq.s32.totalorder %s46, 0
      %p434 = por %p432, %p433
      %p435 = scmp.ne.s32.totalorder %s423, %s424
      %p436 = scmp.eq.s32.totalorder %s47, 1
      %p437 = por %p435, %p436
      %p439 = scmp.ne.s32.totalorder %s424, %s438
      %p440 = scmp.eq.s32.totalorder %s47, 0
      %p441 = por %p439, %p440
      %s443 = sadd.s32 %s442, 1
      %p446 = scmp.eq.s32.totalorder %s41, 1
      %p447 = scmp.ne.s32.totalorder %s442, %s444
      %p448 = scmp.eq.s32.totalorder %s41, 0
      %p449 = por %p447, %p448
      %p450 = scmp.ne.s32.totalorder %s442, %s444
      %p451 = scmp.eq.s32.totalorder %s46, 1
      %p452 = por %p450, %p451
      %p453 = scmp.ne.s32.totalorder %s444, %s445
      %p454 = scmp.eq.s32.totalorder %s46, 0
      %p455 = por %p453, %p454
      %p456 = scmp.ne.s32.totalorder %s444, %s445
      %p457 = scmp.eq.s32.totalorder %s47, 1
      %p458 = por %p456, %p457
      %p460 = scmp.ne.s32.totalorder %s445, %s459
      %p461 = scmp.eq.s32.totalorder %s47, 0
      %p462 = por %p460, %p461
      %s464 = sadd.s32 %s463, 1
      %p467 = scmp.eq.s32.totalorder %s41, 1
      %p468 = scmp.ne.s32.totalorder %s463, %s465
      %p469 = scmp.eq.s32.totalorder %s41, 0
      %p470 = por %p468, %p469
      %p471 = scmp.ne.s32.totalorder %s463, %s465
      %p472 = scmp.eq.s32.totalorder %s46, 1
      %p473 = por %p471, %p472
      %p474 = scmp.ne.s32.totalorder %s465, %s466
      %p475 = scmp.eq.s32.totalorder %s46, 0
      %p476 = por %p474, %p475
      %p477 = scmp.ne.s32.totalorder %s465, %s466
      %p478 = scmp.eq.s32.totalorder %s47, 1
      %p479 = por %p477, %p478
      %p481 = scmp.ne.s32.totalorder %s466, %s480
      %p482 = scmp.eq.s32.totalorder %s47, 0
      %p483 = por %p481, %p482
      %s485 = sadd.s32 %s484, 1
      %p488 = scmp.eq.s32.totalorder %s41, 1
      %p489 = scmp.ne.s32.totalorder %s484, %s486
      %p490 = scmp.eq.s32.totalorder %s41, 0
      %p491 = por %p489, %p490
      %p492 = scmp.ne.s32.totalorder %s484, %s486
      %p493 = scmp.eq.s32.totalorder %s46, 1
      %p494 = por %p492, %p493
      %p495 = scmp.ne.s32.totalorder %s486, %s487
      %p496 = scmp.eq.s32.totalorder %s46, 0
      %p497 = por %p495, %p496
      %p498 = scmp.ne.s32.totalorder %s486, %s487
      %p499 = scmp.eq.s32.totalorder %s47, 1
      %p500 = por %p498, %p499
      %p502 = scmp.ne.s32.totalorder %s487, %s501
      %p503 = scmp.eq.s32.totalorder %s47, 0
      %p504 = por %p502, %p503
      %s505 = ssub.s32 %s41, %s48
      %p506 = scmp.eq.s32.totalorder %s505, 0
      %s508 = sadd.s32 %s507, 1
      %s509 = scalar_select %p506, %s507, %s508
      %p512 = pneg %p506
      %p513 = scmp.eq.s32.totalorder %s41, 1
      %p514 = por %p512, %p513
      %p515 = scmp.ne.s32.totalorder %s507, %s510
      %p516 = scmp.eq.s32.totalorder %s41, 0
      %p517 = por %p515, %p516
      %p518 = scmp.ne.s32.totalorder %s507, %s510
      %p519 = scmp.eq.s32.totalorder %s46, 1
      %p520 = por %p518, %p519
      %p521 = scmp.ne.s32.totalorder %s510, %s511
      %p522 = scmp.eq.s32.totalorder %s46, 0
      %p523 = por %p521, %p522
      %p524 = scmp.ne.s32.totalorder %s510, %s511
      %p525 = scmp.eq.s32.totalorder %s47, 1
      %p526 = por %p524, %p525
      %p528 = scmp.ne.s32.totalorder %s511, %s527
      %p529 = scmp.eq.s32.totalorder %s47, 0
      %p530 = por %p528, %p529
      %p531 = scmp.le.s32.totalorder 1, %s41
      %p532 = scmp.lt.s32.totalorder %s41, 3
      %p533 = pnand %p531, %p532
      %p534 = pneg %p533
      // Predicated region
      $region9: #{tpu_custom_call.1} parent=5 // pred_check
        _
      $region10: #{tpu_custom_call.1} parent=5 // pred_check_branch
        %536 = sbr.rel (%p533) target = $region12
      $region11: #{tpu_custom_call.1} parent=5 // pred_region
        %s537 = ssub.s32 %s41, 1
        // Predicated region
        $region13: #{tpu_custom_call.1} parent=11 // pred_check
          %p538 = pneg %p140
        $region14: #{tpu_custom_call.1} parent=11 // pred_check_branch
          %540 = sbr.rel (%p538) target = $region16
        $region15: #{tpu_custom_call.1} parent=11 // pred_region
          %542 = vsyncadd [#allocation9], 0
          %s543 = sshll.u32 %s3, 4
          %s544 = int_to_ptr.hbm [resolvable:$true] %s543
          %s545 = sshll.u32 [#allocation8], 4
          %s546 = int_to_ptr.vmem [resolvable:$true] %s545
          %551 = dma.hbm_to_vmem [thread:$0]  %s544, 48, %s546, [#allocation9], 16, 16, 1
        $region16: #{tpu_custom_call.1} parent=11 // pred_fallthru
          _
        // Predicated region
        $region17: #{tpu_custom_call.1} parent=11 // pred_check
          %p552 = pneg %p161
        $region18: #{tpu_custom_call.1} parent=11 // pred_check_branch
          %554 = sbr.rel (%p552) target = $region20
        $region19: #{tpu_custom_call.1} parent=11 // pred_region
          _
        $region20: #{tpu_custom_call.1} parent=11 // pred_fallthru
          _
        // Predicated region
        $region21: #{tpu_custom_call.1} parent=11 // pred_check
          %p555 = pneg %p182
        $region22: #{tpu_custom_call.1} parent=11 // pred_check_branch
          %557 = sbr.rel (%p555) target = $region24
        $region23: #{tpu_custom_call.1} parent=11 // pred_region
          %559 = vsyncadd [#allocation9], 0
          %s560 = sshll.u32 %s5, 4
          %s561 = int_to_ptr.hbm [resolvable:$true] %s560
          %s562 = sshll.u32 [#allocation10], 4
          %s563 = int_to_ptr.vmem [resolvable:$true] %s562
          %568 = dma.hbm_to_vmem [thread:$0]  %s561, 3072, %s563, [#allocation9], 192, 192, 12
        $region24: #{tpu_custom_call.1} parent=11 // pred_fallthru
          _
        // Predicated region
        $region25: #{tpu_custom_call.1} parent=11 // pred_check
          %p569 = pneg %p203
        $region26: #{tpu_custom_call.1} parent=11 // pred_check_branch
          %571 = sbr.rel (%p569) target = $region28
        $region27: #{tpu_custom_call.1} parent=11 // pred_region
          %573 = vsyncadd [#allocation12], 0
          %s575 = sshll.u32 %s6, 4
          %s576 = int_to_ptr.hbm [resolvable:$true] %s575
          %s577 = sshll.u32 [#allocation11], 4
          %s578 = int_to_ptr.vmem [resolvable:$true] %s577
          %580 = dma.hbm_to_vmem [thread:$0]  %s576, 48, %s578, [#allocation12]
        $region28: #{tpu_custom_call.1} parent=11 // pred_fallthru
          _
        // Predicated region
        $region29: #{tpu_custom_call.1} parent=11 // pred_check
          %p581 = pneg %p224
        $region30: #{tpu_custom_call.1} parent=11 // pred_check_branch
          %583 = sbr.rel (%p581) target = $region32
        $region31: #{tpu_custom_call.1} parent=11 // pred_region
          %585 = vsyncadd [#allocation12], 0
          %s586 = sshll.u32 %s7, 4
          %s587 = int_to_ptr.hbm [resolvable:$true] %s586
          %s588 = sshll.u32 [#allocation13], 4
          %s589 = int_to_ptr.vmem [resolvable:$true] %s588
          %594 = dma.hbm_to_vmem [thread:$0]  %s587, 1024, %s589, [#allocation12], 64, 64, 4
        $region32: #{tpu_custom_call.1} parent=11 // pred_fallthru
          _
        // Predicated region
        $region33: #{tpu_custom_call.1} parent=11 // pred_check
          %p595 = pneg %p245
        $region34: #{tpu_custom_call.1} parent=11 // pred_check_branch
          %597 = sbr.rel (%p595) target = $region36
        $region35: #{tpu_custom_call.1} parent=11 // pred_region
          %599 = vsyncadd [#allocation15], 0
          %s601 = sshll.u32 %s8, 4
          %s602 = int_to_ptr.hbm [resolvable:$true] %s601
          %s603 = sshll.u32 [#allocation14], 4
          %s604 = int_to_ptr.vmem [resolvable:$true] %s603
          %606 = dma.hbm_to_vmem [thread:$0]  %s602, 16, %s604, [#allocation15]
        $region36: #{tpu_custom_call.1} parent=11 // pred_fallthru
          _
        // Predicated region
        $region37: #{tpu_custom_call.1} parent=11 // pred_check
          %p607 = pneg %p266
        $region38: #{tpu_custom_call.1} parent=11 // pred_check_branch
          %609 = sbr.rel (%p607) target = $region40
        $region39: #{tpu_custom_call.1} parent=11 // pred_region
          %611 = vsyncadd [#allocation15], 0
          %s612 = sshll.u32 %s9, 4
          %s613 = int_to_ptr.hbm [resolvable:$true] %s612
          %s614 = sshll.u32 [#allocation16], 4
          %s615 = int_to_ptr.vmem [resolvable:$true] %s614
          %620 = dma.hbm_to_vmem [thread:$0]  %s613, 1024, %s615, [#allocation15], 64, 64, 4
        $region40: #{tpu_custom_call.1} parent=11 // pred_fallthru
          _
        // Predicated region
        $region41: #{tpu_custom_call.1} parent=11 // pred_check
          %p621 = pneg %p287
        $region42: #{tpu_custom_call.1} parent=11 // pred_check_branch
          %623 = sbr.rel (%p621) target = $region44
        $region43: #{tpu_custom_call.1} parent=11 // pred_region
          _
        $region44: #{tpu_custom_call.1} parent=11 // pred_fallthru
          _
        // Predicated region
        $region45: #{tpu_custom_call.1} parent=11 // pred_check
          %p624 = pneg %p308
        $region46: #{tpu_custom_call.1} parent=11 // pred_check_branch
          %626 = sbr.rel (%p624) target = $region48
        $region47: #{tpu_custom_call.1} parent=11 // pred_region
          %628 = vsyncadd [#allocation18], 0
          %s629 = sshll.u32 %s11, 4
          %s630 = int_to_ptr.hbm [resolvable:$true] %s629
          %s631 = sshll.u32 [#allocation17], 4
          %s632 = int_to_ptr.vmem [resolvable:$true] %s631
          %637 = dma.hbm_to_vmem [thread:$0]  %s630, 2048, %s632, [#allocation18], 128, 128, 8
        $region48: #{tpu_custom_call.1} parent=11 // pred_fallthru
          _
        // Predicated region
        $region49: #{tpu_custom_call.1} parent=11 // pred_check
          %p638 = pneg %p329
        $region50: #{tpu_custom_call.1} parent=11 // pred_check_branch
          %640 = sbr.rel (%p638) target = $region52
        $region51: #{tpu_custom_call.1} parent=11 // pred_region
          _
        $region52: #{tpu_custom_call.1} parent=11 // pred_fallthru
          _
        // Predicated region
        $region53: #{tpu_custom_call.1} parent=11 // pred_check
          %p641 = pneg %p350
        $region54: #{tpu_custom_call.1} parent=11 // pred_check_branch
          %643 = sbr.rel (%p641) target = $region56
        $region55: #{tpu_custom_call.1} parent=11 // pred_region
          %645 = vsyncadd [#allocation18], 0
          %s646 = sshll.u32 %s13, 4
          %s647 = int_to_ptr.hbm [resolvable:$true] %s646
          %s648 = sshll.u32 [#allocation19], 4
          %s649 = int_to_ptr.vmem [resolvable:$true] %s648
          %654 = dma.hbm_to_vmem [thread:$0]  %s647, 1024, %s649, [#allocation18], 64, 64, 4
        $region56: #{tpu_custom_call.1} parent=11 // pred_fallthru
          _
        // Predicated region
        $region57: #{tpu_custom_call.1} parent=11 // pred_check
          %p655 = pneg %p371
        $region58: #{tpu_custom_call.1} parent=11 // pred_check_branch
          %657 = sbr.rel (%p655) target = $region60
        $region59: #{tpu_custom_call.1} parent=11 // pred_region
          _
        $region60: #{tpu_custom_call.1} parent=11 // pred_fallthru
          _
        // Predicated region
        $region61: #{tpu_custom_call.1} parent=11 // pred_check
          %p658 = pneg %p392
        $region62: #{tpu_custom_call.1} parent=11 // pred_check_branch
          %660 = sbr.rel (%p658) target = $region64
        $region63: #{tpu_custom_call.1} parent=11 // pred_region
          %662 = vsyncadd [#allocation21], 0
          %s663 = sshll.u32 %s15, 4
          %s664 = int_to_ptr.hbm [resolvable:$true] %s663
          %s665 = sshll.u32 [#allocation20], 4
          %s666 = int_to_ptr.vmem [resolvable:$true] %s665
          %671 = dma.hbm_to_vmem [thread:$0]  %s664, 2048, %s666, [#allocation21], 128, 128, 8
        $region64: #{tpu_custom_call.1} parent=11 // pred_fallthru
          _
        // Predicated region
        $region65: #{tpu_custom_call.1} parent=11 // pred_check
          %p672 = pneg %p413
        $region66: #{tpu_custom_call.1} parent=11 // pred_check_branch
          %674 = sbr.rel (%p672) target = $region68
        $region67: #{tpu_custom_call.1} parent=11 // pred_region
          _
        $region68: #{tpu_custom_call.1} parent=11 // pred_fallthru
          _
        // Predicated region
        $region69: #{tpu_custom_call.1} parent=11 // pred_check
          %p675 = pneg %p434
        $region70: #{tpu_custom_call.1} parent=11 // pred_check_branch
          %677 = sbr.rel (%p675) target = $region72
        $region71: #{tpu_custom_call.1} parent=11 // pred_region
          %679 = vsyncadd [#allocation21], 0
          %s680 = sshll.u32 %s17, 4
          %s681 = int_to_ptr.hbm [resolvable:$true] %s680
          %s682 = sshll.u32 [#allocation22], 4
          %s683 = int_to_ptr.vmem [resolvable:$true] %s682
          %688 = dma.hbm_to_vmem [thread:$0]  %s681, 2048, %s683, [#allocation21], 64, 64, 4
        $region72: #{tpu_custom_call.1} parent=11 // pred_fallthru
          _
        // Predicated region
        $region73: #{tpu_custom_call.1} parent=11 // pred_check
          %p689 = pneg %p455
        $region74: #{tpu_custom_call.1} parent=11 // pred_check_branch
          %691 = sbr.rel (%p689) target = $region76
        $region75: #{tpu_custom_call.1} parent=11 // pred_region
          _
        $region76: #{tpu_custom_call.1} parent=11 // pred_fallthru
          _
        // Predicated region
        $region77: #{tpu_custom_call.1} parent=11 // pred_check
          %p692 = pneg %p476
        $region78: #{tpu_custom_call.1} parent=11 // pred_check_branch
          %694 = sbr.rel (%p692) target = $region80
        $region79: #{tpu_custom_call.1} parent=11 // pred_region
          _
        $region80: #{tpu_custom_call.1} parent=11 // pred_fallthru
          _
        // Predicated region
        $region81: #{tpu_custom_call.1} parent=11 // pred_check
          %p695 = pneg %p497
        $region82: #{tpu_custom_call.1} parent=11 // pred_check_branch
          %697 = sbr.rel (%p695) target = $region84
        $region83: #{tpu_custom_call.1} parent=11 // pred_region
          _
        $region84: #{tpu_custom_call.1} parent=11 // pred_fallthru
          _
      $region12: #{tpu_custom_call.1} parent=5 // pred_fallthru
        _
      %p698 = scmp.lt.s32.totalorder %s41, 2
      // Predicated region
      $region85: #{tpu_custom_call.1} parent=5 // pred_check
        %p699 = pneg %p698
      $region86: #{tpu_custom_call.1} parent=5 // pred_check_branch
        %701 = sbr.rel (%p699) target = $region88
      $region87: #{tpu_custom_call.1} parent=5 // pred_region
        // Predicated region
        $region89: #{tpu_custom_call.1} parent=87 // pred_check
          %p702 = pneg %p61
        $region90: #{tpu_custom_call.1} parent=87 // pred_check_branch
          %704 = sbr.rel (%p702) target = $region92
        $region91: #{tpu_custom_call.1} parent=87 // pred_region
          %s705 = sand.u32 %s51, 1
          %s706 = scalar_lea.sflag [#allocation3], %s705
          %s707 = sand.u32 %s51, 1
          %s708 = smul.addr %s707, 4
          %s709 = scalar_lea.vmem [#allocation2], %s708
          %711 = vsyncadd %s706, 0
          %s712 = smul.addr %s41, 4
          %s713 = scalar_lea.hbm %s0, %s712
          %s715 = sshll.u32 %s713, 4
          %s716 = int_to_ptr.hbm [resolvable:$true] %s715
          %s717 = sshll.u32 %s709, 4
          %s718 = int_to_ptr.vmem [resolvable:$true] %s717
          %720 = dma.hbm_to_vmem [thread:$0]  %s716, 64, %s718, %s706
        $region92: #{tpu_custom_call.1} parent=87 // pred_fallthru
          _
        // Predicated region
        $region93: #{tpu_custom_call.1} parent=87 // pred_check
          %p721 = pneg %p87
        $region94: #{tpu_custom_call.1} parent=87 // pred_check_branch
          %723 = sbr.rel (%p721) target = $region96
        $region95: #{tpu_custom_call.1} parent=87 // pred_region
          %s724 = sand.u32 %s41, 1
          %s725 = scalar_lea.sflag [#allocation6], %s724
          %s726 = sand.u32 %s77, 1
          %s727 = smul.addr %s726, 4
          %s728 = scalar_lea.vmem [#allocation5], %s727
          %730 = vsyncadd %s725, 0
          %s731 = smul.addr %s41, 4
          %s732 = scalar_lea.hbm %s1, %s731
          %s734 = sshll.u32 %s732, 4
          %s735 = int_to_ptr.hbm [resolvable:$true] %s734
          %s736 = sshll.u32 %s728, 4
          %s737 = int_to_ptr.vmem [resolvable:$true] %s736
          %739 = dma.hbm_to_vmem [thread:$0]  %s735, 64, %s737, %s725
        $region96: #{tpu_custom_call.1} parent=87 // pred_fallthru
          _
        // Predicated region
        $region97: #{tpu_custom_call.1} parent=87 // pred_check
          %p740 = pneg %p113
        $region98: #{tpu_custom_call.1} parent=87 // pred_check_branch
          %742 = sbr.rel (%p740) target = $region100
        $region99: #{tpu_custom_call.1} parent=87 // pred_region
          %s743 = sand.u32 %s41, 1
          %s744 = scalar_lea.sflag [#allocation6], %s743
          %s745 = sand.u32 %s103, 1
          %s746 = scalar_lea.vmem [#allocation7], %s745
          %748 = vsyncadd %s744, 0
          %s749 = scalar_lea.hbm %s2, %s41
          %s751 = sshll.u32 %s749, 4
          %s752 = int_to_ptr.hbm [resolvable:$true] %s751
          %s753 = sshll.u32 %s746, 4
          %s754 = int_to_ptr.vmem [resolvable:$true] %s753
          %756 = dma.hbm_to_vmem [thread:$0]  %s752, 16, %s754, %s744
        $region100: #{tpu_custom_call.1} parent=87 // pred_fallthru
          _
      $region88: #{tpu_custom_call.1} parent=5 // pred_fallthru
        _
      %p757 = scmp.le.s32.totalorder 1, %s41
      %p758 = scmp.lt.s32.totalorder %s41, 3
      %p759 = pnand %p757, %p758
      %p760 = pneg %p759
      // Predicated region
      $region101: #{tpu_custom_call.1} parent=5 // pred_check
        _
      $region102: #{tpu_custom_call.1} parent=5 // pred_check_branch
        %762 = sbr.rel (%p759) target = $region104
      $region103: #{tpu_custom_call.1} parent=5 // pred_region
        %s763 = ssub.s32 %s41, 1
        %s764 = sand.u32 %s54, 1
        %s765 = scalar_lea.sflag [#allocation3], %s764
        %s766 = sand.u32 %s54, 1
        %s767 = smul.addr %s766, 4
        %s768 = scalar_lea.vmem [#allocation2], %s767
        // Predicated region
        $region105: #{tpu_custom_call.1} parent=103 // pred_check
          %p769 = pneg %p67
        $region106: #{tpu_custom_call.1} parent=103 // pred_check_branch
          %771 = sbr.rel (%p769) target = $region108
        $region107: #{tpu_custom_call.1} parent=103 // pred_region
          %773 = dma.done %s765, 64
        $region108: #{tpu_custom_call.1} parent=103 // pred_fallthru
          _
        %s774 = sand.u32 %s46, 1
        %s775 = scalar_lea.sflag [#allocation6], %s774
        %s776 = sand.u32 %s80, 1
        %s777 = smul.addr %s776, 4
        %s778 = scalar_lea.vmem [#allocation5], %s777
        // Predicated region
        $region109: #{tpu_custom_call.1} parent=103 // pred_check
          %p779 = pneg %p93
        $region110: #{tpu_custom_call.1} parent=103 // pred_check_branch
          %781 = sbr.rel (%p779) target = $region112
        $region111: #{tpu_custom_call.1} parent=103 // pred_region
          %783 = dma.done %s775, 64
        $region112: #{tpu_custom_call.1} parent=103 // pred_fallthru
          _
        %s784 = sand.u32 %s46, 1
        %s785 = scalar_lea.sflag [#allocation6], %s784
        %s786 = sand.u32 %s106, 1
        %s787 = scalar_lea.vmem [#allocation7], %s786
        // Predicated region
        $region113: #{tpu_custom_call.1} parent=103 // pred_check
          %p788 = pneg %p119
        $region114: #{tpu_custom_call.1} parent=103 // pred_check_branch
          %790 = sbr.rel (%p788) target = $region116
        $region115: #{tpu_custom_call.1} parent=103 // pred_region
          %792 = dma.done %s785, 16
        $region116: #{tpu_custom_call.1} parent=103 // pred_fallthru
          _
        // Predicated region
        $region117: #{tpu_custom_call.1} parent=103 // pred_check
          %p793 = pneg %p140
        $region118: #{tpu_custom_call.1} parent=103 // pred_check_branch
          %795 = sbr.rel (%p793) target = $region120
        $region119: #{tpu_custom_call.1} parent=103 // pred_region
          %797 = dma.done [#allocation9], 48
        $region120: #{tpu_custom_call.1} parent=103 // pred_fallthru
          _
        // Predicated region
        $region121: #{tpu_custom_call.1} parent=103 // pred_check
          %p798 = pneg %p182
        $region122: #{tpu_custom_call.1} parent=103 // pred_check_branch
          %800 = sbr.rel (%p798) target = $region124
        $region123: #{tpu_custom_call.1} parent=103 // pred_region
          %802 = dma.done [#allocation9], 3072
        $region124: #{tpu_custom_call.1} parent=103 // pred_fallthru
          _
        // Predicated region
        $region125: #{tpu_custom_call.1} parent=103 // pred_check
          %p803 = pneg %p203
        $region126: #{tpu_custom_call.1} parent=103 // pred_check_branch
          %805 = sbr.rel (%p803) target = $region128
        $region127: #{tpu_custom_call.1} parent=103 // pred_region
          %807 = dma.done [#allocation12], 48
        $region128: #{tpu_custom_call.1} parent=103 // pred_fallthru
          _
        // Predicated region
        $region129: #{tpu_custom_call.1} parent=103 // pred_check
          %p808 = pneg %p224
        $region130: #{tpu_custom_call.1} parent=103 // pred_check_branch
          %810 = sbr.rel (%p808) target = $region132
        $region131: #{tpu_custom_call.1} parent=103 // pred_region
          %812 = dma.done [#allocation12], 1024
        $region132: #{tpu_custom_call.1} parent=103 // pred_fallthru
          _
        // Predicated region
        $region133: #{tpu_custom_call.1} parent=103 // pred_check
          %p813 = pneg %p245
        $region134: #{tpu_custom_call.1} parent=103 // pred_check_branch
          %815 = sbr.rel (%p813) target = $region136
        $region135: #{tpu_custom_call.1} parent=103 // pred_region
          %817 = dma.done [#allocation15], 16
        $region136: #{tpu_custom_call.1} parent=103 // pred_fallthru
          _
        // Predicated region
        $region137: #{tpu_custom_call.1} parent=103 // pred_check
          %p818 = pneg %p266
        $region138: #{tpu_custom_call.1} parent=103 // pred_check_branch
          %820 = sbr.rel (%p818) target = $region140
        $region139: #{tpu_custom_call.1} parent=103 // pred_region
          %822 = dma.done [#allocation15], 1024
        $region140: #{tpu_custom_call.1} parent=103 // pred_fallthru
          _
        // Predicated region
        $region141: #{tpu_custom_call.1} parent=103 // pred_check
          %p823 = pneg %p308
        $region142: #{tpu_custom_call.1} parent=103 // pred_check_branch
          %825 = sbr.rel (%p823) target = $region144
        $region143: #{tpu_custom_call.1} parent=103 // pred_region
          %827 = dma.done [#allocation18], 2048
        $region144: #{tpu_custom_call.1} parent=103 // pred_fallthru
          _
        // Predicated region
        $region145: #{tpu_custom_call.1} parent=103 // pred_check
          %p828 = pneg %p350
        $region146: #{tpu_custom_call.1} parent=103 // pred_check_branch
          %830 = sbr.rel (%p828) target = $region148
        $region147: #{tpu_custom_call.1} parent=103 // pred_region
          %832 = dma.done [#allocation18], 1024
        $region148: #{tpu_custom_call.1} parent=103 // pred_fallthru
          _
        // Predicated region
        $region149: #{tpu_custom_call.1} parent=103 // pred_check
          %p833 = pneg %p392
        $region150: #{tpu_custom_call.1} parent=103 // pred_check_branch
          %835 = sbr.rel (%p833) target = $region152
        $region151: #{tpu_custom_call.1} parent=103 // pred_region
          %837 = dma.done [#allocation21], 2048
        $region152: #{tpu_custom_call.1} parent=103 // pred_fallthru
          _
        // Predicated region
        $region153: #{tpu_custom_call.1} parent=103 // pred_check
          %p838 = pneg %p434
        $region154: #{tpu_custom_call.1} parent=103 // pred_check_branch
          %840 = sbr.rel (%p838) target = $region156
        $region155: #{tpu_custom_call.1} parent=103 // pred_region
          %842 = dma.done [#allocation21], 2048
        $region156: #{tpu_custom_call.1} parent=103 // pred_fallthru
          _
        %s843 = sand.u32 %s54, 1
        %s844 = scalar_lea.sflag [#allocation3], %s843
        %s845 = sand.u32 %s54, 1
        %s846 = smul.addr %s845, 4
        %s847 = scalar_lea.vmem [#allocation2], %s846
        %p848 = pneg %p67
        %p849 = pneg %p64
        %s850 = sand.u32 %s46, 1
        %s851 = scalar_lea.sflag [#allocation6], %s850
        %s852 = sand.u32 %s80, 1
        %s853 = smul.addr %s852, 4
        %s854 = scalar_lea.vmem [#allocation5], %s853
        %p855 = pneg %p93
        %p856 = pneg %p90
        %s857 = sand.u32 %s46, 1
        %s858 = scalar_lea.sflag [#allocation6], %s857
        %s859 = sand.u32 %s106, 1
        %s860 = scalar_lea.vmem [#allocation7], %s859
        %p861 = pneg %p119
        %p862 = pneg %p116
        %p863 = pneg %p140
        %p864 = pneg %p137
        %p865 = pneg %p161
        %p866 = pneg %p158
        %p867 = pneg %p182
        %p868 = pneg %p179
        %p869 = pneg %p203
        %p870 = pneg %p200
        %p871 = pneg %p224
        %p872 = pneg %p221
        %p873 = pneg %p245
        %p874 = pneg %p242
        %p875 = pneg %p266
        %p876 = pneg %p263
        %p877 = pneg %p287
        %p878 = pneg %p284
        %p879 = pneg %p308
        %p880 = pneg %p305
        %p881 = pneg %p329
        %p882 = pneg %p326
        %p883 = pneg %p350
        %p884 = pneg %p347
        %p885 = pneg %p371
        %p886 = pneg %p368
        %p887 = pneg %p392
        %p888 = pneg %p389
        %p889 = pneg %p413
        %p890 = pneg %p410
        %p891 = pneg %p434
        %p892 = pneg %p431
        %p893 = pneg %p455
        %p894 = pneg %p452
        %p895 = pneg %p476
        %p896 = pneg %p473
        %p897 = pneg %p497
        %p898 = pneg %p494
        %p899 = pneg %p523
        %p900 = pneg %p520
        %s901 = sand.u32 %s510, 1
        %s902 = scalar_lea.sflag [#allocation4], %s901
        %s903 = sand.u32 %s510, 1
        %s904 = smul.addr %s903, 4
        %s905 = scalar_lea.vmem [#allocation23], %s904
        %v907 = vld [vmem:[%s768] sm:$0xf]
        %v908 = vunpack.c.l.bf16 %v907
        %v909 = vld [vmem:[%s778] sm:$0xf]
        %v910 = vld [vmem:[%s787] sm:$0x1]
        %v911 = vlaneseq
        %v912 = vshrl.u32 %v911, 7
        %v913 = vlaneseq
        %v914 = vand.u32 %v913, 127
        %vm915 = vcmp.ge.s32.totalorder %v912, %v914
        %vm916 = vcmp.gt.f32.partialorder %v910, 0.0
        %v917 = vld [vmem:[#allocation8] sm:$0x1]
        %v918 = vld [vmem:[%s4] sm:$0x1]
        %919 = vadd.xlane.f32.xlu0 %v908
        %v920 = vpop.xlane.xlu0 %919
        %v921 = vrcp.pop 128.0
        %v922 = vmul.f32 128.0, %v921
        %v923 = vsub.f32 1.0, %v922
        %v924 = vmul.f32 %v921, %v923
        %v925 = vadd.f32 %v921, %v924
        %vm926 = vweird.f32 %v921
        %v927 = vsel %vm926, %v921, %v925
        %v928 = vmul.f32 %v920, %v927
        %v929 = vsub.f32 %v908, %v928
        %v930 = vmul.f32 %v929, %v929
        %931 = vadd.xlane.f32.xlu0 %v930
        %v932 = vpop.xlane.xlu0 %931
        %v933 = vmul.f32 %v932, %v927
        %v935 = vperm.slane %v917, 0
        %v937 = vmul.f32 %v935, %v929
        %v938 = vadd.f32 %v933, 1e-05
        %v939 = vrsqrt.pop %v938
        %v940 = vmul.f32 %v939, %v938
        %v941 = vmul.f32 %v940, %v939
        %v942 = vmul.f32 0.5, %v941
        %v943 = vsub.f32 1.5, %v942
        %v944 = vmul.f32 %v939, %v943
        %vm945 = vweird.f32 %v938
        %vm946 = vweird.f32 %v939
        %vm947 = vmor %vm945, %vm946
        %v948 = vsel %vm947, %v939, %v944
        %v949 = vmul.f32 %v937, %v948
        %v951 = vperm.slane %v918, 0
        %v953 = vadd.f32 %v949, %v951
        %v954 = vpack.c.bf16 %v953, %v953
        %v955 = vld [vmem:[#allocation10] sm:$0xff]
        %v956 = vld [vmem:[#allocation10 + $0x8] sm:$0xf]
        %v957 = vld [vmem:[#allocation10 + $0xc] sm:$0xff]
        %v958 = vld [vmem:[#allocation10 + $0x14] sm:$0xf]
        %v959 = vld [vmem:[#allocation10 + $0x18] sm:$0xff]
        %v960 = vld [vmem:[#allocation10 + $0x20] sm:$0xf]
        %v961 = vld [vmem:[#allocation10 + $0x24] sm:$0xff]
        %v962 = vld [vmem:[#allocation10 + $0x2c] sm:$0xf]
        %v963 = vld [vmem:[#allocation10 + $0x30] sm:$0xff]
        %v964 = vld [vmem:[#allocation10 + $0x38] sm:$0xf]
        %v965 = vld [vmem:[#allocation10 + $0x3c] sm:$0xff]
        %v966 = vld [vmem:[#allocation10 + $0x44] sm:$0xf]
        %v967 = vld [vmem:[#allocation10 + $0x48] sm:$0xff]
        %v968 = vld [vmem:[#allocation10 + $0x50] sm:$0xf]
        %v969 = vld [vmem:[#allocation10 + $0x54] sm:$0xff]
        %v970 = vld [vmem:[#allocation10 + $0x5c] sm:$0xf]
        %v971 = vld [vmem:[#allocation10 + $0x60] sm:$0xff]
        %v972 = vld [vmem:[#allocation10 + $0x68] sm:$0xf]
        %v973 = vld [vmem:[#allocation10 + $0x6c] sm:$0xff]
        %v974 = vld [vmem:[#allocation10 + $0x74] sm:$0xf]
        %v975 = vld [vmem:[#allocation10 + $0x78] sm:$0xff]
        %v976 = vld [vmem:[#allocation10 + $0x80] sm:$0xf]
        %v977 = vld [vmem:[#allocation10 + $0x84] sm:$0xff]
        %v978 = vld [vmem:[#allocation10 + $0x8c] sm:$0xf]
        %v979 = vld [vmem:[#allocation10 + $0x90] sm:$0xff]
        %v980 = vld [vmem:[#allocation10 + $0x98] sm:$0xf]
        %v981 = vld [vmem:[#allocation10 + $0x9c] sm:$0xff]
        %v982 = vld [vmem:[#allocation10 + $0xa4] sm:$0xf]
        %v983 = vld [vmem:[#allocation10 + $0xa8] sm:$0xff]
        %v984 = vld [vmem:[#allocation10 + $0xb0] sm:$0xf]
        %v985 = vld [vmem:[#allocation10 + $0xb4] sm:$0xff]
        %v986 = vld [vmem:[#allocation10 + $0xbc] sm:$0xf]
        %v987 = vld [vmem:[#allocation11] sm:$0x7]
        %v989 = vperm.slane %v987, 0
        %v990 = vperm.slane %v987, 1
        %v991 = vperm.slane %v987, 2
        %v1027 = vunpack.c.l.b16 %v955
        %v1028 = vunpack.c.h.b16 %v955
        %v1029 = vunpack.c.l.b16 %v956
        %v1030 = vunpack.c.l.b16 %v957
        %v1031 = vunpack.c.h.b16 %v957
        %v1032 = vunpack.c.l.b16 %v958
        %v1033 = vunpack.c.l.b16 %v959
        %v1034 = vunpack.c.h.b16 %v959
        %v1035 = vunpack.c.l.b16 %v960
        %v1036 = vunpack.c.l.b16 %v961
        %v1037 = vunpack.c.h.b16 %v961
        %v1038 = vunpack.c.l.b16 %v962
        %v1039 = vunpack.c.l.b16 %v963
        %v1040 = vunpack.c.h.b16 %v963
        %v1041 = vunpack.c.l.b16 %v964
        %v1042 = vunpack.c.l.b16 %v965
        %v1043 = vunpack.c.h.b16 %v965
        %v1044 = vunpack.c.l.b16 %v966
        %v1045 = vunpack.c.l.b16 %v967
        %v1046 = vunpack.c.h.b16 %v967
        %v1047 = vunpack.c.l.b16 %v968
        %v1048 = vunpack.c.l.b16 %v969
        %v1049 = vunpack.c.h.b16 %v969
        %v1050 = vunpack.c.l.b16 %v970
        %v1051 = vunpack.c.l.b16 %v971
        %v1052 = vunpack.c.h.b16 %v971
        %v1053 = vunpack.c.l.b16 %v972
        %v1054 = vunpack.c.l.b16 %v973
        %v1055 = vunpack.c.h.b16 %v973
        %v1056 = vunpack.c.l.b16 %v974
        %v1057 = vunpack.c.l.b16 %v975
        %v1058 = vunpack.c.h.b16 %v975
        %v1059 = vunpack.c.l.b16 %v976
        %v1060 = vunpack.c.l.b16 %v977
        %v1061 = vunpack.c.h.b16 %v977
        %v1062 = vunpack.c.l.b16 %v978
        %v1063 = vunpack.c.l.b16 %v979
        %v1064 = vunpack.c.h.b16 %v979
        %v1065 = vunpack.c.l.b16 %v980
        %v1066 = vunpack.c.l.b16 %v981
        %v1067 = vunpack.c.h.b16 %v981
        %v1068 = vunpack.c.l.b16 %v982
        %v1069 = vunpack.c.l.b16 %v983
        %v1070 = vunpack.c.h.b16 %v983
        %v1071 = vunpack.c.l.b16 %v984
        %v1072 = vunpack.c.l.b16 %v985
        %v1073 = vunpack.c.h.b16 %v985
        %v1074 = vunpack.c.l.b16 %v986
        %v1075 = vpack.c.b16 %v1030, %v1027
        %v1076 = vpack.c.b16 %v1031, %v1028
        %v1077 = vpack.c.b16 %v1032, %v1029
        %v1078 = vpack.c.b16 %v1036, %v1033
        %v1079 = vpack.c.b16 %v1037, %v1034
        %v1080 = vpack.c.b16 %v1038, %v1035
        %v1081 = vpack.c.b16 %v1042, %v1039
        %v1082 = vpack.c.b16 %v1043, %v1040
        %v1083 = vpack.c.b16 %v1044, %v1041
        %v1084 = vpack.c.b16 %v1048, %v1045
        %v1085 = vpack.c.b16 %v1049, %v1046
        %v1086 = vpack.c.b16 %v1050, %v1047
        %v1087 = vpack.c.b16 %v1054, %v1051
        %v1088 = vpack.c.b16 %v1055, %v1052
        %v1089 = vpack.c.b16 %v1056, %v1053
        %v1090 = vpack.c.b16 %v1060, %v1057
        %v1091 = vpack.c.b16 %v1061, %v1058
        %v1092 = vpack.c.b16 %v1062, %v1059
        %v1093 = vpack.c.b16 %v1066, %v1063
        %v1094 = vpack.c.b16 %v1067, %v1064
        %v1095 = vpack.c.b16 %v1068, %v1065
        %v1096 = vpack.c.b16 %v1072, %v1069
        %v1097 = vpack.c.b16 %v1073, %v1070
        %v1098 = vpack.c.b16 %v1074, %v1071
        %1123 = vmatpush.bf16.msra.mxu0 %v1096
        %1124 = vmatpush.bf16.msra.mxu0 %v1093
        %1125 = vmatpush.bf16.msra.mxu0 %v1090
        %1126 = vmatpush.bf16.msra.mxu0 %v1087
        %1127 = vmatpush.bf16.msra.mxu0 %v1084
        %1128 = vmatpush.bf16.msra.mxu0 %v1081
        %1129 = vmatpush.bf16.msra.mxu0 %v1078
        %1130 = vmatpush.bf16.msra.mxu0 %v1075
        %1131 = vmatmul.bf16.gmra.mxu0 %v954
        %v1132 = vpop.f32.mrf.mxu0
        %v1133 = vadd.f32 %v989, %v1132
        %v1134 = vpop.f32.mrf.mxu0
        %1135 = vdwg.mxu0
        %1136 = vmatpush.bf16.msra.mxu0 %v1097
        %1137 = vmatpush.bf16.msra.mxu0 %v1094
        %1138 = vmatpush.bf16.msra.mxu0 %v1091
        %1139 = vmatpush.bf16.msra.mxu0 %v1088
        %1140 = vmatpush.bf16.msra.mxu0 %v1085
        %1141 = vmatpush.bf16.msra.mxu0 %v1082
        %1142 = vmatpush.bf16.msra.mxu0 %v1079
        %1143 = vmatpush.bf16.msra.mxu0 %v1076
        %1144 = vmatmul.bf16.gmra.mxu0 %v954
        %v1145 = vpop.f32.mrf.mxu0
        %v1146 = vadd.f32 %v990, %v1145
        %v1147 = vpop.f32.mrf.mxu0
        %1148 = vdwg.mxu0
        %1149 = vmatpush.bf16.msra.mxu0 %v1098
        %1150 = vmatpush.bf16.msra.mxu0 %v1095
        %1151 = vmatpush.bf16.msra.mxu0 %v1092
        %1152 = vmatpush.bf16.msra.mxu0 %v1089
        %1153 = vmatpush.bf16.msra.mxu0 %v1086
        %1154 = vmatpush.bf16.msra.mxu0 %v1083
        %1155 = vmatpush.bf16.msra.mxu0 %v1080
        %1156 = vmatpush.bf16.msra.mxu0 %v1077
        %1157 = vmatmul.bf16.gmra.mxu0 %v954
        %v1158 = vpop.f32.mrf.mxu0
        %v1159 = vadd.f32 %v991, %v1158
        %v1160 = vpop.f32.mrf.mxu0
        %1161 = vdwg.mxu0
        %v1162 = vpack.c.bf16 %v1146, %v1133
        %v1163 = vpack.c.bf16 %v1159, %v1159
        %v1165 = vrot.slane %v1162, 4
        %vm1166 = vcmask 261120
        %v1168 = vsel %vm1166, %v1162, 0
        %v1171 = vsel %vm1166, %v1165, 0
        %1173 = vmatpush.bf16.xpose.msra.mxu0 0
        %1174 = vmatpush.bf16.xpose.msra.mxu0 0
        %1175 = vmatpush.bf16.xpose.msra.mxu0 0
        %1176 = vmatpush.bf16.xpose.msra.mxu0 0
        %1177 = vmatpush.bf16.xpose.msra.mxu0 0
        %1178 = vmatpush.bf16.xpose.msra.mxu0 0
        %1179 = vmatpush.bf16.xpose.msra.mxu0 0
        %1180 = vmatpush.bf16.xpose.msra.mxu0 %v1171
        %1181 = vmatmul.bf16.gmra.mxu0 %v1168
        %v1182 = vpop.f32.mrf.mxu0
        %v1183 = vadd.f32 0.0, %v1182
        %v1184 = vpop.f32.mrf.mxu0
        %1185 = vdwg.mxu0
        %v1186 = vsel %vm915, %v1183, -1e+09
        %vm1187 = vcmask 64512
        %v1188 = vsel %vm1187, %v1186, -inf
        %1189 = vmax.xlane.f32.xlu0 %v1188
        %v1190 = vpop.xlane.xlu0 %1189
        %v1191 = vsub.f32 %v1186, %v1190
        %v1192 = vmul.f32 %v1191, 1.442695
        %v1193 = vpow.pop %v1192
        %v1194 = vsel %vm1187, %v1193, 0.0
        %1195 = vadd.xlane.f32.xlu0 %v1194
        %v1196 = vpop.xlane.xlu0 %1195
        %v1197 = vrcp.pop %v1196
        %v1198 = vpack.c.bf16 %v1193, %v1193
        %v1200 = vsel %vm1187, %v1198, 0
        %vm1202 = vcmask 1043456
        %v1204 = vsel %vm1202, %v1163, 0
        %1206 = vmatpush.bf16.msra.mxu0 0
        %1207 = vmatpush.bf16.msra.mxu0 0
        %1208 = vmatpush.bf16.msra.mxu0 0
        %1209 = vmatpush.bf16.msra.mxu0 0
        %1210 = vmatpush.bf16.msra.mxu0 0
        %1211 = vmatpush.bf16.msra.mxu0 0
        %1212 = vmatpush.bf16.msra.mxu0 0
        %1213 = vmatpush.bf16.msra.mxu0 %v1204
        %1214 = vmatmul.bf16.gmra.mxu0 %v1200
        %v1215 = vpop.f32.mrf.mxu0
        %v1216 = vadd.f32 0.0, %v1215
        %v1217 = vpop.f32.mrf.mxu0
        %1218 = vdwg.mxu0
        %v1219 = vmul.f32 %v1216, %v1197
        %v1220 = vpack.c.bf16 %v1219, %v1219
        %1221 = vrot.lane.b32.xlu0 %v1162, 96
        %v1222 = vpop.permute.xlu0 %1221
        %v1223 = vrot.slane %v1222, 4
        %v1224 = vunpack.c.l.b16 %v1162
        %v1225 = vpack.c.b16 %v1224, %v1224
        %1226 = vrot.lane.b32.xlu0 %v1225, 96
        %v1227 = vpop.permute.xlu0 %1226
        %v1229 = vsel %vm1166, %v1227, 0
        %v1232 = vsel %vm1166, %v1223, 0
        %1234 = vmatpush.bf16.xpose.msra.mxu0 0
        %1235 = vmatpush.bf16.xpose.msra.mxu0 0
        %1236 = vmatpush.bf16.xpose.msra.mxu0 0
        %1237 = vmatpush.bf16.xpose.msra.mxu0 0
        %1238 = vmatpush.bf16.xpose.msra.mxu0 0
        %1239 = vmatpush.bf16.xpose.msra.mxu0 0
        %1240 = vmatpush.bf16.xpose.msra.mxu0 0
        %1241 = vmatpush.bf16.xpose.msra.mxu0 %v1232
        %1242 = vmatmul.bf16.gmra.mxu0 %v1229
        %v1243 = vpop.f32.mrf.mxu0
        %v1244 = vadd.f32 0.0, %v1243
        %v1245 = vpop.f32.mrf.mxu0
        %1246 = vdwg.mxu0
        %v1247 = vsel %vm915, %v1244, -1e+09
        %v1248 = vsel %vm1187, %v1247, -inf
        %1249 = vmax.xlane.f32.xlu0 %v1248
        %v1250 = vpop.xlane.xlu0 %1249
        %v1251 = vsub.f32 %v1247, %v1250
        %v1252 = vmul.f32 %v1251, 1.442695
        %v1253 = vpow.pop %v1252
        %v1254 = vsel %vm1187, %v1253, 0.0
        %1255 = vadd.xlane.f32.xlu0 %v1254
        %v1256 = vpop.xlane.xlu0 %1255
        %v1257 = vrcp.pop %v1256
        %v1258 = vpack.c.bf16 %v1253, %v1253
        %v1260 = vunpack.c.l.b16 %v1163
        %v1261 = vpack.c.b16 %v1260, %v1260
        %1262 = vrot.lane.b32.xlu0 %v1261, 96
        %v1263 = vpop.permute.xlu0 %1262
        %v1265 = vsel %vm1187, %v1258, 0
        %v1268 = vsel %vm1202, %v1263, 0
        %1270 = vmatpush.bf16.msra.mxu0 0
        %1271 = vmatpush.bf16.msra.mxu0 0
        %1272 = vmatpush.bf16.msra.mxu0 0
        %1273 = vmatpush.bf16.msra.mxu0 0
        %1274 = vmatpush.bf16.msra.mxu0 0
        %1275 = vmatpush.bf16.msra.mxu0 0
        %1276 = vmatpush.bf16.msra.mxu0 0
        %1277 = vmatpush.bf16.msra.mxu0 %v1268
        %1278 = vmatmul.bf16.gmra.mxu0 %v1265
        %v1279 = vpop.f32.mrf.mxu0
        %v1280 = vadd.f32 0.0, %v1279
        %v1281 = vpop.f32.mrf.mxu0
        %1282 = vdwg.mxu0
        %v1283 = vmul.f32 %v1280, %v1257
        %v1284 = vpack.c.bf16 %v1283, %v1283
        %1285 = vrot.lane.b32.xlu0 %v1162, 64
        %v1286 = vpop.permute.xlu0 %1285
        %v1287 = vrot.slane %v1286, 4
        %1288 = vrot.lane.b32.xlu0 %v1225, 64
        %v1289 = vpop.permute.xlu0 %1288
        %v1291 = vsel %vm1166, %v1289, 0
        %v1294 = vsel %vm1166, %v1287, 0
        %1296 = vmatpush.bf16.xpose.msra.mxu0 0
        %1297 = vmatpush.bf16.xpose.msra.mxu0 0
        %1298 = vmatpush.bf16.xpose.msra.mxu0 0
        %1299 = vmatpush.bf16.xpose.msra.mxu0 0
        %1300 = vmatpush.bf16.xpose.msra.mxu0 0
        %1301 = vmatpush.bf16.xpose.msra.mxu0 0
        %1302 = vmatpush.bf16.xpose.msra.mxu0 0
        %1303 = vmatpush.bf16.xpose.msra.mxu0 %v1294
        %1304 = vmatmul.bf16.gmra.mxu0 %v1291
        %v1305 = vpop.f32.mrf.mxu0
        %v1306 = vadd.f32 0.0, %v1305
        %v1307 = vpop.f32.mrf.mxu0
        %1308 = vdwg.mxu0
        %v1309 = vsel %vm915, %v1306, -1e+09
        %v1310 = vsel %vm1187, %v1309, -inf
        %1311 = vmax.xlane.f32.xlu0 %v1310
        %v1312 = vpop.xlane.xlu0 %1311
        %v1313 = vsub.f32 %v1309, %v1312
        %v1314 = vmul.f32 %v1313, 1.442695
        %v1315 = vpow.pop %v1314
        %v1316 = vsel %vm1187, %v1315, 0.0
        %1317 = vadd.xlane.f32.xlu0 %v1316
        %v1318 = vpop.xlane.xlu0 %1317
        %v1319 = vrcp.pop %v1318
        %v1320 = vpack.c.bf16 %v1315, %v1315
        %1321 = vrot.lane.b32.xlu0 %v1261, 64
        %v1322 = vpop.permute.xlu0 %1321
        %v1324 = vsel %vm1187, %v1320, 0
        %v1327 = vsel %vm1202, %v1322, 0
        %1329 = vmatpush.bf16.msra.mxu0 0
        %1330 = vmatpush.bf16.msra.mxu0 0
        %1331 = vmatpush.bf16.msra.mxu0 0
        %1332 = vmatpush.bf16.msra.mxu0 0
        %1333 = vmatpush.bf16.msra.mxu0 0
        %1334 = vmatpush.bf16.msra.mxu0 0
        %1335 = vmatpush.bf16.msra.mxu0 0
        %1336 = vmatpush.bf16.msra.mxu0 %v1327
        %1337 = vmatmul.bf16.gmra.mxu0 %v1324
        %v1338 = vpop.f32.mrf.mxu0
        %v1339 = vadd.f32 0.0, %v1338
        %v1340 = vpop.f32.mrf.mxu0
        %1341 = vdwg.mxu0
        %v1342 = vmul.f32 %v1339, %v1319
        %v1343 = vpack.c.bf16 %v1342, %v1342
        %1344 = vrot.lane.b32.xlu0 %v1162, 32
        %v1345 = vpop.permute.xlu0 %1344
        %v1346 = vrot.slane %v1345, 4
        %1347 = vrot.lane.b32.xlu0 %v1225, 32
        %v1348 = vpop.permute.xlu0 %1347
        %v1350 = vsel %vm1166, %v1348, 0
        %v1353 = vsel %vm1166, %v1346, 0
        %1355 = vmatpush.bf16.xpose.msra.mxu0 0
        %1356 = vmatpush.bf16.xpose.msra.mxu0 0
        %1357 = vmatpush.bf16.xpose.msra.mxu0 0
        %1358 = vmatpush.bf16.xpose.msra.mxu0 0
        %1359 = vmatpush.bf16.xpose.msra.mxu0 0
        %1360 = vmatpush.bf16.xpose.msra.mxu0 0
        %1361 = vmatpush.bf16.xpose.msra.mxu0 0
        %1362 = vmatpush.bf16.xpose.msra.mxu0 %v1353
        %1363 = vmatmul.bf16.gmra.mxu0 %v1350
        %v1364 = vpop.f32.mrf.mxu0
        %v1365 = vadd.f32 0.0, %v1364
        %v1366 = vpop.f32.mrf.mxu0
        %1367 = vdwg.mxu0
        %v1368 = vsel %vm915, %v1365, -1e+09
        %v1369 = vsel %vm1187, %v1368, -inf
        %1370 = vmax.xlane.f32.xlu0 %v1369
        %v1371 = vpop.xlane.xlu0 %1370
        %v1372 = vsub.f32 %v1368, %v1371
        %v1373 = vmul.f32 %v1372, 1.442695
        %v1374 = vpow.pop %v1373
        %v1375 = vsel %vm1187, %v1374, 0.0
        %1376 = vadd.xlane.f32.xlu0 %v1375
        %v1377 = vpop.xlane.xlu0 %1376
        %v1378 = vrcp.pop %v1377
        %v1379 = vpack.c.bf16 %v1374, %v1374
        %1380 = vrot.lane.b32.xlu0 %v1261, 32
        %v1381 = vpop.permute.xlu0 %1380
        %v1383 = vsel %vm1187, %v1379, 0
        %v1386 = vsel %vm1202, %v1381, 0
        %1388 = vmatpush.bf16.msra.mxu0 0
        %1389 = vmatpush.bf16.msra.mxu0 0
        %1390 = vmatpush.bf16.msra.mxu0 0
        %1391 = vmatpush.bf16.msra.mxu0 0
        %1392 = vmatpush.bf16.msra.mxu0 0
        %1393 = vmatpush.bf16.msra.mxu0 0
        %1394 = vmatpush.bf16.msra.mxu0 0
        %1395 = vmatpush.bf16.msra.mxu0 %v1386
        %1396 = vmatmul.bf16.gmra.mxu0 %v1383
        %v1397 = vpop.f32.mrf.mxu0
        %v1398 = vadd.f32 0.0, %v1397
        %v1399 = vpop.f32.mrf.mxu0
        %1400 = vdwg.mxu0
        %v1401 = vmul.f32 %v1398, %v1378
        %v1402 = vpack.c.bf16 %v1401, %v1401
        %v1404 = vunpack.c.l.b16 %v1284
        %v1405 = vpack.c.b16 %v1404, %v1404
        %1406 = vrot.lane.b32.xlu0 %v1405, 32
        %v1407 = vpop.permute.xlu0 %1406
        %v1409 = vunpack.c.l.b16 %v1343
        %v1410 = vpack.c.b16 %v1409, %v1409
        %1411 = vrot.lane.b32.xlu0 %v1410, 64
        %v1412 = vpop.permute.xlu0 %1411
        %v1414 = vunpack.c.l.b16 %v1402
        %v1415 = vpack.c.b16 %v1414, %v1414
        %1416 = vrot.lane.b32.xlu0 %v1415, 96
        %v1417 = vpop.permute.xlu0 %1416
        %v1420 = vsel %vm1166, %v1220, %v1407
        %vm1421 = vcmask 523264
        %v1423 = vsel %vm1421, %v1420, %v1412
        %vm1424 = vcmask 785408
        %v1426 = vsel %vm1424, %v1423, %v1417
        %v1428 = vld [vmem:[#allocation13] sm:$0xf]
        %v1429 = vld [vmem:[#allocation13 + $0x4] sm:$0xf]
        %v1430 = vld [vmem:[#allocation13 + $0x8] sm:$0xf]
        %v1431 = vld [vmem:[#allocation13 + $0xc] sm:$0xf]
        %v1432 = vld [vmem:[#allocation13 + $0x10] sm:$0xf]
        %v1433 = vld [vmem:[#allocation13 + $0x14] sm:$0xf]
        %v1434 = vld [vmem:[#allocation13 + $0x18] sm:$0xf]
        %v1435 = vld [vmem:[#allocation13 + $0x1c] sm:$0xf]
        %v1436 = vld [vmem:[#allocation13 + $0x20] sm:$0xf]
        %v1437 = vld [vmem:[#allocation13 + $0x24] sm:$0xf]
        %v1438 = vld [vmem:[#allocation13 + $0x28] sm:$0xf]
        %v1439 = vld [vmem:[#allocation13 + $0x2c] sm:$0xf]
        %v1440 = vld [vmem:[#allocation13 + $0x30] sm:$0xf]
        %v1441 = vld [vmem:[#allocation13 + $0x34] sm:$0xf]
        %v1442 = vld [vmem:[#allocation13 + $0x38] sm:$0xf]
        %v1443 = vld [vmem:[#allocation13 + $0x3c] sm:$0xf]
        %v1444 = vld [vmem:[#allocation14] sm:$0x1]
        %v1446 = vperm.slane %v1444, 0
        %v1464 = vunpack.c.l.b16 %v1428
        %v1465 = vunpack.c.l.b16 %v1429
        %v1466 = vunpack.c.l.b16 %v1430
        %v1467 = vunpack.c.l.b16 %v1431
        %v1468 = vunpack.c.l.b16 %v1432
        %v1469 = vunpack.c.l.b16 %v1433
        %v1470 = vunpack.c.l.b16 %v1434
        %v1471 = vunpack.c.l.b16 %v1435
        %v1472 = vunpack.c.l.b16 %v1436
        %v1473 = vunpack.c.l.b16 %v1437
        %v1474 = vunpack.c.l.b16 %v1438
        %v1475 = vunpack.c.l.b16 %v1439
        %v1476 = vunpack.c.l.b16 %v1440
        %v1477 = vunpack.c.l.b16 %v1441
        %v1478 = vunpack.c.l.b16 %v1442
        %v1479 = vunpack.c.l.b16 %v1443
        %v1480 = vpack.c.b16 %v1465, %v1464
        %v1481 = vpack.c.b16 %v1467, %v1466
        %v1482 = vpack.c.b16 %v1469, %v1468
        %v1483 = vpack.c.b16 %v1471, %v1470
        %v1484 = vpack.c.b16 %v1473, %v1472
        %v1485 = vpack.c.b16 %v1475, %v1474
        %v1486 = vpack.c.b16 %v1477, %v1476
        %v1487 = vpack.c.b16 %v1479, %v1478
        %1496 = vmatpush.bf16.msra.mxu0 %v1487
        %1497 = vmatpush.bf16.msra.mxu0 %v1486
        %1498 = vmatpush.bf16.msra.mxu0 %v1485
        %1499 = vmatpush.bf16.msra.mxu0 %v1484
        %1500 = vmatpush.bf16.msra.mxu0 %v1483
        %1501 = vmatpush.bf16.msra.mxu0 %v1482
        %1502 = vmatpush.bf16.msra.mxu0 %v1481
        %1503 = vmatpush.bf16.msra.mxu0 %v1480
        %1504 = vmatmul.bf16.gmra.mxu0 %v1426
        %v1505 = vpop.f32.mrf.mxu0
        %v1506 = vadd.f32 %v1446, %v1505
        %v1507 = vpop.f32.mrf.mxu0
        %1508 = vdwg.mxu0
        %v1509 = vadd.f32 %v908, %v1506
        %s1510 = scalar_lea.vmem [#allocation8], 1
        %v1511 = vld [vmem:[%s1510] sm:$0x1]
        %s1512 = scalar_lea.vmem %s4, 1
        %v1513 = vld [vmem:[%s1512] sm:$0x1]
        %1514 = vadd.xlane.f32.xlu0 %v1509
        %v1515 = vpop.xlane.xlu0 %1514
        %v1516 = vmul.f32 %v1515, %v927
        %v1517 = vsub.f32 %v1509, %v1516
        %v1518 = vmul.f32 %v1517, %v1517
        %1519 = vadd.xlane.f32.xlu0 %v1518
        %v1520 = vpop.xlane.xlu0 %1519
        %v1521 = vmul.f32 %v1520, %v927
        %v1523 = vperm.slane %v1511, 0
        %v1525 = vmul.f32 %v1523, %v1517
        %v1526 = vadd.f32 %v1521, 1e-05
        %v1527 = vrsqrt.pop %v1526
        %v1528 = vmul.f32 %v1527, %v1526
        %v1529 = vmul.f32 %v1528, %v1527
        %v1530 = vmul.f32 0.5, %v1529
        %v1531 = vsub.f32 1.5, %v1530
        %v1532 = vmul.f32 %v1527, %v1531
        %vm1533 = vweird.f32 %v1526
        %vm1534 = vweird.f32 %v1527
        %vm1535 = vmor %vm1533, %vm1534
        %v1536 = vsel %vm1535, %v1527, %v1532
        %v1537 = vmul.f32 %v1525, %v1536
        %v1539 = vperm.slane %v1513, 0
        %v1541 = vadd.f32 %v1537, %v1539
        %v1542 = vpack.c.bf16 %v1541, %v1541
        %v1543 = vld [vmem:[#allocation16] sm:$0xf]
        %v1544 = vld [vmem:[#allocation16 + $0x4] sm:$0xf]
        %v1545 = vld [vmem:[#allocation16 + $0x8] sm:$0xf]
        %v1546 = vld [vmem:[#allocation16 + $0xc] sm:$0xf]
        %v1547 = vld [vmem:[#allocation16 + $0x10] sm:$0xf]
        %v1548 = vld [vmem:[#allocation16 + $0x14] sm:$0xf]
        %v1549 = vld [vmem:[#allocation16 + $0x18] sm:$0xf]
        %v1550 = vld [vmem:[#allocation16 + $0x1c] sm:$0xf]
        %v1551 = vld [vmem:[#allocation16 + $0x20] sm:$0xf]
        %v1552 = vld [vmem:[#allocation16 + $0x24] sm:$0xf]
        %v1553 = vld [vmem:[#allocation16 + $0x28] sm:$0xf]
        %v1554 = vld [vmem:[#allocation16 + $0x2c] sm:$0xf]
        %v1555 = vld [vmem:[#allocation16 + $0x30] sm:$0xf]
        %v1556 = vld [vmem:[#allocation16 + $0x34] sm:$0xf]
        %v1557 = vld [vmem:[#allocation16 + $0x38] sm:$0xf]
        %v1558 = vld [vmem:[#allocation16 + $0x3c] sm:$0xf]
        %v1559 = vld [vmem:[%s10] sm:$0x1]
        %v1561 = vperm.slane %v1559, 0
        %v1579 = vunpack.c.l.b16 %v1543
        %v1580 = vunpack.c.l.b16 %v1544
        %v1581 = vunpack.c.l.b16 %v1545
        %v1582 = vunpack.c.l.b16 %v1546
        %v1583 = vunpack.c.l.b16 %v1547
        %v1584 = vunpack.c.l.b16 %v1548
        %v1585 = vunpack.c.l.b16 %v1549
        %v1586 = vunpack.c.l.b16 %v1550
        %v1587 = vunpack.c.l.b16 %v1551
        %v1588 = vunpack.c.l.b16 %v1552
        %v1589 = vunpack.c.l.b16 %v1553
        %v1590 = vunpack.c.l.b16 %v1554
        %v1591 = vunpack.c.l.b16 %v1555
        %v1592 = vunpack.c.l.b16 %v1556
        %v1593 = vunpack.c.l.b16 %v1557
        %v1594 = vunpack.c.l.b16 %v1558
        %v1595 = vpack.c.b16 %v1580, %v1579
        %v1596 = vpack.c.b16 %v1582, %v1581
        %v1597 = vpack.c.b16 %v1584, %v1583
        %v1598 = vpack.c.b16 %v1586, %v1585
        %v1599 = vpack.c.b16 %v1588, %v1587
        %v1600 = vpack.c.b16 %v1590, %v1589
        %v1601 = vpack.c.b16 %v1592, %v1591
        %v1602 = vpack.c.b16 %v1594, %v1593
        %1611 = vmatpush.bf16.msra.mxu0 %v1602
        %1612 = vmatpush.bf16.msra.mxu0 %v1601
        %1613 = vmatpush.bf16.msra.mxu0 %v1600
        %1614 = vmatpush.bf16.msra.mxu0 %v1599
        %1615 = vmatpush.bf16.msra.mxu0 %v1598
        %1616 = vmatpush.bf16.msra.mxu0 %v1597
        %1617 = vmatpush.bf16.msra.mxu0 %v1596
        %1618 = vmatpush.bf16.msra.mxu0 %v1595
        %1619 = vmatmul.bf16.gmra.mxu0 %v1542
        %v1620 = vpop.f32.mrf.mxu0
        %v1621 = vadd.f32 %v1561, %v1620
        %v1622 = vpop.f32.mrf.mxu0
        %1623 = vdwg.mxu0
        %v1624 = vpack.c.bf16 %v1621, %v1621
        %v1625 = vld [vmem:[#allocation17] sm:$0xff]
        %v1626 = vld [vmem:[#allocation17 + $0x8] sm:$0xff]
        %v1627 = vld [vmem:[#allocation17 + $0x10] sm:$0xff]
        %v1628 = vld [vmem:[#allocation17 + $0x18] sm:$0xff]
        %v1629 = vld [vmem:[#allocation17 + $0x20] sm:$0xff]
        %v1630 = vld [vmem:[#allocation17 + $0x28] sm:$0xff]
        %v1631 = vld [vmem:[#allocation17 + $0x30] sm:$0xff]
        %v1632 = vld [vmem:[#allocation17 + $0x38] sm:$0xff]
        %v1633 = vld [vmem:[#allocation17 + $0x40] sm:$0xff]
        %v1634 = vld [vmem:[#allocation17 + $0x48] sm:$0xff]
        %v1635 = vld [vmem:[#allocation17 + $0x50] sm:$0xff]
        %v1636 = vld [vmem:[#allocation17 + $0x58] sm:$0xff]
        %v1637 = vld [vmem:[#allocation17 + $0x60] sm:$0xff]
        %v1638 = vld [vmem:[#allocation17 + $0x68] sm:$0xff]
        %v1639 = vld [vmem:[#allocation17 + $0x70] sm:$0xff]
        %v1640 = vld [vmem:[#allocation17 + $0x78] sm:$0xff]
        %v1641 = vld [vmem:[%s12] sm:$0x3]
        %v1643 = vperm.slane %v1641, 0
        %v1644 = vperm.slane %v1641, 1
        %v1663 = vunpack.c.l.b16 %v1625
        %v1664 = vunpack.c.h.b16 %v1625
        %v1665 = vunpack.c.l.b16 %v1626
        %v1666 = vunpack.c.h.b16 %v1626
        %v1667 = vunpack.c.l.b16 %v1627
        %v1668 = vunpack.c.h.b16 %v1627
        %v1669 = vunpack.c.l.b16 %v1628
        %v1670 = vunpack.c.h.b16 %v1628
        %v1671 = vunpack.c.l.b16 %v1629
        %v1672 = vunpack.c.h.b16 %v1629
        %v1673 = vunpack.c.l.b16 %v1630
        %v1674 = vunpack.c.h.b16 %v1630
        %v1675 = vunpack.c.l.b16 %v1631
        %v1676 = vunpack.c.h.b16 %v1631
        %v1677 = vunpack.c.l.b16 %v1632
        %v1678 = vunpack.c.h.b16 %v1632
        %v1679 = vunpack.c.l.b16 %v1633
        %v1680 = vunpack.c.h.b16 %v1633
        %v1681 = vunpack.c.l.b16 %v1634
        %v1682 = vunpack.c.h.b16 %v1634
        %v1683 = vunpack.c.l.b16 %v1635
        %v1684 = vunpack.c.h.b16 %v1635
        %v1685 = vunpack.c.l.b16 %v1636
        %v1686 = vunpack.c.h.b16 %v1636
        %v1687 = vunpack.c.l.b16 %v1637
        %v1688 = vunpack.c.h.b16 %v1637
        %v1689 = vunpack.c.l.b16 %v1638
        %v1690 = vunpack.c.h.b16 %v1638
        %v1691 = vunpack.c.l.b16 %v1639
        %v1692 = vunpack.c.h.b16 %v1639
        %v1693 = vunpack.c.l.b16 %v1640
        %v1694 = vunpack.c.h.b16 %v1640
        %v1695 = vpack.c.b16 %v1665, %v1663
        %v1696 = vpack.c.b16 %v1666, %v1664
        %v1697 = vpack.c.b16 %v1669, %v1667
        %v1698 = vpack.c.b16 %v1670, %v1668
        %v1699 = vpack.c.b16 %v1673, %v1671
        %v1700 = vpack.c.b16 %v1674, %v1672
        %v1701 = vpack.c.b16 %v1677, %v1675
        %v1702 = vpack.c.b16 %v1678, %v1676
        %v1703 = vpack.c.b16 %v1681, %v1679
        %v1704 = vpack.c.b16 %v1682, %v1680
        %v1705 = vpack.c.b16 %v1685, %v1683
        %v1706 = vpack.c.b16 %v1686, %v1684
        %v1707 = vpack.c.b16 %v1689, %v1687
        %v1708 = vpack.c.b16 %v1690, %v1688
        %v1709 = vpack.c.b16 %v1693, %v1691
        %v1710 = vpack.c.b16 %v1694, %v1692
        %1727 = vmatpush.bf16.msra.mxu0 %v1709
        %1728 = vmatpush.bf16.msra.mxu0 %v1707
        %1729 = vmatpush.bf16.msra.mxu0 %v1705
        %1730 = vmatpush.bf16.msra.mxu0 %v1703
        %1731 = vmatpush.bf16.msra.mxu0 %v1701
        %1732 = vmatpush.bf16.msra.mxu0 %v1699
        %1733 = vmatpush.bf16.msra.mxu0 %v1697
        %1734 = vmatpush.bf16.msra.mxu0 %v1695
        %1735 = vmatmul.bf16.gmra.mxu0 %v909
        %v1736 = vpop.f32.mrf.mxu0
        %v1737 = vadd.f32 %v1643, %v1736
        %v1738 = vpop.f32.mrf.mxu0
        %1739 = vdwg.mxu0
        %1740 = vmatpush.bf16.msra.mxu0 %v1710
        %1741 = vmatpush.bf16.msra.mxu0 %v1708
        %1742 = vmatpush.bf16.msra.mxu0 %v1706
        %1743 = vmatpush.bf16.msra.mxu0 %v1704
        %1744 = vmatpush.bf16.msra.mxu0 %v1702
        %1745 = vmatpush.bf16.msra.mxu0 %v1700
        %1746 = vmatpush.bf16.msra.mxu0 %v1698
        %1747 = vmatpush.bf16.msra.mxu0 %v1696
        %1748 = vmatmul.bf16.gmra.mxu0 %v909
        %v1749 = vpop.f32.mrf.mxu0
        %v1750 = vadd.f32 %v1644, %v1749
        %v1751 = vpop.f32.mrf.mxu0
        %1752 = vdwg.mxu0
        %v1753 = vpack.c.bf16 %v1750, %v1737
        %v1755 = vsel %vm1166, %v1624, 0
        %v1758 = vsel %vm1166, %v1753, 0
        %1760 = vmatpush.bf16.xpose.msra.mxu0 0
        %1761 = vmatpush.bf16.xpose.msra.mxu0 0
        %1762 = vmatpush.bf16.xpose.msra.mxu0 0
        %1763 = vmatpush.bf16.xpose.msra.mxu0 0
        %1764 = vmatpush.bf16.xpose.msra.mxu0 0
        %1765 = vmatpush.bf16.xpose.msra.mxu0 0
        %1766 = vmatpush.bf16.xpose.msra.mxu0 0
        %1767 = vmatpush.bf16.xpose.msra.mxu0 %v1758
        %1768 = vmatmul.bf16.gmra.mxu0 %v1755
        %v1769 = vpop.f32.mrf.mxu0
        %v1770 = vadd.f32 0.0, %v1769
        %v1771 = vpop.f32.mrf.mxu0
        %1772 = vdwg.mxu0
        %v1773 = vsel %vm916, 1, 0
        %v1774 = vperm.slane %v1773, 0
        %vm1775 = vcmp.eq.s32.totalorder %v1774, 1
        %v1776 = vsel %vm1775, %v1770, -1e+09
        %v1777 = vsel %vm1187, %v1776, -inf
        %1778 = vmax.xlane.f32.xlu0 %v1777
        %v1779 = vpop.xlane.xlu0 %1778
        %v1780 = vsub.f32 %v1776, %v1779
        %v1781 = vmul.f32 %v1780, 1.442695
        %v1782 = vpow.pop %v1781
        %v1783 = vsel %vm1187, %v1782, 0.0
        %1784 = vadd.xlane.f32.xlu0 %v1783
        %v1785 = vpop.xlane.xlu0 %1784
        %v1786 = vrcp.pop %v1785
        %v1787 = vpack.c.bf16 %v1782, %v1782
        %v1789 = vrot.slane %v1753, 4
        %v1791 = vsel %vm1187, %v1787, 0
        %v1794 = vsel %vm1202, %v1789, 0
        %1796 = vmatpush.bf16.msra.mxu0 0
        %1797 = vmatpush.bf16.msra.mxu0 0
        %1798 = vmatpush.bf16.msra.mxu0 0
        %1799 = vmatpush.bf16.msra.mxu0 0
        %1800 = vmatpush.bf16.msra.mxu0 0
        %1801 = vmatpush.bf16.msra.mxu0 0
        %1802 = vmatpush.bf16.msra.mxu0 0
        %1803 = vmatpush.bf16.msra.mxu0 %v1794
        %1804 = vmatmul.bf16.gmra.mxu0 %v1791
        %v1805 = vpop.f32.mrf.mxu0
        %v1806 = vadd.f32 0.0, %v1805
        %v1807 = vpop.f32.mrf.mxu0
        %1808 = vdwg.mxu0
        %v1809 = vmul.f32 %v1806, %v1786
        %v1810 = vpack.c.bf16 %v1809, %v1809
        %v1812 = vunpack.c.l.b16 %v1624
        %v1813 = vpack.c.b16 %v1812, %v1812
        %1814 = vrot.lane.b32.xlu0 %v1813, 96
        %v1815 = vpop.permute.xlu0 %1814
        %v1816 = vunpack.c.l.b16 %v1753
        %v1817 = vpack.c.b16 %v1816, %v1816
        %1818 = vrot.lane.b32.xlu0 %v1817, 96
        %v1819 = vpop.permute.xlu0 %1818
        %v1821 = vsel %vm1166, %v1815, 0
        %v1824 = vsel %vm1166, %v1819, 0
        %1826 = vmatpush.bf16.xpose.msra.mxu0 0
        %1827 = vmatpush.bf16.xpose.msra.mxu0 0
        %1828 = vmatpush.bf16.xpose.msra.mxu0 0
        %1829 = vmatpush.bf16.xpose.msra.mxu0 0
        %1830 = vmatpush.bf16.xpose.msra.mxu0 0
        %1831 = vmatpush.bf16.xpose.msra.mxu0 0
        %1832 = vmatpush.bf16.xpose.msra.mxu0 0
        %1833 = vmatpush.bf16.xpose.msra.mxu0 %v1824
        %1834 = vmatmul.bf16.gmra.mxu0 %v1821
        %v1835 = vpop.f32.mrf.mxu0
        %v1836 = vadd.f32 0.0, %v1835
        %v1837 = vpop.f32.mrf.mxu0
        %1838 = vdwg.mxu0
        %v1839 = vsel %vm1775, %v1836, -1e+09
        %v1840 = vsel %vm1187, %v1839, -inf
        %1841 = vmax.xlane.f32.xlu0 %v1840
        %v1842 = vpop.xlane.xlu0 %1841
        %v1843 = vsub.f32 %v1839, %v1842
        %v1844 = vmul.f32 %v1843, 1.442695
        %v1845 = vpow.pop %v1844
        %v1846 = vsel %vm1187, %v1845, 0.0
        %1847 = vadd.xlane.f32.xlu0 %v1846
        %v1848 = vpop.xlane.xlu0 %1847
        %v1849 = vrcp.pop %v1848
        %v1850 = vpack.c.bf16 %v1845, %v1845
        %1851 = vrot.lane.b32.xlu0 %v1753, 96
        %v1852 = vpop.permute.xlu0 %1851
        %v1853 = vrot.slane %v1852, 4
        %v1855 = vsel %vm1187, %v1850, 0
        %v1858 = vsel %vm1202, %v1853, 0
        %1860 = vmatpush.bf16.msra.mxu0 0
        %1861 = vmatpush.bf16.msra.mxu0 0
        %1862 = vmatpush.bf16.msra.mxu0 0
        %1863 = vmatpush.bf16.msra.mxu0 0
        %1864 = vmatpush.bf16.msra.mxu0 0
        %1865 = vmatpush.bf16.msra.mxu0 0
        %1866 = vmatpush.bf16.msra.mxu0 0
        %1867 = vmatpush.bf16.msra.mxu0 %v1858
        %1868 = vmatmul.bf16.gmra.mxu0 %v1855
        %v1869 = vpop.f32.mrf.mxu0
        %v1870 = vadd.f32 0.0, %v1869
        %v1871 = vpop.f32.mrf.mxu0
        %1872 = vdwg.mxu0
        %v1873 = vmul.f32 %v1870, %v1849
        %v1874 = vpack.c.bf16 %v1873, %v1873
        %1875 = vrot.lane.b32.xlu0 %v1813, 64
        %v1876 = vpop.permute.xlu0 %1875
        %1877 = vrot.lane.b32.xlu0 %v1817, 64
        %v1878 = vpop.permute.xlu0 %1877
        %v1880 = vsel %vm1166, %v1876, 0
        %v1883 = vsel %vm1166, %v1878, 0
        %1885 = vmatpush.bf16.xpose.msra.mxu0 0
        %1886 = vmatpush.bf16.xpose.msra.mxu0 0
        %1887 = vmatpush.bf16.xpose.msra.mxu0 0
        %1888 = vmatpush.bf16.xpose.msra.mxu0 0
        %1889 = vmatpush.bf16.xpose.msra.mxu0 0
        %1890 = vmatpush.bf16.xpose.msra.mxu0 0
        %1891 = vmatpush.bf16.xpose.msra.mxu0 0
        %1892 = vmatpush.bf16.xpose.msra.mxu0 %v1883
        %1893 = vmatmul.bf16.gmra.mxu0 %v1880
        %v1894 = vpop.f32.mrf.mxu0
        %v1895 = vadd.f32 0.0, %v1894
        %v1896 = vpop.f32.mrf.mxu0
        %1897 = vdwg.mxu0
        %v1898 = vsel %vm1775, %v1895, -1e+09
        %v1899 = vsel %vm1187, %v1898, -inf
        %1900 = vmax.xlane.f32.xlu0 %v1899
        %v1901 = vpop.xlane.xlu0 %1900
        %v1902 = vsub.f32 %v1898, %v1901
        %v1903 = vmul.f32 %v1902, 1.442695
        %v1904 = vpow.pop %v1903
        %v1905 = vsel %vm1187, %v1904, 0.0
        %1906 = vadd.xlane.f32.xlu0 %v1905
        %v1907 = vpop.xlane.xlu0 %1906
        %v1908 = vrcp.pop %v1907
        %v1909 = vpack.c.bf16 %v1904, %v1904
        %1910 = vrot.lane.b32.xlu0 %v1753, 64
        %v1911 = vpop.permute.xlu0 %1910
        %v1912 = vrot.slane %v1911, 4
        %v1914 = vsel %vm1187, %v1909, 0
        %v1917 = vsel %vm1202, %v1912, 0
        %1919 = vmatpush.bf16.msra.mxu0 0
        %1920 = vmatpush.bf16.msra.mxu0 0
        %1921 = vmatpush.bf16.msra.mxu0 0
        %1922 = vmatpush.bf16.msra.mxu0 0
        %1923 = vmatpush.bf16.msra.mxu0 0
        %1924 = vmatpush.bf16.msra.mxu0 0
        %1925 = vmatpush.bf16.msra.mxu0 0
        %1926 = vmatpush.bf16.msra.mxu0 %v1917
        %1927 = vmatmul.bf16.gmra.mxu0 %v1914
        %v1928 = vpop.f32.mrf.mxu0
        %v1929 = vadd.f32 0.0, %v1928
        %v1930 = vpop.f32.mrf.mxu0
        %1931 = vdwg.mxu0
        %v1932 = vmul.f32 %v1929, %v1908
        %v1933 = vpack.c.bf16 %v1932, %v1932
        %1934 = vrot.lane.b32.xlu0 %v1813, 32
        %v1935 = vpop.permute.xlu0 %1934
        %1936 = vrot.lane.b32.xlu0 %v1817, 32
        %v1937 = vpop.permute.xlu0 %1936
        %v1939 = vsel %vm1166, %v1935, 0
        %v1942 = vsel %vm1166, %v1937, 0
        %1944 = vmatpush.bf16.xpose.msra.mxu0 0
        %1945 = vmatpush.bf16.xpose.msra.mxu0 0
        %1946 = vmatpush.bf16.xpose.msra.mxu0 0
        %1947 = vmatpush.bf16.xpose.msra.mxu0 0
        %1948 = vmatpush.bf16.xpose.msra.mxu0 0
        %1949 = vmatpush.bf16.xpose.msra.mxu0 0
        %1950 = vmatpush.bf16.xpose.msra.mxu0 0
        %1951 = vmatpush.bf16.xpose.msra.mxu0 %v1942
        %1952 = vmatmul.bf16.gmra.mxu0 %v1939
        %v1953 = vpop.f32.mrf.mxu0
        %v1954 = vadd.f32 0.0, %v1953
        %v1955 = vpop.f32.mrf.mxu0
        %1956 = vdwg.mxu0
        %v1957 = vsel %vm1775, %v1954, -1e+09
        %v1958 = vsel %vm1187, %v1957, -inf
        %1959 = vmax.xlane.f32.xlu0 %v1958
        %v1960 = vpop.xlane.xlu0 %1959
        %v1961 = vsub.f32 %v1957, %v1960
        %v1962 = vmul.f32 %v1961, 1.442695
        %v1963 = vpow.pop %v1962
        %v1964 = vsel %vm1187, %v1963, 0.0
        %1965 = vadd.xlane.f32.xlu0 %v1964
        %v1966 = vpop.xlane.xlu0 %1965
        %v1967 = vrcp.pop %v1966
        %v1968 = vpack.c.bf16 %v1963, %v1963
        %1969 = vrot.lane.b32.xlu0 %v1753, 32
        %v1970 = vpop.permute.xlu0 %1969
        %v1971 = vrot.slane %v1970, 4
        %v1973 = vsel %vm1187, %v1968, 0
        %v1976 = vsel %vm1202, %v1971, 0
        %1978 = vmatpush.bf16.msra.mxu0 0
        %1979 = vmatpush.bf16.msra.mxu0 0
        %1980 = vmatpush.bf16.msra.mxu0 0
        %1981 = vmatpush.bf16.msra.mxu0 0
        %1982 = vmatpush.bf16.msra.mxu0 0
        %1983 = vmatpush.bf16.msra.mxu0 0
        %1984 = vmatpush.bf16.msra.mxu0 0
        %1985 = vmatpush.bf16.msra.mxu0 %v1976
        %1986 = vmatmul.bf16.gmra.mxu0 %v1973
        %v1987 = vpop.f32.mrf.mxu0
        %v1988 = vadd.f32 0.0, %v1987
        %v1989 = vpop.f32.mrf.mxu0
        %1990 = vdwg.mxu0
        %v1991 = vmul.f32 %v1988, %v1967
        %v1992 = vpack.c.bf16 %v1991, %v1991
        %v1994 = vunpack.c.l.b16 %v1874
        %v1995 = vpack.c.b16 %v1994, %v1994
        %1996 = vrot.lane.b32.xlu0 %v1995, 32
        %v1997 = vpop.permute.xlu0 %1996
        %v1999 = vunpack.c.l.b16 %v1933
        %v2000 = vpack.c.b16 %v1999, %v1999
        %2001 = vrot.lane.b32.xlu0 %v2000, 64
        %v2002 = vpop.permute.xlu0 %2001
        %v2004 = vunpack.c.l.b16 %v1992
        %v2005 = vpack.c.b16 %v2004, %v2004
        %2006 = vrot.lane.b32.xlu0 %v2005, 96
        %v2007 = vpop.permute.xlu0 %2006
        %v2010 = vsel %vm1166, %v1810, %v1997
        %v2012 = vsel %vm1421, %v2010, %v2002
        %v2014 = vsel %vm1424, %v2012, %v2007
        %v2016 = vld [vmem:[#allocation19] sm:$0xf]
        %v2017 = vld [vmem:[#allocation19 + $0x4] sm:$0xf]
        %v2018 = vld [vmem:[#allocation19 + $0x8] sm:$0xf]
        %v2019 = vld [vmem:[#allocation19 + $0xc] sm:$0xf]
        %v2020 = vld [vmem:[#allocation19 + $0x10] sm:$0xf]
        %v2021 = vld [vmem:[#allocation19 + $0x14] sm:$0xf]
        %v2022 = vld [vmem:[#allocation19 + $0x18] sm:$0xf]
        %v2023 = vld [vmem:[#allocation19 + $0x1c] sm:$0xf]
        %v2024 = vld [vmem:[#allocation19 + $0x20] sm:$0xf]
        %v2025 = vld [vmem:[#allocation19 + $0x24] sm:$0xf]
        %v2026 = vld [vmem:[#allocation19 + $0x28] sm:$0xf]
        %v2027 = vld [vmem:[#allocation19 + $0x2c] sm:$0xf]
        %v2028 = vld [vmem:[#allocation19 + $0x30] sm:$0xf]
        %v2029 = vld [vmem:[#allocation19 + $0x34] sm:$0xf]
        %v2030 = vld [vmem:[#allocation19 + $0x38] sm:$0xf]
        %v2031 = vld [vmem:[#allocation19 + $0x3c] sm:$0xf]
        %v2032 = vld [vmem:[%s14] sm:$0x1]
        %v2034 = vperm.slane %v2032, 0
        %v2052 = vunpack.c.l.b16 %v2016
        %v2053 = vunpack.c.l.b16 %v2017
        %v2054 = vunpack.c.l.b16 %v2018
        %v2055 = vunpack.c.l.b16 %v2019
        %v2056 = vunpack.c.l.b16 %v2020
        %v2057 = vunpack.c.l.b16 %v2021
        %v2058 = vunpack.c.l.b16 %v2022
        %v2059 = vunpack.c.l.b16 %v2023
        %v2060 = vunpack.c.l.b16 %v2024
        %v2061 = vunpack.c.l.b16 %v2025
        %v2062 = vunpack.c.l.b16 %v2026
        %v2063 = vunpack.c.l.b16 %v2027
        %v2064 = vunpack.c.l.b16 %v2028
        %v2065 = vunpack.c.l.b16 %v2029
        %v2066 = vunpack.c.l.b16 %v2030
        %v2067 = vunpack.c.l.b16 %v2031
        %v2068 = vpack.c.b16 %v2053, %v2052
        %v2069 = vpack.c.b16 %v2055, %v2054
        %v2070 = vpack.c.b16 %v2057, %v2056
        %v2071 = vpack.c.b16 %v2059, %v2058
        %v2072 = vpack.c.b16 %v2061, %v2060
        %v2073 = vpack.c.b16 %v2063, %v2062
        %v2074 = vpack.c.b16 %v2065, %v2064
        %v2075 = vpack.c.b16 %v2067, %v2066
        %2084 = vmatpush.bf16.msra.mxu0 %v2075
        %2085 = vmatpush.bf16.msra.mxu0 %v2074
        %2086 = vmatpush.bf16.msra.mxu0 %v2073
        %2087 = vmatpush.bf16.msra.mxu0 %v2072
        %2088 = vmatpush.bf16.msra.mxu0 %v2071
        %2089 = vmatpush.bf16.msra.mxu0 %v2070
        %2090 = vmatpush.bf16.msra.mxu0 %v2069
        %2091 = vmatpush.bf16.msra.mxu0 %v2068
        %2092 = vmatmul.bf16.gmra.mxu0 %v2014
        %v2093 = vpop.f32.mrf.mxu0
        %v2094 = vadd.f32 %v2034, %v2093
        %v2095 = vpop.f32.mrf.mxu0
        %2096 = vdwg.mxu0
        %v2097 = vadd.f32 %v1509, %v2094
        %s2098 = scalar_lea.vmem [#allocation8], 2
        %v2099 = vld [vmem:[%s2098] sm:$0x1]
        %s2100 = scalar_lea.vmem %s4, 2
        %v2101 = vld [vmem:[%s2100] sm:$0x1]
        %2102 = vadd.xlane.f32.xlu0 %v2097
        %v2103 = vpop.xlane.xlu0 %2102
        %v2104 = vmul.f32 %v2103, %v927
        %v2105 = vsub.f32 %v2097, %v2104
        %v2106 = vmul.f32 %v2105, %v2105
        %2107 = vadd.xlane.f32.xlu0 %v2106
        %v2108 = vpop.xlane.xlu0 %2107
        %v2109 = vmul.f32 %v2108, %v927
        %v2111 = vperm.slane %v2099, 0
        %v2113 = vmul.f32 %v2111, %v2105
        %v2114 = vadd.f32 %v2109, 1e-05
        %v2115 = vrsqrt.pop %v2114
        %v2116 = vmul.f32 %v2115, %v2114
        %v2117 = vmul.f32 %v2116, %v2115
        %v2118 = vmul.f32 0.5, %v2117
        %v2119 = vsub.f32 1.5, %v2118
        %v2120 = vmul.f32 %v2115, %v2119
        %vm2121 = vweird.f32 %v2114
        %vm2122 = vweird.f32 %v2115
        %vm2123 = vmor %vm2121, %vm2122
        %v2124 = vsel %vm2123, %v2115, %v2120
        %v2125 = vmul.f32 %v2113, %v2124
        %v2127 = vperm.slane %v2101, 0
        %v2129 = vadd.f32 %v2125, %v2127
        %v2130 = vpack.c.bf16 %v2129, %v2129
        %v2131 = vld [vmem:[#allocation20] sm:$0xff]
        %v2132 = vld [vmem:[#allocation20 + $0x8] sm:$0xff]
        %v2133 = vld [vmem:[#allocation20 + $0x10] sm:$0xff]
        %v2134 = vld [vmem:[#allocation20 + $0x18] sm:$0xff]
        %v2135 = vld [vmem:[#allocation20 + $0x20] sm:$0xff]
        %v2136 = vld [vmem:[#allocation20 + $0x28] sm:$0xff]
        %v2137 = vld [vmem:[#allocation20 + $0x30] sm:$0xff]
        %v2138 = vld [vmem:[#allocation20 + $0x38] sm:$0xff]
        %v2139 = vld [vmem:[#allocation20 + $0x40] sm:$0xff]
        %v2140 = vld [vmem:[#allocation20 + $0x48] sm:$0xff]
        %v2141 = vld [vmem:[#allocation20 + $0x50] sm:$0xff]
        %v2142 = vld [vmem:[#allocation20 + $0x58] sm:$0xff]
        %v2143 = vld [vmem:[#allocation20 + $0x60] sm:$0xff]
        %v2144 = vld [vmem:[#allocation20 + $0x68] sm:$0xff]
        %v2145 = vld [vmem:[#allocation20 + $0x70] sm:$0xff]
        %v2146 = vld [vmem:[#allocation20 + $0x78] sm:$0xff]
        %v2147 = vld [vmem:[%s16] sm:$0x3]
        %v2149 = vperm.slane %v2147, 0
        %v2150 = vperm.slane %v2147, 1
        %v2169 = vunpack.c.l.b16 %v2131
        %v2170 = vunpack.c.h.b16 %v2131
        %v2171 = vunpack.c.l.b16 %v2132
        %v2172 = vunpack.c.h.b16 %v2132
        %v2173 = vunpack.c.l.b16 %v2133
        %v2174 = vunpack.c.h.b16 %v2133
        %v2175 = vunpack.c.l.b16 %v2134
        %v2176 = vunpack.c.h.b16 %v2134
        %v2177 = vunpack.c.l.b16 %v2135
        %v2178 = vunpack.c.h.b16 %v2135
        %v2179 = vunpack.c.l.b16 %v2136
        %v2180 = vunpack.c.h.b16 %v2136
        %v2181 = vunpack.c.l.b16 %v2137
        %v2182 = vunpack.c.h.b16 %v2137
        %v2183 = vunpack.c.l.b16 %v2138
        %v2184 = vunpack.c.h.b16 %v2138
        %v2185 = vunpack.c.l.b16 %v2139
        %v2186 = vunpack.c.h.b16 %v2139
        %v2187 = vunpack.c.l.b16 %v2140
        %v2188 = vunpack.c.h.b16 %v2140
        %v2189 = vunpack.c.l.b16 %v2141
        %v2190 = vunpack.c.h.b16 %v2141
        %v2191 = vunpack.c.l.b16 %v2142
        %v2192 = vunpack.c.h.b16 %v2142
        %v2193 = vunpack.c.l.b16 %v2143
        %v2194 = vunpack.c.h.b16 %v2143
        %v2195 = vunpack.c.l.b16 %v2144
        %v2196 = vunpack.c.h.b16 %v2144
        %v2197 = vunpack.c.l.b16 %v2145
        %v2198 = vunpack.c.h.b16 %v2145
        %v2199 = vunpack.c.l.b16 %v2146
        %v2200 = vunpack.c.h.b16 %v2146
        %v2201 = vpack.c.b16 %v2171, %v2169
        %v2202 = vpack.c.b16 %v2172, %v2170
        %v2203 = vpack.c.b16 %v2175, %v2173
        %v2204 = vpack.c.b16 %v2176, %v2174
        %v2205 = vpack.c.b16 %v2179, %v2177
        %v2206 = vpack.c.b16 %v2180, %v2178
        %v2207 = vpack.c.b16 %v2183, %v2181
        %v2208 = vpack.c.b16 %v2184, %v2182
        %v2209 = vpack.c.b16 %v2187, %v2185
        %v2210 = vpack.c.b16 %v2188, %v2186
        %v2211 = vpack.c.b16 %v2191, %v2189
        %v2212 = vpack.c.b16 %v2192, %v2190
        %v2213 = vpack.c.b16 %v2195, %v2193
        %v2214 = vpack.c.b16 %v2196, %v2194
        %v2215 = vpack.c.b16 %v2199, %v2197
        %v2216 = vpack.c.b16 %v2200, %v2198
        %2233 = vmatpush.bf16.msra.mxu0 %v2215
        %2234 = vmatpush.bf16.msra.mxu0 %v2213
        %2235 = vmatpush.bf16.msra.mxu0 %v2211
        %2236 = vmatpush.bf16.msra.mxu0 %v2209
        %2237 = vmatpush.bf16.msra.mxu0 %v2207
        %2238 = vmatpush.bf16.msra.mxu0 %v2205
        %2239 = vmatpush.bf16.msra.mxu0 %v2203
        %2240 = vmatpush.bf16.msra.mxu0 %v2201
        %2241 = vmatmul.bf16.gmra.mxu0 %v2130
        %v2242 = vpop.f32.mrf.mxu0
        %v2243 = vadd.f32 %v2149, %v2242
        %v2244 = vpop.f32.mrf.mxu0
        %2245 = vdwg.mxu0
        %2246 = vmatpush.bf16.msra.mxu0 %v2216
        %2247 = vmatpush.bf16.msra.mxu0 %v2214
        %2248 = vmatpush.bf16.msra.mxu0 %v2212
        %2249 = vmatpush.bf16.msra.mxu0 %v2210
        %2250 = vmatpush.bf16.msra.mxu0 %v2208
        %2251 = vmatpush.bf16.msra.mxu0 %v2206
        %2252 = vmatpush.bf16.msra.mxu0 %v2204
        %2253 = vmatpush.bf16.msra.mxu0 %v2202
        %2254 = vmatmul.bf16.gmra.mxu0 %v2130
        %v2255 = vpop.f32.mrf.mxu0
        %v2256 = vadd.f32 %v2150, %v2255
        %v2257 = vpop.f32.mrf.mxu0
        %2258 = vdwg.mxu0
        %v2259 = vmax.f32 %v2243, 0.0
        %v2260 = vmax.f32 %v2256, 0.0
        %v2261 = vpack.c.bf16 %v2259, %v2259
        %v2262 = vpack.c.bf16 %v2260, %v2260
        %v2263 = vld [vmem:[#allocation22] sm:$0xf]
        %v2264 = vld [vmem:[#allocation22 + $0x4] sm:$0xf]
        %v2265 = vld [vmem:[#allocation22 + $0x8] sm:$0xf]
        %v2266 = vld [vmem:[#allocation22 + $0xc] sm:$0xf]
        %v2267 = vld [vmem:[#allocation22 + $0x10] sm:$0xf]
        %v2268 = vld [vmem:[#allocation22 + $0x14] sm:$0xf]
        %v2269 = vld [vmem:[#allocation22 + $0x18] sm:$0xf]
        %v2270 = vld [vmem:[#allocation22 + $0x1c] sm:$0xf]
        %v2271 = vld [vmem:[#allocation22 + $0x20] sm:$0xf]
        %v2272 = vld [vmem:[#allocation22 + $0x24] sm:$0xf]
        %v2273 = vld [vmem:[#allocation22 + $0x28] sm:$0xf]
        %v2274 = vld [vmem:[#allocation22 + $0x2c] sm:$0xf]
        %v2275 = vld [vmem:[#allocation22 + $0x30] sm:$0xf]
        %v2276 = vld [vmem:[#allocation22 + $0x34] sm:$0xf]
        %v2277 = vld [vmem:[#allocation22 + $0x38] sm:$0xf]
        %v2278 = vld [vmem:[#allocation22 + $0x3c] sm:$0xf]
        %v2279 = vld [vmem:[#allocation22 + $0x40] sm:$0xf]
        %v2280 = vld [vmem:[#allocation22 + $0x44] sm:$0xf]
        %v2281 = vld [vmem:[#allocation22 + $0x48] sm:$0xf]
        %v2282 = vld [vmem:[#allocation22 + $0x4c] sm:$0xf]
        %v2283 = vld [vmem:[#allocation22 + $0x50] sm:$0xf]
        %v2284 = vld [vmem:[#allocation22 + $0x54] sm:$0xf]
        %v2285 = vld [vmem:[#allocation22 + $0x58] sm:$0xf]
        %v2286 = vld [vmem:[#allocation22 + $0x5c] sm:$0xf]
        %v2287 = vld [vmem:[#allocation22 + $0x60] sm:$0xf]
        %v2288 = vld [vmem:[#allocation22 + $0x64] sm:$0xf]
        %v2289 = vld [vmem:[#allocation22 + $0x68] sm:$0xf]
        %v2290 = vld [vmem:[#allocation22 + $0x6c] sm:$0xf]
        %v2291 = vld [vmem:[#allocation22 + $0x70] sm:$0xf]
        %v2292 = vld [vmem:[#allocation22 + $0x74] sm:$0xf]
        %v2293 = vld [vmem:[#allocation22 + $0x78] sm:$0xf]
        %v2294 = vld [vmem:[#allocation22 + $0x7c] sm:$0xf]
        %v2295 = vld [vmem:[%s18] sm:$0x1]
        %v2297 = vperm.slane %v2295, 0
        %v2331 = vunpack.c.l.b16 %v2263
        %v2332 = vunpack.c.l.b16 %v2264
        %v2333 = vunpack.c.l.b16 %v2265
        %v2334 = vunpack.c.l.b16 %v2266
        %v2335 = vunpack.c.l.b16 %v2267
        %v2336 = vunpack.c.l.b16 %v2268
        %v2337 = vunpack.c.l.b16 %v2269
        %v2338 = vunpack.c.l.b16 %v2270
        %v2339 = vunpack.c.l.b16 %v2271
        %v2340 = vunpack.c.l.b16 %v2272
        %v2341 = vunpack.c.l.b16 %v2273
        %v2342 = vunpack.c.l.b16 %v2274
        %v2343 = vunpack.c.l.b16 %v2275
        %v2344 = vunpack.c.l.b16 %v2276
        %v2345 = vunpack.c.l.b16 %v2277
        %v2346 = vunpack.c.l.b16 %v2278
        %v2347 = vunpack.c.l.b16 %v2279
        %v2348 = vunpack.c.l.b16 %v2280
        %v2349 = vunpack.c.l.b16 %v2281
        %v2350 = vunpack.c.l.b16 %v2282
        %v2351 = vunpack.c.l.b16 %v2283
        %v2352 = vunpack.c.l.b16 %v2284
        %v2353 = vunpack.c.l.b16 %v2285
        %v2354 = vunpack.c.l.b16 %v2286
        %v2355 = vunpack.c.l.b16 %v2287
        %v2356 = vunpack.c.l.b16 %v2288
        %v2357 = vunpack.c.l.b16 %v2289
        %v2358 = vunpack.c.l.b16 %v2290
        %v2359 = vunpack.c.l.b16 %v2291
        %v2360 = vunpack.c.l.b16 %v2292
        %v2361 = vunpack.c.l.b16 %v2293
        %v2362 = vunpack.c.l.b16 %v2294
        %v2363 = vpack.c.b16 %v2332, %v2331
        %v2364 = vpack.c.b16 %v2334, %v2333
        %v2365 = vpack.c.b16 %v2336, %v2335
        %v2366 = vpack.c.b16 %v2338, %v2337
        %v2367 = vpack.c.b16 %v2340, %v2339
        %v2368 = vpack.c.b16 %v2342, %v2341
        %v2369 = vpack.c.b16 %v2344, %v2343
        %v2370 = vpack.c.b16 %v2346, %v2345
        %v2371 = vpack.c.b16 %v2348, %v2347
        %v2372 = vpack.c.b16 %v2350, %v2349
        %v2373 = vpack.c.b16 %v2352, %v2351
        %v2374 = vpack.c.b16 %v2354, %v2353
        %v2375 = vpack.c.b16 %v2356, %v2355
        %v2376 = vpack.c.b16 %v2358, %v2357
        %v2377 = vpack.c.b16 %v2360, %v2359
        %v2378 = vpack.c.b16 %v2362, %v2361
        %2395 = vmatpush.bf16.msra.mxu0 %v2370
        %2396 = vmatpush.bf16.msra.mxu0 %v2369
        %2397 = vmatpush.bf16.msra.mxu0 %v2368
        %2398 = vmatpush.bf16.msra.mxu0 %v2367
        %2399 = vmatpush.bf16.msra.mxu0 %v2366
        %2400 = vmatpush.bf16.msra.mxu0 %v2365
        %2401 = vmatpush.bf16.msra.mxu0 %v2364
        %2402 = vmatpush.bf16.msra.mxu0 %v2363
        %2403 = vmatmul.bf16.gmra.mxu0 %v2261
        %v2404 = vpop.f32.mrf.mxu0
        %v2405 = vadd.f32 %v2297, %v2404
        %v2406 = vpop.f32.mrf.mxu0
        %2407 = vdwg.mxu0
        %2408 = vmatpush.bf16.msra.mxu0 %v2378
        %2409 = vmatpush.bf16.msra.mxu0 %v2377
        %2410 = vmatpush.bf16.msra.mxu0 %v2376
        %2411 = vmatpush.bf16.msra.mxu0 %v2375
        %2412 = vmatpush.bf16.msra.mxu0 %v2374
        %2413 = vmatpush.bf16.msra.mxu0 %v2373
        %2414 = vmatpush.bf16.msra.mxu0 %v2372
        %2415 = vmatpush.bf16.msra.mxu0 %v2371
        %2416 = vmatmul.bf16.gmra.mxu0 %v2262
        %v2417 = vpop.f32.mrf.mxu0
        %v2418 = vadd.f32 %v2405, %v2417
        %v2419 = vpop.f32.mrf.mxu0
        %2420 = vdwg.mxu0
        %v2421 = vadd.f32 %v2097, %v2418
        %v2422 = vpack.c.bf16 %v2421, %v2421
        %2423 = vst [vmem:[%s905] sm:$0xf] %v2422
        %s2424 = sand.u32 %s510, 1
        %s2425 = scalar_lea.sflag [#allocation4], %s2424
        %s2426 = sand.u32 %s510, 1
        %s2427 = smul.addr %s2426, 4
        %s2428 = scalar_lea.vmem [#allocation23], %s2427
        // Predicated region
        $region157: #{tpu_custom_call.1} parent=103 // pred_check
          %p2429 = pneg %p520
        $region158: #{tpu_custom_call.1} parent=103 // pred_check_branch
          %2431 = sbr.rel (%p2429) target = $region160
        $region159: #{tpu_custom_call.1} parent=103 // pred_region
          %2433 = vsyncadd %s2425, 0
          %s2434 = smul.addr %s46, 4
          %s2435 = scalar_lea.hbm %s21, %s2434
          %s2437 = sshll.u32 %s2428, 4
          %s2438 = int_to_ptr.vmem [resolvable:$true] %s2437
          %s2439 = sshll.u32 %s2435, 4
          %s2440 = int_to_ptr.hbm [resolvable:$true] %s2439
          %2442 = dma.vmem_to_hbm [thread:$0]  %s2438, 64, %s2440, %s2425
        $region160: #{tpu_custom_call.1} parent=103 // pred_fallthru
          _
      $region104: #{tpu_custom_call.1} parent=5 // pred_fallthru
        _
      %p2443 = scmp.le.s32.totalorder 2, %s41
      // Predicated region
      $region161: #{tpu_custom_call.1} parent=5 // pred_check
        %p2444 = pneg %p2443
      $region162: #{tpu_custom_call.1} parent=5 // pred_check_branch
        %2446 = sbr.rel (%p2444) target = $region164
      $region163: #{tpu_custom_call.1} parent=5 // pred_region
        %s2447 = ssub.s32 %s41, 2
        // Predicated region
        $region165: #{tpu_custom_call.1} parent=163 // pred_check
          %p2448 = pneg %p526
        $region166: #{tpu_custom_call.1} parent=163 // pred_check_branch
          %2450 = sbr.rel (%p2448) target = $region168
        $region167: #{tpu_custom_call.1} parent=163 // pred_region
          %s2451 = sand.u32 %s511, 1
          %s2452 = scalar_lea.sflag [#allocation4], %s2451
          %s2453 = sand.u32 %s511, 1
          %s2454 = smul.addr %s2453, 4
          %s2455 = scalar_lea.vmem [#allocation23], %s2454
          %2457 = dma.done %s2452, 64
        $region168: #{tpu_custom_call.1} parent=163 // pred_fallthru
          _
      $region164: #{tpu_custom_call.1} parent=5 // pred_fallthru
        _
    $region6: #{tpu_custom_call.1} parent=1 // loop_footer
      %s45 = sadd.s32 1, %s41
    $region7: #{tpu_custom_call.1} parent=1 // loop_footer_branch
      %40 = sbr.rel target = $region3
    $region8: #{tpu_custom_call.1} parent=1 // loop_exit
      _
    %2458 = vsyncpa [#allocation3], 1
    %s2459 = scalar_lea.sflag [#allocation3], 1
    %2460 = vsyncpa %s2459, 1
    %2461 = vsyncpa [#allocation6], 1
    %s2462 = scalar_lea.sflag [#allocation6], 1
    %2463 = vsyncpa %s2462, 1
    %2464 = vsyncpa [#allocation9], 1
    %2465 = vsyncpa [#allocation12], 1
    %2466 = vsyncpa [#allocation15], 1
    %2467 = vsyncpa [#allocation18], 1
    %2468 = vsyncpa [#allocation21], 1
    %2469 = vsyncpa [#allocation4], 1
    %s2470 = scalar_lea.sflag [#allocation4], 1
    %2471 = vsyncpa %s2470, 1

// kernel: tpu_custom_call.1
$region0: #{tpu_custom_call.1}
  #allocation0 [shape = 'u32[]', space=smem, size = 0x4, offset = 0x4, fixed_abs, tag = 'smem constant byte address 0x4 - core index']
  #allocation1 [shape = 'u32[72,128]{1,0:T(1,128)}', space=vmem, size = 0x9000, scoped, tag = 'internal scratch']
  %s0 = inlined_call_operand.hbm [shape: bf16[2,8,128], index: 0, kind: input, shape index: {}]
  %s1 = inlined_call_operand.hbm [shape: bf16[2,8,128], index: 1, kind: input, shape index: {}]
  %s2 = inlined_call_operand.hbm [shape: f32[2,1,8], index: 2, kind: input, shape index: {}]
  %s3 = inlined_call_operand.hbm [shape: f32[3,1,128], index: 3, kind: input, shape index: {}]
  %s4 = inlined_call_operand.vmem [shape: f32[3,1,128], index: 4, kind: input, shape index: {}]
  %s5 = inlined_call_operand.hbm [shape: bf16[128,384], index: 5, kind: input, shape index: {}]
  %s6 = inlined_call_operand.hbm [shape: f32[1,384], index: 6, kind: input, shape index: {}]
  %s7 = inlined_call_operand.hbm [shape: bf16[128,128], index: 7, kind: input, shape index: {}]
  %s8 = inlined_call_operand.hbm [shape: f32[1,128], index: 8, kind: input, shape index: {}]
  %s9 = inlined_call_operand.hbm [shape: bf16[128,128], index: 9, kind: input, shape index: {}]
  %s10 = inlined_call_operand.vmem [shape: f32[1,128], index: 10, kind: input, shape index: {}]
  %s11 = inlined_call_operand.hbm [shape: bf16[128,256], index: 11, kind: input, shape index: {}]
  %s12 = inlined_call_operand.vmem [shape: f32[1,256], index: 12, kind: input, shape index: {}]
  %s13 = inlined_call_operand.hbm [shape: bf16[128,128], index: 13, kind: input, shape index: {}]
  %s14 = inlined_call_operand.vmem [shape: f32[1,128], index: 14, kind: input, shape index: {}]
  %s15 = inlined_call_operand.hbm [shape: bf16[128,256], index: 15, kind: input, shape index: {}]
  %s16 = inlined_call_operand.vmem [shape: f32[1,256], index: 16, kind: input, shape index: {}]
  %s17 = inlined_call_operand.hbm [shape: bf16[256,128], index: 17, kind: input, shape index: {}]
  %s18 = inlined_call_operand.vmem [shape: f32[1,128], index: 18, kind: input, shape index: {}]
  %s19 = inlined_call_operand.vmem [shape: f32[1,128], index: 19, kind: input, shape index: {}]
  %s20 = inlined_call_operand.vmem [shape: f32[1,128], index: 20, kind: input, shape index: {}]
  %s21 = inlined_call_operand.hbm [shape: bf16[2,8,128], index: 21, kind: output, shape index: {}]
  %s22 = sld [smem:[#allocation0]]
  $region169: #{tpu_custom_call.1} parent=0
    _
  %s24 = ssub.s32 1, %s22
  %s25 = scalar_select 0, %s24, %s22
  $region1: #{tpu_custom_call.1} parent=0
    #allocation2 [shape = 'u8[4096]{0}', space=vmem, size = 0x1000, scoped, tag = 'input window, operand 0']
    #allocation3 [shape = 's32[2]{0}', space=sflag, size = 0x8, scoped, tag = 'scoped memory for tpu_custom_call.1']
    #allocation4 [shape = 's32[2]{0}', space=sflag, size = 0x8, scoped, tag = 'scoped memory for tpu_custom_call.1']
    #allocation5 [shape = 'u8[4096]{0}', space=vmem, size = 0x1000, scoped, tag = 'input window, operand 1']
    #allocation6 [shape = 's32[2]{0}', space=sflag, size = 0x8, scoped, tag = 'scoped memory for tpu_custom_call.1']
    #allocation7 [shape = 'u8[1024]{0}', space=vmem, size = 0x400, scoped, tag = 'input window, operand 2']
    #allocation8 [shape = 'u8[1536]{0}', space=vmem, size = 0x800, scoped, tag = 'input window, operand 3, single buffered']
    #allocation9 [shape = 's32[1]{0}', space=sflag, size = 0x4, scoped, tag = 'scoped memory for tpu_custom_call.1']
    #allocation10 [shape = 'u8[98304]{0}', space=vmem, size = 0x18000, scoped, tag = 'input window, operand 5, single buffered']
    #allocation11 [shape = 'u8[1536]{0}', space=vmem, size = 0x800, scoped, tag = 'input window, operand 6, single buffered']
    #allocation12 [shape = 's32[1]{0}', space=sflag, size = 0x4, scoped, tag = 'scoped memory for tpu_custom_call.1']
    #allocation13 [shape = 'u8[32768]{0}', space=vmem, size = 0x8000, scoped, tag = 'input window, operand 7, single buffered']
    #allocation14 [shape = 'u8[512]{0}', space=vmem, size = 0x400, scoped, tag = 'input window, operand 8, single buffered']
    #allocation15 [shape = 's32[1]{0}', space=sflag, size = 0x4, scoped, tag = 'scoped memory for tpu_custom_call.1']
    #allocation16 [shape = 'u8[32768]{0}', space=vmem, size = 0x8000, scoped, tag = 'input window, operand 9, single buffered']
    #allocation17 [shape = 'u8[65536]{0}', space=vmem, size = 0x10000, scoped, tag = 'input window, operand 11, single buffered']
    #allocation18 [shape = 's32[1]{0}', space=sflag, size = 0x4, scoped, tag = 'scoped memory for tpu_custom_call.1']
    #allocation19 [shape = 'u8[32768]{0}', space=vmem, size = 0x8000, scoped, tag = 'input window, operand 13, single buffered']
    #allocation20 [shape = 'u8[65536]{0}', space=vmem, size = 0x10000, scoped, tag = 'input window, operand 15, single buffered']
    #allocation21 [shape = 's32[1]{0}', space=sflag, size = 0x4, scoped, tag = 'scoped memory for tpu_custom_call.1']
    #allocation22 [shape = 'u8[65536]{0}', space=vmem, size = 0x10000, scoped, tag = 'input window, operand 17, single buffered']
    #allocation23 [shape = 'u8[4096]{0}', space=vmem, size = 0x1000, scoped, tag = 'output window, operand 0']
    %26 = vsyncpa [#allocation3], 0
    %s27 = scalar_lea.sflag [#allocation3], 1
    %28 = vsyncpa %s27, 0
    %29 = vsyncpa [#allocation6], 0
    %s30 = scalar_lea.sflag [#allocation6], 1
    %31 = vsyncpa %s30, 0
    %32 = vsyncpa [#allocation9], 0
    %33 = vsyncpa [#allocation12], 0
    %34 = vsyncpa [#allocation15], 0
    %35 = vsyncpa [#allocation18], 0
    %36 = vsyncpa [#allocation21], 0
    %37 = vsyncpa [#allocation4], 0
    %s38 = scalar_lea.sflag [#allocation4], 1
    %39 = vsyncpa %s38, 0
    loop: start=0, step=1, limit=4
    $region2: #{tpu_custom_call.1} parent=1 // loop_pre_header
      _
    $region3: #{tpu_custom_call.1} parent=1 // loop_header
      %s41 = sphi 0, %s45
      %p42 = scmp.ge.s32.totalorder %s41, 4
      %s51 = sphi 0, %s53
      %s54 = sphi 0, %s51
      %s55 = sphi 0, %s54
      %s71 = sphi 0, %s55
      %s77 = sphi 0, %s79
      %s80 = sphi 0, %s77
      %s81 = sphi 0, %s80
      %s97 = sphi 0, %s81
      %s103 = sphi 0, %s105
      %s106 = sphi 0, %s103
      %s107 = sphi 0, %s106
      %s123 = sphi 0, %s107
      %s127 = sphi 0, %s127
      %s129 = sphi 0, %s127
      %s130 = sphi 0, %s129
      %s144 = sphi 0, %s130
      %s148 = sphi 0, %s148
      %s150 = sphi 0, %s148
      %s151 = sphi 0, %s150
      %s165 = sphi 0, %s151
      %s169 = sphi 0, %s169
      %s171 = sphi 0, %s169
      %s172 = sphi 0, %s171
      %s186 = sphi 0, %s172
      %s190 = sphi 0, %s190
      %s192 = sphi 0, %s190
      %s193 = sphi 0, %s192
      %s207 = sphi 0, %s193
      %s211 = sphi 0, %s211
      %s213 = sphi 0, %s211
      %s214 = sphi 0, %s213
      %s228 = sphi 0, %s214
      %s232 = sphi 0, %s232
      %s234 = sphi 0, %s232
      %s235 = sphi 0, %s234
      %s249 = sphi 0, %s235
      %s253 = sphi 0, %s253
      %s255 = sphi 0, %s253
      %s256 = sphi 0, %s255
      %s270 = sphi 0, %s256
      %s274 = sphi 0, %s274
      %s276 = sphi 0, %s274
      %s277 = sphi 0, %s276
      %s291 = sphi 0, %s277
      %s295 = sphi 0, %s295
      %s297 = sphi 0, %s295
      %s298 = sphi 0, %s297
      %s312 = sphi 0, %s298
      %s316 = sphi 0, %s316
      %s318 = sphi 0, %s316
      %s319 = sphi 0, %s318
      %s333 = sphi 0, %s319
      %s337 = sphi 0, %s337
      %s339 = sphi 0, %s337
      %s340 = sphi 0, %s339
      %s354 = sphi 0, %s340
      %s358 = sphi 0, %s358
      %s360 = sphi 0, %s358
      %s361 = sphi 0, %s360
      %s375 = sphi 0, %s361
      %s379 = sphi 0, %s379
      %s381 = sphi 0, %s379
      %s382 = sphi 0, %s381
      %s396 = sphi 0, %s382
      %s400 = sphi 0, %s400
      %s402 = sphi 0, %s400
      %s403 = sphi 0, %s402
      %s417 = sphi 0, %s403
      %s421 = sphi 0, %s421
      %s423 = sphi 0, %s421
      %s424 = sphi 0, %s423
      %s438 = sphi 0, %s424
      %s442 = sphi 0, %s442
      %s444 = sphi 0, %s442
      %s445 = sphi 0, %s444
      %s459 = sphi 0, %s445
      %s463 = sphi 0, %s463
      %s465 = sphi 0, %s463
      %s466 = sphi 0, %s465
      %s480 = sphi 0, %s466
      %s484 = sphi 0, %s484
      %s486 = sphi 0, %s484
      %s487 = sphi 0, %s486
      %s501 = sphi 0, %s487
      %s507 = sphi 0, %s509
      %s510 = sphi 0, %s507
      %s511 = sphi 0, %s510
      %s527 = sphi 0, %s511
    $region4: #{tpu_custom_call.1} parent=1 // loop_header_branch
      %44 = sbr.rel (%p42) target = $region8
    $region5: #{tpu_custom_call.1} parent=1 // loop_body
      %s46 = ssub.s32 %s41, 1
      %s47 = ssub.s32 %s41, 2
      %s48 = sadd.s32 %s41, 1
      %s49 = ssub.s32 %s41, %s48
      %p50 = scmp.eq.s32.totalorder %s49, 0
      %s52 = sadd.s32 %s51, 1
      %s53 = scalar_select %p50, %s51, %s52
      %p56 = pneg %p50
      %p57 = scmp.eq.s32.totalorder %s41, 1
      %p58 = por %p56, %p57
      %p59 = scmp.ne.s32.totalorder %s51, %s54
      %p60 = scmp.eq.s32.totalorder %s41, 0
      %p61 = por %p59, %p60
      %p62 = scmp.ne.s32.totalorder %s51, %s54
      %p63 = scmp.eq.s32.totalorder %s46, 1
      %p64 = por %p62, %p63
      %p65 = scmp.ne.s32.totalorder %s54, %s55
      %p66 = scmp.eq.s32.totalorder %s46, 0
      %p67 = por %p65, %p66
      %p68 = scmp.ne.s32.totalorder %s54, %s55
      %p69 = scmp.eq.s32.totalorder %s47, 1
      %p70 = por %p68, %p69
      %p72 = scmp.ne.s32.totalorder %s55, %s71
      %p73 = scmp.eq.s32.totalorder %s47, 0
      %p74 = por %p72, %p73
      %s75 = ssub.s32 %s41, %s48
      %p76 = scmp.eq.s32.totalorder %s75, 0
      %s78 = sadd.s32 %s77, 1
      %s79 = scalar_select %p76, %s77, %s78
      %p82 = pneg %p76
      %p83 = scmp.eq.s32.totalorder %s41, 1
      %p84 = por %p82, %p83
      %p85 = scmp.ne.s32.totalorder %s77, %s80
      %p86 = scmp.eq.s32.totalorder %s41, 0
      %p87 = por %p85, %p86
      %p88 = scmp.ne.s32.totalorder %s77, %s80
      %p89 = scmp.eq.s32.totalorder %s46, 1
      %p90 = por %p88, %p89
      %p91 = scmp.ne.s32.totalorder %s80, %s81
      %p92 = scmp.eq.s32.totalorder %s46, 0
      %p93 = por %p91, %p92
      %p94 = scmp.ne.s32.totalorder %s80, %s81
      %p95 = scmp.eq.s32.totalorder %s47, 1
      %p96 = por %p94, %p95
      %p98 = scmp.ne.s32.totalorder %s81, %s97
      %p99 = scmp.eq.s32.totalorder %s47, 0
      %p100 = por %p98, %p99
      %s101 = ssub.s32 %s41, %s48
      %p102 = scmp.eq.s32.totalorder %s101, 0
      %s104 = sadd.s32 %s103, 1
      %s105 = scalar_select %p102, %s103, %s104
      %p108 = pneg %p102
      %p109 = scmp.eq.s32.totalorder %s41, 1
      %p110 = por %p108, %p109
      %p111 = scmp.ne.s32.totalorder %s103, %s106
      %p112 = scmp.eq.s32.totalorder %s41, 0
      %p113 = por %p111, %p112
      %p114 = scmp.ne.s32.totalorder %s103, %s106
      %p115 = scmp.eq.s32.totalorder %s46, 1
      %p116 = por %p114, %p115
      %p117 = scmp.ne.s32.totalorder %s106, %s107
      %p118 = scmp.eq.s32.totalorder %s46, 0
      %p119 = por %p117, %p118
      %p120 = scmp.ne.s32.totalorder %s106, %s107
      %p121 = scmp.eq.s32.totalorder %s47, 1
      %p122 = por %p120, %p121
      %p124 = scmp.ne.s32.totalorder %s107, %s123
      %p125 = scmp.eq.s32.totalorder %s47, 0
      %p126 = por %p124, %p125
      %s128 = sadd.s32 %s127, 1
      %p131 = scmp.eq.s32.totalorder %s41, 1
      %p132 = scmp.ne.s32.totalorder %s127, %s129
      %p133 = scmp.eq.s32.totalorder %s41, 0
      %p134 = por %p132, %p133
      %p135 = scmp.ne.s32.totalorder %s127, %s129
      %p136 = scmp.eq.s32.totalorder %s46, 1
      %p137 = por %p135, %p136
      %p138 = scmp.ne.s32.totalorder %s129, %s130
      %p139 = scmp.eq.s32.totalorder %s46, 0
      %p140 = por %p138, %p139
      %p141 = scmp.ne.s32.totalorder %s129, %s130
      %p142 = scmp.eq.s32.totalorder %s47, 1
      %p143 = por %p141, %p142
      %p145 = scmp.ne.s32.totalorder %s130, %s144
      %p146 = scmp.eq.s32.totalorder %s47, 0
      %p147 = por %p145, %p146
      %s149 = sadd.s32 %s148, 1
      %p152 = scmp.eq.s32.totalorder %s41, 1
      %p153 = scmp.ne.s32.totalorder %s148, %s150
      %p154 = scmp.eq.s32.totalorder %s41, 0
      %p155 = por %p153, %p154
      %p156 = scmp.ne.s32.totalorder %s148, %s150
      %p157 = scmp.eq.s32.totalorder %s46, 1
      %p158 = por %p156, %p157
      %p159 = scmp.ne.s32.totalorder %s150, %s151
      %p160 = scmp.eq.s32.totalorder %s46, 0
      %p161 = por %p159, %p160
      %p162 = scmp.ne.s32.totalorder %s150, %s151
      %p163 = scmp.eq.s32.totalorder %s47, 1
      %p164 = por %p162, %p163
      %p166 = scmp.ne.s32.totalorder %s151, %s165
      %p167 = scmp.eq.s32.totalorder %s47, 0
      %p168 = por %p166, %p167
      %s170 = sadd.s32 %s169, 1
      %p173 = scmp.eq.s32.totalorder %s41, 1
      %p174 = scmp.ne.s32.totalorder %s169, %s171
      %p175 = scmp.eq.s32.totalorder %s41, 0
      %p176 = por %p174, %p175
      %p177 = scmp.ne.s32.totalorder %s169, %s171
      %p178 = scmp.eq.s32.totalorder %s46, 1
      %p179 = por %p177, %p178
      %p180 = scmp.ne.s32.totalorder %s171, %s172
      %p181 = scmp.eq.s32.totalorder %s46, 0
      %p182 = por %p180, %p181
      %p183 = scmp.ne.s32.totalorder %s171, %s172
      %p184 = scmp.eq.s32.totalorder %s47, 1
      %p185 = por %p183, %p184
      %p187 = scmp.ne.s32.totalorder %s172, %s186
      %p188 = scmp.eq.s32.totalorder %s47, 0
      %p189 = por %p187, %p188
      %s191 = sadd.s32 %s190, 1
      %p194 = scmp.eq.s32.totalorder %s41, 1
      %p195 = scmp.ne.s32.totalorder %s190, %s192
      %p196 = scmp.eq.s32.totalorder %s41, 0
      %p197 = por %p195, %p196
      %p198 = scmp.ne.s32.totalorder %s190, %s192
      %p199 = scmp.eq.s32.totalorder %s46, 1
      %p200 = por %p198, %p199
      %p201 = scmp.ne.s32.totalorder %s192, %s193
      %p202 = scmp.eq.s32.totalorder %s46, 0
      %p203 = por %p201, %p202
      %p204 = scmp.ne.s32.totalorder %s192, %s193
      %p205 = scmp.eq.s32.totalorder %s47, 1
      %p206 = por %p204, %p205
      %p208 = scmp.ne.s32.totalorder %s193, %s207
      %p209 = scmp.eq.s32.totalorder %s47, 0
      %p210 = por %p208, %p209
      %s212 = sadd.s32 %s211, 1
      %p215 = scmp.eq.s32.totalorder %s41, 1
      %p216 = scmp.ne.s32.totalorder %s211, %s213
      %p217 = scmp.eq.s32.totalorder %s41, 0
      %p218 = por %p216, %p217
      %p219 = scmp.ne.s32.totalorder %s211, %s213
      %p220 = scmp.eq.s32.totalorder %s46, 1
      %p221 = por %p219, %p220
      %p222 = scmp.ne.s32.totalorder %s213, %s214
      %p223 = scmp.eq.s32.totalorder %s46, 0
      %p224 = por %p222, %p223
      %p225 = scmp.ne.s32.totalorder %s213, %s214
      %p226 = scmp.eq.s32.totalorder %s47, 1
      %p227 = por %p225, %p226
      %p229 = scmp.ne.s32.totalorder %s214, %s228
      %p230 = scmp.eq.s32.totalorder %s47, 0
      %p231 = por %p229, %p230
      %s233 = sadd.s32 %s232, 1
      %p236 = scmp.eq.s32.totalorder %s41, 1
      %p237 = scmp.ne.s32.totalorder %s232, %s234
      %p238 = scmp.eq.s32.totalorder %s41, 0
      %p239 = por %p237, %p238
      %p240 = scmp.ne.s32.totalorder %s232, %s234
      %p241 = scmp.eq.s32.totalorder %s46, 1
      %p242 = por %p240, %p241
      %p243 = scmp.ne.s32.totalorder %s234, %s235
      %p244 = scmp.eq.s32.totalorder %s46, 0
      %p245 = por %p243, %p244
      %p246 = scmp.ne.s32.totalorder %s234, %s235
      %p247 = scmp.eq.s32.totalorder %s47, 1
      %p248 = por %p246, %p247
      %p250 = scmp.ne.s32.totalorder %s235, %s249
      %p251 = scmp.eq.s32.totalorder %s47, 0
      %p252 = por %p250, %p251
      %s254 = sadd.s32 %s253, 1
      %p257 = scmp.eq.s32.totalorder %s41, 1
      %p258 = scmp.ne.s32.totalorder %s253, %s255
      %p259 = scmp.eq.s32.totalorder %s41, 0
      %p260 = por %p258, %p259
      %p261 = scmp.ne.s32.totalorder %s253, %s255
      %p262 = scmp.eq.s32.totalorder %s46, 1
      %p263 = por %p261, %p262
      %p264 = scmp.ne.s32.totalorder %s255, %s256
      %p265 = scmp.eq.s32.totalorder %s46, 0
      %p266 = por %p264, %p265
      %p267 = scmp.ne.s32.totalorder %s255, %s256
      %p268 = scmp.eq.s32.totalorder %s47, 1
      %p269 = por %p267, %p268
      %p271 = scmp.ne.s32.totalorder %s256, %s270
      %p272 = scmp.eq.s32.totalorder %s47, 0
      %p273 = por %p271, %p272
      %s275 = sadd.s32 %s274, 1
      %p278 = scmp.eq.s32.totalorder %s41, 1
      %p279 = scmp.ne.s32.totalorder %s274, %s276
      %p280 = scmp.eq.s32.totalorder %s41, 0
      %p281 = por %p279, %p280
      %p282 = scmp.ne.s32.totalorder %s274, %s276
      %p283 = scmp.eq.s32.totalorder %s46, 1
      %p284 = por %p282, %p283
      %p285 = scmp.ne.s32.totalorder %s276, %s277
      %p286 = scmp.eq.s32.totalorder %s46, 0
      %p287 = por %p285, %p286
      %p288 = scmp.ne.s32.totalorder %s276, %s277
      %p289 = scmp.eq.s32.totalorder %s47, 1
      %p290 = por %p288, %p289
      %p292 = scmp.ne.s32.totalorder %s277, %s291
      %p293 = scmp.eq.s32.totalorder %s47, 0
      %p294 = por %p292, %p293
      %s296 = sadd.s32 %s295, 1
      %p299 = scmp.eq.s32.totalorder %s41, 1
      %p300 = scmp.ne.s32.totalorder %s295, %s297
      %p301 = scmp.eq.s32.totalorder %s41, 0
      %p302 = por %p300, %p301
      %p303 = scmp.ne.s32.totalorder %s295, %s297
      %p304 = scmp.eq.s32.totalorder %s46, 1
      %p305 = por %p303, %p304
      %p306 = scmp.ne.s32.totalorder %s297, %s298
      %p307 = scmp.eq.s32.totalorder %s46, 0
      %p308 = por %p306, %p307
      %p309 = scmp.ne.s32.totalorder %s297, %s298
      %p310 = scmp.eq.s32.totalorder %s47, 1
      %p311 = por %p309, %p310
      %p313 = scmp.ne.s32.totalorder %s298, %s312
      %p314 = scmp.eq.s32.totalorder %s47, 0
      %p315 = por %p313, %p314
      %s317 = sadd.s32 %s316, 1
      %p320 = scmp.eq.s32.totalorder %s41, 1
      %p321 = scmp.ne.s32.totalorder %s316, %s318
      %p322 = scmp.eq.s32.totalorder %s41, 0
      %p323 = por %p321, %p322
      %p324 = scmp.ne.s32.totalorder %s316, %s318
      %p325 = scmp.eq.s32.totalorder %s46, 1
      %p326 = por %p324, %p325
      %p327 = scmp.ne.s32.totalorder %s318, %s319
      %p328 = scmp.eq.s32.totalorder %s46, 0
      %p329 = por %p327, %p328
      %p330 = scmp.ne.s32.totalorder %s318, %s319
      %p331 = scmp.eq.s32.totalorder %s47, 1
      %p332 = por %p330, %p331
      %p334 = scmp.ne.s32.totalorder %s319, %s333
      %p335 = scmp.eq.s32.totalorder %s47, 0
      %p336 = por %p334, %p335
      %s338 = sadd.s32 %s337, 1
      %p341 = scmp.eq.s32.totalorder %s41, 1
      %p342 = scmp.ne.s32.totalorder %s337, %s339
      %p343 = scmp.eq.s32.totalorder %s41, 0
      %p344 = por %p342, %p343
      %p345 = scmp.ne.s32.totalorder %s337, %s339
      %p346 = scmp.eq.s32.totalorder %s46, 1
      %p347 = por %p345, %p346
      %p348 = scmp.ne.s32.totalorder %s339, %s340
      %p349 = scmp.eq.s32.totalorder %s46, 0
      %p350 = por %p348, %p349
      %p351 = scmp.ne.s32.totalorder %s339, %s340
      %p352 = scmp.eq.s32.totalorder %s47, 1
      %p353 = por %p351, %p352
      %p355 = scmp.ne.s32.totalorder %s340, %s354
      %p356 = scmp.eq.s32.totalorder %s47, 0
      %p357 = por %p355, %p356
      %s359 = sadd.s32 %s358, 1
      %p362 = scmp.eq.s32.totalorder %s41, 1
      %p363 = scmp.ne.s32.totalorder %s358, %s360
      %p364 = scmp.eq.s32.totalorder %s41, 0
      %p365 = por %p363, %p364
      %p366 = scmp.ne.s32.totalorder %s358, %s360
      %p367 = scmp.eq.s32.totalorder %s46, 1
      %p368 = por %p366, %p367
      %p369 = scmp.ne.s32.totalorder %s360, %s361
      %p370 = scmp.eq.s32.totalorder %s46, 0
      %p371 = por %p369, %p370
      %p372 = scmp.ne.s32.totalorder %s360, %s361
      %p373 = scmp.eq.s32.totalorder %s47, 1
      %p374 = por %p372, %p373
      %p376 = scmp.ne.s32.totalorder %s361, %s375
      %p377 = scmp.eq.s32.totalorder %s47, 0
      %p378 = por %p376, %p377
      %s380 = sadd.s32 %s379, 1
      %p383 = scmp.eq.s32.totalorder %s41, 1
      %p384 = scmp.ne.s32.totalorder %s379, %s381
      %p385 = scmp.eq.s32.totalorder %s41, 0
      %p386 = por %p384, %p385
      %p387 = scmp.ne.s32.totalorder %s379, %s381
      %p388 = scmp.eq.s32.totalorder %s46, 1
      %p389 = por %p387, %p388
      %p390 = scmp.ne.s32.totalorder %s381, %s382
      %p391 = scmp.eq.s32.totalorder %s46, 0
      %p392 = por %p390, %p391
      %p393 = scmp.ne.s32.totalorder %s381, %s382
      %p394 = scmp.eq.s32.totalorder %s47, 1
      %p395 = por %p393, %p394
      %p397 = scmp.ne.s32.totalorder %s382, %s396
      %p398 = scmp.eq.s32.totalorder %s47, 0
      %p399 = por %p397, %p398
      %s401 = sadd.s32 %s400, 1
      %p404 = scmp.eq.s32.totalorder %s41, 1
      %p405 = scmp.ne.s32.totalorder %s400, %s402
      %p406 = scmp.eq.s32.totalorder %s41, 0
      %p407 = por %p405, %p406
      %p408 = scmp.ne.s32.totalorder %s400, %s402
      %p409 = scmp.eq.s32.totalorder %s46, 1
      %p410 = por %p408, %p409
      %p411 = scmp.ne.s32.totalorder %s402, %s403
      %p412 = scmp.eq.s32.totalorder %s46, 0
      %p413 = por %p411, %p412
      %p414 = scmp.ne.s32.totalorder %s402, %s403
      %p415 = scmp.eq.s32.totalorder %s47, 1
      %p416 = por %p414, %p415
      %p418 = scmp.ne.s32.totalorder %s403, %s417
      %p419 = scmp.eq.s32.totalorder %s47, 0
      %p420 = por %p418, %p419
      %s422 = sadd.s32 %s421, 1
      %p425 = scmp.eq.s32.totalorder %s41, 1
      %p426 = scmp.ne.s32.totalorder %s421, %s423
      %p427 = scmp.eq.s32.totalorder %s41, 0
      %p428 = por %p426, %p427
      %p429 = scmp.ne.s32.totalorder %s421, %s423
      %p430 = scmp.eq.s32.totalorder %s46, 1
      %p431 = por %p429, %p430
      %p432 = scmp.ne.s32.totalorder %s423, %s424
      %p433 = scmp.eq.s32.totalorder %s46, 0
      %p434 = por %p432, %p433
      %p435 = scmp.ne.s32.totalorder %s423, %s424
      %p436 = scmp.eq.s32.totalorder %s47, 1
      %p437 = por %p435, %p436
      %p439 = scmp.ne.s32.totalorder %s424, %s438
      %p440 = scmp.eq.s32.totalorder %s47, 0
      %p441 = por %p439, %p440
      %s443 = sadd.s32 %s442, 1
      %p446 = scmp.eq.s32.totalorder %s41, 1
      %p447 = scmp.ne.s32.totalorder %s442, %s444
      %p448 = scmp.eq.s32.totalorder %s41, 0
      %p449 = por %p447, %p448
      %p450 = scmp.ne.s32.totalorder %s442, %s444
      %p451 = scmp.eq.s32.totalorder %s46, 1
      %p452 = por %p450, %p451
      %p453 = scmp.ne.s32.totalorder %s444, %s445
      %p454 = scmp.eq.s32.totalorder %s46, 0
      %p455 = por %p453, %p454
      %p456 = scmp.ne.s32.totalorder %s444, %s445
      %p457 = scmp.eq.s32.totalorder %s47, 1
      %p458 = por %p456, %p457
      %p460 = scmp.ne.s32.totalorder %s445, %s459
      %p461 = scmp.eq.s32.totalorder %s47, 0
      %p462 = por %p460, %p461
      %s464 = sadd.s32 %s463, 1
      %p467 = scmp.eq.s32.totalorder %s41, 1
      %p468 = scmp.ne.s32.totalorder %s463, %s465
      %p469 = scmp.eq.s32.totalorder %s41, 0
      %p470 = por %p468, %p469
      %p471 = scmp.ne.s32.totalorder %s463, %s465
      %p472 = scmp.eq.s32.totalorder %s46, 1
      %p473 = por %p471, %p472
      %p474 = scmp.ne.s32.totalorder %s465, %s466
      %p475 = scmp.eq.s32.totalorder %s46, 0
      %p476 = por %p474, %p475
      %p477 = scmp.ne.s32.totalorder %s465, %s466
      %p478 = scmp.eq.s32.totalorder %s47, 1
      %p479 = por %p477, %p478
      %p481 = scmp.ne.s32.totalorder %s466, %s480
      %p482 = scmp.eq.s32.totalorder %s47, 0
      %p483 = por %p481, %p482
      %s485 = sadd.s32 %s484, 1
      %p488 = scmp.eq.s32.totalorder %s41, 1
      %p489 = scmp.ne.s32.totalorder %s484, %s486
      %p490 = scmp.eq.s32.totalorder %s41, 0
      %p491 = por %p489, %p490
      %p492 = scmp.ne.s32.totalorder %s484, %s486
      %p493 = scmp.eq.s32.totalorder %s46, 1
      %p494 = por %p492, %p493
      %p495 = scmp.ne.s32.totalorder %s486, %s487
      %p496 = scmp.eq.s32.totalorder %s46, 0
      %p497 = por %p495, %p496
      %p498 = scmp.ne.s32.totalorder %s486, %s487
      %p499 = scmp.eq.s32.totalorder %s47, 1
      %p500 = por %p498, %p499
      %p502 = scmp.ne.s32.totalorder %s487, %s501
      %p503 = scmp.eq.s32.totalorder %s47, 0
      %p504 = por %p502, %p503
      %s505 = ssub.s32 %s41, %s48
      %p506 = scmp.eq.s32.totalorder %s505, 0
      %s508 = sadd.s32 %s507, 1
      %s509 = scalar_select %p506, %s507, %s508
      %p512 = pneg %p506
      %p513 = scmp.eq.s32.totalorder %s41, 1
      %p514 = por %p512, %p513
      %p515 = scmp.ne.s32.totalorder %s507, %s510
      %p516 = scmp.eq.s32.totalorder %s41, 0
      %p517 = por %p515, %p516
      %p518 = scmp.ne.s32.totalorder %s507, %s510
      %p519 = scmp.eq.s32.totalorder %s46, 1
      %p520 = por %p518, %p519
      %p521 = scmp.ne.s32.totalorder %s510, %s511
      %p522 = scmp.eq.s32.totalorder %s46, 0
      %p523 = por %p521, %p522
      %p524 = scmp.ne.s32.totalorder %s510, %s511
      %p525 = scmp.eq.s32.totalorder %s47, 1
      %p526 = por %p524, %p525
      %p528 = scmp.ne.s32.totalorder %s511, %s527
      %p529 = scmp.eq.s32.totalorder %s47, 0
      %p530 = por %p528, %p529
      %p531 = scmp.le.s32.totalorder 1, %s41
      %p532 = scmp.lt.s32.totalorder %s41, 3
      %p533 = pnand %p531, %p532
      %p534 = pneg %p533
      // Predicated region
      $region9: #{tpu_custom_call.1} parent=5 // pred_check
        _
      $region10: #{tpu_custom_call.1} parent=5 // pred_check_branch
        %536 = sbr.rel (%p533) target = $region12
      $region11: #{tpu_custom_call.1} parent=5 // pred_region
        %s537 = ssub.s32 %s41, 1
        // Predicated region
        $region13: #{tpu_custom_call.1} parent=11 // pred_check
          %p538 = pneg %p140
        $region14: #{tpu_custom_call.1} parent=11 // pred_check_branch
          %540 = sbr.rel (%p538) target = $region16
        $region15: #{tpu_custom_call.1} parent=11 // pred_region
          %542 = vsyncadd [#allocation9], 0
          %s543 = sshll.u32 %s3, 4
          %s544 = int_to_ptr.hbm [resolvable:$true] %s543
          %s545 = sshll.u32 [#allocation8], 4
          %s546 = int_to_ptr.vmem [resolvable:$true] %s545
          %551 = dma.hbm_to_vmem [thread:$0]  %s544, 48, %s546, [#allocation9], 16, 16, 1
        $region16: #{tpu_custom_call.1} parent=11 // pred_fallthru
          _
        // Predicated region
        $region17: #{tpu_custom_call.1} parent=11 // pred_check
          %p552 = pneg %p161
        $region18: #{tpu_custom_call.1} parent=11 // pred_check_branch
          %554 = sbr.rel (%p552) target = $region20
        $region19: #{tpu_custom_call.1} parent=11 // pred_region
          _
        $region20: #{tpu_custom_call.1} parent=11 // pred_fallthru
          _
        // Predicated region
        $region21: #{tpu_custom_call.1} parent=11 // pred_check
          %p555 = pneg %p182
        $region22: #{tpu_custom_call.1} parent=11 // pred_check_branch
          %557 = sbr.rel (%p555) target = $region24
        $region23: #{tpu_custom_call.1} parent=11 // pred_region
          %559 = vsyncadd [#allocation9], 0
          %s560 = sshll.u32 %s5, 4
          %s561 = int_to_ptr.hbm [resolvable:$true] %s560
          %s562 = sshll.u32 [#allocation10], 4
          %s563 = int_to_ptr.vmem [resolvable:$true] %s562
          %568 = dma.hbm_to_vmem [thread:$0]  %s561, 3072, %s563, [#allocation9], 192, 192, 12
        $region24: #{tpu_custom_call.1} parent=11 // pred_fallthru
          _
        // Predicated region
        $region25: #{tpu_custom_call.1} parent=11 // pred_check
          %p569 = pneg %p203
        $region26: #{tpu_custom_call.1} parent=11 // pred_check_branch
          %571 = sbr.rel (%p569) target = $region28
        $region27: #{tpu_custom_call.1} parent=11 // pred_region
          %573 = vsyncadd [#allocation12], 0
          %s575 = sshll.u32 %s6, 4
          %s576 = int_to_ptr.hbm [resolvable:$true] %s575
          %s577 = sshll.u32 [#allocation11], 4
          %s578 = int_to_ptr.vmem [resolvable:$true] %s577
          %580 = dma.hbm_to_vmem [thread:$0]  %s576, 48, %s578, [#allocation12]
        $region28: #{tpu_custom_call.1} parent=11 // pred_fallthru
          _
        // Predicated region
        $region29: #{tpu_custom_call.1} parent=11 // pred_check
          %p581 = pneg %p224
        $region30: #{tpu_custom_call.1} parent=11 // pred_check_branch
          %583 = sbr.rel (%p581) target = $region32
        $region31: #{tpu_custom_call.1} parent=11 // pred_region
          %585 = vsyncadd [#allocation12], 0
          %s586 = sshll.u32 %s7, 4
          %s587 = int_to_ptr.hbm [resolvable:$true] %s586
          %s588 = sshll.u32 [#allocation13], 4
          %s589 = int_to_ptr.vmem [resolvable:$true] %s588
          %594 = dma.hbm_to_vmem [thread:$0]  %s587, 1024, %s589, [#allocation12], 64, 64, 4
        $region32: #{tpu_custom_call.1} parent=11 // pred_fallthru
          _
        // Predicated region
        $region33: #{tpu_custom_call.1} parent=11 // pred_check
          %p595 = pneg %p245
        $region34: #{tpu_custom_call.1} parent=11 // pred_check_branch
          %597 = sbr.rel (%p595) target = $region36
        $region35: #{tpu_custom_call.1} parent=11 // pred_region
          %599 = vsyncadd [#allocation15], 0
          %s601 = sshll.u32 %s8, 4
          %s602 = int_to_ptr.hbm [resolvable:$true] %s601
          %s603 = sshll.u32 [#allocation14], 4
          %s604 = int_to_ptr.vmem [resolvable:$true] %s603
          %606 = dma.hbm_to_vmem [thread:$0]  %s602, 16, %s604, [#allocation15]
        $region36: #{tpu_custom_call.1} parent=11 // pred_fallthru
          _
        // Predicated region
        $region37: #{tpu_custom_call.1} parent=11 // pred_check
          %p607 = pneg %p266
        $region38: #{tpu_custom_call.1} parent=11 // pred_check_branch
          %609 = sbr.rel (%p607) target = $region40
        $region39: #{tpu_custom_call.1} parent=11 // pred_region
          %611 = vsyncadd [#allocation15], 0
          %s612 = sshll.u32 %s9, 4
          %s613 = int_to_ptr.hbm [resolvable:$true] %s612
          %s614 = sshll.u32 [#allocation16], 4
          %s615 = int_to_ptr.vmem [resolvable:$true] %s614
          %620 = dma.hbm_to_vmem [thread:$0]  %s613, 1024, %s615, [#allocation15], 64, 64, 4
        $region40: #{tpu_custom_call.1} parent=11 // pred_fallthru
          _
        // Predicated region
        $region41: #{tpu_custom_call.1} parent=11 // pred_check
          %p621 = pneg %p287
        $region42: #{tpu_custom_call.1} parent=11 // pred_check_branch
          %623 = sbr.rel (%p621) target = $region44
        $region43: #{tpu_custom_call.1} parent=11 // pred_region
          _
        $region44: #{tpu_custom_call.1} parent=11 // pred_fallthru
          _
        // Predicated region
        $region45: #{tpu_custom_call.1} parent=11 // pred_check
          %p624 = pneg %p308
        $region46: #{tpu_custom_call.1} parent=11 // pred_check_branch
          %626 = sbr.rel (%p624) target = $region48
        $region47: #{tpu_custom_call.1} parent=11 // pred_region
          %628 = vsyncadd [#allocation18], 0
          %s629 = sshll.u32 %s11, 4
          %s630 = int_to_ptr.hbm [resolvable:$true] %s629
          %s631 = sshll.u32 [#allocation17], 4
          %s632 = int_to_ptr.vmem [resolvable:$true] %s631
          %637 = dma.hbm_to_vmem [thread:$0]  %s630, 2048, %s632, [#allocation18], 128, 128, 8
        $region48: #{tpu_custom_call.1} parent=11 // pred_fallthru
          _
        // Predicated region
        $region49: #{tpu_custom_call.1} parent=11 // pred_check
          %p638 = pneg %p329
        $region50: #{tpu_custom_call.1} parent=11 // pred_check_branch
          %640 = sbr.rel (%p638) target = $region52
        $region51: #{tpu_custom_call.1} parent=11 // pred_region
          _
        $region52: #{tpu_custom_call.1} parent=11 // pred_fallthru
          _
        // Predicated region
        $region53: #{tpu_custom_call.1} parent=11 // pred_check
          %p641 = pneg %p350
        $region54: #{tpu_custom_call.1} parent=11 // pred_check_branch
          %643 = sbr.rel (%p641) target = $region56
        $region55: #{tpu_custom_call.1} parent=11 // pred_region
          %645 = vsyncadd [#allocation18], 0
          %s646 = sshll.u32 %s13, 4
          %s647 = int_to_ptr.hbm [resolvable:$true] %s646
          %s648 = sshll.u32 [#allocation19], 4
          %s649 = int_to_ptr.vmem [resolvable:$true] %s648
          %654 = dma.hbm_to_vmem [thread:$0]  %s647, 1024, %s649, [#allocation18], 64, 64, 4
        $region56: #{tpu_custom_call.1} parent=11 // pred_fallthru
          _
        // Predicated region
        $region57: #{tpu_custom_call.1} parent=11 // pred_check
          %p655 = pneg %p371
        $region58: #{tpu_custom_call.1} parent=11 // pred_check_branch
          %657 = sbr.rel (%p655) target = $region60
        $region59: #{tpu_custom_call.1} parent=11 // pred_region
          _
        $region60: #{tpu_custom_call.1} parent=11 // pred_fallthru
          _
        // Predicated region
        $region61: #{tpu_custom_call.1} parent=11 // pred_check
          %p658 = pneg %p392
        $region62: #{tpu_custom_call.1} parent=11 // pred_check_branch
          %660 = sbr.rel (%p658) target = $region64
        $region63: #{tpu_custom_call.1} parent=11 // pred_region
          %662 = vsyncadd [#allocation21], 0
          %s663 = sshll.u32 %s15, 4
          %s664 = int_to_ptr.hbm [resolvable:$true] %s663
          %s665 = sshll.u32 [#allocation20], 4
          %s666 = int_to_ptr.vmem [resolvable:$true] %s665
          %671 = dma.hbm_to_vmem [thread:$0]  %s664, 2048, %s666, [#allocation21], 128, 128, 8
        $region64: #{tpu_custom_call.1} parent=11 // pred_fallthru
          _
        // Predicated region
        $region65: #{tpu_custom_call.1} parent=11 // pred_check
          %p672 = pneg %p413
        $region66: #{tpu_custom_call.1} parent=11 // pred_check_branch
          %674 = sbr.rel (%p672) target = $region68
        $region67: #{tpu_custom_call.1} parent=11 // pred_region
          _
        $region68: #{tpu_custom_call.1} parent=11 // pred_fallthru
          _
        // Predicated region
        $region69: #{tpu_custom_call.1} parent=11 // pred_check
          %p675 = pneg %p434
        $region70: #{tpu_custom_call.1} parent=11 // pred_check_branch
          %677 = sbr.rel (%p675) target = $region72
        $region71: #{tpu_custom_call.1} parent=11 // pred_region
          %679 = vsyncadd [#allocation21], 0
          %s680 = sshll.u32 %s17, 4
          %s681 = int_to_ptr.hbm [resolvable:$true] %s680
          %s682 = sshll.u32 [#allocation22], 4
          %s683 = int_to_ptr.vmem [resolvable:$true] %s682
          %688 = dma.hbm_to_vmem [thread:$0]  %s681, 2048, %s683, [#allocation21], 64, 64, 4
        $region72: #{tpu_custom_call.1} parent=11 // pred_fallthru
          _
        // Predicated region
        $region73: #{tpu_custom_call.1} parent=11 // pred_check
          %p689 = pneg %p455
        $region74: #{tpu_custom_call.1} parent=11 // pred_check_branch
          %691 = sbr.rel (%p689) target = $region76
        $region75: #{tpu_custom_call.1} parent=11 // pred_region
          _
        $region76: #{tpu_custom_call.1} parent=11 // pred_fallthru
          _
        // Predicated region
        $region77: #{tpu_custom_call.1} parent=11 // pred_check
          %p692 = pneg %p476
        $region78: #{tpu_custom_call.1} parent=11 // pred_check_branch
          %694 = sbr.rel (%p692) target = $region80
        $region79: #{tpu_custom_call.1} parent=11 // pred_region
          _
        $region80: #{tpu_custom_call.1} parent=11 // pred_fallthru
          _
        // Predicated region
        $region81: #{tpu_custom_call.1} parent=11 // pred_check
          %p695 = pneg %p497
        $region82: #{tpu_custom_call.1} parent=11 // pred_check_branch
          %697 = sbr.rel (%p695) target = $region84
        $region83: #{tpu_custom_call.1} parent=11 // pred_region
          _
        $region84: #{tpu_custom_call.1} parent=11 // pred_fallthru
          _
      $region12: #{tpu_custom_call.1} parent=5 // pred_fallthru
        _
      %p698 = scmp.lt.s32.totalorder %s41, 2
      // Predicated region
      $region85: #{tpu_custom_call.1} parent=5 // pred_check
        %p699 = pneg %p698
      $region86: #{tpu_custom_call.1} parent=5 // pred_check_branch
        %701 = sbr.rel (%p699) target = $region88
      $region87: #{tpu_custom_call.1} parent=5 // pred_region
        // Predicated region
        $region89: #{tpu_custom_call.1} parent=87 // pred_check
          %p702 = pneg %p61
        $region90: #{tpu_custom_call.1} parent=87 // pred_check_branch
          %704 = sbr.rel (%p702) target = $region92
        $region91: #{tpu_custom_call.1} parent=87 // pred_region
          %s705 = sand.u32 %s51, 1
          %s706 = scalar_lea.sflag [#allocation3], %s705
          %s707 = sand.u32 %s51, 1
          %s708 = smul.addr %s707, 4
          %s709 = scalar_lea.vmem [#allocation2], %s708
          %711 = vsyncadd %s706, 0
          %s712 = smul.addr %s41, 4
          %s713 = scalar_lea.hbm %s0, %s712
          %s715 = sshll.u32 %s713, 4
          %s716 = int_to_ptr.hbm [resolvable:$true] %s715
          %s717 = sshll.u32 %s709, 4
          %s718 = int_to_ptr.vmem [resolvable:$true] %s717
          %720 = dma.hbm_to_vmem [thread:$0]  %s716, 64, %s718, %s706
        $region92: #{tpu_custom_call.1} parent=87 // pred_fallthru
          _
        // Predicated region
        $region93: #{tpu_custom_call.1} parent=87 // pred_check
          %p721 = pneg %p87
        $region94: #{tpu_custom_call.1} parent=87 // pred_check_branch
          %723 = sbr.rel (%p721) target = $region96
        $region95: #{tpu_custom_call.1} parent=87 // pred_region
          %s724 = sand.u32 %s41, 1
          %s725 = scalar_lea.sflag [#allocation6], %s724
          %s726 = sand.u32 %s77, 1
          %s727 = smul.addr %s726, 4
          %s728 = scalar_lea.vmem [#allocation5], %s727
          %730 = vsyncadd %s725, 0
          %s731 = smul.addr %s41, 4
          %s732 = scalar_lea.hbm %s1, %s731
          %s734 = sshll.u32 %s732, 4
          %s735 = int_to_ptr.hbm [resolvable:$true] %s734
          %s736 = sshll.u32 %s728, 4
          %s737 = int_to_ptr.vmem [resolvable:$true] %s736
          %739 = dma.hbm_to_vmem [thread:$0]  %s735, 64, %s737, %s725
        $region96: #{tpu_custom_call.1} parent=87 // pred_fallthru
          _
        // Predicated region
        $region97: #{tpu_custom_call.1} parent=87 // pred_check
          %p740 = pneg %p113
        $region98: #{tpu_custom_call.1} parent=87 // pred_check_branch
          %742 = sbr.rel (%p740) target = $region100
        $region99: #{tpu_custom_call.1} parent=87 // pred_region
          %s743 = sand.u32 %s41, 1
          %s744 = scalar_lea.sflag [#allocation6], %s743
          %s745 = sand.u32 %s103, 1
          %s746 = scalar_lea.vmem [#allocation7], %s745
          %748 = vsyncadd %s744, 0
          %s749 = scalar_lea.hbm %s2, %s41
          %s751 = sshll.u32 %s749, 4
          %s752 = int_to_ptr.hbm [resolvable:$true] %s751
          %s753 = sshll.u32 %s746, 4
          %s754 = int_to_ptr.vmem [resolvable:$true] %s753
          %756 = dma.hbm_to_vmem [thread:$0]  %s752, 16, %s754, %s744
        $region100: #{tpu_custom_call.1} parent=87 // pred_fallthru
          _
      $region88: #{tpu_custom_call.1} parent=5 // pred_fallthru
        _
      %p757 = scmp.le.s32.totalorder 1, %s41
      %p758 = scmp.lt.s32.totalorder %s41, 3
      %p759 = pnand %p757, %p758
      %p760 = pneg %p759
      // Predicated region
      $region101: #{tpu_custom_call.1} parent=5 // pred_check
        _
      $region102: #{tpu_custom_call.1} parent=5 // pred_check_branch
        %762 = sbr.rel (%p759) target = $region104
      $region103: #{tpu_custom_call.1} parent=5 // pred_region
        %s763 = ssub.s32 %s41, 1
        %s764 = sand.u32 %s54, 1
        %s765 = scalar_lea.sflag [#allocation3], %s764
        %s766 = sand.u32 %s54, 1
        %s767 = smul.addr %s766, 4
        %s768 = scalar_lea.vmem [#allocation2], %s767
        // Predicated region
        $region105: #{tpu_custom_call.1} parent=103 // pred_check
          %p769 = pneg %p67
        $region106: #{tpu_custom_call.1} parent=103 // pred_check_branch
          %771 = sbr.rel (%p769) target = $region108
        $region107: #{tpu_custom_call.1} parent=103 // pred_region
          %773 = dma.done %s765, 64
        $region108: #{tpu_custom_call.1} parent=103 // pred_fallthru
          _
        %s774 = sand.u32 %s46, 1
        %s775 = scalar_lea.sflag [#allocation6], %s774
        %s776 = sand.u32 %s80, 1
        %s777 = smul.addr %s776, 4
        %s778 = scalar_lea.vmem [#allocation5], %s777
        // Predicated region
        $region109: #{tpu_custom_call.1} parent=103 // pred_check
          %p779 = pneg %p93
        $region110: #{tpu_custom_call.1} parent=103 // pred_check_branch
          %781 = sbr.rel (%p779) target = $region112
        $region111: #{tpu_custom_call.1} parent=103 // pred_region
          %783 = dma.done %s775, 64
        $region112: #{tpu_custom_call.1} parent=103 // pred_fallthru
          _
        %s784 = sand.u32 %s46, 1
        %s785 = scalar_lea.sflag [#allocation6], %s784
        %s786 = sand.u32 %s106, 1
        %s787 = scalar_lea.vmem [#allocation7], %s786
        // Predicated region
        $region113: #{tpu_custom_call.1} parent=103 // pred_check
          %p788 = pneg %p119
        $region114: #{tpu_custom_call.1} parent=103 // pred_check_branch
          %790 = sbr.rel (%p788) target = $region116
        $region115: #{tpu_custom_call.1} parent=103 // pred_region
          %792 = dma.done %s785, 16
        $region116: #{tpu_custom_call.1} parent=103 // pred_fallthru
          _
        // Predicated region
        $region117: #{tpu_custom_call.1} parent=103 // pred_check
          %p793 = pneg %p140
        $region118: #{tpu_custom_call.1} parent=103 // pred_check_branch
          %795 = sbr.rel (%p793) target = $region120
        $region119: #{tpu_custom_call.1} parent=103 // pred_region
          %797 = dma.done [#allocation9], 48
        $region120: #{tpu_custom_call.1} parent=103 // pred_fallthru
          _
        // Predicated region
        $region121: #{tpu_custom_call.1} parent=103 // pred_check
          %p798 = pneg %p182
        $region122: #{tpu_custom_call.1} parent=103 // pred_check_branch
          %800 = sbr.rel (%p798) target = $region124
        $region123: #{tpu_custom_call.1} parent=103 // pred_region
          %802 = dma.done [#allocation9], 3072
        $region124: #{tpu_custom_call.1} parent=103 // pred_fallthru
          _
        // Predicated region
        $region125: #{tpu_custom_call.1} parent=103 // pred_check
          %p803 = pneg %p203
        $region126: #{tpu_custom_call.1} parent=103 // pred_check_branch
          %805 = sbr.rel (%p803) target = $region128
        $region127: #{tpu_custom_call.1} parent=103 // pred_region
          %807 = dma.done [#allocation12], 48
        $region128: #{tpu_custom_call.1} parent=103 // pred_fallthru
          _
        // Predicated region
        $region129: #{tpu_custom_call.1} parent=103 // pred_check
          %p808 = pneg %p224
        $region130: #{tpu_custom_call.1} parent=103 // pred_check_branch
          %810 = sbr.rel (%p808) target = $region132
        $region131: #{tpu_custom_call.1} parent=103 // pred_region
          %812 = dma.done [#allocation12], 1024
        $region132: #{tpu_custom_call.1} parent=103 // pred_fallthru
          _
        // Predicated region
        $region133: #{tpu_custom_call.1} parent=103 // pred_check
          %p813 = pneg %p245
        $region134: #{tpu_custom_call.1} parent=103 // pred_check_branch
          %815 = sbr.rel (%p813) target = $region136
        $region135: #{tpu_custom_call.1} parent=103 // pred_region
          %817 = dma.done [#allocation15], 16
        $region136: #{tpu_custom_call.1} parent=103 // pred_fallthru
          _
        // Predicated region
        $region137: #{tpu_custom_call.1} parent=103 // pred_check
          %p818 = pneg %p266
        $region138: #{tpu_custom_call.1} parent=103 // pred_check_branch
          %820 = sbr.rel (%p818) target = $region140
        $region139: #{tpu_custom_call.1} parent=103 // pred_region
          %822 = dma.done [#allocation15], 1024
        $region140: #{tpu_custom_call.1} parent=103 // pred_fallthru
          _
        // Predicated region
        $region141: #{tpu_custom_call.1} parent=103 // pred_check
          %p823 = pneg %p308
        $region142: #{tpu_custom_call.1} parent=103 // pred_check_branch
          %825 = sbr.rel (%p823) target = $region144
        $region143: #{tpu_custom_call.1} parent=103 // pred_region
          %827 = dma.done [#allocation18], 2048
        $region144: #{tpu_custom_call.1} parent=103 // pred_fallthru
          _
        // Predicated region
        $region145: #{tpu_custom_call.1} parent=103 // pred_check
          %p828 = pneg %p350
        $region146: #{tpu_custom_call.1} parent=103 // pred_check_branch
          %830 = sbr.rel (%p828) target = $region148
        $region147: #{tpu_custom_call.1} parent=103 // pred_region
          %832 = dma.done [#allocation18], 1024
        $region148: #{tpu_custom_call.1} parent=103 // pred_fallthru
          _
        // Predicated region
        $region149: #{tpu_custom_call.1} parent=103 // pred_check
          %p833 = pneg %p392
        $region150: #{tpu_custom_call.1} parent=103 // pred_check_branch
          %835 = sbr.rel (%p833) target = $region152
        $region151: #{tpu_custom_call.1} parent=103 // pred_region
          %837 = dma.done [#allocation21], 2048
        $region152: #{tpu_custom_call.1} parent=103 // pred_fallthru
          _
        // Predicated region
        $region153: #{tpu_custom_call.1} parent=103 // pred_check
          %p838 = pneg %p434
        $region154: #{tpu_custom_call.1} parent=103 // pred_check_branch
          %840 = sbr.rel (%p838) target = $region156
        $region155: #{tpu_custom_call.1} parent=103 // pred_region
          %842 = dma.done [#allocation21], 2048
        $region156: #{tpu_custom_call.1} parent=103 // pred_fallthru
          _
        %s843 = sand.u32 %s54, 1
        %s844 = scalar_lea.sflag [#allocation3], %s843
        %s845 = sand.u32 %s54, 1
        %s846 = smul.addr %s845, 4
        %s847 = scalar_lea.vmem [#allocation2], %s846
        %p848 = pneg %p67
        %p849 = pneg %p64
        %s850 = sand.u32 %s46, 1
        %s851 = scalar_lea.sflag [#allocation6], %s850
        %s852 = sand.u32 %s80, 1
        %s853 = smul.addr %s852, 4
        %s854 = scalar_lea.vmem [#allocation5], %s853
        %p855 = pneg %p93
        %p856 = pneg %p90
        %s857 = sand.u32 %s46, 1
        %s858 = scalar_lea.sflag [#allocation6], %s857
        %s859 = sand.u32 %s106, 1
        %s860 = scalar_lea.vmem [#allocation7], %s859
        %p861 = pneg %p119
        %p862 = pneg %p116
        %p863 = pneg %p140
        %p864 = pneg %p137
        %p865 = pneg %p161
        %p866 = pneg %p158
        %p867 = pneg %p182
        %p868 = pneg %p179
        %p869 = pneg %p203
        %p870 = pneg %p200
        %p871 = pneg %p224
        %p872 = pneg %p221
        %p873 = pneg %p245
        %p874 = pneg %p242
        %p875 = pneg %p266
        %p876 = pneg %p263
        %p877 = pneg %p287
        %p878 = pneg %p284
        %p879 = pneg %p308
        %p880 = pneg %p305
        %p881 = pneg %p329
        %p882 = pneg %p326
        %p883 = pneg %p350
        %p884 = pneg %p347
        %p885 = pneg %p371
        %p886 = pneg %p368
        %p887 = pneg %p392
        %p888 = pneg %p389
        %p889 = pneg %p413
        %p890 = pneg %p410
        %p891 = pneg %p434
        %p892 = pneg %p431
        %p893 = pneg %p455
        %p894 = pneg %p452
        %p895 = pneg %p476
        %p896 = pneg %p473
        %p897 = pneg %p497
        %p898 = pneg %p494
        %p899 = pneg %p523
        %p900 = pneg %p520
        %s901 = sand.u32 %s510, 1
        %s902 = scalar_lea.sflag [#allocation4], %s901
        %s903 = sand.u32 %s510, 1
        %s904 = smul.addr %s903, 4
        %s905 = scalar_lea.vmem [#allocation23], %s904
        %v907 = vld [vmem:[%s768] sm:$0xf]
        %v908 = vunpack.c.l.bf16 %v907
        %v909 = vld [vmem:[%s778] sm:$0xf]
        %v910 = vld [vmem:[%s787] sm:$0x1]
        %v911 = vlaneseq
        %v912 = vshrl.u32 %v911, 7
        %v913 = vlaneseq
        %v914 = vand.u32 %v913, 127
        %vm915 = vcmp.ge.s32.totalorder %v912, %v914
        %vm916 = vcmp.gt.f32.partialorder %v910, 0.0
        %v917 = vld [vmem:[#allocation8] sm:$0x1]
        %v918 = vld [vmem:[%s4] sm:$0x1]
        %919 = vadd.xlane.f32.xlu0 %v908
        %v920 = vpop.xlane.xlu0 %919
        %v921 = vrcp.pop 128.0
        %v922 = vmul.f32 128.0, %v921
        %v923 = vsub.f32 1.0, %v922
        %v924 = vmul.f32 %v921, %v923
        %v925 = vadd.f32 %v921, %v924
        %vm926 = vweird.f32 %v921
        %v927 = vsel %vm926, %v921, %v925
        %v928 = vmul.f32 %v920, %v927
        %v929 = vsub.f32 %v908, %v928
        %v930 = vmul.f32 %v929, %v929
        %931 = vadd.xlane.f32.xlu0 %v930
        %v932 = vpop.xlane.xlu0 %931
        %v933 = vmul.f32 %v932, %v927
        %v935 = vperm.slane %v917, 0
        %v937 = vmul.f32 %v935, %v929
        %v938 = vadd.f32 %v933, 1e-05
        %v939 = vrsqrt.pop %v938
        %v940 = vmul.f32 %v939, %v938
        %v941 = vmul.f32 %v940, %v939
        %v942 = vmul.f32 0.5, %v941
        %v943 = vsub.f32 1.5, %v942
        %v944 = vmul.f32 %v939, %v943
        %vm945 = vweird.f32 %v938
        %vm946 = vweird.f32 %v939
        %vm947 = vmor %vm945, %vm946
        %v948 = vsel %vm947, %v939, %v944
        %v949 = vmul.f32 %v937, %v948
        %v951 = vperm.slane %v918, 0
        %v953 = vadd.f32 %v949, %v951
        %v954 = vpack.c.bf16 %v953, %v953
        %v955 = vld [vmem:[#allocation10] sm:$0xff]
        %v956 = vld [vmem:[#allocation10 + $0x8] sm:$0xf]
        %v957 = vld [vmem:[#allocation10 + $0xc] sm:$0xff]
        %v958 = vld [vmem:[#allocation10 + $0x14] sm:$0xf]
        %v959 = vld [vmem:[#allocation10 + $0x18] sm:$0xff]
        %v960 = vld [vmem:[#allocation10 + $0x20] sm:$0xf]
        %v961 = vld [vmem:[#allocation10 + $0x24] sm:$0xff]
        %v962 = vld [vmem:[#allocation10 + $0x2c] sm:$0xf]
        %v963 = vld [vmem:[#allocation10 + $0x30] sm:$0xff]
        %v964 = vld [vmem:[#allocation10 + $0x38] sm:$0xf]
        %v965 = vld [vmem:[#allocation10 + $0x3c] sm:$0xff]
        %v966 = vld [vmem:[#allocation10 + $0x44] sm:$0xf]
        %v967 = vld [vmem:[#allocation10 + $0x48] sm:$0xff]
        %v968 = vld [vmem:[#allocation10 + $0x50] sm:$0xf]
        %v969 = vld [vmem:[#allocation10 + $0x54] sm:$0xff]
        %v970 = vld [vmem:[#allocation10 + $0x5c] sm:$0xf]
        %v971 = vld [vmem:[#allocation10 + $0x60] sm:$0xff]
        %v972 = vld [vmem:[#allocation10 + $0x68] sm:$0xf]
        %v973 = vld [vmem:[#allocation10 + $0x6c] sm:$0xff]
        %v974 = vld [vmem:[#allocation10 + $0x74] sm:$0xf]
        %v975 = vld [vmem:[#allocation10 + $0x78] sm:$0xff]
        %v976 = vld [vmem:[#allocation10 + $0x80] sm:$0xf]
        %v977 = vld [vmem:[#allocation10 + $0x84] sm:$0xff]
        %v978 = vld [vmem:[#allocation10 + $0x8c] sm:$0xf]
        %v979 = vld [vmem:[#allocation10 + $0x90] sm:$0xff]
        %v980 = vld [vmem:[#allocation10 + $0x98] sm:$0xf]
        %v981 = vld [vmem:[#allocation10 + $0x9c] sm:$0xff]
        %v982 = vld [vmem:[#allocation10 + $0xa4] sm:$0xf]
        %v983 = vld [vmem:[#allocation10 + $0xa8] sm:$0xff]
        %v984 = vld [vmem:[#allocation10 + $0xb0] sm:$0xf]
        %v985 = vld [vmem:[#allocation10 + $0xb4] sm:$0xff]
        %v986 = vld [vmem:[#allocation10 + $0xbc] sm:$0xf]
        %v987 = vld [vmem:[#allocation11] sm:$0x7]
        %v989 = vperm.slane %v987, 0
        %v990 = vperm.slane %v987, 1
        %v991 = vperm.slane %v987, 2
        %v1027 = vunpack.c.l.b16 %v955
        %v1028 = vunpack.c.h.b16 %v955
        %v1029 = vunpack.c.l.b16 %v956
        %v1030 = vunpack.c.l.b16 %v957
        %v1031 = vunpack.c.h.b16 %v957
        %v1032 = vunpack.c.l.b16 %v958
        %v1033 = vunpack.c.l.b16 %v959
        %v1034 = vunpack.c.h.b16 %v959
        %v1035 = vunpack.c.l.b16 %v960
        %v1036 = vunpack.c.l.b16 %v961
        %v1037 = vunpack.c.h.b16 %v961
        %v1038 = vunpack.c.l.b16 %v962
        %v1039 = vunpack.c.l.b16 %v963
        %v1040 = vunpack.c.h.b16 %v963
        %v1041 = vunpack.c.l.b16 %v964
        %v1042 = vunpack.c.l.b16 %v965
        %v1043 = vunpack.c.h.b16 %v965
        %v1044 = vunpack.c.l.b16 %v966
        %v1045 = vunpack.c.l.b16 %v967
        %v1046 = vunpack.c.h.b16 %v967
        %v1047 = vunpack.c.l.b16 %v968
        %v1048 = vunpack.c.l.b16 %v969
        %v1049 = vunpack.c.h.b16 %v969
        %v1050 = vunpack.c.l.b16 %v970
        %v1051 = vunpack.c.l.b16 %v971
        %v1052 = vunpack.c.h.b16 %v971
        %v1053 = vunpack.c.l.b16 %v972
        %v1054 = vunpack.c.l.b16 %v973
        %v1055 = vunpack.c.h.b16 %v973
        %v1056 = vunpack.c.l.b16 %v974
        %v1057 = vunpack.c.l.b16 %v975
        %v1058 = vunpack.c.h.b16 %v975
        %v1059 = vunpack.c.l.b16 %v976
        %v1060 = vunpack.c.l.b16 %v977
        %v1061 = vunpack.c.h.b16 %v977
        %v1062 = vunpack.c.l.b16 %v978
        %v1063 = vunpack.c.l.b16 %v979
        %v1064 = vunpack.c.h.b16 %v979
        %v1065 = vunpack.c.l.b16 %v980
        %v1066 = vunpack.c.l.b16 %v981
        %v1067 = vunpack.c.h.b16 %v981
        %v1068 = vunpack.c.l.b16 %v982
        %v1069 = vunpack.c.l.b16 %v983
        %v1070 = vunpack.c.h.b16 %v983
        %v1071 = vunpack.c.l.b16 %v984
        %v1072 = vunpack.c.l.b16 %v985
        %v1073 = vunpack.c.h.b16 %v985
        %v1074 = vunpack.c.l.b16 %v986
        %v1075 = vpack.c.b16 %v1030, %v1027
        %v1076 = vpack.c.b16 %v1031, %v1028
        %v1077 = vpack.c.b16 %v1032, %v1029
        %v1078 = vpack.c.b16 %v1036, %v1033
        %v1079 = vpack.c.b16 %v1037, %v1034
        %v1080 = vpack.c.b16 %v1038, %v1035
        %v1081 = vpack.c.b16 %v1042, %v1039
        %v1082 = vpack.c.b16 %v1043, %v1040
        %v1083 = vpack.c.b16 %v1044, %v1041
        %v1084 = vpack.c.b16 %v1048, %v1045
        %v1085 = vpack.c.b16 %v1049, %v1046
        %v1086 = vpack.c.b16 %v1050, %v1047
        %v1087 = vpack.c.b16 %v1054, %v1051
        %v1088 = vpack.c.b16 %v1055, %v1052
        %v1089 = vpack.c.b16 %v1056, %v1053
        %v1090 = vpack.c.b16 %v1060, %v1057
        %v1091 = vpack.c.b16 %v1061, %v1058
        %v1092 = vpack.c.b16 %v1062, %v1059
        %v1093 = vpack.c.b16 %v1066, %v1063
        %v1094 = vpack.c.b16 %v1067, %v1064
        %v1095 = vpack.c.b16 %v1068, %v1065
        %v1096 = vpack.c.b16 %v1072, %v1069
        %v1097 = vpack.c.b16 %v1073, %v1070
        %v1098 = vpack.c.b16 %v1074, %v1071
        %1123 = vmatpush.bf16.msra.mxu0 %v1096
        %1124 = vmatpush.bf16.msra.mxu0 %v1093
        %1125 = vmatpush.bf16.msra.mxu0 %v1090
        %1126 = vmatpush.bf16.msra.mxu0 %v1087
        %1127 = vmatpush.bf16.msra.mxu0 %v1084
        %1128 = vmatpush.bf16.msra.mxu0 %v1081
        %1129 = vmatpush.bf16.msra.mxu0 %v1078
        %1130 = vmatpush.bf16.msra.mxu0 %v1075
        %1131 = vmatmul.bf16.gmra.mxu0 %v954
        %v1132 = vpop.f32.mrf.mxu0
        %v1133 = vadd.f32 %v989, %v1132
        %v1134 = vpop.f32.mrf.mxu0
        %1135 = vdwg.mxu0
        %1136 = vmatpush.bf16.msra.mxu0 %v1097
        %1137 = vmatpush.bf16.msra.mxu0 %v1094
        %1138 = vmatpush.bf16.msra.mxu0 %v1091
        %1139 = vmatpush.bf16.msra.mxu0 %v1088
        %1140 = vmatpush.bf16.msra.mxu0 %v1085
        %1141 = vmatpush.bf16.msra.mxu0 %v1082
        %1142 = vmatpush.bf16.msra.mxu0 %v1079
        %1143 = vmatpush.bf16.msra.mxu0 %v1076
        %1144 = vmatmul.bf16.gmra.mxu0 %v954
        %v1145 = vpop.f32.mrf.mxu0
        %v1146 = vadd.f32 %v990, %v1145
        %v1147 = vpop.f32.mrf.mxu0
        %1148 = vdwg.mxu0
        %1149 = vmatpush.bf16.msra.mxu0 %v1098
        %1150 = vmatpush.bf16.msra.mxu0 %v1095
        %1151 = vmatpush.bf16.msra.mxu0 %v1092
        %1152 = vmatpush.bf16.msra.mxu0 %v1089
        %1153 = vmatpush.bf16.msra.mxu0 %v1086
        %1154 = vmatpush.bf16.msra.mxu0 %v1083
        %1155 = vmatpush.bf16.msra.mxu0 %v1080
        %1156 = vmatpush.bf16.msra.mxu0 %v1077
        %1157 = vmatmul.bf16.gmra.mxu0 %v954
        %v1158 = vpop.f32.mrf.mxu0
        %v1159 = vadd.f32 %v991, %v1158
        %v1160 = vpop.f32.mrf.mxu0
        %1161 = vdwg.mxu0
        %v1162 = vpack.c.bf16 %v1146, %v1133
        %v1163 = vpack.c.bf16 %v1159, %v1159
        %v1165 = vrot.slane %v1162, 4
        %vm1166 = vcmask 261120
        %v1168 = vsel %vm1166, %v1162, 0
        %v1171 = vsel %vm1166, %v1165, 0
        %1173 = vmatpush.bf16.xpose.msra.mxu0 0
        %1174 = vmatpush.bf16.xpose.msra.mxu0 0
        %1175 = vmatpush.bf16.xpose.msra.mxu0 0
        %1176 = vmatpush.bf16.xpose.msra.mxu0 0
        %1177 = vmatpush.bf16.xpose.msra.mxu0 0
        %1178 = vmatpush.bf16.xpose.msra.mxu0 0
        %1179 = vmatpush.bf16.xpose.msra.mxu0 0
        %1180 = vmatpush.bf16.xpose.msra.mxu0 %v1171
        %1181 = vmatmul.bf16.gmra.mxu0 %v1168
        %v1182 = vpop.f32.mrf.mxu0
        %v1183 = vadd.f32 0.0, %v1182
        %v1184 = vpop.f32.mrf.mxu0
        %1185 = vdwg.mxu0
        %v1186 = vsel %vm915, %v1183, -1e+09
        %vm1187 = vcmask 64512
        %v1188 = vsel %vm1187, %v1186, -inf
        %1189 = vmax.xlane.f32.xlu0 %v1188
        %v1190 = vpop.xlane.xlu0 %1189
        %v1191 = vsub.f32 %v1186, %v1190
        %v1192 = vmul.f32 %v1191, 1.442695
        %v1193 = vpow.pop %v1192
        %v1194 = vsel %vm1187, %v1193, 0.0
        %1195 = vadd.xlane.f32.xlu0 %v1194
        %v1196 = vpop.xlane.xlu0 %1195
        %v1197 = vrcp.pop %v1196
        %v1198 = vpack.c.bf16 %v1193, %v1193
        %v1200 = vsel %vm1187, %v1198, 0
        %vm1202 = vcmask 1043456
        %v1204 = vsel %vm1202, %v1163, 0
        %1206 = vmatpush.bf16.msra.mxu0 0
        %1207 = vmatpush.bf16.msra.mxu0 0
        %1208 = vmatpush.bf16.msra.mxu0 0
        %1209 = vmatpush.bf16.msra.mxu0 0
        %1210 = vmatpush.bf16.msra.mxu0 0
        %1211 = vmatpush.bf16.msra.mxu0 0
        %1212 = vmatpush.bf16.msra.mxu0 0
        %1213 = vmatpush.bf16.msra.mxu0 %v1204
        %1214 = vmatmul.bf16.gmra.mxu0 %v1200
        %v1215 = vpop.f32.mrf.mxu0
        %v1216 = vadd.f32 0.0, %v1215
        %v1217 = vpop.f32.mrf.mxu0
        %1218 = vdwg.mxu0
        %v1219 = vmul.f32 %v1216, %v1197
        %v1220 = vpack.c.bf16 %v1219, %v1219
        %1221 = vrot.lane.b32.xlu0 %v1162, 96
        %v1222 = vpop.permute.xlu0 %1221
        %v1223 = vrot.slane %v1222, 4
        %v1224 = vunpack.c.l.b16 %v1162
        %v1225 = vpack.c.b16 %v1224, %v1224
        %1226 = vrot.lane.b32.xlu0 %v1225, 96
        %v1227 = vpop.permute.xlu0 %1226
        %v1229 = vsel %vm1166, %v1227, 0
        %v1232 = vsel %vm1166, %v1223, 0
        %1234 = vmatpush.bf16.xpose.msra.mxu0 0
        %1235 = vmatpush.bf16.xpose.msra.mxu0 0
        %1236 = vmatpush.bf16.xpose.msra.mxu0 0
        %1237 = vmatpush.bf16.xpose.msra.mxu0 0
        %1238 = vmatpush.bf16.xpose.msra.mxu0 0
        %1239 = vmatpush.bf16.xpose.msra.mxu0 0
        %1240 = vmatpush.bf16.xpose.msra.mxu0 0
        %1241 = vmatpush.bf16.xpose.msra.mxu0 %v1232
        %1242 = vmatmul.bf16.gmra.mxu0 %v1229
        %v1243 = vpop.f32.mrf.mxu0
        %v1244 = vadd.f32 0.0, %v1243
        %v1245 = vpop.f32.mrf.mxu0
        %1246 = vdwg.mxu0
        %v1247 = vsel %vm915, %v1244, -1e+09
        %v1248 = vsel %vm1187, %v1247, -inf
        %1249 = vmax.xlane.f32.xlu0 %v1248
        %v1250 = vpop.xlane.xlu0 %1249
        %v1251 = vsub.f32 %v1247, %v1250
        %v1252 = vmul.f32 %v1251, 1.442695
        %v1253 = vpow.pop %v1252
        %v1254 = vsel %vm1187, %v1253, 0.0
        %1255 = vadd.xlane.f32.xlu0 %v1254
        %v1256 = vpop.xlane.xlu0 %1255
        %v1257 = vrcp.pop %v1256
        %v1258 = vpack.c.bf16 %v1253, %v1253
        %v1260 = vunpack.c.l.b16 %v1163
        %v1261 = vpack.c.b16 %v1260, %v1260
        %1262 = vrot.lane.b32.xlu0 %v1261, 96
        %v1263 = vpop.permute.xlu0 %1262
        %v1265 = vsel %vm1187, %v1258, 0
        %v1268 = vsel %vm1202, %v1263, 0
        %1270 = vmatpush.bf16.msra.mxu0 0
        %1271 = vmatpush.bf16.msra.mxu0 0
        %1272 = vmatpush.bf16.msra.mxu0 0
        %1273 = vmatpush.bf16.msra.mxu0 0
        %1274 = vmatpush.bf16.msra.mxu0 0
        %1275 = vmatpush.bf16.msra.mxu0 0
        %1276 = vmatpush.bf16.msra.mxu0 0
        %1277 = vmatpush.bf16.msra.mxu0 %v1268
        %1278 = vmatmul.bf16.gmra.mxu0 %v1265
        %v1279 = vpop.f32.mrf.mxu0
        %v1280 = vadd.f32 0.0, %v1279
        %v1281 = vpop.f32.mrf.mxu0
        %1282 = vdwg.mxu0
        %v1283 = vmul.f32 %v1280, %v1257
        %v1284 = vpack.c.bf16 %v1283, %v1283
        %1285 = vrot.lane.b32.xlu0 %v1162, 64
        %v1286 = vpop.permute.xlu0 %1285
        %v1287 = vrot.slane %v1286, 4
        %1288 = vrot.lane.b32.xlu0 %v1225, 64
        %v1289 = vpop.permute.xlu0 %1288
        %v1291 = vsel %vm1166, %v1289, 0
        %v1294 = vsel %vm1166, %v1287, 0
        %1296 = vmatpush.bf16.xpose.msra.mxu0 0
        %1297 = vmatpush.bf16.xpose.msra.mxu0 0
        %1298 = vmatpush.bf16.xpose.msra.mxu0 0
        %1299 = vmatpush.bf16.xpose.msra.mxu0 0
        %1300 = vmatpush.bf16.xpose.msra.mxu0 0
        %1301 = vmatpush.bf16.xpose.msra.mxu0 0
        %1302 = vmatpush.bf16.xpose.msra.mxu0 0
        %1303 = vmatpush.bf16.xpose.msra.mxu0 %v1294
        %1304 = vmatmul.bf16.gmra.mxu0 %v1291
        %v1305 = vpop.f32.mrf.mxu0
        %v1306 = vadd.f32 0.0, %v1305
        %v1307 = vpop.f32.mrf.mxu0
        %1308 = vdwg.mxu0
        %v1309 = vsel %vm915, %v1306, -1e+09
        %v1310 = vsel %vm1187, %v1309, -inf
        %1311 = vmax.xlane.f32.xlu0 %v1310
        %v1312 = vpop.xlane.xlu0 %1311
        %v1313 = vsub.f32 %v1309, %v1312
        %v1314 = vmul.f32 %v1313, 1.442695
        %v1315 = vpow.pop %v1314
        %v1316 = vsel %vm1187, %v1315, 0.0
        %1317 = vadd.xlane.f32.xlu0 %v1316
        %v1318 = vpop.xlane.xlu0 %1317
        %v1319 = vrcp.pop %v1318
        %v1320 = vpack.c.bf16 %v1315, %v1315
        %1321 = vrot.lane.b32.xlu0 %v1261, 64
        %v1322 = vpop.permute.xlu0 %1321
        %v1324 = vsel %vm1187, %v1320, 0
        %v1327 = vsel %vm1202, %v1322, 0
        %1329 = vmatpush.bf16.msra.mxu0 0
        %1330 = vmatpush.bf16.msra.mxu0 0
        %1331 = vmatpush.bf16.msra.mxu0 0
        %1332 = vmatpush.bf16.msra.mxu0 0
        %1333 = vmatpush.bf16.msra.mxu0 0
        %1334 = vmatpush.bf16.msra.mxu0 0
        %1335 = vmatpush.bf16.msra.mxu0 0
        %1336 = vmatpush.bf16.msra.mxu0 %v1327
        %1337 = vmatmul.bf16.gmra.mxu0 %v1324
        %v1338 = vpop.f32.mrf.mxu0
        %v1339 = vadd.f32 0.0, %v1338
        %v1340 = vpop.f32.mrf.mxu0
        %1341 = vdwg.mxu0
        %v1342 = vmul.f32 %v1339, %v1319
        %v1343 = vpack.c.bf16 %v1342, %v1342
        %1344 = vrot.lane.b32.xlu0 %v1162, 32
        %v1345 = vpop.permute.xlu0 %1344
        %v1346 = vrot.slane %v1345, 4
        %1347 = vrot.lane.b32.xlu0 %v1225, 32
        %v1348 = vpop.permute.xlu0 %1347
        %v1350 = vsel %vm1166, %v1348, 0
        %v1353 = vsel %vm1166, %v1346, 0
        %1355 = vmatpush.bf16.xpose.msra.mxu0 0
        %1356 = vmatpush.bf16.xpose.msra.mxu0 0
        %1357 = vmatpush.bf16.xpose.msra.mxu0 0
        %1358 = vmatpush.bf16.xpose.msra.mxu0 0
        %1359 = vmatpush.bf16.xpose.msra.mxu0 0
        %1360 = vmatpush.bf16.xpose.msra.mxu0 0
        %1361 = vmatpush.bf16.xpose.msra.mxu0 0
        %1362 = vmatpush.bf16.xpose.msra.mxu0 %v1353
        %1363 = vmatmul.bf16.gmra.mxu0 %v1350
        %v1364 = vpop.f32.mrf.mxu0
        %v1365 = vadd.f32 0.0, %v1364
        %v1366 = vpop.f32.mrf.mxu0
        %1367 = vdwg.mxu0
        %v1368 = vsel %vm915, %v1365, -1e+09
        %v1369 = vsel %vm1187, %v1368, -inf
        %1370 = vmax.xlane.f32.xlu0 %v1369
        %v1371 = vpop.xlane.xlu0 %1370
        %v1372 = vsub.f32 %v1368, %v1371
        %v1373 = vmul.f32 %v1372, 1.442695
        %v1374 = vpow.pop %v1373
        %v1375 = vsel %vm1187, %v1374, 0.0
        %1376 = vadd.xlane.f32.xlu0 %v1375
        %v1377 = vpop.xlane.xlu0 %1376
        %v1378 = vrcp.pop %v1377
        %v1379 = vpack.c.bf16 %v1374, %v1374
        %1380 = vrot.lane.b32.xlu0 %v1261, 32
        %v1381 = vpop.permute.xlu0 %1380
        %v1383 = vsel %vm1187, %v1379, 0
        %v1386 = vsel %vm1202, %v1381, 0
        %1388 = vmatpush.bf16.msra.mxu0 0
        %1389 = vmatpush.bf16.msra.mxu0 0
        %1390 = vmatpush.bf16.msra.mxu0 0
        %1391 = vmatpush.bf16.msra.mxu0 0
        %1392 = vmatpush.bf16.msra.mxu0 0
        %1393 = vmatpush.bf16.msra.mxu0 0
        %1394 = vmatpush.bf16.msra.mxu0 0
        %1395 = vmatpush.bf16.msra.mxu0 %v1386
        %1396 = vmatmul.bf16.gmra.mxu0 %v1383
        %v1397 = vpop.f32.mrf.mxu0
        %v1398 = vadd.f32 0.0, %v1397
        %v1399 = vpop.f32.mrf.mxu0
        %1400 = vdwg.mxu0
        %v1401 = vmul.f32 %v1398, %v1378
        %v1402 = vpack.c.bf16 %v1401, %v1401
        %v1404 = vunpack.c.l.b16 %v1284
        %v1405 = vpack.c.b16 %v1404, %v1404
        %1406 = vrot.lane.b32.xlu0 %v1405, 32
        %v1407 = vpop.permute.xlu0 %1406
        %v1409 = vunpack.c.l.b16 %v1343
        %v1410 = vpack.c.b16 %v1409, %v1409
        %1411 = vrot.lane.b32.xlu0 %v1410, 64
        %v1412 = vpop.permute.xlu0 %1411
        %v1414 = vunpack.c.l.b16 %v1402
        %v1415 = vpack.c.b16 %v1414, %v1414
        %1416 = vrot.lane.b32.xlu0 %v1415, 96
        %v1417 = vpop.permute.xlu0 %1416
        %v1420 = vsel %vm1166, %v1220, %v1407
        %vm1421 = vcmask 523264
        %v1423 = vsel %vm1421, %v1420, %v1412
        %vm1424 = vcmask 785408
        %v1426 = vsel %vm1424, %v1423, %v1417
        %v1428 = vld [vmem:[#allocation13] sm:$0xf]
        %v1429 = vld [vmem:[#allocation13 + $0x4] sm:$0xf]
        %v1430 = vld [vmem:[#allocation13 + $0x8] sm:$0xf]
        %v1431 = vld [vmem:[#allocation13 + $0xc] sm:$0xf]
        %v1432 = vld [vmem:[#allocation13 + $0x10] sm:$0xf]
        %v1433 = vld [vmem:[#allocation13 + $0x14] sm:$0xf]
        %v1434 = vld [vmem:[#allocation13 + $0x18] sm:$0xf]
        %v1435 = vld [vmem:[#allocation13 + $0x1c] sm:$0xf]
        %v1436 = vld [vmem:[#allocation13 + $0x20] sm:$0xf]
        %v1437 = vld [vmem:[#allocation13 + $0x24] sm:$0xf]
        %v1438 = vld [vmem:[#allocation13 + $0x28] sm:$0xf]
        %v1439 = vld [vmem:[#allocation13 + $0x2c] sm:$0xf]
        %v1440 = vld [vmem:[#allocation13 + $0x30] sm:$0xf]
        %v1441 = vld [vmem:[#allocation13 + $0x34] sm:$0xf]
        %v1442 = vld [vmem:[#allocation13 + $0x38] sm:$0xf]
        %v1443 = vld [vmem:[#allocation13 + $0x3c] sm:$0xf]
        %v1444 = vld [vmem:[#allocation14] sm:$0x1]
        %v1446 = vperm.slane %v1444, 0
        %v1464 = vunpack.c.l.b16 %v1428
        %v1465 = vunpack.c.l.b16 %v1429
        %v1466 = vunpack.c.l.b16 %v1430
        %v1467 = vunpack.c.l.b16 %v1431
        %v1468 = vunpack.c.l.b16 %v1432
        %v1469 = vunpack.c.l.b16 %v1433
        %v1470 = vunpack.c.l.b16 %v1434
        %v1471 = vunpack.c.l.b16 %v1435
        %v1472 = vunpack.c.l.b16 %v1436
        %v1473 = vunpack.c.l.b16 %v1437
        %v1474 = vunpack.c.l.b16 %v1438
        %v1475 = vunpack.c.l.b16 %v1439
        %v1476 = vunpack.c.l.b16 %v1440
        %v1477 = vunpack.c.l.b16 %v1441
        %v1478 = vunpack.c.l.b16 %v1442
        %v1479 = vunpack.c.l.b16 %v1443
        %v1480 = vpack.c.b16 %v1465, %v1464
        %v1481 = vpack.c.b16 %v1467, %v1466
        %v1482 = vpack.c.b16 %v1469, %v1468
        %v1483 = vpack.c.b16 %v1471, %v1470
        %v1484 = vpack.c.b16 %v1473, %v1472
        %v1485 = vpack.c.b16 %v1475, %v1474
        %v1486 = vpack.c.b16 %v1477, %v1476
        %v1487 = vpack.c.b16 %v1479, %v1478
        %1496 = vmatpush.bf16.msra.mxu0 %v1487
        %1497 = vmatpush.bf16.msra.mxu0 %v1486
        %1498 = vmatpush.bf16.msra.mxu0 %v1485
        %1499 = vmatpush.bf16.msra.mxu0 %v1484
        %1500 = vmatpush.bf16.msra.mxu0 %v1483
        %1501 = vmatpush.bf16.msra.mxu0 %v1482
        %1502 = vmatpush.bf16.msra.mxu0 %v1481
        %1503 = vmatpush.bf16.msra.mxu0 %v1480
        %1504 = vmatmul.bf16.gmra.mxu0 %v1426
        %v1505 = vpop.f32.mrf.mxu0
        %v1506 = vadd.f32 %v1446, %v1505
        %v1507 = vpop.f32.mrf.mxu0
        %1508 = vdwg.mxu0
        %v1509 = vadd.f32 %v908, %v1506
        %s1510 = scalar_lea.vmem [#allocation8], 1
        %v1511 = vld [vmem:[%s1510] sm:$0x1]
        %s1512 = scalar_lea.vmem %s4, 1
        %v1513 = vld [vmem:[%s1512] sm:$0x1]
        %1514 = vadd.xlane.f32.xlu0 %v1509
        %v1515 = vpop.xlane.xlu0 %1514
        %v1516 = vmul.f32 %v1515, %v927
        %v1517 = vsub.f32 %v1509, %v1516
        %v1518 = vmul.f32 %v1517, %v1517
        %1519 = vadd.xlane.f32.xlu0 %v1518
        %v1520 = vpop.xlane.xlu0 %1519
        %v1521 = vmul.f32 %v1520, %v927
        %v1523 = vperm.slane %v1511, 0
        %v1525 = vmul.f32 %v1523, %v1517
        %v1526 = vadd.f32 %v1521, 1e-05
        %v1527 = vrsqrt.pop %v1526
        %v1528 = vmul.f32 %v1527, %v1526
        %v1529 = vmul.f32 %v1528, %v1527
        %v1530 = vmul.f32 0.5, %v1529
        %v1531 = vsub.f32 1.5, %v1530
        %v1532 = vmul.f32 %v1527, %v1531
        %vm1533 = vweird.f32 %v1526
        %vm1534 = vweird.f32 %v1527
        %vm1535 = vmor %vm1533, %vm1534
        %v1536 = vsel %vm1535, %v1527, %v1532
        %v1537 = vmul.f32 %v1525, %v1536
        %v1539 = vperm.slane %v1513, 0
        %v1541 = vadd.f32 %v1537, %v1539
        %v1542 = vpack.c.bf16 %v1541, %v1541
        %v1543 = vld [vmem:[#allocation16] sm:$0xf]
        %v1544 = vld [vmem:[#allocation16 + $0x4] sm:$0xf]
        %v1545 = vld [vmem:[#allocation16 + $0x8] sm:$0xf]
        %v1546 = vld [vmem:[#allocation16 + $0xc] sm:$0xf]
        %v1547 = vld [vmem:[#allocation16 + $0x10] sm:$0xf]
        %v1548 = vld [vmem:[#allocation16 + $0x14] sm:$0xf]
        %v1549 = vld [vmem:[#allocation16 + $0x18] sm:$0xf]
        %v1550 = vld [vmem:[#allocation16 + $0x1c] sm:$0xf]
        %v1551 = vld [vmem:[#allocation16 + $0x20] sm:$0xf]
        %v1552 = vld [vmem:[#allocation16 + $0x24] sm:$0xf]
        %v1553 = vld [vmem:[#allocation16 + $0x28] sm:$0xf]
        %v1554 = vld [vmem:[#allocation16 + $0x2c] sm:$0xf]
        %v1555 = vld [vmem:[#allocation16 + $0x30] sm:$0xf]
        %v1556 = vld [vmem:[#allocation16 + $0x34] sm:$0xf]
        %v1557 = vld [vmem:[#allocation16 + $0x38] sm:$0xf]
        %v1558 = vld [vmem:[#allocation16 + $0x3c] sm:$0xf]
        %v1559 = vld [vmem:[%s10] sm:$0x1]
        %v1561 = vperm.slane %v1559, 0
        %v1579 = vunpack.c.l.b16 %v1543
        %v1580 = vunpack.c.l.b16 %v1544
        %v1581 = vunpack.c.l.b16 %v1545
        %v1582 = vunpack.c.l.b16 %v1546
        %v1583 = vunpack.c.l.b16 %v1547
        %v1584 = vunpack.c.l.b16 %v1548
        %v1585 = vunpack.c.l.b16 %v1549
        %v1586 = vunpack.c.l.b16 %v1550
        %v1587 = vunpack.c.l.b16 %v1551
        %v1588 = vunpack.c.l.b16 %v1552
        %v1589 = vunpack.c.l.b16 %v1553
        %v1590 = vunpack.c.l.b16 %v1554
        %v1591 = vunpack.c.l.b16 %v1555
        %v1592 = vunpack.c.l.b16 %v1556
        %v1593 = vunpack.c.l.b16 %v1557
        %v1594 = vunpack.c.l.b16 %v1558
        %v1595 = vpack.c.b16 %v1580, %v1579
        %v1596 = vpack.c.b16 %v1582, %v1581
        %v1597 = vpack.c.b16 %v1584, %v1583
        %v1598 = vpack.c.b16 %v1586, %v1585
        %v1599 = vpack.c.b16 %v1588, %v1587
        %v1600 = vpack.c.b16 %v1590, %v1589
        %v1601 = vpack.c.b16 %v1592, %v1591
        %v1602 = vpack.c.b16 %v1594, %v1593
        %1611 = vmatpush.bf16.msra.mxu0 %v1602
        %1612 = vmatpush.bf16.msra.mxu0 %v1601
        %1613 = vmatpush.bf16.msra.mxu0 %v1600
        %1614 = vmatpush.bf16.msra.mxu0 %v1599
        %1615 = vmatpush.bf16.msra.mxu0 %v1598
        %1616 = vmatpush.bf16.msra.mxu0 %v1597
        %1617 = vmatpush.bf16.msra.mxu0 %v1596
        %1618 = vmatpush.bf16.msra.mxu0 %v1595
        %1619 = vmatmul.bf16.gmra.mxu0 %v1542
        %v1620 = vpop.f32.mrf.mxu0
        %v1621 = vadd.f32 %v1561, %v1620
        %v1622 = vpop.f32.mrf.mxu0
        %1623 = vdwg.mxu0
        %v1624 = vpack.c.bf16 %v1621, %v1621
        %v1625 = vld [vmem:[#allocation17] sm:$0xff]
        %v1626 = vld [vmem:[#allocation17 + $0x8] sm:$0xff]
        %v1627 = vld [vmem:[#allocation17 + $0x10] sm:$0xff]
        %v1628 = vld [vmem:[#allocation17 + $0x18] sm:$0xff]
        %v1629 = vld [vmem:[#allocation17 + $0x20] sm:$0xff]
        %v1630 = vld [vmem:[#allocation17 + $0x28] sm:$0xff]
        %v1631 = vld [vmem:[#allocation17 + $0x30] sm:$0xff]
        %v1632 = vld [vmem:[#allocation17 + $0x38] sm:$0xff]
        %v1633 = vld [vmem:[#allocation17 + $0x40] sm:$0xff]
        %v1634 = vld [vmem:[#allocation17 + $0x48] sm:$0xff]
        %v1635 = vld [vmem:[#allocation17 + $0x50] sm:$0xff]
        %v1636 = vld [vmem:[#allocation17 + $0x58] sm:$0xff]
        %v1637 = vld [vmem:[#allocation17 + $0x60] sm:$0xff]
        %v1638 = vld [vmem:[#allocation17 + $0x68] sm:$0xff]
        %v1639 = vld [vmem:[#allocation17 + $0x70] sm:$0xff]
        %v1640 = vld [vmem:[#allocation17 + $0x78] sm:$0xff]
        %v1641 = vld [vmem:[%s12] sm:$0x3]
        %v1643 = vperm.slane %v1641, 0
        %v1644 = vperm.slane %v1641, 1
        %v1663 = vunpack.c.l.b16 %v1625
        %v1664 = vunpack.c.h.b16 %v1625
        %v1665 = vunpack.c.l.b16 %v1626
        %v1666 = vunpack.c.h.b16 %v1626
        %v1667 = vunpack.c.l.b16 %v1627
        %v1668 = vunpack.c.h.b16 %v1627
        %v1669 = vunpack.c.l.b16 %v1628
        %v1670 = vunpack.c.h.b16 %v1628
        %v1671 = vunpack.c.l.b16 %v1629
        %v1672 = vunpack.c.h.b16 %v1629
        %v1673 = vunpack.c.l.b16 %v1630
        %v1674 = vunpack.c.h.b16 %v1630
        %v1675 = vunpack.c.l.b16 %v1631
        %v1676 = vunpack.c.h.b16 %v1631
        %v1677 = vunpack.c.l.b16 %v1632
        %v1678 = vunpack.c.h.b16 %v1632
        %v1679 = vunpack.c.l.b16 %v1633
        %v1680 = vunpack.c.h.b16 %v1633
        %v1681 = vunpack.c.l.b16 %v1634
        %v1682 = vunpack.c.h.b16 %v1634
        %v1683 = vunpack.c.l.b16 %v1635
        %v1684 = vunpack.c.h.b16 %v1635
        %v1685 = vunpack.c.l.b16 %v1636
        %v1686 = vunpack.c.h.b16 %v1636
        %v1687 = vunpack.c.l.b16 %v1637
        %v1688 = vunpack.c.h.b16 %v1637
        %v1689 = vunpack.c.l.b16 %v1638
        %v1690 = vunpack.c.h.b16 %v1638
        %v1691 = vunpack.c.l.b16 %v1639
        %v1692 = vunpack.c.h.b16 %v1639
        %v1693 = vunpack.c.l.b16 %v1640
        %v1694 = vunpack.c.h.b16 %v1640
        %v1695 = vpack.c.b16 %v1665, %v1663
        %v1696 = vpack.c.b16 %v1666, %v1664
        %v1697 = vpack.c.b16 %v1669, %v1667
        %v1698 = vpack.c.b16 %v1670, %v1668
        %v1699 = vpack.c.b16 %v1673, %v1671
        %v1700 = vpack.c.b16 %v1674, %v1672
        %v1701 = vpack.c.b16 %v1677, %v1675
        %v1702 = vpack.c.b16 %v1678, %v1676
        %v1703 = vpack.c.b16 %v1681, %v1679
        %v1704 = vpack.c.b16 %v1682, %v1680
        %v1705 = vpack.c.b16 %v1685, %v1683
        %v1706 = vpack.c.b16 %v1686, %v1684
        %v1707 = vpack.c.b16 %v1689, %v1687
        %v1708 = vpack.c.b16 %v1690, %v1688
        %v1709 = vpack.c.b16 %v1693, %v1691
        %v1710 = vpack.c.b16 %v1694, %v1692
        %1727 = vmatpush.bf16.msra.mxu0 %v1709
        %1728 = vmatpush.bf16.msra.mxu0 %v1707
        %1729 = vmatpush.bf16.msra.mxu0 %v1705
        %1730 = vmatpush.bf16.msra.mxu0 %v1703
        %1731 = vmatpush.bf16.msra.mxu0 %v1701
        %1732 = vmatpush.bf16.msra.mxu0 %v1699
        %1733 = vmatpush.bf16.msra.mxu0 %v1697
        %1734 = vmatpush.bf16.msra.mxu0 %v1695
        %1735 = vmatmul.bf16.gmra.mxu0 %v909
        %v1736 = vpop.f32.mrf.mxu0
        %v1737 = vadd.f32 %v1643, %v1736
        %v1738 = vpop.f32.mrf.mxu0
        %1739 = vdwg.mxu0
        %1740 = vmatpush.bf16.msra.mxu0 %v1710
        %1741 = vmatpush.bf16.msra.mxu0 %v1708
        %1742 = vmatpush.bf16.msra.mxu0 %v1706
        %1743 = vmatpush.bf16.msra.mxu0 %v1704
        %1744 = vmatpush.bf16.msra.mxu0 %v1702
        %1745 = vmatpush.bf16.msra.mxu0 %v1700
        %1746 = vmatpush.bf16.msra.mxu0 %v1698
        %1747 = vmatpush.bf16.msra.mxu0 %v1696
        %1748 = vmatmul.bf16.gmra.mxu0 %v909
        %v1749 = vpop.f32.mrf.mxu0
        %v1750 = vadd.f32 %v1644, %v1749
        %v1751 = vpop.f32.mrf.mxu0
        %1752 = vdwg.mxu0
        %v1753 = vpack.c.bf16 %v1750, %v1737
        %v1755 = vsel %vm1166, %v1624, 0
        %v1758 = vsel %vm1166, %v1753, 0
        %1760 = vmatpush.bf16.xpose.msra.mxu0 0
        %1761 = vmatpush.bf16.xpose.msra.mxu0 0
        %1762 = vmatpush.bf16.xpose.msra.mxu0 0
        %1763 = vmatpush.bf16.xpose.msra.mxu0 0
        %1764 = vmatpush.bf16.xpose.msra.mxu0 0
        %1765 = vmatpush.bf16.xpose.msra.mxu0 0
        %1766 = vmatpush.bf16.xpose.msra.mxu0 0
        %1767 = vmatpush.bf16.xpose.msra.mxu0 %v1758
        %1768 = vmatmul.bf16.gmra.mxu0 %v1755
        %v1769 = vpop.f32.mrf.mxu0
        %v1770 = vadd.f32 0.0, %v1769
        %v1771 = vpop.f32.mrf.mxu0
        %1772 = vdwg.mxu0
        %v1773 = vsel %vm916, 1, 0
        %v1774 = vperm.slane %v1773, 0
        %vm1775 = vcmp.eq.s32.totalorder %v1774, 1
        %v1776 = vsel %vm1775, %v1770, -1e+09
        %v1777 = vsel %vm1187, %v1776, -inf
        %1778 = vmax.xlane.f32.xlu0 %v1777
        %v1779 = vpop.xlane.xlu0 %1778
        %v1780 = vsub.f32 %v1776, %v1779
        %v1781 = vmul.f32 %v1780, 1.442695
        %v1782 = vpow.pop %v1781
        %v1783 = vsel %vm1187, %v1782, 0.0
        %1784 = vadd.xlane.f32.xlu0 %v1783
        %v1785 = vpop.xlane.xlu0 %1784
        %v1786 = vrcp.pop %v1785
        %v1787 = vpack.c.bf16 %v1782, %v1782
        %v1789 = vrot.slane %v1753, 4
        %v1791 = vsel %vm1187, %v1787, 0
        %v1794 = vsel %vm1202, %v1789, 0
        %1796 = vmatpush.bf16.msra.mxu0 0
        %1797 = vmatpush.bf16.msra.mxu0 0
        %1798 = vmatpush.bf16.msra.mxu0 0
        %1799 = vmatpush.bf16.msra.mxu0 0
        %1800 = vmatpush.bf16.msra.mxu0 0
        %1801 = vmatpush.bf16.msra.mxu0 0
        %1802 = vmatpush.bf16.msra.mxu0 0
        %1803 = vmatpush.bf16.msra.mxu0 %v1794
        %1804 = vmatmul.bf16.gmra.mxu0 %v1791
        %v1805 = vpop.f32.mrf.mxu0
        %v1806 = vadd.f32 0.0, %v1805
        %v1807 = vpop.f32.mrf.mxu0
        %1808 = vdwg.mxu0
        %v1809 = vmul.f32 %v1806, %v1786
        %v1810 = vpack.c.bf16 %v1809, %v1809
        %v1812 = vunpack.c.l.b16 %v1624
        %v1813 = vpack.c.b16 %v1812, %v1812
        %1814 = vrot.lane.b32.xlu0 %v1813, 96
        %v1815 = vpop.permute.xlu0 %1814
        %v1816 = vunpack.c.l.b16 %v1753
        %v1817 = vpack.c.b16 %v1816, %v1816
        %1818 = vrot.lane.b32.xlu0 %v1817, 96
        %v1819 = vpop.permute.xlu0 %1818
        %v1821 = vsel %vm1166, %v1815, 0
        %v1824 = vsel %vm1166, %v1819, 0
        %1826 = vmatpush.bf16.xpose.msra.mxu0 0
        %1827 = vmatpush.bf16.xpose.msra.mxu0 0
        %1828 = vmatpush.bf16.xpose.msra.mxu0 0
        %1829 = vmatpush.bf16.xpose.msra.mxu0 0
        %1830 = vmatpush.bf16.xpose.msra.mxu0 0
        %1831 = vmatpush.bf16.xpose.msra.mxu0 0
        %1832 = vmatpush.bf16.xpose.msra.mxu0 0
        %1833 = vmatpush.bf16.xpose.msra.mxu0 %v1824
        %1834 = vmatmul.bf16.gmra.mxu0 %v1821
        %v1835 = vpop.f32.mrf.mxu0
        %v1836 = vadd.f32 0.0, %v1835
        %v1837 = vpop.f32.mrf.mxu0
        %1838 = vdwg.mxu0
        %v1839 = vsel %vm1775, %v1836, -1e+09
        %v1840 = vsel %vm1187, %v1839, -inf
        %1841 = vmax.xlane.f32.xlu0 %v1840
        %v1842 = vpop.xlane.xlu0 %1841
        %v1843 = vsub.f32 %v1839, %v1842
        %v1844 = vmul.f32 %v1843, 1.442695
        %v1845 = vpow.pop %v1844
        %v1846 = vsel %vm1187, %v1845, 0.0
        %1847 = vadd.xlane.f32.xlu0 %v1846
        %v1848 = vpop.xlane.xlu0 %1847
        %v1849 = vrcp.pop %v1848
        %v1850 = vpack.c.bf16 %v1845, %v1845
        %1851 = vrot.lane.b32.xlu0 %v1753, 96
        %v1852 = vpop.permute.xlu0 %1851
        %v1853 = vrot.slane %v1852, 4
        %v1855 = vsel %vm1187, %v1850, 0
        %v1858 = vsel %vm1202, %v1853, 0
        %1860 = vmatpush.bf16.msra.mxu0 0
        %1861 = vmatpush.bf16.msra.mxu0 0
        %1862 = vmatpush.bf16.msra.mxu0 0
        %1863 = vmatpush.bf16.msra.mxu0 0
        %1864 = vmatpush.bf16.msra.mxu0 0
        %1865 = vmatpush.bf16.msra.mxu0 0
        %1866 = vmatpush.bf16.msra.mxu0 0
        %1867 = vmatpush.bf16.msra.mxu0 %v1858
        %1868 = vmatmul.bf16.gmra.mxu0 %v1855
        %v1869 = vpop.f32.mrf.mxu0
        %v1870 = vadd.f32 0.0, %v1869
        %v1871 = vpop.f32.mrf.mxu0
        %1872 = vdwg.mxu0
        %v1873 = vmul.f32 %v1870, %v1849
        %v1874 = vpack.c.bf16 %v1873, %v1873
        %1875 = vrot.lane.b32.xlu0 %v1813, 64
        %v1876 = vpop.permute.xlu0 %1875
        %1877 = vrot.lane.b32.xlu0 %v1817, 64
        %v1878 = vpop.permute.xlu0 %1877
        %v1880 = vsel %vm1166, %v1876, 0
        %v1883 = vsel %vm1166, %v1878, 0
        %1885 = vmatpush.bf16.xpose.msra.mxu0 0
        %1886 = vmatpush.bf16.xpose.msra.mxu0 0
        %1887 = vmatpush.bf16.xpose.msra.mxu0 0
        %1888 = vmatpush.bf16.xpose.msra.mxu0 0
        %1889 = vmatpush.bf16.xpose.msra.mxu0 0
        %1890 = vmatpush.bf16.xpose.msra.mxu0 0
        %1891 = vmatpush.bf16.xpose.msra.mxu0 0
        %1892 = vmatpush.bf16.xpose.msra.mxu0 %v1883
        %1893 = vmatmul.bf16.gmra.mxu0 %v1880
        %v1894 = vpop.f32.mrf.mxu0
        %v1895 = vadd.f32 0.0, %v1894
        %v1896 = vpop.f32.mrf.mxu0
        %1897 = vdwg.mxu0
        %v1898 = vsel %vm1775, %v1895, -1e+09
        %v1899 = vsel %vm1187, %v1898, -inf
        %1900 = vmax.xlane.f32.xlu0 %v1899
        %v1901 = vpop.xlane.xlu0 %1900
        %v1902 = vsub.f32 %v1898, %v1901
        %v1903 = vmul.f32 %v1902, 1.442695
        %v1904 = vpow.pop %v1903
        %v1905 = vsel %vm1187, %v1904, 0.0
        %1906 = vadd.xlane.f32.xlu0 %v1905
        %v1907 = vpop.xlane.xlu0 %1906
        %v1908 = vrcp.pop %v1907
        %v1909 = vpack.c.bf16 %v1904, %v1904
        %1910 = vrot.lane.b32.xlu0 %v1753, 64
        %v1911 = vpop.permute.xlu0 %1910
        %v1912 = vrot.slane %v1911, 4
        %v1914 = vsel %vm1187, %v1909, 0
        %v1917 = vsel %vm1202, %v1912, 0
        %1919 = vmatpush.bf16.msra.mxu0 0
        %1920 = vmatpush.bf16.msra.mxu0 0
        %1921 = vmatpush.bf16.msra.mxu0 0
        %1922 = vmatpush.bf16.msra.mxu0 0
        %1923 = vmatpush.bf16.msra.mxu0 0
        %1924 = vmatpush.bf16.msra.mxu0 0
        %1925 = vmatpush.bf16.msra.mxu0 0
        %1926 = vmatpush.bf16.msra.mxu0 %v1917
        %1927 = vmatmul.bf16.gmra.mxu0 %v1914
        %v1928 = vpop.f32.mrf.mxu0
        %v1929 = vadd.f32 0.0, %v1928
        %v1930 = vpop.f32.mrf.mxu0
        %1931 = vdwg.mxu0
        %v1932 = vmul.f32 %v1929, %v1908
        %v1933 = vpack.c.bf16 %v1932, %v1932
        %1934 = vrot.lane.b32.xlu0 %v1813, 32
        %v1935 = vpop.permute.xlu0 %1934
        %1936 = vrot.lane.b32.xlu0 %v1817, 32
        %v1937 = vpop.permute.xlu0 %1936
        %v1939 = vsel %vm1166, %v1935, 0
        %v1942 = vsel %vm1166, %v1937, 0
        %1944 = vmatpush.bf16.xpose.msra.mxu0 0
        %1945 = vmatpush.bf16.xpose.msra.mxu0 0
        %1946 = vmatpush.bf16.xpose.msra.mxu0 0
        %1947 = vmatpush.bf16.xpose.msra.mxu0 0
        %1948 = vmatpush.bf16.xpose.msra.mxu0 0
        %1949 = vmatpush.bf16.xpose.msra.mxu0 0
        %1950 = vmatpush.bf16.xpose.msra.mxu0 0
        %1951 = vmatpush.bf16.xpose.msra.mxu0 %v1942
        %1952 = vmatmul.bf16.gmra.mxu0 %v1939
        %v1953 = vpop.f32.mrf.mxu0
        %v1954 = vadd.f32 0.0, %v1953
        %v1955 = vpop.f32.mrf.mxu0
        %1956 = vdwg.mxu0
        %v1957 = vsel %vm1775, %v1954, -1e+09
        %v1958 = vsel %vm1187, %v1957, -inf
        %1959 = vmax.xlane.f32.xlu0 %v1958
        %v1960 = vpop.xlane.xlu0 %1959
        %v1961 = vsub.f32 %v1957, %v1960
        %v1962 = vmul.f32 %v1961, 1.442695
        %v1963 = vpow.pop %v1962
        %v1964 = vsel %vm1187, %v1963, 0.0
        %1965 = vadd.xlane.f32.xlu0 %v1964
        %v1966 = vpop.xlane.xlu0 %1965
        %v1967 = vrcp.pop %v1966
        %v1968 = vpack.c.bf16 %v1963, %v1963
        %1969 = vrot.lane.b32.xlu0 %v1753, 32
        %v1970 = vpop.permute.xlu0 %1969
        %v1971 = vrot.slane %v1970, 4
        %v1973 = vsel %vm1187, %v1968, 0
        %v1976 = vsel %vm1202, %v1971, 0
        %1978 = vmatpush.bf16.msra.mxu0 0
        %1979 = vmatpush.bf16.msra.mxu0 0
        %1980 = vmatpush.bf16.msra.mxu0 0
        %1981 = vmatpush.bf16.msra.mxu0 0
        %1982 = vmatpush.bf16.msra.mxu0 0
        %1983 = vmatpush.bf16.msra.mxu0 0
        %1984 = vmatpush.bf16.msra.mxu0 0
        %1985 = vmatpush.bf16.msra.mxu0 %v1976
        %1986 = vmatmul.bf16.gmra.mxu0 %v1973
        %v1987 = vpop.f32.mrf.mxu0
        %v1988 = vadd.f32 0.0, %v1987
        %v1989 = vpop.f32.mrf.mxu0
        %1990 = vdwg.mxu0
        %v1991 = vmul.f32 %v1988, %v1967
        %v1992 = vpack.c.bf16 %v1991, %v1991
        %v1994 = vunpack.c.l.b16 %v1874
        %v1995 = vpack.c.b16 %v1994, %v1994
        %1996 = vrot.lane.b32.xlu0 %v1995, 32
        %v1997 = vpop.permute.xlu0 %1996
        %v1999 = vunpack.c.l.b16 %v1933
        %v2000 = vpack.c.b16 %v1999, %v1999
        %2001 = vrot.lane.b32.xlu0 %v2000, 64
        %v2002 = vpop.permute.xlu0 %2001
        %v2004 = vunpack.c.l.b16 %v1992
        %v2005 = vpack.c.b16 %v2004, %v2004
        %2006 = vrot.lane.b32.xlu0 %v2005, 96
        %v2007 = vpop.permute.xlu0 %2006
        %v2010 = vsel %vm1166, %v1810, %v1997
        %v2012 = vsel %vm1421, %v2010, %v2002
        %v2014 = vsel %vm1424, %v2012, %v2007
        %v2016 = vld [vmem:[#allocation19] sm:$0xf]
        %v2017 = vld [vmem:[#allocation19 + $0x4] sm:$0xf]
        %v2018 = vld [vmem:[#allocation19 + $0x8] sm:$0xf]
        %v2019 = vld [vmem:[#allocation19 + $0xc] sm:$0xf]
        %v2020 = vld [vmem:[#allocation19 + $0x10] sm:$0xf]
        %v2021 = vld [vmem:[#allocation19 + $0x14] sm:$0xf]
        %v2022 = vld [vmem:[#allocation19 + $0x18] sm:$0xf]
        %v2023 = vld [vmem:[#allocation19 + $0x1c] sm:$0xf]
        %v2024 = vld [vmem:[#allocation19 + $0x20] sm:$0xf]
        %v2025 = vld [vmem:[#allocation19 + $0x24] sm:$0xf]
        %v2026 = vld [vmem:[#allocation19 + $0x28] sm:$0xf]
        %v2027 = vld [vmem:[#allocation19 + $0x2c] sm:$0xf]
        %v2028 = vld [vmem:[#allocation19 + $0x30] sm:$0xf]
        %v2029 = vld [vmem:[#allocation19 + $0x34] sm:$0xf]
        %v2030 = vld [vmem:[#allocation19 + $0x38] sm:$0xf]
        %v2031 = vld [vmem:[#allocation19 + $0x3c] sm:$0xf]
        %v2032 = vld [vmem:[%s14] sm:$0x1]
        %v2034 = vperm.slane %v2032, 0
        %v2052 = vunpack.c.l.b16 %v2016
        %v2053 = vunpack.c.l.b16 %v2017
        %v2054 = vunpack.c.l.b16 %v2018
        %v2055 = vunpack.c.l.b16 %v2019
        %v2056 = vunpack.c.l.b16 %v2020
        %v2057 = vunpack.c.l.b16 %v2021
        %v2058 = vunpack.c.l.b16 %v2022
        %v2059 = vunpack.c.l.b16 %v2023
        %v2060 = vunpack.c.l.b16 %v2024
        %v2061 = vunpack.c.l.b16 %v2025
        %v2062 = vunpack.c.l.b16 %v2026
        %v2063 = vunpack.c.l.b16 %v2027
        %v2064 = vunpack.c.l.b16 %v2028
        %v2065 = vunpack.c.l.b16 %v2029
        %v2066 = vunpack.c.l.b16 %v2030
        %v2067 = vunpack.c.l.b16 %v2031
        %v2068 = vpack.c.b16 %v2053, %v2052
        %v2069 = vpack.c.b16 %v2055, %v2054
        %v2070 = vpack.c.b16 %v2057, %v2056
        %v2071 = vpack.c.b16 %v2059, %v2058
        %v2072 = vpack.c.b16 %v2061, %v2060
        %v2073 = vpack.c.b16 %v2063, %v2062
        %v2074 = vpack.c.b16 %v2065, %v2064
        %v2075 = vpack.c.b16 %v2067, %v2066
        %2084 = vmatpush.bf16.msra.mxu0 %v2075
        %2085 = vmatpush.bf16.msra.mxu0 %v2074
        %2086 = vmatpush.bf16.msra.mxu0 %v2073
        %2087 = vmatpush.bf16.msra.mxu0 %v2072
        %2088 = vmatpush.bf16.msra.mxu0 %v2071
        %2089 = vmatpush.bf16.msra.mxu0 %v2070
        %2090 = vmatpush.bf16.msra.mxu0 %v2069
        %2091 = vmatpush.bf16.msra.mxu0 %v2068
        %2092 = vmatmul.bf16.gmra.mxu0 %v2014
        %v2093 = vpop.f32.mrf.mxu0
        %v2094 = vadd.f32 %v2034, %v2093
        %v2095 = vpop.f32.mrf.mxu0
        %2096 = vdwg.mxu0
        %v2097 = vadd.f32 %v1509, %v2094
        %s2098 = scalar_lea.vmem [#allocation8], 2
        %v2099 = vld [vmem:[%s2098] sm:$0x1]
        %s2100 = scalar_lea.vmem %s4, 2
        %v2101 = vld [vmem:[%s2100] sm:$0x1]
        %2102 = vadd.xlane.f32.xlu0 %v2097
        %v2103 = vpop.xlane.xlu0 %2102
        %v2104 = vmul.f32 %v2103, %v927
        %v2105 = vsub.f32 %v2097, %v2104
        %v2106 = vmul.f32 %v2105, %v2105
        %2107 = vadd.xlane.f32.xlu0 %v2106
        %v2108 = vpop.xlane.xlu0 %2107
        %v2109 = vmul.f32 %v2108, %v927
        %v2111 = vperm.slane %v2099, 0
        %v2113 = vmul.f32 %v2111, %v2105
        %v2114 = vadd.f32 %v2109, 1e-05
        %v2115 = vrsqrt.pop %v2114
        %v2116 = vmul.f32 %v2115, %v2114
        %v2117 = vmul.f32 %v2116, %v2115
        %v2118 = vmul.f32 0.5, %v2117
        %v2119 = vsub.f32 1.5, %v2118
        %v2120 = vmul.f32 %v2115, %v2119
        %vm2121 = vweird.f32 %v2114
        %vm2122 = vweird.f32 %v2115
        %vm2123 = vmor %vm2121, %vm2122
        %v2124 = vsel %vm2123, %v2115, %v2120
        %v2125 = vmul.f32 %v2113, %v2124
        %v2127 = vperm.slane %v2101, 0
        %v2129 = vadd.f32 %v2125, %v2127
        %v2130 = vpack.c.bf16 %v2129, %v2129
        %v2131 = vld [vmem:[#allocation20] sm:$0xff]
        %v2132 = vld [vmem:[#allocation20 + $0x8] sm:$0xff]
        %v2133 = vld [vmem:[#allocation20 + $0x10] sm:$0xff]
        %v2134 = vld [vmem:[#allocation20 + $0x18] sm:$0xff]
        %v2135 = vld [vmem:[#allocation20 + $0x20] sm:$0xff]
        %v2136 = vld [vmem:[#allocation20 + $0x28] sm:$0xff]
        %v2137 = vld [vmem:[#allocation20 + $0x30] sm:$0xff]
        %v2138 = vld [vmem:[#allocation20 + $0x38] sm:$0xff]
        %v2139 = vld [vmem:[#allocation20 + $0x40] sm:$0xff]
        %v2140 = vld [vmem:[#allocation20 + $0x48] sm:$0xff]
        %v2141 = vld [vmem:[#allocation20 + $0x50] sm:$0xff]
        %v2142 = vld [vmem:[#allocation20 + $0x58] sm:$0xff]
        %v2143 = vld [vmem:[#allocation20 + $0x60] sm:$0xff]
        %v2144 = vld [vmem:[#allocation20 + $0x68] sm:$0xff]
        %v2145 = vld [vmem:[#allocation20 + $0x70] sm:$0xff]
        %v2146 = vld [vmem:[#allocation20 + $0x78] sm:$0xff]
        %v2147 = vld [vmem:[%s16] sm:$0x3]
        %v2149 = vperm.slane %v2147, 0
        %v2150 = vperm.slane %v2147, 1
        %v2169 = vunpack.c.l.b16 %v2131
        %v2170 = vunpack.c.h.b16 %v2131
        %v2171 = vunpack.c.l.b16 %v2132
        %v2172 = vunpack.c.h.b16 %v2132
        %v2173 = vunpack.c.l.b16 %v2133
        %v2174 = vunpack.c.h.b16 %v2133
        %v2175 = vunpack.c.l.b16 %v2134
        %v2176 = vunpack.c.h.b16 %v2134
        %v2177 = vunpack.c.l.b16 %v2135
        %v2178 = vunpack.c.h.b16 %v2135
        %v2179 = vunpack.c.l.b16 %v2136
        %v2180 = vunpack.c.h.b16 %v2136
        %v2181 = vunpack.c.l.b16 %v2137
        %v2182 = vunpack.c.h.b16 %v2137
        %v2183 = vunpack.c.l.b16 %v2138
        %v2184 = vunpack.c.h.b16 %v2138
        %v2185 = vunpack.c.l.b16 %v2139
        %v2186 = vunpack.c.h.b16 %v2139
        %v2187 = vunpack.c.l.b16 %v2140
        %v2188 = vunpack.c.h.b16 %v2140
        %v2189 = vunpack.c.l.b16 %v2141
        %v2190 = vunpack.c.h.b16 %v2141
        %v2191 = vunpack.c.l.b16 %v2142
        %v2192 = vunpack.c.h.b16 %v2142
        %v2193 = vunpack.c.l.b16 %v2143
        %v2194 = vunpack.c.h.b16 %v2143
        %v2195 = vunpack.c.l.b16 %v2144
        %v2196 = vunpack.c.h.b16 %v2144
        %v2197 = vunpack.c.l.b16 %v2145
        %v2198 = vunpack.c.h.b16 %v2145
        %v2199 = vunpack.c.l.b16 %v2146
        %v2200 = vunpack.c.h.b16 %v2146
        %v2201 = vpack.c.b16 %v2171, %v2169
        %v2202 = vpack.c.b16 %v2172, %v2170
        %v2203 = vpack.c.b16 %v2175, %v2173
        %v2204 = vpack.c.b16 %v2176, %v2174
        %v2205 = vpack.c.b16 %v2179, %v2177
        %v2206 = vpack.c.b16 %v2180, %v2178
        %v2207 = vpack.c.b16 %v2183, %v2181
        %v2208 = vpack.c.b16 %v2184, %v2182
        %v2209 = vpack.c.b16 %v2187, %v2185
        %v2210 = vpack.c.b16 %v2188, %v2186
        %v2211 = vpack.c.b16 %v2191, %v2189
        %v2212 = vpack.c.b16 %v2192, %v2190
        %v2213 = vpack.c.b16 %v2195, %v2193
        %v2214 = vpack.c.b16 %v2196, %v2194
        %v2215 = vpack.c.b16 %v2199, %v2197
        %v2216 = vpack.c.b16 %v2200, %v2198
        %2233 = vmatpush.bf16.msra.mxu0 %v2215
        %2234 = vmatpush.bf16.msra.mxu0 %v2213
        %2235 = vmatpush.bf16.msra.mxu0 %v2211
        %2236 = vmatpush.bf16.msra.mxu0 %v2209
        %2237 = vmatpush.bf16.msra.mxu0 %v2207
        %2238 = vmatpush.bf16.msra.mxu0 %v2205
        %2239 = vmatpush.bf16.msra.mxu0 %v2203
        %2240 = vmatpush.bf16.msra.mxu0 %v2201
        %2241 = vmatmul.bf16.gmra.mxu0 %v2130
        %v2242 = vpop.f32.mrf.mxu0
        %v2243 = vadd.f32 %v2149, %v2242
        %v2244 = vpop.f32.mrf.mxu0
        %2245 = vdwg.mxu0
        %2246 = vmatpush.bf16.msra.mxu0 %v2216
        %2247 = vmatpush.bf16.msra.mxu0 %v2214
        %2248 = vmatpush.bf16.msra.mxu0 %v2212
        %2249 = vmatpush.bf16.msra.mxu0 %v2210
        %2250 = vmatpush.bf16.msra.mxu0 %v2208
        %2251 = vmatpush.bf16.msra.mxu0 %v2206
        %2252 = vmatpush.bf16.msra.mxu0 %v2204
        %2253 = vmatpush.bf16.msra.mxu0 %v2202
        %2254 = vmatmul.bf16.gmra.mxu0 %v2130
        %v2255 = vpop.f32.mrf.mxu0
        %v2256 = vadd.f32 %v2150, %v2255
        %v2257 = vpop.f32.mrf.mxu0
        %2258 = vdwg.mxu0
        %v2259 = vmax.f32 %v2243, 0.0
        %v2260 = vmax.f32 %v2256, 0.0
        %v2261 = vpack.c.bf16 %v2259, %v2259
        %v2262 = vpack.c.bf16 %v2260, %v2260
        %v2263 = vld [vmem:[#allocation22] sm:$0xf]
        %v2264 = vld [vmem:[#allocation22 + $0x4] sm:$0xf]
        %v2265 = vld [vmem:[#allocation22 + $0x8] sm:$0xf]
        %v2266 = vld [vmem:[#allocation22 + $0xc] sm:$0xf]
        %v2267 = vld [vmem:[#allocation22 + $0x10] sm:$0xf]
        %v2268 = vld [vmem:[#allocation22 + $0x14] sm:$0xf]
        %v2269 = vld [vmem:[#allocation22 + $0x18] sm:$0xf]
        %v2270 = vld [vmem:[#allocation22 + $0x1c] sm:$0xf]
        %v2271 = vld [vmem:[#allocation22 + $0x20] sm:$0xf]
        %v2272 = vld [vmem:[#allocation22 + $0x24] sm:$0xf]
        %v2273 = vld [vmem:[#allocation22 + $0x28] sm:$0xf]
        %v2274 = vld [vmem:[#allocation22 + $0x2c] sm:$0xf]
        %v2275 = vld [vmem:[#allocation22 + $0x30] sm:$0xf]
        %v2276 = vld [vmem:[#allocation22 + $0x34] sm:$0xf]
        %v2277 = vld [vmem:[#allocation22 + $0x38] sm:$0xf]
        %v2278 = vld [vmem:[#allocation22 + $0x3c] sm:$0xf]
        %v2279 = vld [vmem:[#allocation22 + $0x40] sm:$0xf]
        %v2280 = vld [vmem:[#allocation22 + $0x44] sm:$0xf]
        %v2281 = vld [vmem:[#allocation22 + $0x48] sm:$0xf]
        %v2282 = vld [vmem:[#allocation22 + $0x4c] sm:$0xf]
        %v2283 = vld [vmem:[#allocation22 + $0x50] sm:$0xf]
        %v2284 = vld [vmem:[#allocation22 + $0x54] sm:$0xf]
        %v2285 = vld [vmem:[#allocation22 + $0x58] sm:$0xf]
        %v2286 = vld [vmem:[#allocation22 + $0x5c] sm:$0xf]
        %v2287 = vld [vmem:[#allocation22 + $0x60] sm:$0xf]
        %v2288 = vld [vmem:[#allocation22 + $0x64] sm:$0xf]
        %v2289 = vld [vmem:[#allocation22 + $0x68] sm:$0xf]
        %v2290 = vld [vmem:[#allocation22 + $0x6c] sm:$0xf]
        %v2291 = vld [vmem:[#allocation22 + $0x70] sm:$0xf]
        %v2292 = vld [vmem:[#allocation22 + $0x74] sm:$0xf]
        %v2293 = vld [vmem:[#allocation22 + $0x78] sm:$0xf]
        %v2294 = vld [vmem:[#allocation22 + $0x7c] sm:$0xf]
        %v2295 = vld [vmem:[%s18] sm:$0x1]
        %v2297 = vperm.slane %v2295, 0
        %v2331 = vunpack.c.l.b16 %v2263
        %v2332 = vunpack.c.l.b16 %v2264
        %v2333 = vunpack.c.l.b16 %v2265
        %v2334 = vunpack.c.l.b16 %v2266
        %v2335 = vunpack.c.l.b16 %v2267
        %v2336 = vunpack.c.l.b16 %v2268
        %v2337 = vunpack.c.l.b16 %v2269
        %v2338 = vunpack.c.l.b16 %v2270
        %v2339 = vunpack.c.l.b16 %v2271
        %v2340 = vunpack.c.l.b16 %v2272
        %v2341 = vunpack.c.l.b16 %v2273
        %v2342 = vunpack.c.l.b16 %v2274
        %v2343 = vunpack.c.l.b16 %v2275
        %v2344 = vunpack.c.l.b16 %v2276
        %v2345 = vunpack.c.l.b16 %v2277
        %v2346 = vunpack.c.l.b16 %v2278
        %v2347 = vunpack.c.l.b16 %v2279
        %v2348 = vunpack.c.l.b16 %v2280
        %v2349 = vunpack.c.l.b16 %v2281
        %v2350 = vunpack.c.l.b16 %v2282
        %v2351 = vunpack.c.l.b16 %v2283
        %v2352 = vunpack.c.l.b16 %v2284
        %v2353 = vunpack.c.l.b16 %v2285
        %v2354 = vunpack.c.l.b16 %v2286
        %v2355 = vunpack.c.l.b16 %v2287
        %v2356 = vunpack.c.l.b16 %v2288
        %v2357 = vunpack.c.l.b16 %v2289
        %v2358 = vunpack.c.l.b16 %v2290
        %v2359 = vunpack.c.l.b16 %v2291
        %v2360 = vunpack.c.l.b16 %v2292
        %v2361 = vunpack.c.l.b16 %v2293
        %v2362 = vunpack.c.l.b16 %v2294
        %v2363 = vpack.c.b16 %v2332, %v2331
        %v2364 = vpack.c.b16 %v2334, %v2333
        %v2365 = vpack.c.b16 %v2336, %v2335
        %v2366 = vpack.c.b16 %v2338, %v2337
        %v2367 = vpack.c.b16 %v2340, %v2339
        %v2368 = vpack.c.b16 %v2342, %v2341
        %v2369 = vpack.c.b16 %v2344, %v2343
        %v2370 = vpack.c.b16 %v2346, %v2345
        %v2371 = vpack.c.b16 %v2348, %v2347
        %v2372 = vpack.c.b16 %v2350, %v2349
        %v2373 = vpack.c.b16 %v2352, %v2351
        %v2374 = vpack.c.b16 %v2354, %v2353
        %v2375 = vpack.c.b16 %v2356, %v2355
        %v2376 = vpack.c.b16 %v2358, %v2357
        %v2377 = vpack.c.b16 %v2360, %v2359
        %v2378 = vpack.c.b16 %v2362, %v2361
        %2395 = vmatpush.bf16.msra.mxu0 %v2370
        %2396 = vmatpush.bf16.msra.mxu0 %v2369
        %2397 = vmatpush.bf16.msra.mxu0 %v2368
        %2398 = vmatpush.bf16.msra.mxu0 %v2367
        %2399 = vmatpush.bf16.msra.mxu0 %v2366
        %2400 = vmatpush.bf16.msra.mxu0 %v2365
        %2401 = vmatpush.bf16.msra.mxu0 %v2364
        %2402 = vmatpush.bf16.msra.mxu0 %v2363
        %2403 = vmatmul.bf16.gmra.mxu0 %v2261
        %v2404 = vpop.f32.mrf.mxu0
        %v2405 = vadd.f32 %v2297, %v2404
        %v2406 = vpop.f32.mrf.mxu0
        %2407 = vdwg.mxu0
        %2408 = vmatpush.bf16.msra.mxu0 %v2378
        %2409 = vmatpush.bf16.msra.mxu0 %v2377
        %2410 = vmatpush.bf16.msra.mxu0 %v2376
        %2411 = vmatpush.bf16.msra.mxu0 %v2375
        %2412 = vmatpush.bf16.msra.mxu0 %v2374
        %2413 = vmatpush.bf16.msra.mxu0 %v2373
        %2414 = vmatpush.bf16.msra.mxu0 %v2372
        %2415 = vmatpush.bf16.msra.mxu0 %v2371
        %2416 = vmatmul.bf16.gmra.mxu0 %v2262
        %v2417 = vpop.f32.mrf.mxu0
        %v2418 = vadd.f32 %v2405, %v2417
        %v2419 = vpop.f32.mrf.mxu0
        %2420 = vdwg.mxu0
        %v2421 = vadd.f32 %v2097, %v2418
        %v2422 = vpack.c.bf16 %v2421, %v2421
        %2423 = vst [vmem:[%s905] sm:$0xf] %v2422
        %s2424 = sand.u32 %s510, 1
        %s2425 = scalar_lea.sflag [#allocation4], %s2424
        %s2426 = sand.u32 %s510, 1
        %s2427 = smul.addr %s2426, 4
        %s2428 = scalar_lea.vmem [#allocation23], %s2427
        // Predicated region
        $region157: #{tpu_custom_call.1} parent=103 // pred_check
          %p2429 = pneg %p520
        $region158: #{tpu_custom_call.1} parent=103 // pred_check_branch
          %2431 = sbr.rel (%p2429) target = $region160
        $region159: #{tpu_custom_call.1} parent=103 // pred_region
          %2433 = vsyncadd %s2425, 0
          %s2434 = smul.addr %s46, 4
          %s2435 = scalar_lea.hbm %s21, %s2434
          %s2437 = sshll.u32 %s2428, 4
          %s2438 = int_to_ptr.vmem [resolvable:$true] %s2437
          %s2439 = sshll.u32 %s2435, 4
          %s2440 = int_to_ptr.hbm [resolvable:$true] %s2439
          %2442 = dma.vmem_to_hbm [thread:$0]  %s2438, 64, %s2440, %s2425
        $region160: #{tpu_custom_call.1} parent=103 // pred_fallthru
          _
      $region104: #{tpu_custom_call.1} parent=5 // pred_fallthru
        _
      %p2443 = scmp.le.s32.totalorder 2, %s41
      // Predicated region
      $region161: #{tpu_custom_call.1} parent=5 // pred_check
        %p2444 = pneg %p2443
      $region162: #{tpu_custom_call.1} parent=5 // pred_check_branch
        %2446 = sbr.rel (%p2444) target = $region164
      $region163: #{tpu_custom_call.1} parent=5 // pred_region
        %s2447 = ssub.s32 %s41, 2
        // Predicated region
        $region165: #{tpu_custom_call.1} parent=163 // pred_check
          %p2448 = pneg %p526
        $region166: #{tpu_custom_call.1} parent=163 // pred_check_branch
          %2450 = sbr.rel (%p2448) target = $region168
        $region167: #{tpu_custom_call.1} parent=163 // pred_region
          %s2451 = sand.u32 %s511, 1
          %s2452 = scalar_lea.sflag [#allocation4], %s2451
          %s2453 = sand.u32 %s511, 1
          %s2454 = smul.addr %s2453, 4
          %s2455 = scalar_lea.vmem [#allocation23], %s2454
          %2457 = dma.done %s2452, 64
        $region168: #{tpu_custom_call.1} parent=163 // pred_fallthru
          _
      $region164: #{tpu_custom_call.1} parent=5 // pred_fallthru
        _
    $region6: #{tpu_custom_call.1} parent=1 // loop_footer
      %s45 = sadd.s32 1, %s41
    $region7: #{tpu_custom_call.1} parent=1 // loop_footer_branch
      %40 = sbr.rel target = $region3
    $region8: #{tpu_custom_call.1} parent=1 // loop_exit
      _
    %2458 = vsyncpa [#allocation3], 1
    %s2459 = scalar_lea.sflag [#allocation3], 1
    %2460 = vsyncpa %s2459, 1
    %2461 = vsyncpa [#allocation6], 1
    %s2462 = scalar_lea.sflag [#allocation6], 1
    %2463 = vsyncpa %s2462, 1
    %2464 = vsyncpa [#allocation9], 1
    %2465 = vsyncpa [#allocation12], 1
    %2466 = vsyncpa [#allocation15], 1
    %2467 = vsyncpa [#allocation18], 1
    %2468 = vsyncpa [#allocation21], 1
    %2469 = vsyncpa [#allocation4], 1
    %s2470 = scalar_lea.sflag [#allocation4], 1
    %2471 = vsyncpa %s2470, 1

</llo_original>
